<compile_context>
chip_gen: v7x
topology: tpu7x:2x2x1
jax: 0.10.0
libtpu: 0.0.40
codegen_flags: <defaults>
</compile_context>

<pallas_src>
import functools

import jax
import jax.numpy as jnp
from jax.experimental import pallas as pl
from jax.experimental.pallas import tpu as pltpu  # noqa: F401


# Bias-table row layout (per layer): one (16, W) f32 slab, W = roundup(max(3D,H),128).
_ROW_B_QKV, _ROW_B_CKV, _ROW_B_FF1 = 0, 1, 2
_ROW_B_SO, _ROW_B_CQ, _ROW_B_CO, _ROW_B_FF2 = 3, 4, 5, 6
_ROW_LN1_G, _ROW_LN1_B, _ROW_LN2_G, _ROW_LN2_B = 7, 8, 9, 10
_N_BIAS_ROWS = 16


# ----------------------------- shared math -----------------------------------
# Used both inside the Pallas kernel and by the pure-JAX reference, so the two
# paths compute exactly the same formula.

def _layernorm(x, g, b, eps=1e-5):
    mu = jnp.mean(x, axis=-1, keepdims=True)
    xc = x - mu
    var = jnp.mean(xc * xc, axis=-1, keepdims=True)
    return xc * jax.lax.rsqrt(var + eps) * g + b


def _activation(x, activation):
    if activation == "relu":
        return jnp.maximum(x, 0.0)
    elif activation == "gelu":  # exact (erf) GELU, like nn.GELU() default
        return 0.5 * x * (1.0 + jax.lax.erf(x * (1.0 / jnp.sqrt(2.0))))
    else:
        raise ValueError("Invalid activation function. Choose 'relu' or 'gelu'.")


def _proj(x, w, b=None):
    """(..., Din) @ (Din, Dout) as one 2-D MXU matmul (batch dims merged;
    S == 8 sublanes so the merge is tile-aligned and free)."""
    lead = x.shape[:-1]
    y = jnp.dot(x.reshape(-1, x.shape[-1]), w, preferred_element_type=jnp.float32)
    if b is not None:
        y = y + b
    return y.reshape(*lead, w.shape[-1])


def _mha(q, k, v, w_o, b_o, mask, n_head):
    """Multi-head scaled-dot-product attention on batched (B, S, D) operands.

    Per-head scores / softmax / PV (static tiny loop), then a lane concat of the
    head outputs and ONE output projection matmul.
    """
    d = q.shape[-1]
    dh = d // n_head
    q = q * (1.0 / (dh ** 0.5))          # fold 1/sqrt(dh) into q once
    heads = []
    for h_idx in range(n_head):          # static loop (n_head = 4)
        sl = slice(h_idx * dh, (h_idx + 1) * dh)
        s = jnp.einsum('bqd,bkd->bqk', q[..., sl], k[..., sl],
                       preferred_element_type=jnp.float32)
        if mask is not None:
            s = s + mask
        s = s - jnp.max(s, axis=-1, keepdims=True)
        p = jnp.exp(s)
        p = p / jnp.sum(p, axis=-1, keepdims=True)   # exact divide (correctness)
        heads.append(jnp.einsum('bqk,bkd->bqd', p, v[..., sl],
                                preferred_element_type=jnp.float32))
    o = jnp.concatenate(heads, axis=-1)              # (B, S, D) lane concat
    return _proj(o, w_o, b_o)                        # one (B*S,D)x(D,D) matmul


def _decoder_layer_math(h, e, mask, p, n_head, activation):
    """One decoder block on batched (B, S, D) / (B, Se, D) operands."""
    d = h.shape[-1]

    # masked multi-head self-attention (fused QKV) + residual + LayerNorm
    qkv = _proj(h, p['w_qkv'], p['b_qkv'])                    # (B, S, 3D)
    q, k, v = qkv[..., :d], qkv[..., d:2 * d], qkv[..., 2 * d:]
    h = _layernorm(h + _mha(q, k, v, p['w_so'], p['b_so'], mask, n_head),
                   p['ln1_g'], p['ln1_b'])

    # cross attention over encoder output (fused KV) + residual + same LayerNorm
    q = _proj(h, p['w_cq'], p['b_cq'])                        # (B, S, D)
    kv = _proj(e, p['w_ckv'], p['b_ckv'])                     # (B, Se, 2D)
    k, v = kv[..., :d], kv[..., d:]
    h = _layernorm(h + _mha(q, k, v, p['w_co'], p['b_co'], None, n_head),
                   p['ln1_g'], p['ln1_b'])

    # feed-forward (dropout = identity, eval mode) + residual + LayerNorm2
    ff = _proj(_activation(_proj(h, p['w_ff1'], p['b_ff1']), activation),
               p['w_ff2'], p['b_ff2'])
    h = _layernorm(h + ff, p['ln2_g'], p['ln2_b'])
    return h


# ----------------------------- Pallas kernel ---------------------------------

def _fused_decoder_kernel(mask_ref, x_ref, e_ref, w_qkv_ref, w_ckv_ref,
                          w_dd_ref, w_ff1_ref, w_ff2_ref, bias_ref, out_ref,
                          *, n_layers, n_head, activation, d_model, n_hidden):
    h = x_ref[...].astype(jnp.float32)        # (B, S, D) running activation
    e = e_ref[...].astype(jnp.float32)        # (B, Se, D) loaded/cast once
    mask = mask_ref[...]                      # (S, S), built once in wrapper
    d, hd = d_model, n_hidden

    for l in range(n_layers):                 # unrolled: n_iter is small
        bt = bias_ref[l]                      # (16, W) packed biases / LN params
        prm = dict(
            w_qkv=w_qkv_ref[l],  b_qkv=bt[_ROW_B_QKV, :3 * d],
            w_ckv=w_ckv_ref[l],  b_ckv=bt[_ROW_B_CKV, :2 * d],
            w_so=w_dd_ref[l, 0], b_so=bt[_ROW_B_SO, :d],
            w_cq=w_dd_ref[l, 1], b_cq=bt[_ROW_B_CQ, :d],
            w_co=w_dd_ref[l, 2], b_co=bt[_ROW_B_CO, :d],
            w_ff1=w_ff1_ref[l],  b_ff1=bt[_ROW_B_FF1, :hd],
            w_ff2=w_ff2_ref[l],  b_ff2=bt[_ROW_B_FF2, :d],
            ln1_g=bt[_ROW_LN1_G, :d], ln1_b=bt[_ROW_LN1_B, :d],
            ln2_g=bt[_ROW_LN2_G, :d], ln2_b=bt[_ROW_LN2_B, :d],
        )
        h = _decoder_layer_math(h, e, mask, prm, n_head, activation)

    out_ref[...] = h.astype(out_ref.dtype)    # single store at the end


def _build_mask(s):
    # mask = torch.triu(torch.ones(S, S), diagonal=-1) * -999
    row = jnp.arange(s, dtype=jnp.int32)[:, None]
    col = jnp.arange(s, dtype=jnp.int32)[None, :]
    return jnp.where(col >= row - 1, jnp.float32(-999.0), jnp.float32(0.0))


def _bias_table(p, d, h):
    """Pack all per-layer 1-D biases / LN params into one lane-dense (16, W) slab."""
    width = -(-max(3 * d, h) // 128) * 128

    def row(v):
        return jnp.pad(v.astype(jnp.float32), (0, width - v.shape[0]))

    rows = [jnp.zeros((width,), jnp.float32)] * _N_BIAS_ROWS
    rows[_ROW_B_QKV] = row(p['b_qkv']); rows[_ROW_B_CKV] = row(p['b_ckv'])
    rows[_ROW_B_FF1] = row(p['b_ff1'])
    rows[_ROW_B_SO] = row(p['b_so']);   rows[_ROW_B_CQ] = row(p['b_cq'])
    rows[_ROW_B_CO] = row(p['b_co']);   rows[_ROW_B_FF2] = row(p['b_ff2'])
    rows[_ROW_LN1_G] = row(p['ln1_g']); rows[_ROW_LN1_B] = row(p['ln1_b'])
    rows[_ROW_LN2_G] = row(p['ln2_g']); rows[_ROW_LN2_B] = row(p['ln2_b'])
    return jnp.stack(rows)                       # (16, W)


def _stack_for_kernel(layer_params, d, h):
    return dict(
        w_qkv=jnp.stack([p['w_qkv'] for p in layer_params]),          # (L, D, 3D)
        w_ckv=jnp.stack([p['w_ckv'] for p in layer_params]),          # (L, D, 2D)
        w_dd=jnp.stack([jnp.stack([p['w_so'], p['w_cq'], p['w_co']])
                        for p in layer_params]),                      # (L, 3, D, D)
        w_ff1=jnp.stack([p['w_ff1'] for p in layer_params]),          # (L, D, H)
        w_ff2=jnp.stack([p['w_ff2'] for p in layer_params]),          # (L, H, D)
        bias_tab=jnp.stack([_bias_table(p, d, h) for p in layer_params]),  # (L,16,W)
    )


def multiple_decoder_pallas(x, e, layer_params, n_head, activation):
    b, s, d = x.shape
    n_layers = len(layer_params)
    n_hidden = layer_params[0]['w_ff1'].shape[-1]
    stk = _stack_for_kernel(layer_params, d, n_hidden)
    mask = _build_mask(s)

    kernel = functools.partial(_fused_decoder_kernel, n_layers=n_layers,
                               n_head=n_head, activation=activation,
                               d_model=d, n_hidden=n_hidden)

    # No grid: all operands (~100 KB of stacked weights at these sizes) fit in
    # VMEM as single full-array blocks, so the whole decoder stack runs in one
    # kernel invocation with zero per-grid-step pipeline/DMA bookkeeping.
    # If d_model/n_iter ever grow so the weights exceed a few MiB, switch back
    # to a grid=(n_layers,) layer-streaming form with (l, ...) index_maps.
    return pl.pallas_call(
        kernel,
        out_shape=jax.ShapeDtypeStruct((b, s, d), x.dtype),
    )(mask, x, e, stk['w_qkv'], stk['w_ckv'], stk['w_dd'],
      stk['w_ff1'], stk['w_ff2'], stk['bias_tab'])


# --------------------------- pure-JAX reference -------------------------------

def multiple_decoder_ref(x, e, layer_params, n_head, activation):
    mask = _build_mask(x.shape[1])
    h = x
    for p in layer_params:
        h = _decoder_layer_math(h, e, mask, p, n_head, activation)
    return h


# ------------------------------ parameters -----------------------------------

def init_layer_params(key, d_model, n_hidden):
    def linear(k, fan_in, fan_out):
        k1, k2 = jax.random.split(k)
        w = jax.random.normal(k1, (fan_in, fan_out), jnp.float32) / jnp.sqrt(fan_in)
        bias = 0.01 * jax.random.normal(k2, (fan_out,), jnp.float32)
        return w, bias

    keys = jax.random.split(key, 10)
    sq_w, sq_b = linear(keys[0], d_model, d_model)
    sk_w, sk_b = linear(keys[1], d_model, d_model)
    sv_w, sv_b = linear(keys[2], d_model, d_model)
    so_w, so_b = linear(keys[3], d_model, d_model)
    cq_w, cq_b = linear(keys[4], d_model, d_model)
    ck_w, ck_b = linear(keys[5], d_model, d_model)
    cv_w, cv_b = linear(keys[6], d_model, d_model)
    co_w, co_b = linear(keys[7], d_model, d_model)
    ff1_w, ff1_b = linear(keys[8], d_model, n_hidden)
    ff2_w, ff2_b = linear(keys[9], n_hidden, d_model)

    return dict(
        w_qkv=jnp.concatenate([sq_w, sk_w, sv_w], axis=1),   # (D, 3D) fused self QKV
        b_qkv=jnp.concatenate([sq_b, sk_b, sv_b], axis=0),   # (3D,)
        w_ckv=jnp.concatenate([ck_w, cv_w], axis=1),          # (D, 2D) fused cross KV
        b_ckv=jnp.concatenate([ck_b, cv_b], axis=0),          # (2D,)
        w_so=so_w, b_so=so_b,
        w_cq=cq_w, b_cq=cq_b,
        w_co=co_w, b_co=co_b,
        w_ff1=ff1_w, b_ff1=ff1_b,
        w_ff2=ff2_w, b_ff2=ff2_b,
        ln1_g=jnp.ones((d_model,), jnp.float32),
        ln1_b=jnp.zeros((d_model,), jnp.float32),
        ln2_g=jnp.ones((d_model,), jnp.float32),
        ln2_b=jnp.zeros((d_model,), jnp.float32),
    )


# --------------------------------- main ---------------------------------------

if __name__ == "__main__":
    # cfg = {'d_model': 32,
    #        'decoder_params': {'n_hidden': 64, 'activation': 'relu',
    #                           'n_iter': 2, 'n_head': 4}}
    d_model = 32
    n_hidden = 64
    n_head = 4
    n_iter = 2
    activation = "relu"
    batch, seq = 2, 8

    key = jax.random.PRNGKey(0)
    kx, ke, kp = jax.random.split(key, 3)
    x = jax.random.normal(kx, (batch, seq, d_model), jnp.float32)
    e = jax.random.normal(ke, (batch, seq, d_model), jnp.float32)

    layer_keys = jax.random.split(kp, n_iter)
    layer_params = [init_layer_params(k, d_model, n_hidden) for k in layer_keys]

    out = multiple_decoder_pallas(x, e, layer_params, n_head, activation)
    out = jax.block_until_ready(out)

    ref = multiple_decoder_ref(x, e, layer_params, n_head, activation)
    ref = jax.block_until_ready(ref)

    assert out.shape == (batch, seq, d_model)
    assert jnp.allclose(out, ref, rtol=2e-3, atol=2e-3), (
        f"max abs diff {jnp.max(jnp.abs(out - ref))}")
    print("KERNEL_OK")
</pallas_src>

<mosaic_0001>
module attributes {stable_mosaic.version = 11 : i64} {
  func.func @_fused_decoder_kernel(%arg0: memref<8x8xf32, #tpu.memory_space<vmem>>, %arg1: memref<2x8x32xf32, #tpu.memory_space<vmem>>, %arg2: memref<2x8x32xf32, #tpu.memory_space<vmem>>, %arg3: memref<2x32x96xf32, #tpu.memory_space<vmem>>, %arg4: memref<2x32x64xf32, #tpu.memory_space<vmem>>, %arg5: memref<2x3x32x32xf32, #tpu.memory_space<vmem>>, %arg6: memref<2x32x64xf32, #tpu.memory_space<vmem>>, %arg7: memref<2x64x32xf32, #tpu.memory_space<vmem>>, %arg8: memref<2x16x128xf32, #tpu.memory_space<vmem>>, %arg9: memref<2x8x32xf32, #tpu.memory_space<vmem>>) attributes {dimension_semantics = [], scalar_prefetch = 0 : i64, scratch_operands = 0 : i64, tpu.core_type = #tpu.core_type<tc>} {
    %c0 = arith.constant 0 : index
    %c0_0 = arith.constant 0 : index
    %c0_1 = arith.constant 0 : index
    %0 = vector.load %arg1[%c0, %c0_0, %c0_1] : memref<2x8x32xf32, #tpu.memory_space<vmem>>, vector<2x8x32xf32>
    %c0_2 = arith.constant 0 : index
    %c0_3 = arith.constant 0 : index
    %c0_4 = arith.constant 0 : index
    %1 = vector.load %arg2[%c0_2, %c0_3, %c0_4] : memref<2x8x32xf32, #tpu.memory_space<vmem>>, vector<2x8x32xf32>
    %c0_5 = arith.constant 0 : index
    %c0_6 = arith.constant 0 : index
    %2 = vector.load %arg0[%c0_5, %c0_6] : memref<8x8xf32, #tpu.memory_space<vmem>>, vector<8x8xf32>
    %c0_7 = arith.constant 0 : index
    %c0_8 = arith.constant 0 : index
    %c0_9 = arith.constant 0 : index
    %3 = vector.load %arg8[%c0_7, %c0_8, %c0_9] : memref<2x16x128xf32, #tpu.memory_space<vmem>>, vector<1x16x128xf32>
    %4 = vector.shape_cast %3 : vector<1x16x128xf32> to vector<16x128xf32>
    %c0_10 = arith.constant 0 : index
    %c0_11 = arith.constant 0 : index
    %c0_12 = arith.constant 0 : index
    %5 = vector.load %arg3[%c0_10, %c0_11, %c0_12] : memref<2x32x96xf32, #tpu.memory_space<vmem>>, vector<1x32x96xf32>
    %6 = vector.shape_cast %5 : vector<1x32x96xf32> to vector<32x96xf32>
    %7 = vector.extract_strided_slice %4 {offsets = [0, 0], sizes = [1, 96], strides = [1, 1]} : vector<16x128xf32> to vector<1x96xf32>
    %8 = vector.shape_cast %7 : vector<1x96xf32> to vector<96xf32>
    %c0_13 = arith.constant 0 : index
    %c0_14 = arith.constant 0 : index
    %c0_15 = arith.constant 0 : index
    %9 = vector.load %arg4[%c0_13, %c0_14, %c0_15] : memref<2x32x64xf32, #tpu.memory_space<vmem>>, vector<1x32x64xf32>
    %10 = vector.shape_cast %9 : vector<1x32x64xf32> to vector<32x64xf32>
    %11 = vector.extract_strided_slice %4 {offsets = [1, 0], sizes = [1, 64], strides = [1, 1]} : vector<16x128xf32> to vector<1x64xf32>
    %12 = vector.shape_cast %11 : vector<1x64xf32> to vector<64xf32>
    %c0_16 = arith.constant 0 : index
    %c0_17 = arith.constant 0 : index
    %c0_18 = arith.constant 0 : index
    %c0_19 = arith.constant 0 : index
    %13 = vector.load %arg5[%c0_16, %c0_17, %c0_18, %c0_19] : memref<2x3x32x32xf32, #tpu.memory_space<vmem>>, vector<1x1x32x32xf32>
    %14 = vector.shape_cast %13 : vector<1x1x32x32xf32> to vector<32x32xf32>
    %15 = vector.extract_strided_slice %4 {offsets = [3, 0], sizes = [1, 32], strides = [1, 1]} : vector<16x128xf32> to vector<1x32xf32>
    %16 = vector.shape_cast %15 : vector<1x32xf32> to vector<32xf32>
    %c0_20 = arith.constant 0 : index
    %c1 = arith.constant 1 : index
    %c0_21 = arith.constant 0 : index
    %c0_22 = arith.constant 0 : index
    %17 = vector.load %arg5[%c0_20, %c1, %c0_21, %c0_22] : memref<2x3x32x32xf32, #tpu.memory_space<vmem>>, vector<1x1x32x32xf32>
    %18 = vector.shape_cast %17 : vector<1x1x32x32xf32> to vector<32x32xf32>
    %19 = vector.extract_strided_slice %4 {offsets = [4, 0], sizes = [1, 32], strides = [1, 1]} : vector<16x128xf32> to vector<1x32xf32>
    %20 = vector.shape_cast %19 : vector<1x32xf32> to vector<32xf32>
    %c0_23 = arith.constant 0 : index
    %c2 = arith.constant 2 : index
    %c0_24 = arith.constant 0 : index
    %c0_25 = arith.constant 0 : index
    %21 = vector.load %arg5[%c0_23, %c2, %c0_24, %c0_25] : memref<2x3x32x32xf32, #tpu.memory_space<vmem>>, vector<1x1x32x32xf32>
    %22 = vector.shape_cast %21 : vector<1x1x32x32xf32> to vector<32x32xf32>
    %23 = vector.extract_strided_slice %4 {offsets = [5, 0], sizes = [1, 32], strides = [1, 1]} : vector<16x128xf32> to vector<1x32xf32>
    %24 = vector.shape_cast %23 : vector<1x32xf32> to vector<32xf32>
    %c0_26 = arith.constant 0 : index
    %c0_27 = arith.constant 0 : index
    %c0_28 = arith.constant 0 : index
    %25 = vector.load %arg6[%c0_26, %c0_27, %c0_28] : memref<2x32x64xf32, #tpu.memory_space<vmem>>, vector<1x32x64xf32>
    %26 = vector.shape_cast %25 : vector<1x32x64xf32> to vector<32x64xf32>
    %27 = vector.extract_strided_slice %4 {offsets = [2, 0], sizes = [1, 64], strides = [1, 1]} : vector<16x128xf32> to vector<1x64xf32>
    %28 = vector.shape_cast %27 : vector<1x64xf32> to vector<64xf32>
    %c0_29 = arith.constant 0 : index
    %c0_30 = arith.constant 0 : index
    %c0_31 = arith.constant 0 : index
    %29 = vector.load %arg7[%c0_29, %c0_30, %c0_31] : memref<2x64x32xf32, #tpu.memory_space<vmem>>, vector<1x64x32xf32>
    %30 = vector.shape_cast %29 : vector<1x64x32xf32> to vector<64x32xf32>
    %31 = vector.extract_strided_slice %4 {offsets = [6, 0], sizes = [1, 32], strides = [1, 1]} : vector<16x128xf32> to vector<1x32xf32>
    %32 = vector.shape_cast %31 : vector<1x32xf32> to vector<32xf32>
    %33 = vector.extract_strided_slice %4 {offsets = [7, 0], sizes = [1, 32], strides = [1, 1]} : vector<16x128xf32> to vector<1x32xf32>
    %34 = vector.shape_cast %33 : vector<1x32xf32> to vector<32xf32>
    %35 = vector.extract_strided_slice %4 {offsets = [8, 0], sizes = [1, 32], strides = [1, 1]} : vector<16x128xf32> to vector<1x32xf32>
    %36 = vector.shape_cast %35 : vector<1x32xf32> to vector<32xf32>
    %37 = vector.extract_strided_slice %4 {offsets = [9, 0], sizes = [1, 32], strides = [1, 1]} : vector<16x128xf32> to vector<1x32xf32>
    %38 = vector.shape_cast %37 : vector<1x32xf32> to vector<32xf32>
    %39 = vector.extract_strided_slice %4 {offsets = [10, 0], sizes = [1, 32], strides = [1, 1]} : vector<16x128xf32> to vector<1x32xf32>
    %40 = vector.shape_cast %39 : vector<1x32xf32> to vector<32xf32>
    %41 = vector.shape_cast %0 : vector<2x8x32xf32> to vector<16x32xf32>
    %cst = arith.constant dense<0.000000e+00> : vector<16x96xf32>
    %42 = tpu.matmul %41, %6, %cst {dimension_numbers = #tpu.dot_dimension_numbers<[1], [0], [0], [1], [0, 0, 1, 1], [], []>} : vector<16x32xf32>, vector<32x96xf32>, vector<16x96xf32> -> vector<16x96xf32>
    %43 = vector.shape_cast %8 : vector<96xf32> to vector<1x96xf32>
    %44 = vector.broadcast %43 : vector<1x96xf32> to vector<16x96xf32>
    %45 = arith.addf %42, %44 : vector<16x96xf32>
    %46 = vector.shape_cast %45 : vector<16x96xf32> to vector<2x8x96xf32>
    %47 = vector.extract_strided_slice %46 {offsets = [0, 0, 0], sizes = [2, 8, 32], strides = [1, 1, 1]} : vector<2x8x96xf32> to vector<2x8x32xf32>
    %48 = vector.extract_strided_slice %46 {offsets = [0, 0, 32], sizes = [2, 8, 32], strides = [1, 1, 1]} : vector<2x8x96xf32> to vector<2x8x32xf32>
    %49 = vector.extract_strided_slice %46 {offsets = [0, 0, 64], sizes = [2, 8, 32], strides = [1, 1, 1]} : vector<2x8x96xf32> to vector<2x8x32xf32>
    %cst_32 = arith.constant 0.353553385 : f32
    %50 = vector.broadcast %cst_32 : f32 to vector<2x8x32xf32>
    %51 = arith.mulf %47, %50 : vector<2x8x32xf32>
    %52 = vector.extract_strided_slice %51 {offsets = [0, 0, 0], sizes = [2, 8, 8], strides = [1, 1, 1]} : vector<2x8x32xf32> to vector<2x8x8xf32>
    %53 = vector.extract_strided_slice %48 {offsets = [0, 0, 0], sizes = [2, 8, 8], strides = [1, 1, 1]} : vector<2x8x32xf32> to vector<2x8x8xf32>
    "tpu.trace_start"() <{level = 10 : i32, message = "bqd,bkd->bqk"}> : () -> ()
    %cst_33 = arith.constant dense<0.000000e+00> : vector<2x8x8xf32>
    %54 = tpu.matmul %52, %53, %cst_33 {dimension_numbers = #tpu.dot_dimension_numbers<[2], [2], [1], [1], [0, 0, 0, 1, 1, 1], [0], [0]>} : vector<2x8x8xf32>, vector<2x8x8xf32>, vector<2x8x8xf32> -> vector<2x8x8xf32>
    "tpu.trace_stop"() : () -> ()
    %55 = vector.shape_cast %2 : vector<8x8xf32> to vector<1x8x8xf32>
    %56 = vector.broadcast %55 : vector<1x8x8xf32> to vector<2x8x8xf32>
    %57 = arith.addf %54, %56 : vector<2x8x8xf32>
    %cst_34 = arith.constant dense<0xFF800000> : vector<2x8xf32>
    %58 = vector.multi_reduction <maximumf>, %57, %cst_34 [2] : vector<2x8x8xf32> to vector<2x8xf32>
    %59 = vector.shape_cast %58 : vector<2x8xf32> to vector<2x8x1xf32>
    %60 = vector.broadcast %59 : vector<2x8x1xf32> to vector<2x8x8xf32>
    %61 = arith.subf %57, %60 : vector<2x8x8xf32>
    %62 = math.exp %61 : vector<2x8x8xf32>
    %cst_35 = arith.constant dense<0.000000e+00> : vector<2x8xf32>
    %63 = vector.multi_reduction <add>, %62, %cst_35 [2] : vector<2x8x8xf32> to vector<2x8xf32>
    %64 = vector.shape_cast %63 : vector<2x8xf32> to vector<2x8x1xf32>
    %65 = vector.broadcast %64 : vector<2x8x1xf32> to vector<2x8x8xf32>
    %66 = arith.divf %62, %65 : vector<2x8x8xf32>
    %67 = vector.extract_strided_slice %49 {offsets = [0, 0, 0], sizes = [2, 8, 8], strides = [1, 1, 1]} : vector<2x8x32xf32> to vector<2x8x8xf32>
    "tpu.trace_start"() <{level = 10 : i32, message = "bqk,bkd->bqd"}> : () -> ()
    %cst_36 = arith.constant dense<0.000000e+00> : vector<2x8x8xf32>
    %68 = tpu.matmul %66, %67, %cst_36 {dimension_numbers = #tpu.dot_dimension_numbers<[2], [1], [1], [2], [0, 0, 0, 1, 1, 2], [0], [0]>} : vector<2x8x8xf32>, vector<2x8x8xf32>, vector<2x8x8xf32> -> vector<2x8x8xf32>
    "tpu.trace_stop"() : () -> ()
    %69 = vector.extract_strided_slice %51 {offsets = [0, 0, 8], sizes = [2, 8, 8], strides = [1, 1, 1]} : vector<2x8x32xf32> to vector<2x8x8xf32>
    %70 = vector.extract_strided_slice %48 {offsets = [0, 0, 8], sizes = [2, 8, 8], strides = [1, 1, 1]} : vector<2x8x32xf32> to vector<2x8x8xf32>
    "tpu.trace_start"() <{level = 10 : i32, message = "bqd,bkd->bqk"}> : () -> ()
    %cst_37 = arith.constant dense<0.000000e+00> : vector<2x8x8xf32>
    %71 = tpu.matmul %69, %70, %cst_37 {dimension_numbers = #tpu.dot_dimension_numbers<[2], [2], [1], [1], [0, 0, 0, 1, 1, 1], [0], [0]>} : vector<2x8x8xf32>, vector<2x8x8xf32>, vector<2x8x8xf32> -> vector<2x8x8xf32>
    "tpu.trace_stop"() : () -> ()
    %72 = vector.shape_cast %2 : vector<8x8xf32> to vector<1x8x8xf32>
    %73 = vector.broadcast %72 : vector<1x8x8xf32> to vector<2x8x8xf32>
    %74 = arith.addf %71, %73 : vector<2x8x8xf32>
    %cst_38 = arith.constant dense<0xFF800000> : vector<2x8xf32>
    %75 = vector.multi_reduction <maximumf>, %74, %cst_38 [2] : vector<2x8x8xf32> to vector<2x8xf32>
    %76 = vector.shape_cast %75 : vector<2x8xf32> to vector<2x8x1xf32>
    %77 = vector.broadcast %76 : vector<2x8x1xf32> to vector<2x8x8xf32>
    %78 = arith.subf %74, %77 : vector<2x8x8xf32>
    %79 = math.exp %78 : vector<2x8x8xf32>
    %cst_39 = arith.constant dense<0.000000e+00> : vector<2x8xf32>
    %80 = vector.multi_reduction <add>, %79, %cst_39 [2] : vector<2x8x8xf32> to vector<2x8xf32>
    %81 = vector.shape_cast %80 : vector<2x8xf32> to vector<2x8x1xf32>
    %82 = vector.broadcast %81 : vector<2x8x1xf32> to vector<2x8x8xf32>
    %83 = arith.divf %79, %82 : vector<2x8x8xf32>
    %84 = vector.extract_strided_slice %49 {offsets = [0, 0, 8], sizes = [2, 8, 8], strides = [1, 1, 1]} : vector<2x8x32xf32> to vector<2x8x8xf32>
    "tpu.trace_start"() <{level = 10 : i32, message = "bqk,bkd->bqd"}> : () -> ()
    %cst_40 = arith.constant dense<0.000000e+00> : vector<2x8x8xf32>
    %85 = tpu.matmul %83, %84, %cst_40 {dimension_numbers = #tpu.dot_dimension_numbers<[2], [1], [1], [2], [0, 0, 0, 1, 1, 2], [0], [0]>} : vector<2x8x8xf32>, vector<2x8x8xf32>, vector<2x8x8xf32> -> vector<2x8x8xf32>
    "tpu.trace_stop"() : () -> ()
    %86 = vector.extract_strided_slice %51 {offsets = [0, 0, 16], sizes = [2, 8, 8], strides = [1, 1, 1]} : vector<2x8x32xf32> to vector<2x8x8xf32>
    %87 = vector.extract_strided_slice %48 {offsets = [0, 0, 16], sizes = [2, 8, 8], strides = [1, 1, 1]} : vector<2x8x32xf32> to vector<2x8x8xf32>
    "tpu.trace_start"() <{level = 10 : i32, message = "bqd,bkd->bqk"}> : () -> ()
    %cst_41 = arith.constant dense<0.000000e+00> : vector<2x8x8xf32>
    %88 = tpu.matmul %86, %87, %cst_41 {dimension_numbers = #tpu.dot_dimension_numbers<[2], [2], [1], [1], [0, 0, 0, 1, 1, 1], [0], [0]>} : vector<2x8x8xf32>, vector<2x8x8xf32>, vector<2x8x8xf32> -> vector<2x8x8xf32>
    "tpu.trace_stop"() : () -> ()
    %89 = vector.shape_cast %2 : vector<8x8xf32> to vector<1x8x8xf32>
    %90 = vector.broadcast %89 : vector<1x8x8xf32> to vector<2x8x8xf32>
    %91 = arith.addf %88, %90 : vector<2x8x8xf32>
    %cst_42 = arith.constant dense<0xFF800000> : vector<2x8xf32>
    %92 = vector.multi_reduction <maximumf>, %91, %cst_42 [2] : vector<2x8x8xf32> to vector<2x8xf32>
    %93 = vector.shape_cast %92 : vector<2x8xf32> to vector<2x8x1xf32>
    %94 = vector.broadcast %93 : vector<2x8x1xf32> to vector<2x8x8xf32>
    %95 = arith.subf %91, %94 : vector<2x8x8xf32>
    %96 = math.exp %95 : vector<2x8x8xf32>
    %cst_43 = arith.constant dense<0.000000e+00> : vector<2x8xf32>
    %97 = vector.multi_reduction <add>, %96, %cst_43 [2] : vector<2x8x8xf32> to vector<2x8xf32>
    %98 = vector.shape_cast %97 : vector<2x8xf32> to vector<2x8x1xf32>
    %99 = vector.broadcast %98 : vector<2x8x1xf32> to vector<2x8x8xf32>
    %100 = arith.divf %96, %99 : vector<2x8x8xf32>
    %101 = vector.extract_strided_slice %49 {offsets = [0, 0, 16], sizes = [2, 8, 8], strides = [1, 1, 1]} : vector<2x8x32xf32> to vector<2x8x8xf32>
    "tpu.trace_start"() <{level = 10 : i32, message = "bqk,bkd->bqd"}> : () -> ()
    %cst_44 = arith.constant dense<0.000000e+00> : vector<2x8x8xf32>
    %102 = tpu.matmul %100, %101, %cst_44 {dimension_numbers = #tpu.dot_dimension_numbers<[2], [1], [1], [2], [0, 0, 0, 1, 1, 2], [0], [0]>} : vector<2x8x8xf32>, vector<2x8x8xf32>, vector<2x8x8xf32> -> vector<2x8x8xf32>
    "tpu.trace_stop"() : () -> ()
    %103 = vector.extract_strided_slice %51 {offsets = [0, 0, 24], sizes = [2, 8, 8], strides = [1, 1, 1]} : vector<2x8x32xf32> to vector<2x8x8xf32>
    %104 = vector.extract_strided_slice %48 {offsets = [0, 0, 24], sizes = [2, 8, 8], strides = [1, 1, 1]} : vector<2x8x32xf32> to vector<2x8x8xf32>
    "tpu.trace_start"() <{level = 10 : i32, message = "bqd,bkd->bqk"}> : () -> ()
    %cst_45 = arith.constant dense<0.000000e+00> : vector<2x8x8xf32>
    %105 = tpu.matmul %103, %104, %cst_45 {dimension_numbers = #tpu.dot_dimension_numbers<[2], [2], [1], [1], [0, 0, 0, 1, 1, 1], [0], [0]>} : vector<2x8x8xf32>, vector<2x8x8xf32>, vector<2x8x8xf32> -> vector<2x8x8xf32>
    "tpu.trace_stop"() : () -> ()
    %106 = vector.shape_cast %2 : vector<8x8xf32> to vector<1x8x8xf32>
    %107 = vector.broadcast %106 : vector<1x8x8xf32> to vector<2x8x8xf32>
    %108 = arith.addf %105, %107 : vector<2x8x8xf32>
    %cst_46 = arith.constant dense<0xFF800000> : vector<2x8xf32>
    %109 = vector.multi_reduction <maximumf>, %108, %cst_46 [2] : vector<2x8x8xf32> to vector<2x8xf32>
    %110 = vector.shape_cast %109 : vector<2x8xf32> to vector<2x8x1xf32>
    %111 = vector.broadcast %110 : vector<2x8x1xf32> to vector<2x8x8xf32>
    %112 = arith.subf %108, %111 : vector<2x8x8xf32>
    %113 = math.exp %112 : vector<2x8x8xf32>
    %cst_47 = arith.constant dense<0.000000e+00> : vector<2x8xf32>
    %114 = vector.multi_reduction <add>, %113, %cst_47 [2] : vector<2x8x8xf32> to vector<2x8xf32>
    %115 = vector.shape_cast %114 : vector<2x8xf32> to vector<2x8x1xf32>
    %116 = vector.broadcast %115 : vector<2x8x1xf32> to vector<2x8x8xf32>
    %117 = arith.divf %113, %116 : vector<2x8x8xf32>
    %118 = vector.extract_strided_slice %49 {offsets = [0, 0, 24], sizes = [2, 8, 8], strides = [1, 1, 1]} : vector<2x8x32xf32> to vector<2x8x8xf32>
    "tpu.trace_start"() <{level = 10 : i32, message = "bqk,bkd->bqd"}> : () -> ()
    %cst_48 = arith.constant dense<0.000000e+00> : vector<2x8x8xf32>
    %119 = tpu.matmul %117, %118, %cst_48 {dimension_numbers = #tpu.dot_dimension_numbers<[2], [1], [1], [2], [0, 0, 0, 1, 1, 2], [0], [0]>} : vector<2x8x8xf32>, vector<2x8x8xf32>, vector<2x8x8xf32> -> vector<2x8x8xf32>
    "tpu.trace_stop"() : () -> ()
    %120 = tpu.concatenate %68, %85, %102, %119 in 2 : vector<2x8x8xf32>, vector<2x8x8xf32>, vector<2x8x8xf32>, vector<2x8x8xf32> -> vector<2x8x32xf32>
    %121 = vector.shape_cast %120 : vector<2x8x32xf32> to vector<16x32xf32>
    %cst_49 = arith.constant dense<0.000000e+00> : vector<16x32xf32>
    %122 = tpu.matmul %121, %14, %cst_49 {dimension_numbers = #tpu.dot_dimension_numbers<[1], [0], [0], [1], [0, 0, 1, 1], [], []>} : vector<16x32xf32>, vector<32x32xf32>, vector<16x32xf32> -> vector<16x32xf32>
    %123 = vector.shape_cast %16 : vector<32xf32> to vector<1x32xf32>
    %124 = vector.broadcast %123 : vector<1x32xf32> to vector<16x32xf32>
    %125 = arith.addf %122, %124 : vector<16x32xf32>
    %126 = vector.shape_cast %125 : vector<16x32xf32> to vector<2x8x32xf32>
    %127 = arith.addf %0, %126 : vector<2x8x32xf32>
    %cst_50 = arith.constant dense<0.000000e+00> : vector<2x8xf32>
    %128 = vector.multi_reduction <add>, %127, %cst_50 [2] : vector<2x8x32xf32> to vector<2x8xf32>
    %129 = vector.shape_cast %128 : vector<2x8xf32> to vector<2x8x1xf32>
    %cst_51 = arith.constant 3.200000e+01 : f32
    %130 = vector.broadcast %cst_51 : f32 to vector<2x8x1xf32>
    %131 = arith.divf %129, %130 : vector<2x8x1xf32>
    %132 = vector.broadcast %131 : vector<2x8x1xf32> to vector<2x8x32xf32>
    %133 = arith.subf %127, %132 : vector<2x8x32xf32>
    %134 = arith.mulf %133, %133 : vector<2x8x32xf32>
    %cst_52 = arith.constant dense<0.000000e+00> : vector<2x8xf32>
    %135 = vector.multi_reduction <add>, %134, %cst_52 [2] : vector<2x8x32xf32> to vector<2x8xf32>
    %136 = vector.shape_cast %135 : vector<2x8xf32> to vector<2x8x1xf32>
    %cst_53 = arith.constant 3.200000e+01 : f32
    %137 = vector.broadcast %cst_53 : f32 to vector<2x8x1xf32>
    %138 = arith.divf %136, %137 : vector<2x8x1xf32>
    %cst_54 = arith.constant 9.99999974E-6 : f32
    %139 = vector.broadcast %cst_54 : f32 to vector<2x8x1xf32>
    %140 = arith.addf %138, %139 : vector<2x8x1xf32>
    %141 = math.rsqrt %140 : vector<2x8x1xf32>
    %142 = vector.broadcast %141 : vector<2x8x1xf32> to vector<2x8x32xf32>
    %143 = arith.mulf %133, %142 : vector<2x8x32xf32>
    %144 = vector.shape_cast %34 : vector<32xf32> to vector<1x1x32xf32>
    %145 = vector.broadcast %144 : vector<1x1x32xf32> to vector<2x8x32xf32>
    %146 = arith.mulf %143, %145 : vector<2x8x32xf32>
    %147 = vector.shape_cast %36 : vector<32xf32> to vector<1x1x32xf32>
    %148 = vector.broadcast %147 : vector<1x1x32xf32> to vector<2x8x32xf32>
    %149 = arith.addf %146, %148 : vector<2x8x32xf32>
    %150 = vector.shape_cast %149 : vector<2x8x32xf32> to vector<16x32xf32>
    %cst_55 = arith.constant dense<0.000000e+00> : vector<16x32xf32>
    %151 = tpu.matmul %150, %18, %cst_55 {dimension_numbers = #tpu.dot_dimension_numbers<[1], [0], [0], [1], [0, 0, 1, 1], [], []>} : vector<16x32xf32>, vector<32x32xf32>, vector<16x32xf32> -> vector<16x32xf32>
    %152 = vector.shape_cast %20 : vector<32xf32> to vector<1x32xf32>
    %153 = vector.broadcast %152 : vector<1x32xf32> to vector<16x32xf32>
    %154 = arith.addf %151, %153 : vector<16x32xf32>
    %155 = vector.shape_cast %154 : vector<16x32xf32> to vector<2x8x32xf32>
    %156 = vector.shape_cast %1 : vector<2x8x32xf32> to vector<16x32xf32>
    %cst_56 = arith.constant dense<0.000000e+00> : vector<16x64xf32>
    %157 = tpu.matmul %156, %10, %cst_56 {dimension_numbers = #tpu.dot_dimension_numbers<[1], [0], [0], [1], [0, 0, 1, 1], [], []>} : vector<16x32xf32>, vector<32x64xf32>, vector<16x64xf32> -> vector<16x64xf32>
    %158 = vector.shape_cast %12 : vector<64xf32> to vector<1x64xf32>
    %159 = vector.broadcast %158 : vector<1x64xf32> to vector<16x64xf32>
    %160 = arith.addf %157, %159 : vector<16x64xf32>
    %161 = vector.shape_cast %160 : vector<16x64xf32> to vector<2x8x64xf32>
    %162 = vector.extract_strided_slice %161 {offsets = [0, 0, 0], sizes = [2, 8, 32], strides = [1, 1, 1]} : vector<2x8x64xf32> to vector<2x8x32xf32>
    %163 = vector.extract_strided_slice %161 {offsets = [0, 0, 32], sizes = [2, 8, 32], strides = [1, 1, 1]} : vector<2x8x64xf32> to vector<2x8x32xf32>
    %cst_57 = arith.constant 0.353553385 : f32
    %164 = vector.broadcast %cst_57 : f32 to vector<2x8x32xf32>
    %165 = arith.mulf %155, %164 : vector<2x8x32xf32>
    %166 = vector.extract_strided_slice %165 {offsets = [0, 0, 0], sizes = [2, 8, 8], strides = [1, 1, 1]} : vector<2x8x32xf32> to vector<2x8x8xf32>
    %167 = vector.extract_strided_slice %162 {offsets = [0, 0, 0], sizes = [2, 8, 8], strides = [1, 1, 1]} : vector<2x8x32xf32> to vector<2x8x8xf32>
    "tpu.trace_start"() <{level = 10 : i32, message = "bqd,bkd->bqk"}> : () -> ()
    %cst_58 = arith.constant dense<0.000000e+00> : vector<2x8x8xf32>
    %168 = tpu.matmul %166, %167, %cst_58 {dimension_numbers = #tpu.dot_dimension_numbers<[2], [2], [1], [1], [0, 0, 0, 1, 1, 1], [0], [0]>} : vector<2x8x8xf32>, vector<2x8x8xf32>, vector<2x8x8xf32> -> vector<2x8x8xf32>
    "tpu.trace_stop"() : () -> ()
    %cst_59 = arith.constant dense<0xFF800000> : vector<2x8xf32>
    %169 = vector.multi_reduction <maximumf>, %168, %cst_59 [2] : vector<2x8x8xf32> to vector<2x8xf32>
    %170 = vector.shape_cast %169 : vector<2x8xf32> to vector<2x8x1xf32>
    %171 = vector.broadcast %170 : vector<2x8x1xf32> to vector<2x8x8xf32>
    %172 = arith.subf %168, %171 : vector<2x8x8xf32>
    %173 = math.exp %172 : vector<2x8x8xf32>
    %cst_60 = arith.constant dense<0.000000e+00> : vector<2x8xf32>
    %174 = vector.multi_reduction <add>, %173, %cst_60 [2] : vector<2x8x8xf32> to vector<2x8xf32>
    %175 = vector.shape_cast %174 : vector<2x8xf32> to vector<2x8x1xf32>
    %176 = vector.broadcast %175 : vector<2x8x1xf32> to vector<2x8x8xf32>
    %177 = arith.divf %173, %176 : vector<2x8x8xf32>
    %178 = vector.extract_strided_slice %163 {offsets = [0, 0, 0], sizes = [2, 8, 8], strides = [1, 1, 1]} : vector<2x8x32xf32> to vector<2x8x8xf32>
    "tpu.trace_start"() <{level = 10 : i32, message = "bqk,bkd->bqd"}> : () -> ()
    %cst_61 = arith.constant dense<0.000000e+00> : vector<2x8x8xf32>
    %179 = tpu.matmul %177, %178, %cst_61 {dimension_numbers = #tpu.dot_dimension_numbers<[2], [1], [1], [2], [0, 0, 0, 1, 1, 2], [0], [0]>} : vector<2x8x8xf32>, vector<2x8x8xf32>, vector<2x8x8xf32> -> vector<2x8x8xf32>
    "tpu.trace_stop"() : () -> ()
    %180 = vector.extract_strided_slice %165 {offsets = [0, 0, 8], sizes = [2, 8, 8], strides = [1, 1, 1]} : vector<2x8x32xf32> to vector<2x8x8xf32>
    %181 = vector.extract_strided_slice %162 {offsets = [0, 0, 8], sizes = [2, 8, 8], strides = [1, 1, 1]} : vector<2x8x32xf32> to vector<2x8x8xf32>
    "tpu.trace_start"() <{level = 10 : i32, message = "bqd,bkd->bqk"}> : () -> ()
    %cst_62 = arith.constant dense<0.000000e+00> : vector<2x8x8xf32>
    %182 = tpu.matmul %180, %181, %cst_62 {dimension_numbers = #tpu.dot_dimension_numbers<[2], [2], [1], [1], [0, 0, 0, 1, 1, 1], [0], [0]>} : vector<2x8x8xf32>, vector<2x8x8xf32>, vector<2x8x8xf32> -> vector<2x8x8xf32>
    "tpu.trace_stop"() : () -> ()
    %cst_63 = arith.constant dense<0xFF800000> : vector<2x8xf32>
    %183 = vector.multi_reduction <maximumf>, %182, %cst_63 [2] : vector<2x8x8xf32> to vector<2x8xf32>
    %184 = vector.shape_cast %183 : vector<2x8xf32> to vector<2x8x1xf32>
    %185 = vector.broadcast %184 : vector<2x8x1xf32> to vector<2x8x8xf32>
    %186 = arith.subf %182, %185 : vector<2x8x8xf32>
    %187 = math.exp %186 : vector<2x8x8xf32>
    %cst_64 = arith.constant dense<0.000000e+00> : vector<2x8xf32>
    %188 = vector.multi_reduction <add>, %187, %cst_64 [2] : vector<2x8x8xf32> to vector<2x8xf32>
    %189 = vector.shape_cast %188 : vector<2x8xf32> to vector<2x8x1xf32>
    %190 = vector.broadcast %189 : vector<2x8x1xf32> to vector<2x8x8xf32>
    %191 = arith.divf %187, %190 : vector<2x8x8xf32>
    %192 = vector.extract_strided_slice %163 {offsets = [0, 0, 8], sizes = [2, 8, 8], strides = [1, 1, 1]} : vector<2x8x32xf32> to vector<2x8x8xf32>
    "tpu.trace_start"() <{level = 10 : i32, message = "bqk,bkd->bqd"}> : () -> ()
    %cst_65 = arith.constant dense<0.000000e+00> : vector<2x8x8xf32>
    %193 = tpu.matmul %191, %192, %cst_65 {dimension_numbers = #tpu.dot_dimension_numbers<[2], [1], [1], [2], [0, 0, 0, 1, 1, 2], [0], [0]>} : vector<2x8x8xf32>, vector<2x8x8xf32>, vector<2x8x8xf32> -> vector<2x8x8xf32>
    "tpu.trace_stop"() : () -> ()
    %194 = vector.extract_strided_slice %165 {offsets = [0, 0, 16], sizes = [2, 8, 8], strides = [1, 1, 1]} : vector<2x8x32xf32> to vector<2x8x8xf32>
    %195 = vector.extract_strided_slice %162 {offsets = [0, 0, 16], sizes = [2, 8, 8], strides = [1, 1, 1]} : vector<2x8x32xf32> to vector<2x8x8xf32>
    "tpu.trace_start"() <{level = 10 : i32, message = "bqd,bkd->bqk"}> : () -> ()
    %cst_66 = arith.constant dense<0.000000e+00> : vector<2x8x8xf32>
    %196 = tpu.matmul %194, %195, %cst_66 {dimension_numbers = #tpu.dot_dimension_numbers<[2], [2], [1], [1], [0, 0, 0, 1, 1, 1], [0], [0]>} : vector<2x8x8xf32>, vector<2x8x8xf32>, vector<2x8x8xf32> -> vector<2x8x8xf32>
    "tpu.trace_stop"() : () -> ()
    %cst_67 = arith.constant dense<0xFF800000> : vector<2x8xf32>
    %197 = vector.multi_reduction <maximumf>, %196, %cst_67 [2] : vector<2x8x8xf32> to vector<2x8xf32>
    %198 = vector.shape_cast %197 : vector<2x8xf32> to vector<2x8x1xf32>
    %199 = vector.broadcast %198 : vector<2x8x1xf32> to vector<2x8x8xf32>
    %200 = arith.subf %196, %199 : vector<2x8x8xf32>
    %201 = math.exp %200 : vector<2x8x8xf32>
    %cst_68 = arith.constant dense<0.000000e+00> : vector<2x8xf32>
    %202 = vector.multi_reduction <add>, %201, %cst_68 [2] : vector<2x8x8xf32> to vector<2x8xf32>
    %203 = vector.shape_cast %202 : vector<2x8xf32> to vector<2x8x1xf32>
    %204 = vector.broadcast %203 : vector<2x8x1xf32> to vector<2x8x8xf32>
    %205 = arith.divf %201, %204 : vector<2x8x8xf32>
    %206 = vector.extract_strided_slice %163 {offsets = [0, 0, 16], sizes = [2, 8, 8], strides = [1, 1, 1]} : vector<2x8x32xf32> to vector<2x8x8xf32>
    "tpu.trace_start"() <{level = 10 : i32, message = "bqk,bkd->bqd"}> : () -> ()
    %cst_69 = arith.constant dense<0.000000e+00> : vector<2x8x8xf32>
    %207 = tpu.matmul %205, %206, %cst_69 {dimension_numbers = #tpu.dot_dimension_numbers<[2], [1], [1], [2], [0, 0, 0, 1, 1, 2], [0], [0]>} : vector<2x8x8xf32>, vector<2x8x8xf32>, vector<2x8x8xf32> -> vector<2x8x8xf32>
    "tpu.trace_stop"() : () -> ()
    %208 = vector.extract_strided_slice %165 {offsets = [0, 0, 24], sizes = [2, 8, 8], strides = [1, 1, 1]} : vector<2x8x32xf32> to vector<2x8x8xf32>
    %209 = vector.extract_strided_slice %162 {offsets = [0, 0, 24], sizes = [2, 8, 8], strides = [1, 1, 1]} : vector<2x8x32xf32> to vector<2x8x8xf32>
    "tpu.trace_start"() <{level = 10 : i32, message = "bqd,bkd->bqk"}> : () -> ()
    %cst_70 = arith.constant dense<0.000000e+00> : vector<2x8x8xf32>
    %210 = tpu.matmul %208, %209, %cst_70 {dimension_numbers = #tpu.dot_dimension_numbers<[2], [2], [1], [1], [0, 0, 0, 1, 1, 1], [0], [0]>} : vector<2x8x8xf32>, vector<2x8x8xf32>, vector<2x8x8xf32> -> vector<2x8x8xf32>
    "tpu.trace_stop"() : () -> ()
    %cst_71 = arith.constant dense<0xFF800000> : vector<2x8xf32>
    %211 = vector.multi_reduction <maximumf>, %210, %cst_71 [2] : vector<2x8x8xf32> to vector<2x8xf32>
    %212 = vector.shape_cast %211 : vector<2x8xf32> to vector<2x8x1xf32>
    %213 = vector.broadcast %212 : vector<2x8x1xf32> to vector<2x8x8xf32>
    %214 = arith.subf %210, %213 : vector<2x8x8xf32>
    %215 = math.exp %214 : vector<2x8x8xf32>
    %cst_72 = arith.constant dense<0.000000e+00> : vector<2x8xf32>
    %216 = vector.multi_reduction <add>, %215, %cst_72 [2] : vector<2x8x8xf32> to vector<2x8xf32>
    %217 = vector.shape_cast %216 : vector<2x8xf32> to vector<2x8x1xf32>
    %218 = vector.broadcast %217 : vector<2x8x1xf32> to vector<2x8x8xf32>
    %219 = arith.divf %215, %218 : vector<2x8x8xf32>
    %220 = vector.extract_strided_slice %163 {offsets = [0, 0, 24], sizes = [2, 8, 8], strides = [1, 1, 1]} : vector<2x8x32xf32> to vector<2x8x8xf32>
    "tpu.trace_start"() <{level = 10 : i32, message = "bqk,bkd->bqd"}> : () -> ()
    %cst_73 = arith.constant dense<0.000000e+00> : vector<2x8x8xf32>
    %221 = tpu.matmul %219, %220, %cst_73 {dimension_numbers = #tpu.dot_dimension_numbers<[2], [1], [1], [2], [0, 0, 0, 1, 1, 2], [0], [0]>} : vector<2x8x8xf32>, vector<2x8x8xf32>, vector<2x8x8xf32> -> vector<2x8x8xf32>
    "tpu.trace_stop"() : () -> ()
    %222 = tpu.concatenate %179, %193, %207, %221 in 2 : vector<2x8x8xf32>, vector<2x8x8xf32>, vector<2x8x8xf32>, vector<2x8x8xf32> -> vector<2x8x32xf32>
    %223 = vector.shape_cast %222 : vector<2x8x32xf32> to vector<16x32xf32>
    %cst_74 = arith.constant dense<0.000000e+00> : vector<16x32xf32>
    %224 = tpu.matmul %223, %22, %cst_74 {dimension_numbers = #tpu.dot_dimension_numbers<[1], [0], [0], [1], [0, 0, 1, 1], [], []>} : vector<16x32xf32>, vector<32x32xf32>, vector<16x32xf32> -> vector<16x32xf32>
    %225 = vector.shape_cast %24 : vector<32xf32> to vector<1x32xf32>
    %226 = vector.broadcast %225 : vector<1x32xf32> to vector<16x32xf32>
    %227 = arith.addf %224, %226 : vector<16x32xf32>
    %228 = vector.shape_cast %227 : vector<16x32xf32> to vector<2x8x32xf32>
    %229 = arith.addf %149, %228 : vector<2x8x32xf32>
    %cst_75 = arith.constant dense<0.000000e+00> : vector<2x8xf32>
    %230 = vector.multi_reduction <add>, %229, %cst_75 [2] : vector<2x8x32xf32> to vector<2x8xf32>
    %231 = vector.shape_cast %230 : vector<2x8xf32> to vector<2x8x1xf32>
    %cst_76 = arith.constant 3.200000e+01 : f32
    %232 = vector.broadcast %cst_76 : f32 to vector<2x8x1xf32>
    %233 = arith.divf %231, %232 : vector<2x8x1xf32>
    %234 = vector.broadcast %233 : vector<2x8x1xf32> to vector<2x8x32xf32>
    %235 = arith.subf %229, %234 : vector<2x8x32xf32>
    %236 = arith.mulf %235, %235 : vector<2x8x32xf32>
    %cst_77 = arith.constant dense<0.000000e+00> : vector<2x8xf32>
    %237 = vector.multi_reduction <add>, %236, %cst_77 [2] : vector<2x8x32xf32> to vector<2x8xf32>
    %238 = vector.shape_cast %237 : vector<2x8xf32> to vector<2x8x1xf32>
    %cst_78 = arith.constant 3.200000e+01 : f32
    %239 = vector.broadcast %cst_78 : f32 to vector<2x8x1xf32>
    %240 = arith.divf %238, %239 : vector<2x8x1xf32>
    %cst_79 = arith.constant 9.99999974E-6 : f32
    %241 = vector.broadcast %cst_79 : f32 to vector<2x8x1xf32>
    %242 = arith.addf %240, %241 : vector<2x8x1xf32>
    %243 = math.rsqrt %242 : vector<2x8x1xf32>
    %244 = vector.broadcast %243 : vector<2x8x1xf32> to vector<2x8x32xf32>
    %245 = arith.mulf %235, %244 : vector<2x8x32xf32>
    %246 = vector.shape_cast %34 : vector<32xf32> to vector<1x1x32xf32>
    %247 = vector.broadcast %246 : vector<1x1x32xf32> to vector<2x8x32xf32>
    %248 = arith.mulf %245, %247 : vector<2x8x32xf32>
    %249 = vector.shape_cast %36 : vector<32xf32> to vector<1x1x32xf32>
    %250 = vector.broadcast %249 : vector<1x1x32xf32> to vector<2x8x32xf32>
    %251 = arith.addf %248, %250 : vector<2x8x32xf32>
    %252 = vector.shape_cast %251 : vector<2x8x32xf32> to vector<16x32xf32>
    %cst_80 = arith.constant dense<0.000000e+00> : vector<16x64xf32>
    %253 = tpu.matmul %252, %26, %cst_80 {dimension_numbers = #tpu.dot_dimension_numbers<[1], [0], [0], [1], [0, 0, 1, 1], [], []>} : vector<16x32xf32>, vector<32x64xf32>, vector<16x64xf32> -> vector<16x64xf32>
    %254 = vector.shape_cast %28 : vector<64xf32> to vector<1x64xf32>
    %255 = vector.broadcast %254 : vector<1x64xf32> to vector<16x64xf32>
    %256 = arith.addf %253, %255 : vector<16x64xf32>
    %257 = vector.shape_cast %256 : vector<16x64xf32> to vector<2x8x64xf32>
    %cst_81 = arith.constant 0.000000e+00 : f32
    %258 = vector.broadcast %cst_81 : f32 to vector<2x8x64xf32>
    %259 = arith.maximumf %257, %258 : vector<2x8x64xf32>
    %260 = vector.shape_cast %259 : vector<2x8x64xf32> to vector<16x64xf32>
    %cst_82 = arith.constant dense<0.000000e+00> : vector<16x32xf32>
    %261 = tpu.matmul %260, %30, %cst_82 {dimension_numbers = #tpu.dot_dimension_numbers<[1], [0], [0], [1], [0, 0, 1, 1], [], []>} : vector<16x64xf32>, vector<64x32xf32>, vector<16x32xf32> -> vector<16x32xf32>
    %262 = vector.shape_cast %32 : vector<32xf32> to vector<1x32xf32>
    %263 = vector.broadcast %262 : vector<1x32xf32> to vector<16x32xf32>
    %264 = arith.addf %261, %263 : vector<16x32xf32>
    %265 = vector.shape_cast %264 : vector<16x32xf32> to vector<2x8x32xf32>
    %266 = arith.addf %251, %265 : vector<2x8x32xf32>
    %cst_83 = arith.constant dense<0.000000e+00> : vector<2x8xf32>
    %267 = vector.multi_reduction <add>, %266, %cst_83 [2] : vector<2x8x32xf32> to vector<2x8xf32>
    %268 = vector.shape_cast %267 : vector<2x8xf32> to vector<2x8x1xf32>
    %cst_84 = arith.constant 3.200000e+01 : f32
    %269 = vector.broadcast %cst_84 : f32 to vector<2x8x1xf32>
    %270 = arith.divf %268, %269 : vector<2x8x1xf32>
    %271 = vector.broadcast %270 : vector<2x8x1xf32> to vector<2x8x32xf32>
    %272 = arith.subf %266, %271 : vector<2x8x32xf32>
    %273 = arith.mulf %272, %272 : vector<2x8x32xf32>
    %cst_85 = arith.constant dense<0.000000e+00> : vector<2x8xf32>
    %274 = vector.multi_reduction <add>, %273, %cst_85 [2] : vector<2x8x32xf32> to vector<2x8xf32>
    %275 = vector.shape_cast %274 : vector<2x8xf32> to vector<2x8x1xf32>
    %cst_86 = arith.constant 3.200000e+01 : f32
    %276 = vector.broadcast %cst_86 : f32 to vector<2x8x1xf32>
    %277 = arith.divf %275, %276 : vector<2x8x1xf32>
    %cst_87 = arith.constant 9.99999974E-6 : f32
    %278 = vector.broadcast %cst_87 : f32 to vector<2x8x1xf32>
    %279 = arith.addf %277, %278 : vector<2x8x1xf32>
    %280 = math.rsqrt %279 : vector<2x8x1xf32>
    %281 = vector.broadcast %280 : vector<2x8x1xf32> to vector<2x8x32xf32>
    %282 = arith.mulf %272, %281 : vector<2x8x32xf32>
    %283 = vector.shape_cast %38 : vector<32xf32> to vector<1x1x32xf32>
    %284 = vector.broadcast %283 : vector<1x1x32xf32> to vector<2x8x32xf32>
    %285 = arith.mulf %282, %284 : vector<2x8x32xf32>
    %286 = vector.shape_cast %40 : vector<32xf32> to vector<1x1x32xf32>
    %287 = vector.broadcast %286 : vector<1x1x32xf32> to vector<2x8x32xf32>
    %288 = arith.addf %285, %287 : vector<2x8x32xf32>
    %c1_88 = arith.constant 1 : index
    %c0_89 = arith.constant 0 : index
    %c0_90 = arith.constant 0 : index
    %289 = vector.load %arg8[%c1_88, %c0_89, %c0_90] : memref<2x16x128xf32, #tpu.memory_space<vmem>>, vector<1x16x128xf32>
    %290 = vector.shape_cast %289 : vector<1x16x128xf32> to vector<16x128xf32>
    %c1_91 = arith.constant 1 : index
    %c0_92 = arith.constant 0 : index
    %c0_93 = arith.constant 0 : index
    %291 = vector.load %arg3[%c1_91, %c0_92, %c0_93] : memref<2x32x96xf32, #tpu.memory_space<vmem>>, vector<1x32x96xf32>
    %292 = vector.shape_cast %291 : vector<1x32x96xf32> to vector<32x96xf32>
    %293 = vector.extract_strided_slice %290 {offsets = [0, 0], sizes = [1, 96], strides = [1, 1]} : vector<16x128xf32> to vector<1x96xf32>
    %294 = vector.shape_cast %293 : vector<1x96xf32> to vector<96xf32>
    %c1_94 = arith.constant 1 : index
    %c0_95 = arith.constant 0 : index
    %c0_96 = arith.constant 0 : index
    %295 = vector.load %arg4[%c1_94, %c0_95, %c0_96] : memref<2x32x64xf32, #tpu.memory_space<vmem>>, vector<1x32x64xf32>
    %296 = vector.shape_cast %295 : vector<1x32x64xf32> to vector<32x64xf32>
    %297 = vector.extract_strided_slice %290 {offsets = [1, 0], sizes = [1, 64], strides = [1, 1]} : vector<16x128xf32> to vector<1x64xf32>
    %298 = vector.shape_cast %297 : vector<1x64xf32> to vector<64xf32>
    %c1_97 = arith.constant 1 : index
    %c0_98 = arith.constant 0 : index
    %c0_99 = arith.constant 0 : index
    %c0_100 = arith.constant 0 : index
    %299 = vector.load %arg5[%c1_97, %c0_98, %c0_99, %c0_100] : memref<2x3x32x32xf32, #tpu.memory_space<vmem>>, vector<1x1x32x32xf32>
    %300 = vector.shape_cast %299 : vector<1x1x32x32xf32> to vector<32x32xf32>
    %301 = vector.extract_strided_slice %290 {offsets = [3, 0], sizes = [1, 32], strides = [1, 1]} : vector<16x128xf32> to vector<1x32xf32>
    %302 = vector.shape_cast %301 : vector<1x32xf32> to vector<32xf32>
    %c1_101 = arith.constant 1 : index
    %c1_102 = arith.constant 1 : index
    %c0_103 = arith.constant 0 : index
    %c0_104 = arith.constant 0 : index
    %303 = vector.load %arg5[%c1_101, %c1_102, %c0_103, %c0_104] : memref<2x3x32x32xf32, #tpu.memory_space<vmem>>, vector<1x1x32x32xf32>
    %304 = vector.shape_cast %303 : vector<1x1x32x32xf32> to vector<32x32xf32>
    %305 = vector.extract_strided_slice %290 {offsets = [4, 0], sizes = [1, 32], strides = [1, 1]} : vector<16x128xf32> to vector<1x32xf32>
    %306 = vector.shape_cast %305 : vector<1x32xf32> to vector<32xf32>
    %c1_105 = arith.constant 1 : index
    %c2_106 = arith.constant 2 : index
    %c0_107 = arith.constant 0 : index
    %c0_108 = arith.constant 0 : index
    %307 = vector.load %arg5[%c1_105, %c2_106, %c0_107, %c0_108] : memref<2x3x32x32xf32, #tpu.memory_space<vmem>>, vector<1x1x32x32xf32>
    %308 = vector.shape_cast %307 : vector<1x1x32x32xf32> to vector<32x32xf32>
    %309 = vector.extract_strided_slice %290 {offsets = [5, 0], sizes = [1, 32], strides = [1, 1]} : vector<16x128xf32> to vector<1x32xf32>
    %310 = vector.shape_cast %309 : vector<1x32xf32> to vector<32xf32>
    %c1_109 = arith.constant 1 : index
    %c0_110 = arith.constant 0 : index
    %c0_111 = arith.constant 0 : index
    %311 = vector.load %arg6[%c1_109, %c0_110, %c0_111] : memref<2x32x64xf32, #tpu.memory_space<vmem>>, vector<1x32x64xf32>
    %312 = vector.shape_cast %311 : vector<1x32x64xf32> to vector<32x64xf32>
    %313 = vector.extract_strided_slice %290 {offsets = [2, 0], sizes = [1, 64], strides = [1, 1]} : vector<16x128xf32> to vector<1x64xf32>
    %314 = vector.shape_cast %313 : vector<1x64xf32> to vector<64xf32>
    %c1_112 = arith.constant 1 : index
    %c0_113 = arith.constant 0 : index
    %c0_114 = arith.constant 0 : index
    %315 = vector.load %arg7[%c1_112, %c0_113, %c0_114] : memref<2x64x32xf32, #tpu.memory_space<vmem>>, vector<1x64x32xf32>
    %316 = vector.shape_cast %315 : vector<1x64x32xf32> to vector<64x32xf32>
    %317 = vector.extract_strided_slice %290 {offsets = [6, 0], sizes = [1, 32], strides = [1, 1]} : vector<16x128xf32> to vector<1x32xf32>
    %318 = vector.shape_cast %317 : vector<1x32xf32> to vector<32xf32>
    %319 = vector.extract_strided_slice %290 {offsets = [7, 0], sizes = [1, 32], strides = [1, 1]} : vector<16x128xf32> to vector<1x32xf32>
    %320 = vector.shape_cast %319 : vector<1x32xf32> to vector<32xf32>
    %321 = vector.extract_strided_slice %290 {offsets = [8, 0], sizes = [1, 32], strides = [1, 1]} : vector<16x128xf32> to vector<1x32xf32>
    %322 = vector.shape_cast %321 : vector<1x32xf32> to vector<32xf32>
    %323 = vector.extract_strided_slice %290 {offsets = [9, 0], sizes = [1, 32], strides = [1, 1]} : vector<16x128xf32> to vector<1x32xf32>
    %324 = vector.shape_cast %323 : vector<1x32xf32> to vector<32xf32>
    %325 = vector.extract_strided_slice %290 {offsets = [10, 0], sizes = [1, 32], strides = [1, 1]} : vector<16x128xf32> to vector<1x32xf32>
    %326 = vector.shape_cast %325 : vector<1x32xf32> to vector<32xf32>
    %327 = vector.shape_cast %288 : vector<2x8x32xf32> to vector<16x32xf32>
    %cst_115 = arith.constant dense<0.000000e+00> : vector<16x96xf32>
    %328 = tpu.matmul %327, %292, %cst_115 {dimension_numbers = #tpu.dot_dimension_numbers<[1], [0], [0], [1], [0, 0, 1, 1], [], []>} : vector<16x32xf32>, vector<32x96xf32>, vector<16x96xf32> -> vector<16x96xf32>
    %329 = vector.shape_cast %294 : vector<96xf32> to vector<1x96xf32>
    %330 = vector.broadcast %329 : vector<1x96xf32> to vector<16x96xf32>
    %331 = arith.addf %328, %330 : vector<16x96xf32>
    %332 = vector.shape_cast %331 : vector<16x96xf32> to vector<2x8x96xf32>
    %333 = vector.extract_strided_slice %332 {offsets = [0, 0, 0], sizes = [2, 8, 32], strides = [1, 1, 1]} : vector<2x8x96xf32> to vector<2x8x32xf32>
    %334 = vector.extract_strided_slice %332 {offsets = [0, 0, 32], sizes = [2, 8, 32], strides = [1, 1, 1]} : vector<2x8x96xf32> to vector<2x8x32xf32>
    %335 = vector.extract_strided_slice %332 {offsets = [0, 0, 64], sizes = [2, 8, 32], strides = [1, 1, 1]} : vector<2x8x96xf32> to vector<2x8x32xf32>
    %cst_116 = arith.constant 0.353553385 : f32
    %336 = vector.broadcast %cst_116 : f32 to vector<2x8x32xf32>
    %337 = arith.mulf %333, %336 : vector<2x8x32xf32>
    %338 = vector.extract_strided_slice %337 {offsets = [0, 0, 0], sizes = [2, 8, 8], strides = [1, 1, 1]} : vector<2x8x32xf32> to vector<2x8x8xf32>
    %339 = vector.extract_strided_slice %334 {offsets = [0, 0, 0], sizes = [2, 8, 8], strides = [1, 1, 1]} : vector<2x8x32xf32> to vector<2x8x8xf32>
    "tpu.trace_start"() <{level = 10 : i32, message = "bqd,bkd->bqk"}> : () -> ()
    %cst_117 = arith.constant dense<0.000000e+00> : vector<2x8x8xf32>
    %340 = tpu.matmul %338, %339, %cst_117 {dimension_numbers = #tpu.dot_dimension_numbers<[2], [2], [1], [1], [0, 0, 0, 1, 1, 1], [0], [0]>} : vector<2x8x8xf32>, vector<2x8x8xf32>, vector<2x8x8xf32> -> vector<2x8x8xf32>
    "tpu.trace_stop"() : () -> ()
    %341 = vector.shape_cast %2 : vector<8x8xf32> to vector<1x8x8xf32>
    %342 = vector.broadcast %341 : vector<1x8x8xf32> to vector<2x8x8xf32>
    %343 = arith.addf %340, %342 : vector<2x8x8xf32>
    %cst_118 = arith.constant dense<0xFF800000> : vector<2x8xf32>
    %344 = vector.multi_reduction <maximumf>, %343, %cst_118 [2] : vector<2x8x8xf32> to vector<2x8xf32>
    %345 = vector.shape_cast %344 : vector<2x8xf32> to vector<2x8x1xf32>
    %346 = vector.broadcast %345 : vector<2x8x1xf32> to vector<2x8x8xf32>
    %347 = arith.subf %343, %346 : vector<2x8x8xf32>
    %348 = math.exp %347 : vector<2x8x8xf32>
    %cst_119 = arith.constant dense<0.000000e+00> : vector<2x8xf32>
    %349 = vector.multi_reduction <add>, %348, %cst_119 [2] : vector<2x8x8xf32> to vector<2x8xf32>
    %350 = vector.shape_cast %349 : vector<2x8xf32> to vector<2x8x1xf32>
    %351 = vector.broadcast %350 : vector<2x8x1xf32> to vector<2x8x8xf32>
    %352 = arith.divf %348, %351 : vector<2x8x8xf32>
    %353 = vector.extract_strided_slice %335 {offsets = [0, 0, 0], sizes = [2, 8, 8], strides = [1, 1, 1]} : vector<2x8x32xf32> to vector<2x8x8xf32>
    "tpu.trace_start"() <{level = 10 : i32, message = "bqk,bkd->bqd"}> : () -> ()
    %cst_120 = arith.constant dense<0.000000e+00> : vector<2x8x8xf32>
    %354 = tpu.matmul %352, %353, %cst_120 {dimension_numbers = #tpu.dot_dimension_numbers<[2], [1], [1], [2], [0, 0, 0, 1, 1, 2], [0], [0]>} : vector<2x8x8xf32>, vector<2x8x8xf32>, vector<2x8x8xf32> -> vector<2x8x8xf32>
    "tpu.trace_stop"() : () -> ()
    %355 = vector.extract_strided_slice %337 {offsets = [0, 0, 8], sizes = [2, 8, 8], strides = [1, 1, 1]} : vector<2x8x32xf32> to vector<2x8x8xf32>
    %356 = vector.extract_strided_slice %334 {offsets = [0, 0, 8], sizes = [2, 8, 8], strides = [1, 1, 1]} : vector<2x8x32xf32> to vector<2x8x8xf32>
    "tpu.trace_start"() <{level = 10 : i32, message = "bqd,bkd->bqk"}> : () -> ()
    %cst_121 = arith.constant dense<0.000000e+00> : vector<2x8x8xf32>
    %357 = tpu.matmul %355, %356, %cst_121 {dimension_numbers = #tpu.dot_dimension_numbers<[2], [2], [1], [1], [0, 0, 0, 1, 1, 1], [0], [0]>} : vector<2x8x8xf32>, vector<2x8x8xf32>, vector<2x8x8xf32> -> vector<2x8x8xf32>
    "tpu.trace_stop"() : () -> ()
    %358 = vector.shape_cast %2 : vector<8x8xf32> to vector<1x8x8xf32>
    %359 = vector.broadcast %358 : vector<1x8x8xf32> to vector<2x8x8xf32>
    %360 = arith.addf %357, %359 : vector<2x8x8xf32>
    %cst_122 = arith.constant dense<0xFF800000> : vector<2x8xf32>
    %361 = vector.multi_reduction <maximumf>, %360, %cst_122 [2] : vector<2x8x8xf32> to vector<2x8xf32>
    %362 = vector.shape_cast %361 : vector<2x8xf32> to vector<2x8x1xf32>
    %363 = vector.broadcast %362 : vector<2x8x1xf32> to vector<2x8x8xf32>
    %364 = arith.subf %360, %363 : vector<2x8x8xf32>
    %365 = math.exp %364 : vector<2x8x8xf32>
    %cst_123 = arith.constant dense<0.000000e+00> : vector<2x8xf32>
    %366 = vector.multi_reduction <add>, %365, %cst_123 [2] : vector<2x8x8xf32> to vector<2x8xf32>
    %367 = vector.shape_cast %366 : vector<2x8xf32> to vector<2x8x1xf32>
    %368 = vector.broadcast %367 : vector<2x8x1xf32> to vector<2x8x8xf32>
    %369 = arith.divf %365, %368 : vector<2x8x8xf32>
    %370 = vector.extract_strided_slice %335 {offsets = [0, 0, 8], sizes = [2, 8, 8], strides = [1, 1, 1]} : vector<2x8x32xf32> to vector<2x8x8xf32>
    "tpu.trace_start"() <{level = 10 : i32, message = "bqk,bkd->bqd"}> : () -> ()
    %cst_124 = arith.constant dense<0.000000e+00> : vector<2x8x8xf32>
    %371 = tpu.matmul %369, %370, %cst_124 {dimension_numbers = #tpu.dot_dimension_numbers<[2], [1], [1], [2], [0, 0, 0, 1, 1, 2], [0], [0]>} : vector<2x8x8xf32>, vector<2x8x8xf32>, vector<2x8x8xf32> -> vector<2x8x8xf32>
    "tpu.trace_stop"() : () -> ()
    %372 = vector.extract_strided_slice %337 {offsets = [0, 0, 16], sizes = [2, 8, 8], strides = [1, 1, 1]} : vector<2x8x32xf32> to vector<2x8x8xf32>
    %373 = vector.extract_strided_slice %334 {offsets = [0, 0, 16], sizes = [2, 8, 8], strides = [1, 1, 1]} : vector<2x8x32xf32> to vector<2x8x8xf32>
    "tpu.trace_start"() <{level = 10 : i32, message = "bqd,bkd->bqk"}> : () -> ()
    %cst_125 = arith.constant dense<0.000000e+00> : vector<2x8x8xf32>
    %374 = tpu.matmul %372, %373, %cst_125 {dimension_numbers = #tpu.dot_dimension_numbers<[2], [2], [1], [1], [0, 0, 0, 1, 1, 1], [0], [0]>} : vector<2x8x8xf32>, vector<2x8x8xf32>, vector<2x8x8xf32> -> vector<2x8x8xf32>
    "tpu.trace_stop"() : () -> ()
    %375 = vector.shape_cast %2 : vector<8x8xf32> to vector<1x8x8xf32>
    %376 = vector.broadcast %375 : vector<1x8x8xf32> to vector<2x8x8xf32>
    %377 = arith.addf %374, %376 : vector<2x8x8xf32>
    %cst_126 = arith.constant dense<0xFF800000> : vector<2x8xf32>
    %378 = vector.multi_reduction <maximumf>, %377, %cst_126 [2] : vector<2x8x8xf32> to vector<2x8xf32>
    %379 = vector.shape_cast %378 : vector<2x8xf32> to vector<2x8x1xf32>
    %380 = vector.broadcast %379 : vector<2x8x1xf32> to vector<2x8x8xf32>
    %381 = arith.subf %377, %380 : vector<2x8x8xf32>
    %382 = math.exp %381 : vector<2x8x8xf32>
    %cst_127 = arith.constant dense<0.000000e+00> : vector<2x8xf32>
    %383 = vector.multi_reduction <add>, %382, %cst_127 [2] : vector<2x8x8xf32> to vector<2x8xf32>
    %384 = vector.shape_cast %383 : vector<2x8xf32> to vector<2x8x1xf32>
    %385 = vector.broadcast %384 : vector<2x8x1xf32> to vector<2x8x8xf32>
    %386 = arith.divf %382, %385 : vector<2x8x8xf32>
    %387 = vector.extract_strided_slice %335 {offsets = [0, 0, 16], sizes = [2, 8, 8], strides = [1, 1, 1]} : vector<2x8x32xf32> to vector<2x8x8xf32>
    "tpu.trace_start"() <{level = 10 : i32, message = "bqk,bkd->bqd"}> : () -> ()
    %cst_128 = arith.constant dense<0.000000e+00> : vector<2x8x8xf32>
    %388 = tpu.matmul %386, %387, %cst_128 {dimension_numbers = #tpu.dot_dimension_numbers<[2], [1], [1], [2], [0, 0, 0, 1, 1, 2], [0], [0]>} : vector<2x8x8xf32>, vector<2x8x8xf32>, vector<2x8x8xf32> -> vector<2x8x8xf32>
    "tpu.trace_stop"() : () -> ()
    %389 = vector.extract_strided_slice %337 {offsets = [0, 0, 24], sizes = [2, 8, 8], strides = [1, 1, 1]} : vector<2x8x32xf32> to vector<2x8x8xf32>
    %390 = vector.extract_strided_slice %334 {offsets = [0, 0, 24], sizes = [2, 8, 8], strides = [1, 1, 1]} : vector<2x8x32xf32> to vector<2x8x8xf32>
    "tpu.trace_start"() <{level = 10 : i32, message = "bqd,bkd->bqk"}> : () -> ()
    %cst_129 = arith.constant dense<0.000000e+00> : vector<2x8x8xf32>
    %391 = tpu.matmul %389, %390, %cst_129 {dimension_numbers = #tpu.dot_dimension_numbers<[2], [2], [1], [1], [0, 0, 0, 1, 1, 1], [0], [0]>} : vector<2x8x8xf32>, vector<2x8x8xf32>, vector<2x8x8xf32> -> vector<2x8x8xf32>
    "tpu.trace_stop"() : () -> ()
    %392 = vector.shape_cast %2 : vector<8x8xf32> to vector<1x8x8xf32>
    %393 = vector.broadcast %392 : vector<1x8x8xf32> to vector<2x8x8xf32>
    %394 = arith.addf %391, %393 : vector<2x8x8xf32>
    %cst_130 = arith.constant dense<0xFF800000> : vector<2x8xf32>
    %395 = vector.multi_reduction <maximumf>, %394, %cst_130 [2] : vector<2x8x8xf32> to vector<2x8xf32>
    %396 = vector.shape_cast %395 : vector<2x8xf32> to vector<2x8x1xf32>
    %397 = vector.broadcast %396 : vector<2x8x1xf32> to vector<2x8x8xf32>
    %398 = arith.subf %394, %397 : vector<2x8x8xf32>
    %399 = math.exp %398 : vector<2x8x8xf32>
    %cst_131 = arith.constant dense<0.000000e+00> : vector<2x8xf32>
    %400 = vector.multi_reduction <add>, %399, %cst_131 [2] : vector<2x8x8xf32> to vector<2x8xf32>
    %401 = vector.shape_cast %400 : vector<2x8xf32> to vector<2x8x1xf32>
    %402 = vector.broadcast %401 : vector<2x8x1xf32> to vector<2x8x8xf32>
    %403 = arith.divf %399, %402 : vector<2x8x8xf32>
    %404 = vector.extract_strided_slice %335 {offsets = [0, 0, 24], sizes = [2, 8, 8], strides = [1, 1, 1]} : vector<2x8x32xf32> to vector<2x8x8xf32>
    "tpu.trace_start"() <{level = 10 : i32, message = "bqk,bkd->bqd"}> : () -> ()
    %cst_132 = arith.constant dense<0.000000e+00> : vector<2x8x8xf32>
    %405 = tpu.matmul %403, %404, %cst_132 {dimension_numbers = #tpu.dot_dimension_numbers<[2], [1], [1], [2], [0, 0, 0, 1, 1, 2], [0], [0]>} : vector<2x8x8xf32>, vector<2x8x8xf32>, vector<2x8x8xf32> -> vector<2x8x8xf32>
    "tpu.trace_stop"() : () -> ()
    %406 = tpu.concatenate %354, %371, %388, %405 in 2 : vector<2x8x8xf32>, vector<2x8x8xf32>, vector<2x8x8xf32>, vector<2x8x8xf32> -> vector<2x8x32xf32>
    %407 = vector.shape_cast %406 : vector<2x8x32xf32> to vector<16x32xf32>
    %cst_133 = arith.constant dense<0.000000e+00> : vector<16x32xf32>
    %408 = tpu.matmul %407, %300, %cst_133 {dimension_numbers = #tpu.dot_dimension_numbers<[1], [0], [0], [1], [0, 0, 1, 1], [], []>} : vector<16x32xf32>, vector<32x32xf32>, vector<16x32xf32> -> vector<16x32xf32>
    %409 = vector.shape_cast %302 : vector<32xf32> to vector<1x32xf32>
    %410 = vector.broadcast %409 : vector<1x32xf32> to vector<16x32xf32>
    %411 = arith.addf %408, %410 : vector<16x32xf32>
    %412 = vector.shape_cast %411 : vector<16x32xf32> to vector<2x8x32xf32>
    %413 = arith.addf %288, %412 : vector<2x8x32xf32>
    %cst_134 = arith.constant dense<0.000000e+00> : vector<2x8xf32>
    %414 = vector.multi_reduction <add>, %413, %cst_134 [2] : vector<2x8x32xf32> to vector<2x8xf32>
    %415 = vector.shape_cast %414 : vector<2x8xf32> to vector<2x8x1xf32>
    %cst_135 = arith.constant 3.200000e+01 : f32
    %416 = vector.broadcast %cst_135 : f32 to vector<2x8x1xf32>
    %417 = arith.divf %415, %416 : vector<2x8x1xf32>
    %418 = vector.broadcast %417 : vector<2x8x1xf32> to vector<2x8x32xf32>
    %419 = arith.subf %413, %418 : vector<2x8x32xf32>
    %420 = arith.mulf %419, %419 : vector<2x8x32xf32>
    %cst_136 = arith.constant dense<0.000000e+00> : vector<2x8xf32>
    %421 = vector.multi_reduction <add>, %420, %cst_136 [2] : vector<2x8x32xf32> to vector<2x8xf32>
    %422 = vector.shape_cast %421 : vector<2x8xf32> to vector<2x8x1xf32>
    %cst_137 = arith.constant 3.200000e+01 : f32
    %423 = vector.broadcast %cst_137 : f32 to vector<2x8x1xf32>
    %424 = arith.divf %422, %423 : vector<2x8x1xf32>
    %cst_138 = arith.constant 9.99999974E-6 : f32
    %425 = vector.broadcast %cst_138 : f32 to vector<2x8x1xf32>
    %426 = arith.addf %424, %425 : vector<2x8x1xf32>
    %427 = math.rsqrt %426 : vector<2x8x1xf32>
    %428 = vector.broadcast %427 : vector<2x8x1xf32> to vector<2x8x32xf32>
    %429 = arith.mulf %419, %428 : vector<2x8x32xf32>
    %430 = vector.shape_cast %320 : vector<32xf32> to vector<1x1x32xf32>
    %431 = vector.broadcast %430 : vector<1x1x32xf32> to vector<2x8x32xf32>
    %432 = arith.mulf %429, %431 : vector<2x8x32xf32>
    %433 = vector.shape_cast %322 : vector<32xf32> to vector<1x1x32xf32>
    %434 = vector.broadcast %433 : vector<1x1x32xf32> to vector<2x8x32xf32>
    %435 = arith.addf %432, %434 : vector<2x8x32xf32>
    %436 = vector.shape_cast %435 : vector<2x8x32xf32> to vector<16x32xf32>
    %cst_139 = arith.constant dense<0.000000e+00> : vector<16x32xf32>
    %437 = tpu.matmul %436, %304, %cst_139 {dimension_numbers = #tpu.dot_dimension_numbers<[1], [0], [0], [1], [0, 0, 1, 1], [], []>} : vector<16x32xf32>, vector<32x32xf32>, vector<16x32xf32> -> vector<16x32xf32>
    %438 = vector.shape_cast %306 : vector<32xf32> to vector<1x32xf32>
    %439 = vector.broadcast %438 : vector<1x32xf32> to vector<16x32xf32>
    %440 = arith.addf %437, %439 : vector<16x32xf32>
    %441 = vector.shape_cast %440 : vector<16x32xf32> to vector<2x8x32xf32>
    %442 = vector.shape_cast %1 : vector<2x8x32xf32> to vector<16x32xf32>
    %cst_140 = arith.constant dense<0.000000e+00> : vector<16x64xf32>
    %443 = tpu.matmul %442, %296, %cst_140 {dimension_numbers = #tpu.dot_dimension_numbers<[1], [0], [0], [1], [0, 0, 1, 1], [], []>} : vector<16x32xf32>, vector<32x64xf32>, vector<16x64xf32> -> vector<16x64xf32>
    %444 = vector.shape_cast %298 : vector<64xf32> to vector<1x64xf32>
    %445 = vector.broadcast %444 : vector<1x64xf32> to vector<16x64xf32>
    %446 = arith.addf %443, %445 : vector<16x64xf32>
    %447 = vector.shape_cast %446 : vector<16x64xf32> to vector<2x8x64xf32>
    %448 = vector.extract_strided_slice %447 {offsets = [0, 0, 0], sizes = [2, 8, 32], strides = [1, 1, 1]} : vector<2x8x64xf32> to vector<2x8x32xf32>
    %449 = vector.extract_strided_slice %447 {offsets = [0, 0, 32], sizes = [2, 8, 32], strides = [1, 1, 1]} : vector<2x8x64xf32> to vector<2x8x32xf32>
    %cst_141 = arith.constant 0.353553385 : f32
    %450 = vector.broadcast %cst_141 : f32 to vector<2x8x32xf32>
    %451 = arith.mulf %441, %450 : vector<2x8x32xf32>
    %452 = vector.extract_strided_slice %451 {offsets = [0, 0, 0], sizes = [2, 8, 8], strides = [1, 1, 1]} : vector<2x8x32xf32> to vector<2x8x8xf32>
    %453 = vector.extract_strided_slice %448 {offsets = [0, 0, 0], sizes = [2, 8, 8], strides = [1, 1, 1]} : vector<2x8x32xf32> to vector<2x8x8xf32>
    "tpu.trace_start"() <{level = 10 : i32, message = "bqd,bkd->bqk"}> : () -> ()
    %cst_142 = arith.constant dense<0.000000e+00> : vector<2x8x8xf32>
    %454 = tpu.matmul %452, %453, %cst_142 {dimension_numbers = #tpu.dot_dimension_numbers<[2], [2], [1], [1], [0, 0, 0, 1, 1, 1], [0], [0]>} : vector<2x8x8xf32>, vector<2x8x8xf32>, vector<2x8x8xf32> -> vector<2x8x8xf32>
    "tpu.trace_stop"() : () -> ()
    %cst_143 = arith.constant dense<0xFF800000> : vector<2x8xf32>
    %455 = vector.multi_reduction <maximumf>, %454, %cst_143 [2] : vector<2x8x8xf32> to vector<2x8xf32>
    %456 = vector.shape_cast %455 : vector<2x8xf32> to vector<2x8x1xf32>
    %457 = vector.broadcast %456 : vector<2x8x1xf32> to vector<2x8x8xf32>
    %458 = arith.subf %454, %457 : vector<2x8x8xf32>
    %459 = math.exp %458 : vector<2x8x8xf32>
    %cst_144 = arith.constant dense<0.000000e+00> : vector<2x8xf32>
    %460 = vector.multi_reduction <add>, %459, %cst_144 [2] : vector<2x8x8xf32> to vector<2x8xf32>
    %461 = vector.shape_cast %460 : vector<2x8xf32> to vector<2x8x1xf32>
    %462 = vector.broadcast %461 : vector<2x8x1xf32> to vector<2x8x8xf32>
    %463 = arith.divf %459, %462 : vector<2x8x8xf32>
    %464 = vector.extract_strided_slice %449 {offsets = [0, 0, 0], sizes = [2, 8, 8], strides = [1, 1, 1]} : vector<2x8x32xf32> to vector<2x8x8xf32>
    "tpu.trace_start"() <{level = 10 : i32, message = "bqk,bkd->bqd"}> : () -> ()
    %cst_145 = arith.constant dense<0.000000e+00> : vector<2x8x8xf32>
    %465 = tpu.matmul %463, %464, %cst_145 {dimension_numbers = #tpu.dot_dimension_numbers<[2], [1], [1], [2], [0, 0, 0, 1, 1, 2], [0], [0]>} : vector<2x8x8xf32>, vector<2x8x8xf32>, vector<2x8x8xf32> -> vector<2x8x8xf32>
    "tpu.trace_stop"() : () -> ()
    %466 = vector.extract_strided_slice %451 {offsets = [0, 0, 8], sizes = [2, 8, 8], strides = [1, 1, 1]} : vector<2x8x32xf32> to vector<2x8x8xf32>
    %467 = vector.extract_strided_slice %448 {offsets = [0, 0, 8], sizes = [2, 8, 8], strides = [1, 1, 1]} : vector<2x8x32xf32> to vector<2x8x8xf32>
    "tpu.trace_start"() <{level = 10 : i32, message = "bqd,bkd->bqk"}> : () -> ()
    %cst_146 = arith.constant dense<0.000000e+00> : vector<2x8x8xf32>
    %468 = tpu.matmul %466, %467, %cst_146 {dimension_numbers = #tpu.dot_dimension_numbers<[2], [2], [1], [1], [0, 0, 0, 1, 1, 1], [0], [0]>} : vector<2x8x8xf32>, vector<2x8x8xf32>, vector<2x8x8xf32> -> vector<2x8x8xf32>
    "tpu.trace_stop"() : () -> ()
    %cst_147 = arith.constant dense<0xFF800000> : vector<2x8xf32>
    %469 = vector.multi_reduction <maximumf>, %468, %cst_147 [2] : vector<2x8x8xf32> to vector<2x8xf32>
    %470 = vector.shape_cast %469 : vector<2x8xf32> to vector<2x8x1xf32>
    %471 = vector.broadcast %470 : vector<2x8x1xf32> to vector<2x8x8xf32>
    %472 = arith.subf %468, %471 : vector<2x8x8xf32>
    %473 = math.exp %472 : vector<2x8x8xf32>
    %cst_148 = arith.constant dense<0.000000e+00> : vector<2x8xf32>
    %474 = vector.multi_reduction <add>, %473, %cst_148 [2] : vector<2x8x8xf32> to vector<2x8xf32>
    %475 = vector.shape_cast %474 : vector<2x8xf32> to vector<2x8x1xf32>
    %476 = vector.broadcast %475 : vector<2x8x1xf32> to vector<2x8x8xf32>
    %477 = arith.divf %473, %476 : vector<2x8x8xf32>
    %478 = vector.extract_strided_slice %449 {offsets = [0, 0, 8], sizes = [2, 8, 8], strides = [1, 1, 1]} : vector<2x8x32xf32> to vector<2x8x8xf32>
    "tpu.trace_start"() <{level = 10 : i32, message = "bqk,bkd->bqd"}> : () -> ()
    %cst_149 = arith.constant dense<0.000000e+00> : vector<2x8x8xf32>
    %479 = tpu.matmul %477, %478, %cst_149 {dimension_numbers = #tpu.dot_dimension_numbers<[2], [1], [1], [2], [0, 0, 0, 1, 1, 2], [0], [0]>} : vector<2x8x8xf32>, vector<2x8x8xf32>, vector<2x8x8xf32> -> vector<2x8x8xf32>
    "tpu.trace_stop"() : () -> ()
    %480 = vector.extract_strided_slice %451 {offsets = [0, 0, 16], sizes = [2, 8, 8], strides = [1, 1, 1]} : vector<2x8x32xf32> to vector<2x8x8xf32>
    %481 = vector.extract_strided_slice %448 {offsets = [0, 0, 16], sizes = [2, 8, 8], strides = [1, 1, 1]} : vector<2x8x32xf32> to vector<2x8x8xf32>
    "tpu.trace_start"() <{level = 10 : i32, message = "bqd,bkd->bqk"}> : () -> ()
    %cst_150 = arith.constant dense<0.000000e+00> : vector<2x8x8xf32>
    %482 = tpu.matmul %480, %481, %cst_150 {dimension_numbers = #tpu.dot_dimension_numbers<[2], [2], [1], [1], [0, 0, 0, 1, 1, 1], [0], [0]>} : vector<2x8x8xf32>, vector<2x8x8xf32>, vector<2x8x8xf32> -> vector<2x8x8xf32>
    "tpu.trace_stop"() : () -> ()
    %cst_151 = arith.constant dense<0xFF800000> : vector<2x8xf32>
    %483 = vector.multi_reduction <maximumf>, %482, %cst_151 [2] : vector<2x8x8xf32> to vector<2x8xf32>
    %484 = vector.shape_cast %483 : vector<2x8xf32> to vector<2x8x1xf32>
    %485 = vector.broadcast %484 : vector<2x8x1xf32> to vector<2x8x8xf32>
    %486 = arith.subf %482, %485 : vector<2x8x8xf32>
    %487 = math.exp %486 : vector<2x8x8xf32>
    %cst_152 = arith.constant dense<0.000000e+00> : vector<2x8xf32>
    %488 = vector.multi_reduction <add>, %487, %cst_152 [2] : vector<2x8x8xf32> to vector<2x8xf32>
    %489 = vector.shape_cast %488 : vector<2x8xf32> to vector<2x8x1xf32>
    %490 = vector.broadcast %489 : vector<2x8x1xf32> to vector<2x8x8xf32>
    %491 = arith.divf %487, %490 : vector<2x8x8xf32>
    %492 = vector.extract_strided_slice %449 {offsets = [0, 0, 16], sizes = [2, 8, 8], strides = [1, 1, 1]} : vector<2x8x32xf32> to vector<2x8x8xf32>
    "tpu.trace_start"() <{level = 10 : i32, message = "bqk,bkd->bqd"}> : () -> ()
    %cst_153 = arith.constant dense<0.000000e+00> : vector<2x8x8xf32>
    %493 = tpu.matmul %491, %492, %cst_153 {dimension_numbers = #tpu.dot_dimension_numbers<[2], [1], [1], [2], [0, 0, 0, 1, 1, 2], [0], [0]>} : vector<2x8x8xf32>, vector<2x8x8xf32>, vector<2x8x8xf32> -> vector<2x8x8xf32>
    "tpu.trace_stop"() : () -> ()
    %494 = vector.extract_strided_slice %451 {offsets = [0, 0, 24], sizes = [2, 8, 8], strides = [1, 1, 1]} : vector<2x8x32xf32> to vector<2x8x8xf32>
    %495 = vector.extract_strided_slice %448 {offsets = [0, 0, 24], sizes = [2, 8, 8], strides = [1, 1, 1]} : vector<2x8x32xf32> to vector<2x8x8xf32>
    "tpu.trace_start"() <{level = 10 : i32, message = "bqd,bkd->bqk"}> : () -> ()
    %cst_154 = arith.constant dense<0.000000e+00> : vector<2x8x8xf32>
    %496 = tpu.matmul %494, %495, %cst_154 {dimension_numbers = #tpu.dot_dimension_numbers<[2], [2], [1], [1], [0, 0, 0, 1, 1, 1], [0], [0]>} : vector<2x8x8xf32>, vector<2x8x8xf32>, vector<2x8x8xf32> -> vector<2x8x8xf32>
    "tpu.trace_stop"() : () -> ()
    %cst_155 = arith.constant dense<0xFF800000> : vector<2x8xf32>
    %497 = vector.multi_reduction <maximumf>, %496, %cst_155 [2] : vector<2x8x8xf32> to vector<2x8xf32>
    %498 = vector.shape_cast %497 : vector<2x8xf32> to vector<2x8x1xf32>
    %499 = vector.broadcast %498 : vector<2x8x1xf32> to vector<2x8x8xf32>
    %500 = arith.subf %496, %499 : vector<2x8x8xf32>
    %501 = math.exp %500 : vector<2x8x8xf32>
    %cst_156 = arith.constant dense<0.000000e+00> : vector<2x8xf32>
    %502 = vector.multi_reduction <add>, %501, %cst_156 [2] : vector<2x8x8xf32> to vector<2x8xf32>
    %503 = vector.shape_cast %502 : vector<2x8xf32> to vector<2x8x1xf32>
    %504 = vector.broadcast %503 : vector<2x8x1xf32> to vector<2x8x8xf32>
    %505 = arith.divf %501, %504 : vector<2x8x8xf32>
    %506 = vector.extract_strided_slice %449 {offsets = [0, 0, 24], sizes = [2, 8, 8], strides = [1, 1, 1]} : vector<2x8x32xf32> to vector<2x8x8xf32>
    "tpu.trace_start"() <{level = 10 : i32, message = "bqk,bkd->bqd"}> : () -> ()
    %cst_157 = arith.constant dense<0.000000e+00> : vector<2x8x8xf32>
    %507 = tpu.matmul %505, %506, %cst_157 {dimension_numbers = #tpu.dot_dimension_numbers<[2], [1], [1], [2], [0, 0, 0, 1, 1, 2], [0], [0]>} : vector<2x8x8xf32>, vector<2x8x8xf32>, vector<2x8x8xf32> -> vector<2x8x8xf32>
    "tpu.trace_stop"() : () -> ()
    %508 = tpu.concatenate %465, %479, %493, %507 in 2 : vector<2x8x8xf32>, vector<2x8x8xf32>, vector<2x8x8xf32>, vector<2x8x8xf32> -> vector<2x8x32xf32>
    %509 = vector.shape_cast %508 : vector<2x8x32xf32> to vector<16x32xf32>
    %cst_158 = arith.constant dense<0.000000e+00> : vector<16x32xf32>
    %510 = tpu.matmul %509, %308, %cst_158 {dimension_numbers = #tpu.dot_dimension_numbers<[1], [0], [0], [1], [0, 0, 1, 1], [], []>} : vector<16x32xf32>, vector<32x32xf32>, vector<16x32xf32> -> vector<16x32xf32>
    %511 = vector.shape_cast %310 : vector<32xf32> to vector<1x32xf32>
    %512 = vector.broadcast %511 : vector<1x32xf32> to vector<16x32xf32>
    %513 = arith.addf %510, %512 : vector<16x32xf32>
    %514 = vector.shape_cast %513 : vector<16x32xf32> to vector<2x8x32xf32>
    %515 = arith.addf %435, %514 : vector<2x8x32xf32>
    %cst_159 = arith.constant dense<0.000000e+00> : vector<2x8xf32>
    %516 = vector.multi_reduction <add>, %515, %cst_159 [2] : vector<2x8x32xf32> to vector<2x8xf32>
    %517 = vector.shape_cast %516 : vector<2x8xf32> to vector<2x8x1xf32>
    %cst_160 = arith.constant 3.200000e+01 : f32
    %518 = vector.broadcast %cst_160 : f32 to vector<2x8x1xf32>
    %519 = arith.divf %517, %518 : vector<2x8x1xf32>
    %520 = vector.broadcast %519 : vector<2x8x1xf32> to vector<2x8x32xf32>
    %521 = arith.subf %515, %520 : vector<2x8x32xf32>
    %522 = arith.mulf %521, %521 : vector<2x8x32xf32>
    %cst_161 = arith.constant dense<0.000000e+00> : vector<2x8xf32>
    %523 = vector.multi_reduction <add>, %522, %cst_161 [2] : vector<2x8x32xf32> to vector<2x8xf32>
    %524 = vector.shape_cast %523 : vector<2x8xf32> to vector<2x8x1xf32>
    %cst_162 = arith.constant 3.200000e+01 : f32
    %525 = vector.broadcast %cst_162 : f32 to vector<2x8x1xf32>
    %526 = arith.divf %524, %525 : vector<2x8x1xf32>
    %cst_163 = arith.constant 9.99999974E-6 : f32
    %527 = vector.broadcast %cst_163 : f32 to vector<2x8x1xf32>
    %528 = arith.addf %526, %527 : vector<2x8x1xf32>
    %529 = math.rsqrt %528 : vector<2x8x1xf32>
    %530 = vector.broadcast %529 : vector<2x8x1xf32> to vector<2x8x32xf32>
    %531 = arith.mulf %521, %530 : vector<2x8x32xf32>
    %532 = vector.shape_cast %320 : vector<32xf32> to vector<1x1x32xf32>
    %533 = vector.broadcast %532 : vector<1x1x32xf32> to vector<2x8x32xf32>
    %534 = arith.mulf %531, %533 : vector<2x8x32xf32>
    %535 = vector.shape_cast %322 : vector<32xf32> to vector<1x1x32xf32>
    %536 = vector.broadcast %535 : vector<1x1x32xf32> to vector<2x8x32xf32>
    %537 = arith.addf %534, %536 : vector<2x8x32xf32>
    %538 = vector.shape_cast %537 : vector<2x8x32xf32> to vector<16x32xf32>
    %cst_164 = arith.constant dense<0.000000e+00> : vector<16x64xf32>
    %539 = tpu.matmul %538, %312, %cst_164 {dimension_numbers = #tpu.dot_dimension_numbers<[1], [0], [0], [1], [0, 0, 1, 1], [], []>} : vector<16x32xf32>, vector<32x64xf32>, vector<16x64xf32> -> vector<16x64xf32>
    %540 = vector.shape_cast %314 : vector<64xf32> to vector<1x64xf32>
    %541 = vector.broadcast %540 : vector<1x64xf32> to vector<16x64xf32>
    %542 = arith.addf %539, %541 : vector<16x64xf32>
    %543 = vector.shape_cast %542 : vector<16x64xf32> to vector<2x8x64xf32>
    %cst_165 = arith.constant 0.000000e+00 : f32
    %544 = vector.broadcast %cst_165 : f32 to vector<2x8x64xf32>
    %545 = arith.maximumf %543, %544 : vector<2x8x64xf32>
    %546 = vector.shape_cast %545 : vector<2x8x64xf32> to vector<16x64xf32>
    %cst_166 = arith.constant dense<0.000000e+00> : vector<16x32xf32>
    %547 = tpu.matmul %546, %316, %cst_166 {dimension_numbers = #tpu.dot_dimension_numbers<[1], [0], [0], [1], [0, 0, 1, 1], [], []>} : vector<16x64xf32>, vector<64x32xf32>, vector<16x32xf32> -> vector<16x32xf32>
    %548 = vector.shape_cast %318 : vector<32xf32> to vector<1x32xf32>
    %549 = vector.broadcast %548 : vector<1x32xf32> to vector<16x32xf32>
    %550 = arith.addf %547, %549 : vector<16x32xf32>
    %551 = vector.shape_cast %550 : vector<16x32xf32> to vector<2x8x32xf32>
    %552 = arith.addf %537, %551 : vector<2x8x32xf32>
    %cst_167 = arith.constant dense<0.000000e+00> : vector<2x8xf32>
    %553 = vector.multi_reduction <add>, %552, %cst_167 [2] : vector<2x8x32xf32> to vector<2x8xf32>
    %554 = vector.shape_cast %553 : vector<2x8xf32> to vector<2x8x1xf32>
    %cst_168 = arith.constant 3.200000e+01 : f32
    %555 = vector.broadcast %cst_168 : f32 to vector<2x8x1xf32>
    %556 = arith.divf %554, %555 : vector<2x8x1xf32>
    %557 = vector.broadcast %556 : vector<2x8x1xf32> to vector<2x8x32xf32>
    %558 = arith.subf %552, %557 : vector<2x8x32xf32>
    %559 = arith.mulf %558, %558 : vector<2x8x32xf32>
    %cst_169 = arith.constant dense<0.000000e+00> : vector<2x8xf32>
    %560 = vector.multi_reduction <add>, %559, %cst_169 [2] : vector<2x8x32xf32> to vector<2x8xf32>
    %561 = vector.shape_cast %560 : vector<2x8xf32> to vector<2x8x1xf32>
    %cst_170 = arith.constant 3.200000e+01 : f32
    %562 = vector.broadcast %cst_170 : f32 to vector<2x8x1xf32>
    %563 = arith.divf %561, %562 : vector<2x8x1xf32>
    %cst_171 = arith.constant 9.99999974E-6 : f32
    %564 = vector.broadcast %cst_171 : f32 to vector<2x8x1xf32>
    %565 = arith.addf %563, %564 : vector<2x8x1xf32>
    %566 = math.rsqrt %565 : vector<2x8x1xf32>
    %567 = vector.broadcast %566 : vector<2x8x1xf32> to vector<2x8x32xf32>
    %568 = arith.mulf %558, %567 : vector<2x8x32xf32>
    %569 = vector.shape_cast %324 : vector<32xf32> to vector<1x1x32xf32>
    %570 = vector.broadcast %569 : vector<1x1x32xf32> to vector<2x8x32xf32>
    %571 = arith.mulf %568, %570 : vector<2x8x32xf32>
    %572 = vector.shape_cast %326 : vector<32xf32> to vector<1x1x32xf32>
    %573 = vector.broadcast %572 : vector<1x1x32xf32> to vector<2x8x32xf32>
    %574 = arith.addf %571, %573 : vector<2x8x32xf32>
    %c0_172 = arith.constant 0 : index
    %c0_173 = arith.constant 0 : index
    %c0_174 = arith.constant 0 : index
    %575 = vector.load %arg9[%c0_172, %c0_173, %c0_174] : memref<2x8x32xf32, #tpu.memory_space<vmem>>, vector<2x8x32xf32>
    tpu.vector_store %arg9[%c0_172, %c0_173, %c0_174], %574 {strides = array<i32>} : memref<2x8x32xf32, #tpu.memory_space<vmem>>, vector<2x8x32xf32>,
    return
  }
}

</mosaic_0001>

<llo_original>
// kernel: tpu_custom_call.1
$region0: #{tpu_custom_call.1}
  #allocation0 [shape = 'u32[]', space=smem, size = 0x4, offset = 0x4, fixed_abs, tag = 'smem constant byte address 0x4 - core index']
  #allocation1 [shape = 'u32[144,128]{1,0:T(1,128)}', space=vmem, size = 0x12000, scoped, tag = 'internal scratch']
  %s0 = inlined_call_operand.hbm [shape: f32[8,8], index: 0, kind: input, shape index: {}]
  %s1 = inlined_call_operand.vmem [shape: f32[2,8,32], index: 1, kind: input, shape index: {}]
  %s2 = inlined_call_operand.hbm [shape: f32[2,8,32], index: 2, kind: input, shape index: {}]
  %s3 = inlined_call_operand.hbm [shape: f32[2,32,96], index: 3, kind: input, shape index: {}]
  %s4 = inlined_call_operand.hbm [shape: f32[2,32,64], index: 4, kind: input, shape index: {}]
  %s5 = inlined_call_operand.vmem [shape: f32[2,3,32,32], index: 5, kind: input, shape index: {}]
  %s6 = inlined_call_operand.hbm [shape: f32[2,32,64], index: 6, kind: input, shape index: {}]
  %s7 = inlined_call_operand.vmem [shape: f32[2,64,32], index: 7, kind: input, shape index: {}]
  %s8 = inlined_call_operand.hbm [shape: f32[2,16,128], index: 8, kind: input, shape index: {}]
  %s9 = inlined_call_operand.hbm [shape: f32[2,8,32], index: 9, kind: output, shape index: {}]
  %s10 = sld [smem:[#allocation0]]
  $region70: #{tpu_custom_call.1} parent=0
    _
  %s12 = ssub.s32 1, %s10
  %s13 = scalar_select 0, %s12, %s10
  $region1: #{tpu_custom_call.1} parent=0
    #allocation2 [shape = 'u8[4096]{0}', space=vmem, size = 0x1000, scoped, tag = 'input window, operand 0, single buffered']
    #allocation3 [shape = 's32[1]{0}', space=sflag, size = 0x4, scoped, tag = 'scoped memory for tpu_custom_call.1']
    #allocation4 [shape = 's32[1]{0}', space=sflag, size = 0x4, scoped, tag = 'scoped memory for tpu_custom_call.1']
    #allocation5 [shape = 'u8[8192]{0}', space=vmem, size = 0x2000, scoped, tag = 'input window, operand 2, single buffered']
    #allocation6 [shape = 's32[1]{0}', space=sflag, size = 0x4, scoped, tag = 'scoped memory for tpu_custom_call.1']
    #allocation7 [shape = 'u8[32768]{0}', space=vmem, size = 0x8000, scoped, tag = 'input window, operand 3, single buffered']
    #allocation8 [shape = 'u8[32768]{0}', space=vmem, size = 0x8000, scoped, tag = 'input window, operand 4, single buffered']
    #allocation9 [shape = 's32[1]{0}', space=sflag, size = 0x4, scoped, tag = 'scoped memory for tpu_custom_call.1']
    #allocation10 [shape = 'u8[32768]{0}', space=vmem, size = 0x8000, scoped, tag = 'input window, operand 6, single buffered']
    #allocation11 [shape = 'u8[16384]{0}', space=vmem, size = 0x4000, scoped, tag = 'input window, operand 8, single buffered']
    #allocation12 [shape = 's32[1]{0}', space=sflag, size = 0x4, scoped, tag = 'scoped memory for tpu_custom_call.1']
    #allocation13 [shape = 'u8[8192]{0}', space=vmem, size = 0x2000, scoped, tag = 'output window, operand 0, single buffered']
    %14 = vsyncpa [#allocation3], 0
    %15 = vsyncpa [#allocation6], 0
    %16 = vsyncpa [#allocation9], 0
    %17 = vsyncpa [#allocation12], 0
    %18 = vsyncpa [#allocation4], 0
    // Predicated region
    $region2: #{tpu_custom_call.1} parent=1 // pred_check
      _
    $region3: #{tpu_custom_call.1} parent=1 // pred_check_branch
      %20 = sbr.rel (0) target = $region5
    $region4: #{tpu_custom_call.1} parent=1 // pred_region
      %s22 = ssub.s32 128, 128
      %23 = vsyncadd [#allocation3], %s22
      %s25 = sshll.u32 [#allocation2], 4
      %s26 = int_to_ptr.vmem [resolvable:$true] %s25
      %28 = dma.hbm_to_vmem [thread:$0]  %s0, 128, %s26, [#allocation3]
    $region5: #{tpu_custom_call.1} parent=1 // pred_fallthru
      _
    // Predicated region
    $region6: #{tpu_custom_call.1} parent=1 // pred_check
      _
    $region7: #{tpu_custom_call.1} parent=1 // pred_check_branch
      %30 = sbr.rel (0) target = $region9
    $region8: #{tpu_custom_call.1} parent=1 // pred_region
      _
    $region9: #{tpu_custom_call.1} parent=1 // pred_fallthru
      _
    // Predicated region
    $region10: #{tpu_custom_call.1} parent=1 // pred_check
      _
    $region11: #{tpu_custom_call.1} parent=1 // pred_check_branch
      %32 = sbr.rel (0) target = $region13
    $region12: #{tpu_custom_call.1} parent=1 // pred_region
      %s34 = ssub.s32 256, 256
      %35 = vsyncadd [#allocation6], %s34
      %s36 = sshll.u32 [#allocation5], 4
      %s37 = int_to_ptr.vmem [resolvable:$true] %s36
      %42 = dma.hbm_to_vmem [thread:$0]  %s2, 256, %s37, [#allocation6], 128, 128, 8
    $region13: #{tpu_custom_call.1} parent=1 // pred_fallthru
      _
    // Predicated region
    $region14: #{tpu_custom_call.1} parent=1 // pred_check
      _
    $region15: #{tpu_custom_call.1} parent=1 // pred_check_branch
      %44 = sbr.rel (0) target = $region17
    $region16: #{tpu_custom_call.1} parent=1 // pred_region
      %s46 = ssub.s32 1024, 1024
      %47 = vsyncadd [#allocation6], %s46
      %s48 = sshll.u32 [#allocation7], 4
      %s49 = int_to_ptr.vmem [resolvable:$true] %s48
      %54 = dma.hbm_to_vmem [thread:$0]  %s3, 1024, %s49, [#allocation6], 128, 128, 8
    $region17: #{tpu_custom_call.1} parent=1 // pred_fallthru
      _
    // Predicated region
    $region18: #{tpu_custom_call.1} parent=1 // pred_check
      _
    $region19: #{tpu_custom_call.1} parent=1 // pred_check_branch
      %56 = sbr.rel (0) target = $region21
    $region20: #{tpu_custom_call.1} parent=1 // pred_region
      %s58 = ssub.s32 1024, 1024
      %59 = vsyncadd [#allocation9], %s58
      %s60 = sshll.u32 [#allocation8], 4
      %s61 = int_to_ptr.vmem [resolvable:$true] %s60
      %66 = dma.hbm_to_vmem [thread:$0]  %s4, 1024, %s61, [#allocation9], 128, 128, 8
    $region21: #{tpu_custom_call.1} parent=1 // pred_fallthru
      _
    // Predicated region
    $region22: #{tpu_custom_call.1} parent=1 // pred_check
      _
    $region23: #{tpu_custom_call.1} parent=1 // pred_check_branch
      %68 = sbr.rel (0) target = $region25
    $region24: #{tpu_custom_call.1} parent=1 // pred_region
      _
    $region25: #{tpu_custom_call.1} parent=1 // pred_fallthru
      _
    // Predicated region
    $region26: #{tpu_custom_call.1} parent=1 // pred_check
      _
    $region27: #{tpu_custom_call.1} parent=1 // pred_check_branch
      %70 = sbr.rel (0) target = $region29
    $region28: #{tpu_custom_call.1} parent=1 // pred_region
      %s72 = ssub.s32 1024, 1024
      %73 = vsyncadd [#allocation9], %s72
      %s74 = sshll.u32 [#allocation10], 4
      %s75 = int_to_ptr.vmem [resolvable:$true] %s74
      %80 = dma.hbm_to_vmem [thread:$0]  %s6, 1024, %s75, [#allocation9], 128, 128, 8
    $region29: #{tpu_custom_call.1} parent=1 // pred_fallthru
      _
    // Predicated region
    $region30: #{tpu_custom_call.1} parent=1 // pred_check
      _
    $region31: #{tpu_custom_call.1} parent=1 // pred_check_branch
      %82 = sbr.rel (0) target = $region33
    $region32: #{tpu_custom_call.1} parent=1 // pred_region
      _
    $region33: #{tpu_custom_call.1} parent=1 // pred_fallthru
      _
    // Predicated region
    $region34: #{tpu_custom_call.1} parent=1 // pred_check
      _
    $region35: #{tpu_custom_call.1} parent=1 // pred_check_branch
      %84 = sbr.rel (0) target = $region37
    $region36: #{tpu_custom_call.1} parent=1 // pred_region
      %s86 = ssub.s32 512, 512
      %87 = vsyncadd [#allocation12], %s86
      %s88 = sshll.u32 [#allocation11], 4
      %s89 = int_to_ptr.vmem [resolvable:$true] %s88
      %94 = dma.hbm_to_vmem [thread:$0]  %s8, 512, %s89, [#allocation12], 128, 128, 8
    $region37: #{tpu_custom_call.1} parent=1 // pred_fallthru
      _
    // Predicated region
    $region38: #{tpu_custom_call.1} parent=1 // pred_check
      _
    $region39: #{tpu_custom_call.1} parent=1 // pred_check_branch
      %96 = sbr.rel (0) target = $region41
    $region40: #{tpu_custom_call.1} parent=1 // pred_region
      %97 = dma.done [#allocation3], 128
    $region41: #{tpu_custom_call.1} parent=1 // pred_fallthru
      _
    // Predicated region
    $region42: #{tpu_custom_call.1} parent=1 // pred_check
      _
    $region43: #{tpu_custom_call.1} parent=1 // pred_check_branch
      %99 = sbr.rel (0) target = $region45
    $region44: #{tpu_custom_call.1} parent=1 // pred_region
      %100 = dma.done [#allocation6], 256
    $region45: #{tpu_custom_call.1} parent=1 // pred_fallthru
      _
    // Predicated region
    $region46: #{tpu_custom_call.1} parent=1 // pred_check
      _
    $region47: #{tpu_custom_call.1} parent=1 // pred_check_branch
      %102 = sbr.rel (0) target = $region49
    $region48: #{tpu_custom_call.1} parent=1 // pred_region
      %103 = dma.done [#allocation6], 1024
    $region49: #{tpu_custom_call.1} parent=1 // pred_fallthru
      _
    // Predicated region
    $region50: #{tpu_custom_call.1} parent=1 // pred_check
      _
    $region51: #{tpu_custom_call.1} parent=1 // pred_check_branch
      %105 = sbr.rel (0) target = $region53
    $region52: #{tpu_custom_call.1} parent=1 // pred_region
      %106 = dma.done [#allocation9], 1024
    $region53: #{tpu_custom_call.1} parent=1 // pred_fallthru
      _
    // Predicated region
    $region54: #{tpu_custom_call.1} parent=1 // pred_check
      _
    $region55: #{tpu_custom_call.1} parent=1 // pred_check_branch
      %108 = sbr.rel (0) target = $region57
    $region56: #{tpu_custom_call.1} parent=1 // pred_region
      %109 = dma.done [#allocation9], 1024
    $region57: #{tpu_custom_call.1} parent=1 // pred_fallthru
      _
    // Predicated region
    $region58: #{tpu_custom_call.1} parent=1 // pred_check
      _
    $region59: #{tpu_custom_call.1} parent=1 // pred_check_branch
      %111 = sbr.rel (0) target = $region61
    $region60: #{tpu_custom_call.1} parent=1 // pred_region
      %112 = dma.done [#allocation12], 512
    $region61: #{tpu_custom_call.1} parent=1 // pred_fallthru
      _
    %v113 = vld [vmem:[%s1] sm:$0xff]
    %v114 = vld [vmem:[%s1 + $0x8] sm:$0xff]
    %v115 = vld [vmem:[#allocation5] sm:$0xff]
    %v116 = vld [vmem:[#allocation5 + $0x8] sm:$0xff]
    %v117 = vld [vmem:[#allocation2] sm:$0xff]
    %v118 = vld [vmem:[#allocation11] sm:$0xff]
    %v119 = vld [vmem:[#allocation11 + $0x8] sm:$0xff]
    %v120 = vld [vmem:[#allocation7] sm:$0xff]
    %v121 = vld [vmem:[#allocation7 + $0x8] sm:$0xff]
    %v122 = vld [vmem:[#allocation7 + $0x10] sm:$0xff]
    %v123 = vld [vmem:[#allocation7 + $0x18] sm:$0xff]
    %v124 = vld [vmem:[#allocation8] sm:$0xff]
    %v125 = vld [vmem:[#allocation8 + $0x8] sm:$0xff]
    %v126 = vld [vmem:[#allocation8 + $0x10] sm:$0xff]
    %v127 = vld [vmem:[#allocation8 + $0x18] sm:$0xff]
    %v128 = vld [vmem:[%s5] sm:$0xff]
    %v129 = vld [vmem:[%s5 + $0x8] sm:$0xff]
    %v130 = vld [vmem:[%s5 + $0x10] sm:$0xff]
    %v131 = vld [vmem:[%s5 + $0x18] sm:$0xff]
    %s132 = scalar_lea.vmem %s5, 32
    %v133 = vld [vmem:[%s132] sm:$0xff]
    %v134 = vld [vmem:[%s132 + $0x8] sm:$0xff]
    %v135 = vld [vmem:[%s132 + $0x10] sm:$0xff]
    %v136 = vld [vmem:[%s132 + $0x18] sm:$0xff]
    %s137 = scalar_lea.vmem %s5, 64
    %v138 = vld [vmem:[%s137] sm:$0xff]
    %v139 = vld [vmem:[%s137 + $0x8] sm:$0xff]
    %v140 = vld [vmem:[%s137 + $0x10] sm:$0xff]
    %v141 = vld [vmem:[%s137 + $0x18] sm:$0xff]
    %v142 = vld [vmem:[#allocation10] sm:$0xff]
    %v143 = vld [vmem:[#allocation10 + $0x8] sm:$0xff]
    %v144 = vld [vmem:[#allocation10 + $0x10] sm:$0xff]
    %v145 = vld [vmem:[#allocation10 + $0x18] sm:$0xff]
    %v146 = vld [vmem:[%s7] sm:$0xff]
    %v147 = vld [vmem:[%s7 + $0x8] sm:$0xff]
    %v148 = vld [vmem:[%s7 + $0x10] sm:$0xff]
    %v149 = vld [vmem:[%s7 + $0x18] sm:$0xff]
    %v150 = vld [vmem:[%s7 + $0x20] sm:$0xff]
    %v151 = vld [vmem:[%s7 + $0x28] sm:$0xff]
    %v152 = vld [vmem:[%s7 + $0x30] sm:$0xff]
    %v153 = vld [vmem:[%s7 + $0x38] sm:$0xff]
    %v154 = vlaneseq
    %v155 = vshrl.u32 %v154, 7
    %v156 = vsub.s32 0, %v155
    %v157 = vrot.slane %v118, %v156
    %vm158 = vcmask 261120
    %v160 = vsel %vm158, %v113, 0
    %v163 = vsel %vm158, %v114, 0
    %165 = vmatprep.subr.mxu0 0.0
    %166 = vmatpush1.msra.mxu0 %v120
    %167 = vmatprep.subr.mxu0 0.0
    %168 = vmatpush1.msra.mxu0 %v121
    %169 = vmatprep.subr.mxu0 0.0
    %170 = vmatpush1.msra.mxu0 %v122
    %171 = vmatprep.subr.mxu0 0.0
    %172 = vmatpush1.msra.mxu0 %v123
    %173 = vmatprep.subr.mxu0 0.0
    %174 = vmatpush1.msra.mxu0 0.0
    %175 = vmatprep.subr.mxu0 0.0
    %176 = vmatpush1.msra.mxu0 0.0
    %177 = vmatprep.subr.mxu0 0.0
    %178 = vmatpush1.msra.mxu0 0.0
    %179 = vmatprep.subr.mxu0 0.0
    %180 = vmatpush1.msra.mxu0 0.0
    %181 = vmatprep.subr.mxu0 0.0
    %182 = vmatpush1.msra.mxu0 0.0
    %183 = vmatprep.subr.mxu0 0.0
    %184 = vmatpush1.msra.mxu0 0.0
    %185 = vmatprep.subr.mxu0 0.0
    %186 = vmatpush1.msra.mxu0 0.0
    %187 = vmatprep.subr.mxu0 0.0
    %188 = vmatpush1.msra.mxu0 0.0
    %189 = vmatprep.subr.mxu0 0.0
    %190 = vmatpush1.msra.mxu0 0.0
    %191 = vmatprep.subr.mxu0 0.0
    %192 = vmatpush1.msra.mxu0 0.0
    %193 = vmatprep.subr.mxu0 0.0
    %194 = vmatpush1.msra.mxu0 0.0
    %195 = vmatprep.subr.mxu0 0.0
    %196 = vmatpush1.msra.mxu0 0.0
    %197 = vmatprep.subr.mxu0 0.0
    %198 = vmatpush1.msra.mxu0 0.0
    %199 = vmatprep.subr.mxu0 0.0
    %200 = vmatpush1.msra.mxu0 0.0
    %201 = vmatprep.subr.mxu0 0.0
    %202 = vmatpush1.msra.mxu0 0.0
    %203 = vmatprep.subr.mxu0 0.0
    %204 = vmatpush1.msra.mxu0 0.0
    %205 = vmatprep.subr.mxu0 0.0
    %206 = vmatpush1.msra.mxu0 0.0
    %207 = vmatprep.subr.mxu0 0.0
    %208 = vmatpush1.msra.mxu0 0.0
    %209 = vmatprep.subr.mxu0 0.0
    %210 = vmatpush1.msra.mxu0 0.0
    %211 = vmatprep.subr.mxu0 0.0
    %212 = vmatpush1.msra.mxu0 0.0
    %213 = vmatprep.subr.mxu0 0.0
    %214 = vmatpush1.msra.mxu0 0.0
    %215 = vmatprep.subr.mxu0 0.0
    %216 = vmatpush1.msra.mxu0 0.0
    %217 = vmatprep.subr.mxu0 0.0
    %218 = vmatpush1.msra.mxu0 0.0
    %219 = vmatprep.subr.mxu0 0.0
    %220 = vmatpush1.msra.mxu0 0.0
    %221 = vmatprep.subr.mxu0 0.0
    %222 = vmatpush1.msra.mxu0 0.0
    %223 = vmatprep.subr.mxu0 0.0
    %224 = vmatpush1.msra.mxu0 0.0
    %225 = vmatprep.subr.mxu0 0.0
    %226 = vmatpush1.msra.mxu0 0.0
    %227 = vmatprep.subr.mxu0 0.0
    %228 = vmatpush1.msra.mxu0 0.0
    %229 = vmatprep.mubr.f32.mxu0 0.0
    %230 = vmatmul.mubr.f32.gmra.mrb[0].mxu0 %v160
    %v231 = vpop.f32.mrb[0].mxu0
    %v232 = vadd.f32 %v157, %v231
    %v233 = vpop.f32.mrb[0].mxu0
    %234 = vmatprep.mubr.f32.mxu0 0.0
    %235 = vmatmul.mubr.f32.gmra.mrb[0].mxu0 %v163
    %v236 = vpop.f32.mrb[0].mxu0
    %v237 = vadd.f32 %v157, %v236
    %v238 = vpop.f32.mrb[0].mxu0
    %239 = vdwg.mxu0
    %v240 = vmul.f32 %v232, 0.35355338
    %v241 = vmul.f32 %v237, 0.35355338
    %243 = vrot.lane.b32.xlu0 %v232, 96
    %v244 = vpop.permute.xlu0 %243
    %vm245 = vcmask 64512
    %v247 = vsel %vm245, %v240, 0
    %v249 = vsel %vm245, %v244, 0
    %251 = vmatprep.subr.mxu0 0.0
    %252 = vmatpush1.xpose.msra.mxu0 %v249
    %253 = vmatprep.subr.mxu0 0.0
    %254 = vmatpush1.xpose.msra.mxu0 0.0
    %255 = vmatprep.subr.mxu0 0.0
    %256 = vmatpush1.xpose.msra.mxu0 0.0
    %257 = vmatprep.subr.mxu0 0.0
    %258 = vmatpush1.xpose.msra.mxu0 0.0
    %259 = vmatprep.subr.mxu0 0.0
    %260 = vmatpush1.xpose.msra.mxu0 0.0
    %261 = vmatprep.subr.mxu0 0.0
    %262 = vmatpush1.xpose.msra.mxu0 0.0
    %263 = vmatprep.subr.mxu0 0.0
    %264 = vmatpush1.xpose.msra.mxu0 0.0
    %265 = vmatprep.subr.mxu0 0.0
    %266 = vmatpush1.xpose.msra.mxu0 0.0
    %267 = vmatprep.subr.mxu0 0.0
    %268 = vmatpush1.xpose.msra.mxu0 0.0
    %269 = vmatprep.subr.mxu0 0.0
    %270 = vmatpush1.xpose.msra.mxu0 0.0
    %271 = vmatprep.subr.mxu0 0.0
    %272 = vmatpush1.xpose.msra.mxu0 0.0
    %273 = vmatprep.subr.mxu0 0.0
    %274 = vmatpush1.xpose.msra.mxu0 0.0
    %275 = vmatprep.subr.mxu0 0.0
    %276 = vmatpush1.xpose.msra.mxu0 0.0
    %277 = vmatprep.subr.mxu0 0.0
    %278 = vmatpush1.xpose.msra.mxu0 0.0
    %279 = vmatprep.subr.mxu0 0.0
    %280 = vmatpush1.xpose.msra.mxu0 0.0
    %281 = vmatprep.subr.mxu0 0.0
    %282 = vmatpush1.xpose.msra.mxu0 0.0
    %283 = vmatprep.subr.mxu0 0.0
    %284 = vmatpush1.xpose.msra.mxu0 0.0
    %285 = vmatprep.subr.mxu0 0.0
    %286 = vmatpush1.xpose.msra.mxu0 0.0
    %287 = vmatprep.subr.mxu0 0.0
    %288 = vmatpush1.xpose.msra.mxu0 0.0
    %289 = vmatprep.subr.mxu0 0.0
    %290 = vmatpush1.xpose.msra.mxu0 0.0
    %291 = vmatprep.subr.mxu0 0.0
    %292 = vmatpush1.xpose.msra.mxu0 0.0
    %293 = vmatprep.subr.mxu0 0.0
    %294 = vmatpush1.xpose.msra.mxu0 0.0
    %295 = vmatprep.subr.mxu0 0.0
    %296 = vmatpush1.xpose.msra.mxu0 0.0
    %297 = vmatprep.subr.mxu0 0.0
    %298 = vmatpush1.xpose.msra.mxu0 0.0
    %299 = vmatprep.subr.mxu0 0.0
    %300 = vmatpush1.xpose.msra.mxu0 0.0
    %301 = vmatprep.subr.mxu0 0.0
    %302 = vmatpush1.xpose.msra.mxu0 0.0
    %303 = vmatprep.subr.mxu0 0.0
    %304 = vmatpush1.xpose.msra.mxu0 0.0
    %305 = vmatprep.subr.mxu0 0.0
    %306 = vmatpush1.xpose.msra.mxu0 0.0
    %307 = vmatprep.subr.mxu0 0.0
    %308 = vmatpush1.xpose.msra.mxu0 0.0
    %309 = vmatprep.subr.mxu0 0.0
    %310 = vmatpush1.xpose.msra.mxu0 0.0
    %311 = vmatprep.subr.mxu0 0.0
    %312 = vmatpush1.xpose.msra.mxu0 0.0
    %313 = vmatprep.subr.mxu0 0.0
    %314 = vmatpush1.xpose.msra.mxu0 0.0
    %315 = vmatprep.mubr.f32.mxu0 0.0
    %316 = vmatmul.mubr.f32.gmra.mrb[0].mxu0 %v247
    %v317 = vpop.f32.mrb[0].mxu0
    %v318 = vadd.f32 %v117, %v317
    %v319 = vpop.f32.mrb[0].mxu0
    %320 = vdwg.mxu0
    %322 = vrot.lane.b32.xlu0 %v237, 96
    %v323 = vpop.permute.xlu0 %322
    %v325 = vsel %vm245, %v241, 0
    %v327 = vsel %vm245, %v323, 0
    %329 = vmatprep.subr.mxu0 0.0
    %330 = vmatpush1.xpose.msra.mxu0 %v327
    %331 = vmatprep.subr.mxu0 0.0
    %332 = vmatpush1.xpose.msra.mxu0 0.0
    %333 = vmatprep.subr.mxu0 0.0
    %334 = vmatpush1.xpose.msra.mxu0 0.0
    %335 = vmatprep.subr.mxu0 0.0
    %336 = vmatpush1.xpose.msra.mxu0 0.0
    %337 = vmatprep.subr.mxu0 0.0
    %338 = vmatpush1.xpose.msra.mxu0 0.0
    %339 = vmatprep.subr.mxu0 0.0
    %340 = vmatpush1.xpose.msra.mxu0 0.0
    %341 = vmatprep.subr.mxu0 0.0
    %342 = vmatpush1.xpose.msra.mxu0 0.0
    %343 = vmatprep.subr.mxu0 0.0
    %344 = vmatpush1.xpose.msra.mxu0 0.0
    %345 = vmatprep.subr.mxu0 0.0
    %346 = vmatpush1.xpose.msra.mxu0 0.0
    %347 = vmatprep.subr.mxu0 0.0
    %348 = vmatpush1.xpose.msra.mxu0 0.0
    %349 = vmatprep.subr.mxu0 0.0
    %350 = vmatpush1.xpose.msra.mxu0 0.0
    %351 = vmatprep.subr.mxu0 0.0
    %352 = vmatpush1.xpose.msra.mxu0 0.0
    %353 = vmatprep.subr.mxu0 0.0
    %354 = vmatpush1.xpose.msra.mxu0 0.0
    %355 = vmatprep.subr.mxu0 0.0
    %356 = vmatpush1.xpose.msra.mxu0 0.0
    %357 = vmatprep.subr.mxu0 0.0
    %358 = vmatpush1.xpose.msra.mxu0 0.0
    %359 = vmatprep.subr.mxu0 0.0
    %360 = vmatpush1.xpose.msra.mxu0 0.0
    %361 = vmatprep.subr.mxu0 0.0
    %362 = vmatpush1.xpose.msra.mxu0 0.0
    %363 = vmatprep.subr.mxu0 0.0
    %364 = vmatpush1.xpose.msra.mxu0 0.0
    %365 = vmatprep.subr.mxu0 0.0
    %366 = vmatpush1.xpose.msra.mxu0 0.0
    %367 = vmatprep.subr.mxu0 0.0
    %368 = vmatpush1.xpose.msra.mxu0 0.0
    %369 = vmatprep.subr.mxu0 0.0
    %370 = vmatpush1.xpose.msra.mxu0 0.0
    %371 = vmatprep.subr.mxu0 0.0
    %372 = vmatpush1.xpose.msra.mxu0 0.0
    %373 = vmatprep.subr.mxu0 0.0
    %374 = vmatpush1.xpose.msra.mxu0 0.0
    %375 = vmatprep.subr.mxu0 0.0
    %376 = vmatpush1.xpose.msra.mxu0 0.0
    %377 = vmatprep.subr.mxu0 0.0
    %378 = vmatpush1.xpose.msra.mxu0 0.0
    %379 = vmatprep.subr.mxu0 0.0
    %380 = vmatpush1.xpose.msra.mxu0 0.0
    %381 = vmatprep.subr.mxu0 0.0
    %382 = vmatpush1.xpose.msra.mxu0 0.0
    %383 = vmatprep.subr.mxu0 0.0
    %384 = vmatpush1.xpose.msra.mxu0 0.0
    %385 = vmatprep.subr.mxu0 0.0
    %386 = vmatpush1.xpose.msra.mxu0 0.0
    %387 = vmatprep.subr.mxu0 0.0
    %388 = vmatpush1.xpose.msra.mxu0 0.0
    %389 = vmatprep.subr.mxu0 0.0
    %390 = vmatpush1.xpose.msra.mxu0 0.0
    %391 = vmatprep.subr.mxu0 0.0
    %392 = vmatpush1.xpose.msra.mxu0 0.0
    %393 = vmatprep.mubr.f32.mxu0 0.0
    %394 = vmatmul.mubr.f32.gmra.mrb[0].mxu0 %v325
    %v395 = vpop.f32.mrb[0].mxu0
    %v396 = vadd.f32 %v117, %v395
    %v397 = vpop.f32.mrb[0].mxu0
    %398 = vdwg.mxu0
    %v399 = vsel %vm245, %v318, -inf
    %400 = vmax.xlane.f32.xlu0 %v399
    %v401 = vpop.xlane.xlu0 %400
    %v402 = vsel %vm245, %v396, -inf
    %403 = vmax.xlane.f32.xlu0 %v402
    %v404 = vpop.xlane.xlu0 %403
    %v405 = vsub.f32 %v318, %v401
    %v406 = vsub.f32 %v396, %v404
    %v407 = vmul.f32 %v405, 1.442695
    %v408 = vpow.pop %v407
    %v409 = vmul.f32 %v406, 1.442695
    %v410 = vpow.pop %v409
    %v411 = vsel %vm245, %v408, 0.0
    %412 = vadd.xlane.f32.xlu0 %v411
    %v413 = vpop.xlane.xlu0 %412
    %v414 = vsel %vm245, %v410, 0.0
    %415 = vadd.xlane.f32.xlu0 %v414
    %v416 = vpop.xlane.xlu0 %415
    %v417 = vrcp.pop %v413
    %v418 = vmul.f32 %v408, %v417
    %v419 = vrcp.pop %v416
    %v420 = vmul.f32 %v410, %v419
    %421 = vrot.lane.b32.xlu0 %v232, 64
    %v422 = vpop.permute.xlu0 %421
    %v425 = vsel %vm245, %v418, 0
    %427 = vmatprep.subr.mxu0 0.0
    %428 = vmatpush1.msra.mxu0 %v422
    %429 = vmatprep.subr.mxu0 0.0
    %430 = vmatpush1.msra.mxu0 0.0
    %431 = vmatprep.subr.mxu0 0.0
    %432 = vmatpush1.msra.mxu0 0.0
    %433 = vmatprep.subr.mxu0 0.0
    %434 = vmatpush1.msra.mxu0 0.0
    %435 = vmatprep.subr.mxu0 0.0
    %436 = vmatpush1.msra.mxu0 0.0
    %437 = vmatprep.subr.mxu0 0.0
    %438 = vmatpush1.msra.mxu0 0.0
    %439 = vmatprep.subr.mxu0 0.0
    %440 = vmatpush1.msra.mxu0 0.0
    %441 = vmatprep.subr.mxu0 0.0
    %442 = vmatpush1.msra.mxu0 0.0
    %443 = vmatprep.subr.mxu0 0.0
    %444 = vmatpush1.msra.mxu0 0.0
    %445 = vmatprep.subr.mxu0 0.0
    %446 = vmatpush1.msra.mxu0 0.0
    %447 = vmatprep.subr.mxu0 0.0
    %448 = vmatpush1.msra.mxu0 0.0
    %449 = vmatprep.subr.mxu0 0.0
    %450 = vmatpush1.msra.mxu0 0.0
    %451 = vmatprep.subr.mxu0 0.0
    %452 = vmatpush1.msra.mxu0 0.0
    %453 = vmatprep.subr.mxu0 0.0
    %454 = vmatpush1.msra.mxu0 0.0
    %455 = vmatprep.subr.mxu0 0.0
    %456 = vmatpush1.msra.mxu0 0.0
    %457 = vmatprep.subr.mxu0 0.0
    %458 = vmatpush1.msra.mxu0 0.0
    %459 = vmatprep.subr.mxu0 0.0
    %460 = vmatpush1.msra.mxu0 0.0
    %461 = vmatprep.subr.mxu0 0.0
    %462 = vmatpush1.msra.mxu0 0.0
    %463 = vmatprep.subr.mxu0 0.0
    %464 = vmatpush1.msra.mxu0 0.0
    %465 = vmatprep.subr.mxu0 0.0
    %466 = vmatpush1.msra.mxu0 0.0
    %467 = vmatprep.subr.mxu0 0.0
    %468 = vmatpush1.msra.mxu0 0.0
    %469 = vmatprep.subr.mxu0 0.0
    %470 = vmatpush1.msra.mxu0 0.0
    %471 = vmatprep.subr.mxu0 0.0
    %472 = vmatpush1.msra.mxu0 0.0
    %473 = vmatprep.subr.mxu0 0.0
    %474 = vmatpush1.msra.mxu0 0.0
    %475 = vmatprep.subr.mxu0 0.0
    %476 = vmatpush1.msra.mxu0 0.0
    %477 = vmatprep.subr.mxu0 0.0
    %478 = vmatpush1.msra.mxu0 0.0
    %479 = vmatprep.subr.mxu0 0.0
    %480 = vmatpush1.msra.mxu0 0.0
    %481 = vmatprep.subr.mxu0 0.0
    %482 = vmatpush1.msra.mxu0 0.0
    %483 = vmatprep.subr.mxu0 0.0
    %484 = vmatpush1.msra.mxu0 0.0
    %485 = vmatprep.subr.mxu0 0.0
    %486 = vmatpush1.msra.mxu0 0.0
    %487 = vmatprep.subr.mxu0 0.0
    %488 = vmatpush1.msra.mxu0 0.0
    %489 = vmatprep.subr.mxu0 0.0
    %490 = vmatpush1.msra.mxu0 0.0
    %491 = vmatprep.mubr.f32.mxu0 0.0
    %492 = vmatmul.mubr.f32.gmra.mrb[0].mxu0 %v425
    %v493 = vpop.f32.mrb[0].mxu0
    %v494 = vadd.f32 0.0, %v493
    %v495 = vpop.f32.mrb[0].mxu0
    %496 = vdwg.mxu0
    %497 = vrot.lane.b32.xlu0 %v237, 64
    %v498 = vpop.permute.xlu0 %497
    %v501 = vsel %vm245, %v420, 0
    %503 = vmatprep.subr.mxu0 0.0
    %504 = vmatpush1.msra.mxu0 %v498
    %505 = vmatprep.subr.mxu0 0.0
    %506 = vmatpush1.msra.mxu0 0.0
    %507 = vmatprep.subr.mxu0 0.0
    %508 = vmatpush1.msra.mxu0 0.0
    %509 = vmatprep.subr.mxu0 0.0
    %510 = vmatpush1.msra.mxu0 0.0
    %511 = vmatprep.subr.mxu0 0.0
    %512 = vmatpush1.msra.mxu0 0.0
    %513 = vmatprep.subr.mxu0 0.0
    %514 = vmatpush1.msra.mxu0 0.0
    %515 = vmatprep.subr.mxu0 0.0
    %516 = vmatpush1.msra.mxu0 0.0
    %517 = vmatprep.subr.mxu0 0.0
    %518 = vmatpush1.msra.mxu0 0.0
    %519 = vmatprep.subr.mxu0 0.0
    %520 = vmatpush1.msra.mxu0 0.0
    %521 = vmatprep.subr.mxu0 0.0
    %522 = vmatpush1.msra.mxu0 0.0
    %523 = vmatprep.subr.mxu0 0.0
    %524 = vmatpush1.msra.mxu0 0.0
    %525 = vmatprep.subr.mxu0 0.0
    %526 = vmatpush1.msra.mxu0 0.0
    %527 = vmatprep.subr.mxu0 0.0
    %528 = vmatpush1.msra.mxu0 0.0
    %529 = vmatprep.subr.mxu0 0.0
    %530 = vmatpush1.msra.mxu0 0.0
    %531 = vmatprep.subr.mxu0 0.0
    %532 = vmatpush1.msra.mxu0 0.0
    %533 = vmatprep.subr.mxu0 0.0
    %534 = vmatpush1.msra.mxu0 0.0
    %535 = vmatprep.subr.mxu0 0.0
    %536 = vmatpush1.msra.mxu0 0.0
    %537 = vmatprep.subr.mxu0 0.0
    %538 = vmatpush1.msra.mxu0 0.0
    %539 = vmatprep.subr.mxu0 0.0
    %540 = vmatpush1.msra.mxu0 0.0
    %541 = vmatprep.subr.mxu0 0.0
    %542 = vmatpush1.msra.mxu0 0.0
    %543 = vmatprep.subr.mxu0 0.0
    %544 = vmatpush1.msra.mxu0 0.0
    %545 = vmatprep.subr.mxu0 0.0
    %546 = vmatpush1.msra.mxu0 0.0
    %547 = vmatprep.subr.mxu0 0.0
    %548 = vmatpush1.msra.mxu0 0.0
    %549 = vmatprep.subr.mxu0 0.0
    %550 = vmatpush1.msra.mxu0 0.0
    %551 = vmatprep.subr.mxu0 0.0
    %552 = vmatpush1.msra.mxu0 0.0
    %553 = vmatprep.subr.mxu0 0.0
    %554 = vmatpush1.msra.mxu0 0.0
    %555 = vmatprep.subr.mxu0 0.0
    %556 = vmatpush1.msra.mxu0 0.0
    %557 = vmatprep.subr.mxu0 0.0
    %558 = vmatpush1.msra.mxu0 0.0
    %559 = vmatprep.subr.mxu0 0.0
    %560 = vmatpush1.msra.mxu0 0.0
    %561 = vmatprep.subr.mxu0 0.0
    %562 = vmatpush1.msra.mxu0 0.0
    %563 = vmatprep.subr.mxu0 0.0
    %564 = vmatpush1.msra.mxu0 0.0
    %565 = vmatprep.subr.mxu0 0.0
    %566 = vmatpush1.msra.mxu0 0.0
    %567 = vmatprep.mubr.f32.mxu0 0.0
    %568 = vmatmul.mubr.f32.gmra.mrb[0].mxu0 %v501
    %v569 = vpop.f32.mrb[0].mxu0
    %v570 = vadd.f32 0.0, %v569
    %v571 = vpop.f32.mrb[0].mxu0
    %572 = vdwg.mxu0
    %573 = vrot.lane.b32.xlu0 %v240, 120
    %v574 = vpop.permute.xlu0 %573
    %575 = vrot.lane.b32.xlu0 %v232, 88
    %v576 = vpop.permute.xlu0 %575
    %v577 = vsel %vm245, %v574, 0
    %v579 = vsel %vm245, %v576, 0
    %581 = vmatprep.subr.mxu0 0.0
    %582 = vmatpush1.xpose.msra.mxu0 %v579
    %583 = vmatprep.subr.mxu0 0.0
    %584 = vmatpush1.xpose.msra.mxu0 0.0
    %585 = vmatprep.subr.mxu0 0.0
    %586 = vmatpush1.xpose.msra.mxu0 0.0
    %587 = vmatprep.subr.mxu0 0.0
    %588 = vmatpush1.xpose.msra.mxu0 0.0
    %589 = vmatprep.subr.mxu0 0.0
    %590 = vmatpush1.xpose.msra.mxu0 0.0
    %591 = vmatprep.subr.mxu0 0.0
    %592 = vmatpush1.xpose.msra.mxu0 0.0
    %593 = vmatprep.subr.mxu0 0.0
    %594 = vmatpush1.xpose.msra.mxu0 0.0
    %595 = vmatprep.subr.mxu0 0.0
    %596 = vmatpush1.xpose.msra.mxu0 0.0
    %597 = vmatprep.subr.mxu0 0.0
    %598 = vmatpush1.xpose.msra.mxu0 0.0
    %599 = vmatprep.subr.mxu0 0.0
    %600 = vmatpush1.xpose.msra.mxu0 0.0
    %601 = vmatprep.subr.mxu0 0.0
    %602 = vmatpush1.xpose.msra.mxu0 0.0
    %603 = vmatprep.subr.mxu0 0.0
    %604 = vmatpush1.xpose.msra.mxu0 0.0
    %605 = vmatprep.subr.mxu0 0.0
    %606 = vmatpush1.xpose.msra.mxu0 0.0
    %607 = vmatprep.subr.mxu0 0.0
    %608 = vmatpush1.xpose.msra.mxu0 0.0
    %609 = vmatprep.subr.mxu0 0.0
    %610 = vmatpush1.xpose.msra.mxu0 0.0
    %611 = vmatprep.subr.mxu0 0.0
    %612 = vmatpush1.xpose.msra.mxu0 0.0
    %613 = vmatprep.subr.mxu0 0.0
    %614 = vmatpush1.xpose.msra.mxu0 0.0
    %615 = vmatprep.subr.mxu0 0.0
    %616 = vmatpush1.xpose.msra.mxu0 0.0
    %617 = vmatprep.subr.mxu0 0.0
    %618 = vmatpush1.xpose.msra.mxu0 0.0
    %619 = vmatprep.subr.mxu0 0.0
    %620 = vmatpush1.xpose.msra.mxu0 0.0
    %621 = vmatprep.subr.mxu0 0.0
    %622 = vmatpush1.xpose.msra.mxu0 0.0
    %623 = vmatprep.subr.mxu0 0.0
    %624 = vmatpush1.xpose.msra.mxu0 0.0
    %625 = vmatprep.subr.mxu0 0.0
    %626 = vmatpush1.xpose.msra.mxu0 0.0
    %627 = vmatprep.subr.mxu0 0.0
    %628 = vmatpush1.xpose.msra.mxu0 0.0
    %629 = vmatprep.subr.mxu0 0.0
    %630 = vmatpush1.xpose.msra.mxu0 0.0
    %631 = vmatprep.subr.mxu0 0.0
    %632 = vmatpush1.xpose.msra.mxu0 0.0
    %633 = vmatprep.subr.mxu0 0.0
    %634 = vmatpush1.xpose.msra.mxu0 0.0
    %635 = vmatprep.subr.mxu0 0.0
    %636 = vmatpush1.xpose.msra.mxu0 0.0
    %637 = vmatprep.subr.mxu0 0.0
    %638 = vmatpush1.xpose.msra.mxu0 0.0
    %639 = vmatprep.subr.mxu0 0.0
    %640 = vmatpush1.xpose.msra.mxu0 0.0
    %641 = vmatprep.subr.mxu0 0.0
    %642 = vmatpush1.xpose.msra.mxu0 0.0
    %643 = vmatprep.subr.mxu0 0.0
    %644 = vmatpush1.xpose.msra.mxu0 0.0
    %645 = vmatprep.mubr.f32.mxu0 0.0
    %646 = vmatmul.mubr.f32.gmra.mrb[0].mxu0 %v577
    %v647 = vpop.f32.mrb[0].mxu0
    %v648 = vadd.f32 %v117, %v647
    %v649 = vpop.f32.mrb[0].mxu0
    %650 = vdwg.mxu0
    %651 = vrot.lane.b32.xlu0 %v241, 120
    %v652 = vpop.permute.xlu0 %651
    %653 = vrot.lane.b32.xlu0 %v237, 88
    %v654 = vpop.permute.xlu0 %653
    %v655 = vsel %vm245, %v652, 0
    %v657 = vsel %vm245, %v654, 0
    %659 = vmatprep.subr.mxu0 0.0
    %660 = vmatpush1.xpose.msra.mxu0 %v657
    %661 = vmatprep.subr.mxu0 0.0
    %662 = vmatpush1.xpose.msra.mxu0 0.0
    %663 = vmatprep.subr.mxu0 0.0
    %664 = vmatpush1.xpose.msra.mxu0 0.0
    %665 = vmatprep.subr.mxu0 0.0
    %666 = vmatpush1.xpose.msra.mxu0 0.0
    %667 = vmatprep.subr.mxu0 0.0
    %668 = vmatpush1.xpose.msra.mxu0 0.0
    %669 = vmatprep.subr.mxu0 0.0
    %670 = vmatpush1.xpose.msra.mxu0 0.0
    %671 = vmatprep.subr.mxu0 0.0
    %672 = vmatpush1.xpose.msra.mxu0 0.0
    %673 = vmatprep.subr.mxu0 0.0
    %674 = vmatpush1.xpose.msra.mxu0 0.0
    %675 = vmatprep.subr.mxu0 0.0
    %676 = vmatpush1.xpose.msra.mxu0 0.0
    %677 = vmatprep.subr.mxu0 0.0
    %678 = vmatpush1.xpose.msra.mxu0 0.0
    %679 = vmatprep.subr.mxu0 0.0
    %680 = vmatpush1.xpose.msra.mxu0 0.0
    %681 = vmatprep.subr.mxu0 0.0
    %682 = vmatpush1.xpose.msra.mxu0 0.0
    %683 = vmatprep.subr.mxu0 0.0
    %684 = vmatpush1.xpose.msra.mxu0 0.0
    %685 = vmatprep.subr.mxu0 0.0
    %686 = vmatpush1.xpose.msra.mxu0 0.0
    %687 = vmatprep.subr.mxu0 0.0
    %688 = vmatpush1.xpose.msra.mxu0 0.0
    %689 = vmatprep.subr.mxu0 0.0
    %690 = vmatpush1.xpose.msra.mxu0 0.0
    %691 = vmatprep.subr.mxu0 0.0
    %692 = vmatpush1.xpose.msra.mxu0 0.0
    %693 = vmatprep.subr.mxu0 0.0
    %694 = vmatpush1.xpose.msra.mxu0 0.0
    %695 = vmatprep.subr.mxu0 0.0
    %696 = vmatpush1.xpose.msra.mxu0 0.0
    %697 = vmatprep.subr.mxu0 0.0
    %698 = vmatpush1.xpose.msra.mxu0 0.0
    %699 = vmatprep.subr.mxu0 0.0
    %700 = vmatpush1.xpose.msra.mxu0 0.0
    %701 = vmatprep.subr.mxu0 0.0
    %702 = vmatpush1.xpose.msra.mxu0 0.0
    %703 = vmatprep.subr.mxu0 0.0
    %704 = vmatpush1.xpose.msra.mxu0 0.0
    %705 = vmatprep.subr.mxu0 0.0
    %706 = vmatpush1.xpose.msra.mxu0 0.0
    %707 = vmatprep.subr.mxu0 0.0
    %708 = vmatpush1.xpose.msra.mxu0 0.0
    %709 = vmatprep.subr.mxu0 0.0
    %710 = vmatpush1.xpose.msra.mxu0 0.0
    %711 = vmatprep.subr.mxu0 0.0
    %712 = vmatpush1.xpose.msra.mxu0 0.0
    %713 = vmatprep.subr.mxu0 0.0
    %714 = vmatpush1.xpose.msra.mxu0 0.0
    %715 = vmatprep.subr.mxu0 0.0
    %716 = vmatpush1.xpose.msra.mxu0 0.0
    %717 = vmatprep.subr.mxu0 0.0
    %718 = vmatpush1.xpose.msra.mxu0 0.0
    %719 = vmatprep.subr.mxu0 0.0
    %720 = vmatpush1.xpose.msra.mxu0 0.0
    %721 = vmatprep.subr.mxu0 0.0
    %722 = vmatpush1.xpose.msra.mxu0 0.0
    %723 = vmatprep.mubr.f32.mxu0 0.0
    %724 = vmatmul.mubr.f32.gmra.mrb[0].mxu0 %v655
    %v725 = vpop.f32.mrb[0].mxu0
    %v726 = vadd.f32 %v117, %v725
    %v727 = vpop.f32.mrb[0].mxu0
    %728 = vdwg.mxu0
    %v729 = vsel %vm245, %v648, -inf
    %730 = vmax.xlane.f32.xlu0 %v729
    %v731 = vpop.xlane.xlu0 %730
    %v732 = vsel %vm245, %v726, -inf
    %733 = vmax.xlane.f32.xlu0 %v732
    %v734 = vpop.xlane.xlu0 %733
    %v735 = vsub.f32 %v648, %v731
    %v736 = vsub.f32 %v726, %v734
    %v737 = vmul.f32 %v735, 1.442695
    %v738 = vpow.pop %v737
    %v739 = vmul.f32 %v736, 1.442695
    %v740 = vpow.pop %v739
    %v741 = vsel %vm245, %v738, 0.0
    %742 = vadd.xlane.f32.xlu0 %v741
    %v743 = vpop.xlane.xlu0 %742
    %v744 = vsel %vm245, %v740, 0.0
    %745 = vadd.xlane.f32.xlu0 %v744
    %v746 = vpop.xlane.xlu0 %745
    %v747 = vrcp.pop %v743
    %v748 = vmul.f32 %v738, %v747
    %v749 = vrcp.pop %v746
    %v750 = vmul.f32 %v740, %v749
    %751 = vrot.lane.b32.xlu0 %v232, 56
    %v752 = vpop.permute.xlu0 %751
    %v755 = vsel %vm245, %v748, 0
    %757 = vmatprep.subr.mxu0 0.0
    %758 = vmatpush1.msra.mxu0 %v752
    %759 = vmatprep.subr.mxu0 0.0
    %760 = vmatpush1.msra.mxu0 0.0
    %761 = vmatprep.subr.mxu0 0.0
    %762 = vmatpush1.msra.mxu0 0.0
    %763 = vmatprep.subr.mxu0 0.0
    %764 = vmatpush1.msra.mxu0 0.0
    %765 = vmatprep.subr.mxu0 0.0
    %766 = vmatpush1.msra.mxu0 0.0
    %767 = vmatprep.subr.mxu0 0.0
    %768 = vmatpush1.msra.mxu0 0.0
    %769 = vmatprep.subr.mxu0 0.0
    %770 = vmatpush1.msra.mxu0 0.0
    %771 = vmatprep.subr.mxu0 0.0
    %772 = vmatpush1.msra.mxu0 0.0
    %773 = vmatprep.subr.mxu0 0.0
    %774 = vmatpush1.msra.mxu0 0.0
    %775 = vmatprep.subr.mxu0 0.0
    %776 = vmatpush1.msra.mxu0 0.0
    %777 = vmatprep.subr.mxu0 0.0
    %778 = vmatpush1.msra.mxu0 0.0
    %779 = vmatprep.subr.mxu0 0.0
    %780 = vmatpush1.msra.mxu0 0.0
    %781 = vmatprep.subr.mxu0 0.0
    %782 = vmatpush1.msra.mxu0 0.0
    %783 = vmatprep.subr.mxu0 0.0
    %784 = vmatpush1.msra.mxu0 0.0
    %785 = vmatprep.subr.mxu0 0.0
    %786 = vmatpush1.msra.mxu0 0.0
    %787 = vmatprep.subr.mxu0 0.0
    %788 = vmatpush1.msra.mxu0 0.0
    %789 = vmatprep.subr.mxu0 0.0
    %790 = vmatpush1.msra.mxu0 0.0
    %791 = vmatprep.subr.mxu0 0.0
    %792 = vmatpush1.msra.mxu0 0.0
    %793 = vmatprep.subr.mxu0 0.0
    %794 = vmatpush1.msra.mxu0 0.0
    %795 = vmatprep.subr.mxu0 0.0
    %796 = vmatpush1.msra.mxu0 0.0
    %797 = vmatprep.subr.mxu0 0.0
    %798 = vmatpush1.msra.mxu0 0.0
    %799 = vmatprep.subr.mxu0 0.0
    %800 = vmatpush1.msra.mxu0 0.0
    %801 = vmatprep.subr.mxu0 0.0
    %802 = vmatpush1.msra.mxu0 0.0
    %803 = vmatprep.subr.mxu0 0.0
    %804 = vmatpush1.msra.mxu0 0.0
    %805 = vmatprep.subr.mxu0 0.0
    %806 = vmatpush1.msra.mxu0 0.0
    %807 = vmatprep.subr.mxu0 0.0
    %808 = vmatpush1.msra.mxu0 0.0
    %809 = vmatprep.subr.mxu0 0.0
    %810 = vmatpush1.msra.mxu0 0.0
    %811 = vmatprep.subr.mxu0 0.0
    %812 = vmatpush1.msra.mxu0 0.0
    %813 = vmatprep.subr.mxu0 0.0
    %814 = vmatpush1.msra.mxu0 0.0
    %815 = vmatprep.subr.mxu0 0.0
    %816 = vmatpush1.msra.mxu0 0.0
    %817 = vmatprep.subr.mxu0 0.0
    %818 = vmatpush1.msra.mxu0 0.0
    %819 = vmatprep.subr.mxu0 0.0
    %820 = vmatpush1.msra.mxu0 0.0
    %821 = vmatprep.mubr.f32.mxu0 0.0
    %822 = vmatmul.mubr.f32.gmra.mrb[0].mxu0 %v755
    %v823 = vpop.f32.mrb[0].mxu0
    %v824 = vadd.f32 0.0, %v823
    %v825 = vpop.f32.mrb[0].mxu0
    %826 = vdwg.mxu0
    %827 = vrot.lane.b32.xlu0 %v237, 56
    %v828 = vpop.permute.xlu0 %827
    %v831 = vsel %vm245, %v750, 0
    %833 = vmatprep.subr.mxu0 0.0
    %834 = vmatpush1.msra.mxu0 %v828
    %835 = vmatprep.subr.mxu0 0.0
    %836 = vmatpush1.msra.mxu0 0.0
    %837 = vmatprep.subr.mxu0 0.0
    %838 = vmatpush1.msra.mxu0 0.0
    %839 = vmatprep.subr.mxu0 0.0
    %840 = vmatpush1.msra.mxu0 0.0
    %841 = vmatprep.subr.mxu0 0.0
    %842 = vmatpush1.msra.mxu0 0.0
    %843 = vmatprep.subr.mxu0 0.0
    %844 = vmatpush1.msra.mxu0 0.0
    %845 = vmatprep.subr.mxu0 0.0
    %846 = vmatpush1.msra.mxu0 0.0
    %847 = vmatprep.subr.mxu0 0.0
    %848 = vmatpush1.msra.mxu0 0.0
    %849 = vmatprep.subr.mxu0 0.0
    %850 = vmatpush1.msra.mxu0 0.0
    %851 = vmatprep.subr.mxu0 0.0
    %852 = vmatpush1.msra.mxu0 0.0
    %853 = vmatprep.subr.mxu0 0.0
    %854 = vmatpush1.msra.mxu0 0.0
    %855 = vmatprep.subr.mxu0 0.0
    %856 = vmatpush1.msra.mxu0 0.0
    %857 = vmatprep.subr.mxu0 0.0
    %858 = vmatpush1.msra.mxu0 0.0
    %859 = vmatprep.subr.mxu0 0.0
    %860 = vmatpush1.msra.mxu0 0.0
    %861 = vmatprep.subr.mxu0 0.0
    %862 = vmatpush1.msra.mxu0 0.0
    %863 = vmatprep.subr.mxu0 0.0
    %864 = vmatpush1.msra.mxu0 0.0
    %865 = vmatprep.subr.mxu0 0.0
    %866 = vmatpush1.msra.mxu0 0.0
    %867 = vmatprep.subr.mxu0 0.0
    %868 = vmatpush1.msra.mxu0 0.0
    %869 = vmatprep.subr.mxu0 0.0
    %870 = vmatpush1.msra.mxu0 0.0
    %871 = vmatprep.subr.mxu0 0.0
    %872 = vmatpush1.msra.mxu0 0.0
    %873 = vmatprep.subr.mxu0 0.0
    %874 = vmatpush1.msra.mxu0 0.0
    %875 = vmatprep.subr.mxu0 0.0
    %876 = vmatpush1.msra.mxu0 0.0
    %877 = vmatprep.subr.mxu0 0.0
    %878 = vmatpush1.msra.mxu0 0.0
    %879 = vmatprep.subr.mxu0 0.0
    %880 = vmatpush1.msra.mxu0 0.0
    %881 = vmatprep.subr.mxu0 0.0
    %882 = vmatpush1.msra.mxu0 0.0
    %883 = vmatprep.subr.mxu0 0.0
    %884 = vmatpush1.msra.mxu0 0.0
    %885 = vmatprep.subr.mxu0 0.0
    %886 = vmatpush1.msra.mxu0 0.0
    %887 = vmatprep.subr.mxu0 0.0
    %888 = vmatpush1.msra.mxu0 0.0
    %889 = vmatprep.subr.mxu0 0.0
    %890 = vmatpush1.msra.mxu0 0.0
    %891 = vmatprep.subr.mxu0 0.0
    %892 = vmatpush1.msra.mxu0 0.0
    %893 = vmatprep.subr.mxu0 0.0
    %894 = vmatpush1.msra.mxu0 0.0
    %895 = vmatprep.subr.mxu0 0.0
    %896 = vmatpush1.msra.mxu0 0.0
    %897 = vmatprep.mubr.f32.mxu0 0.0
    %898 = vmatmul.mubr.f32.gmra.mrb[0].mxu0 %v831
    %v899 = vpop.f32.mrb[0].mxu0
    %v900 = vadd.f32 0.0, %v899
    %v901 = vpop.f32.mrb[0].mxu0
    %902 = vdwg.mxu0
    %903 = vrot.lane.b32.xlu0 %v240, 112
    %v904 = vpop.permute.xlu0 %903
    %905 = vrot.lane.b32.xlu0 %v232, 80
    %v906 = vpop.permute.xlu0 %905
    %v907 = vsel %vm245, %v904, 0
    %v909 = vsel %vm245, %v906, 0
    %911 = vmatprep.subr.mxu0 0.0
    %912 = vmatpush1.xpose.msra.mxu0 %v909
    %913 = vmatprep.subr.mxu0 0.0
    %914 = vmatpush1.xpose.msra.mxu0 0.0
    %915 = vmatprep.subr.mxu0 0.0
    %916 = vmatpush1.xpose.msra.mxu0 0.0
    %917 = vmatprep.subr.mxu0 0.0
    %918 = vmatpush1.xpose.msra.mxu0 0.0
    %919 = vmatprep.subr.mxu0 0.0
    %920 = vmatpush1.xpose.msra.mxu0 0.0
    %921 = vmatprep.subr.mxu0 0.0
    %922 = vmatpush1.xpose.msra.mxu0 0.0
    %923 = vmatprep.subr.mxu0 0.0
    %924 = vmatpush1.xpose.msra.mxu0 0.0
    %925 = vmatprep.subr.mxu0 0.0
    %926 = vmatpush1.xpose.msra.mxu0 0.0
    %927 = vmatprep.subr.mxu0 0.0
    %928 = vmatpush1.xpose.msra.mxu0 0.0
    %929 = vmatprep.subr.mxu0 0.0
    %930 = vmatpush1.xpose.msra.mxu0 0.0
    %931 = vmatprep.subr.mxu0 0.0
    %932 = vmatpush1.xpose.msra.mxu0 0.0
    %933 = vmatprep.subr.mxu0 0.0
    %934 = vmatpush1.xpose.msra.mxu0 0.0
    %935 = vmatprep.subr.mxu0 0.0
    %936 = vmatpush1.xpose.msra.mxu0 0.0
    %937 = vmatprep.subr.mxu0 0.0
    %938 = vmatpush1.xpose.msra.mxu0 0.0
    %939 = vmatprep.subr.mxu0 0.0
    %940 = vmatpush1.xpose.msra.mxu0 0.0
    %941 = vmatprep.subr.mxu0 0.0
    %942 = vmatpush1.xpose.msra.mxu0 0.0
    %943 = vmatprep.subr.mxu0 0.0
    %944 = vmatpush1.xpose.msra.mxu0 0.0
    %945 = vmatprep.subr.mxu0 0.0
    %946 = vmatpush1.xpose.msra.mxu0 0.0
    %947 = vmatprep.subr.mxu0 0.0
    %948 = vmatpush1.xpose.msra.mxu0 0.0
    %949 = vmatprep.subr.mxu0 0.0
    %950 = vmatpush1.xpose.msra.mxu0 0.0
    %951 = vmatprep.subr.mxu0 0.0
    %952 = vmatpush1.xpose.msra.mxu0 0.0
    %953 = vmatprep.subr.mxu0 0.0
    %954 = vmatpush1.xpose.msra.mxu0 0.0
    %955 = vmatprep.subr.mxu0 0.0
    %956 = vmatpush1.xpose.msra.mxu0 0.0
    %957 = vmatprep.subr.mxu0 0.0
    %958 = vmatpush1.xpose.msra.mxu0 0.0
    %959 = vmatprep.subr.mxu0 0.0
    %960 = vmatpush1.xpose.msra.mxu0 0.0
    %961 = vmatprep.subr.mxu0 0.0
    %962 = vmatpush1.xpose.msra.mxu0 0.0
    %963 = vmatprep.subr.mxu0 0.0
    %964 = vmatpush1.xpose.msra.mxu0 0.0
    %965 = vmatprep.subr.mxu0 0.0
    %966 = vmatpush1.xpose.msra.mxu0 0.0
    %967 = vmatprep.subr.mxu0 0.0
    %968 = vmatpush1.xpose.msra.mxu0 0.0
    %969 = vmatprep.subr.mxu0 0.0
    %970 = vmatpush1.xpose.msra.mxu0 0.0
    %971 = vmatprep.subr.mxu0 0.0
    %972 = vmatpush1.xpose.msra.mxu0 0.0
    %973 = vmatprep.subr.mxu0 0.0
    %974 = vmatpush1.xpose.msra.mxu0 0.0
    %975 = vmatprep.mubr.f32.mxu0 0.0
    %976 = vmatmul.mubr.f32.gmra.mrb[0].mxu0 %v907
    %v977 = vpop.f32.mrb[0].mxu0
    %v978 = vadd.f32 %v117, %v977
    %v979 = vpop.f32.mrb[0].mxu0
    %980 = vdwg.mxu0
    %981 = vrot.lane.b32.xlu0 %v241, 112
    %v982 = vpop.permute.xlu0 %981
    %983 = vrot.lane.b32.xlu0 %v237, 80
    %v984 = vpop.permute.xlu0 %983
    %v985 = vsel %vm245, %v982, 0
    %v987 = vsel %vm245, %v984, 0
    %989 = vmatprep.subr.mxu0 0.0
    %990 = vmatpush1.xpose.msra.mxu0 %v987
    %991 = vmatprep.subr.mxu0 0.0
    %992 = vmatpush1.xpose.msra.mxu0 0.0
    %993 = vmatprep.subr.mxu0 0.0
    %994 = vmatpush1.xpose.msra.mxu0 0.0
    %995 = vmatprep.subr.mxu0 0.0
    %996 = vmatpush1.xpose.msra.mxu0 0.0
    %997 = vmatprep.subr.mxu0 0.0
    %998 = vmatpush1.xpose.msra.mxu0 0.0
    %999 = vmatprep.subr.mxu0 0.0
    %1000 = vmatpush1.xpose.msra.mxu0 0.0
    %1001 = vmatprep.subr.mxu0 0.0
    %1002 = vmatpush1.xpose.msra.mxu0 0.0
    %1003 = vmatprep.subr.mxu0 0.0
    %1004 = vmatpush1.xpose.msra.mxu0 0.0
    %1005 = vmatprep.subr.mxu0 0.0
    %1006 = vmatpush1.xpose.msra.mxu0 0.0
    %1007 = vmatprep.subr.mxu0 0.0
    %1008 = vmatpush1.xpose.msra.mxu0 0.0
    %1009 = vmatprep.subr.mxu0 0.0
    %1010 = vmatpush1.xpose.msra.mxu0 0.0
    %1011 = vmatprep.subr.mxu0 0.0
    %1012 = vmatpush1.xpose.msra.mxu0 0.0
    %1013 = vmatprep.subr.mxu0 0.0
    %1014 = vmatpush1.xpose.msra.mxu0 0.0
    %1015 = vmatprep.subr.mxu0 0.0
    %1016 = vmatpush1.xpose.msra.mxu0 0.0
    %1017 = vmatprep.subr.mxu0 0.0
    %1018 = vmatpush1.xpose.msra.mxu0 0.0
    %1019 = vmatprep.subr.mxu0 0.0
    %1020 = vmatpush1.xpose.msra.mxu0 0.0
    %1021 = vmatprep.subr.mxu0 0.0
    %1022 = vmatpush1.xpose.msra.mxu0 0.0
    %1023 = vmatprep.subr.mxu0 0.0
    %1024 = vmatpush1.xpose.msra.mxu0 0.0
    %1025 = vmatprep.subr.mxu0 0.0
    %1026 = vmatpush1.xpose.msra.mxu0 0.0
    %1027 = vmatprep.subr.mxu0 0.0
    %1028 = vmatpush1.xpose.msra.mxu0 0.0
    %1029 = vmatprep.subr.mxu0 0.0
    %1030 = vmatpush1.xpose.msra.mxu0 0.0
    %1031 = vmatprep.subr.mxu0 0.0
    %1032 = vmatpush1.xpose.msra.mxu0 0.0
    %1033 = vmatprep.subr.mxu0 0.0
    %1034 = vmatpush1.xpose.msra.mxu0 0.0
    %1035 = vmatprep.subr.mxu0 0.0
    %1036 = vmatpush1.xpose.msra.mxu0 0.0
    %1037 = vmatprep.subr.mxu0 0.0
    %1038 = vmatpush1.xpose.msra.mxu0 0.0
    %1039 = vmatprep.subr.mxu0 0.0
    %1040 = vmatpush1.xpose.msra.mxu0 0.0
    %1041 = vmatprep.subr.mxu0 0.0
    %1042 = vmatpush1.xpose.msra.mxu0 0.0
    %1043 = vmatprep.subr.mxu0 0.0
    %1044 = vmatpush1.xpose.msra.mxu0 0.0
    %1045 = vmatprep.subr.mxu0 0.0
    %1046 = vmatpush1.xpose.msra.mxu0 0.0
    %1047 = vmatprep.subr.mxu0 0.0
    %1048 = vmatpush1.xpose.msra.mxu0 0.0
    %1049 = vmatprep.subr.mxu0 0.0
    %1050 = vmatpush1.xpose.msra.mxu0 0.0
    %1051 = vmatprep.subr.mxu0 0.0
    %1052 = vmatpush1.xpose.msra.mxu0 0.0
    %1053 = vmatprep.mubr.f32.mxu0 0.0
    %1054 = vmatmul.mubr.f32.gmra.mrb[0].mxu0 %v985
    %v1055 = vpop.f32.mrb[0].mxu0
    %v1056 = vadd.f32 %v117, %v1055
    %v1057 = vpop.f32.mrb[0].mxu0
    %1058 = vdwg.mxu0
    %v1059 = vsel %vm245, %v978, -inf
    %1060 = vmax.xlane.f32.xlu0 %v1059
    %v1061 = vpop.xlane.xlu0 %1060
    %v1062 = vsel %vm245, %v1056, -inf
    %1063 = vmax.xlane.f32.xlu0 %v1062
    %v1064 = vpop.xlane.xlu0 %1063
    %v1065 = vsub.f32 %v978, %v1061
    %v1066 = vsub.f32 %v1056, %v1064
    %v1067 = vmul.f32 %v1065, 1.442695
    %v1068 = vpow.pop %v1067
    %v1069 = vmul.f32 %v1066, 1.442695
    %v1070 = vpow.pop %v1069
    %v1071 = vsel %vm245, %v1068, 0.0
    %1072 = vadd.xlane.f32.xlu0 %v1071
    %v1073 = vpop.xlane.xlu0 %1072
    %v1074 = vsel %vm245, %v1070, 0.0
    %1075 = vadd.xlane.f32.xlu0 %v1074
    %v1076 = vpop.xlane.xlu0 %1075
    %v1077 = vrcp.pop %v1073
    %v1078 = vmul.f32 %v1068, %v1077
    %v1079 = vrcp.pop %v1076
    %v1080 = vmul.f32 %v1070, %v1079
    %1081 = vrot.lane.b32.xlu0 %v232, 48
    %v1082 = vpop.permute.xlu0 %1081
    %v1085 = vsel %vm245, %v1078, 0
    %1087 = vmatprep.subr.mxu0 0.0
    %1088 = vmatpush1.msra.mxu0 %v1082
    %1089 = vmatprep.subr.mxu0 0.0
    %1090 = vmatpush1.msra.mxu0 0.0
    %1091 = vmatprep.subr.mxu0 0.0
    %1092 = vmatpush1.msra.mxu0 0.0
    %1093 = vmatprep.subr.mxu0 0.0
    %1094 = vmatpush1.msra.mxu0 0.0
    %1095 = vmatprep.subr.mxu0 0.0
    %1096 = vmatpush1.msra.mxu0 0.0
    %1097 = vmatprep.subr.mxu0 0.0
    %1098 = vmatpush1.msra.mxu0 0.0
    %1099 = vmatprep.subr.mxu0 0.0
    %1100 = vmatpush1.msra.mxu0 0.0
    %1101 = vmatprep.subr.mxu0 0.0
    %1102 = vmatpush1.msra.mxu0 0.0
    %1103 = vmatprep.subr.mxu0 0.0
    %1104 = vmatpush1.msra.mxu0 0.0
    %1105 = vmatprep.subr.mxu0 0.0
    %1106 = vmatpush1.msra.mxu0 0.0
    %1107 = vmatprep.subr.mxu0 0.0
    %1108 = vmatpush1.msra.mxu0 0.0
    %1109 = vmatprep.subr.mxu0 0.0
    %1110 = vmatpush1.msra.mxu0 0.0
    %1111 = vmatprep.subr.mxu0 0.0
    %1112 = vmatpush1.msra.mxu0 0.0
    %1113 = vmatprep.subr.mxu0 0.0
    %1114 = vmatpush1.msra.mxu0 0.0
    %1115 = vmatprep.subr.mxu0 0.0
    %1116 = vmatpush1.msra.mxu0 0.0
    %1117 = vmatprep.subr.mxu0 0.0
    %1118 = vmatpush1.msra.mxu0 0.0
    %1119 = vmatprep.subr.mxu0 0.0
    %1120 = vmatpush1.msra.mxu0 0.0
    %1121 = vmatprep.subr.mxu0 0.0
    %1122 = vmatpush1.msra.mxu0 0.0
    %1123 = vmatprep.subr.mxu0 0.0
    %1124 = vmatpush1.msra.mxu0 0.0
    %1125 = vmatprep.subr.mxu0 0.0
    %1126 = vmatpush1.msra.mxu0 0.0
    %1127 = vmatprep.subr.mxu0 0.0
    %1128 = vmatpush1.msra.mxu0 0.0
    %1129 = vmatprep.subr.mxu0 0.0
    %1130 = vmatpush1.msra.mxu0 0.0
    %1131 = vmatprep.subr.mxu0 0.0
    %1132 = vmatpush1.msra.mxu0 0.0
    %1133 = vmatprep.subr.mxu0 0.0
    %1134 = vmatpush1.msra.mxu0 0.0
    %1135 = vmatprep.subr.mxu0 0.0
    %1136 = vmatpush1.msra.mxu0 0.0
    %1137 = vmatprep.subr.mxu0 0.0
    %1138 = vmatpush1.msra.mxu0 0.0
    %1139 = vmatprep.subr.mxu0 0.0
    %1140 = vmatpush1.msra.mxu0 0.0
    %1141 = vmatprep.subr.mxu0 0.0
    %1142 = vmatpush1.msra.mxu0 0.0
    %1143 = vmatprep.subr.mxu0 0.0
    %1144 = vmatpush1.msra.mxu0 0.0
    %1145 = vmatprep.subr.mxu0 0.0
    %1146 = vmatpush1.msra.mxu0 0.0
    %1147 = vmatprep.subr.mxu0 0.0
    %1148 = vmatpush1.msra.mxu0 0.0
    %1149 = vmatprep.subr.mxu0 0.0
    %1150 = vmatpush1.msra.mxu0 0.0
    %1151 = vmatprep.mubr.f32.mxu0 0.0
    %1152 = vmatmul.mubr.f32.gmra.mrb[0].mxu0 %v1085
    %v1153 = vpop.f32.mrb[0].mxu0
    %v1154 = vadd.f32 0.0, %v1153
    %v1155 = vpop.f32.mrb[0].mxu0
    %1156 = vdwg.mxu0
    %1157 = vrot.lane.b32.xlu0 %v237, 48
    %v1158 = vpop.permute.xlu0 %1157
    %v1161 = vsel %vm245, %v1080, 0
    %1163 = vmatprep.subr.mxu0 0.0
    %1164 = vmatpush1.msra.mxu0 %v1158
    %1165 = vmatprep.subr.mxu0 0.0
    %1166 = vmatpush1.msra.mxu0 0.0
    %1167 = vmatprep.subr.mxu0 0.0
    %1168 = vmatpush1.msra.mxu0 0.0
    %1169 = vmatprep.subr.mxu0 0.0
    %1170 = vmatpush1.msra.mxu0 0.0
    %1171 = vmatprep.subr.mxu0 0.0
    %1172 = vmatpush1.msra.mxu0 0.0
    %1173 = vmatprep.subr.mxu0 0.0
    %1174 = vmatpush1.msra.mxu0 0.0
    %1175 = vmatprep.subr.mxu0 0.0
    %1176 = vmatpush1.msra.mxu0 0.0
    %1177 = vmatprep.subr.mxu0 0.0
    %1178 = vmatpush1.msra.mxu0 0.0
    %1179 = vmatprep.subr.mxu0 0.0
    %1180 = vmatpush1.msra.mxu0 0.0
    %1181 = vmatprep.subr.mxu0 0.0
    %1182 = vmatpush1.msra.mxu0 0.0
    %1183 = vmatprep.subr.mxu0 0.0
    %1184 = vmatpush1.msra.mxu0 0.0
    %1185 = vmatprep.subr.mxu0 0.0
    %1186 = vmatpush1.msra.mxu0 0.0
    %1187 = vmatprep.subr.mxu0 0.0
    %1188 = vmatpush1.msra.mxu0 0.0
    %1189 = vmatprep.subr.mxu0 0.0
    %1190 = vmatpush1.msra.mxu0 0.0
    %1191 = vmatprep.subr.mxu0 0.0
    %1192 = vmatpush1.msra.mxu0 0.0
    %1193 = vmatprep.subr.mxu0 0.0
    %1194 = vmatpush1.msra.mxu0 0.0
    %1195 = vmatprep.subr.mxu0 0.0
    %1196 = vmatpush1.msra.mxu0 0.0
    %1197 = vmatprep.subr.mxu0 0.0
    %1198 = vmatpush1.msra.mxu0 0.0
    %1199 = vmatprep.subr.mxu0 0.0
    %1200 = vmatpush1.msra.mxu0 0.0
    %1201 = vmatprep.subr.mxu0 0.0
    %1202 = vmatpush1.msra.mxu0 0.0
    %1203 = vmatprep.subr.mxu0 0.0
    %1204 = vmatpush1.msra.mxu0 0.0
    %1205 = vmatprep.subr.mxu0 0.0
    %1206 = vmatpush1.msra.mxu0 0.0
    %1207 = vmatprep.subr.mxu0 0.0
    %1208 = vmatpush1.msra.mxu0 0.0
    %1209 = vmatprep.subr.mxu0 0.0
    %1210 = vmatpush1.msra.mxu0 0.0
    %1211 = vmatprep.subr.mxu0 0.0
    %1212 = vmatpush1.msra.mxu0 0.0
    %1213 = vmatprep.subr.mxu0 0.0
    %1214 = vmatpush1.msra.mxu0 0.0
    %1215 = vmatprep.subr.mxu0 0.0
    %1216 = vmatpush1.msra.mxu0 0.0
    %1217 = vmatprep.subr.mxu0 0.0
    %1218 = vmatpush1.msra.mxu0 0.0
    %1219 = vmatprep.subr.mxu0 0.0
    %1220 = vmatpush1.msra.mxu0 0.0
    %1221 = vmatprep.subr.mxu0 0.0
    %1222 = vmatpush1.msra.mxu0 0.0
    %1223 = vmatprep.subr.mxu0 0.0
    %1224 = vmatpush1.msra.mxu0 0.0
    %1225 = vmatprep.subr.mxu0 0.0
    %1226 = vmatpush1.msra.mxu0 0.0
    %1227 = vmatprep.mubr.f32.mxu0 0.0
    %1228 = vmatmul.mubr.f32.gmra.mrb[0].mxu0 %v1161
    %v1229 = vpop.f32.mrb[0].mxu0
    %v1230 = vadd.f32 0.0, %v1229
    %v1231 = vpop.f32.mrb[0].mxu0
    %1232 = vdwg.mxu0
    %1233 = vrot.lane.b32.xlu0 %v240, 104
    %v1234 = vpop.permute.xlu0 %1233
    %1235 = vrot.lane.b32.xlu0 %v232, 72
    %v1236 = vpop.permute.xlu0 %1235
    %v1237 = vsel %vm245, %v1234, 0
    %v1239 = vsel %vm245, %v1236, 0
    %1241 = vmatprep.subr.mxu0 0.0
    %1242 = vmatpush1.xpose.msra.mxu0 %v1239
    %1243 = vmatprep.subr.mxu0 0.0
    %1244 = vmatpush1.xpose.msra.mxu0 0.0
    %1245 = vmatprep.subr.mxu0 0.0
    %1246 = vmatpush1.xpose.msra.mxu0 0.0
    %1247 = vmatprep.subr.mxu0 0.0
    %1248 = vmatpush1.xpose.msra.mxu0 0.0
    %1249 = vmatprep.subr.mxu0 0.0
    %1250 = vmatpush1.xpose.msra.mxu0 0.0
    %1251 = vmatprep.subr.mxu0 0.0
    %1252 = vmatpush1.xpose.msra.mxu0 0.0
    %1253 = vmatprep.subr.mxu0 0.0
    %1254 = vmatpush1.xpose.msra.mxu0 0.0
    %1255 = vmatprep.subr.mxu0 0.0
    %1256 = vmatpush1.xpose.msra.mxu0 0.0
    %1257 = vmatprep.subr.mxu0 0.0
    %1258 = vmatpush1.xpose.msra.mxu0 0.0
    %1259 = vmatprep.subr.mxu0 0.0
    %1260 = vmatpush1.xpose.msra.mxu0 0.0
    %1261 = vmatprep.subr.mxu0 0.0
    %1262 = vmatpush1.xpose.msra.mxu0 0.0
    %1263 = vmatprep.subr.mxu0 0.0
    %1264 = vmatpush1.xpose.msra.mxu0 0.0
    %1265 = vmatprep.subr.mxu0 0.0
    %1266 = vmatpush1.xpose.msra.mxu0 0.0
    %1267 = vmatprep.subr.mxu0 0.0
    %1268 = vmatpush1.xpose.msra.mxu0 0.0
    %1269 = vmatprep.subr.mxu0 0.0
    %1270 = vmatpush1.xpose.msra.mxu0 0.0
    %1271 = vmatprep.subr.mxu0 0.0
    %1272 = vmatpush1.xpose.msra.mxu0 0.0
    %1273 = vmatprep.subr.mxu0 0.0
    %1274 = vmatpush1.xpose.msra.mxu0 0.0
    %1275 = vmatprep.subr.mxu0 0.0
    %1276 = vmatpush1.xpose.msra.mxu0 0.0
    %1277 = vmatprep.subr.mxu0 0.0
    %1278 = vmatpush1.xpose.msra.mxu0 0.0
    %1279 = vmatprep.subr.mxu0 0.0
    %1280 = vmatpush1.xpose.msra.mxu0 0.0
    %1281 = vmatprep.subr.mxu0 0.0
    %1282 = vmatpush1.xpose.msra.mxu0 0.0
    %1283 = vmatprep.subr.mxu0 0.0
    %1284 = vmatpush1.xpose.msra.mxu0 0.0
    %1285 = vmatprep.subr.mxu0 0.0
    %1286 = vmatpush1.xpose.msra.mxu0 0.0
    %1287 = vmatprep.subr.mxu0 0.0
    %1288 = vmatpush1.xpose.msra.mxu0 0.0
    %1289 = vmatprep.subr.mxu0 0.0
    %1290 = vmatpush1.xpose.msra.mxu0 0.0
    %1291 = vmatprep.subr.mxu0 0.0
    %1292 = vmatpush1.xpose.msra.mxu0 0.0
    %1293 = vmatprep.subr.mxu0 0.0
    %1294 = vmatpush1.xpose.msra.mxu0 0.0
    %1295 = vmatprep.subr.mxu0 0.0
    %1296 = vmatpush1.xpose.msra.mxu0 0.0
    %1297 = vmatprep.subr.mxu0 0.0
    %1298 = vmatpush1.xpose.msra.mxu0 0.0
    %1299 = vmatprep.subr.mxu0 0.0
    %1300 = vmatpush1.xpose.msra.mxu0 0.0
    %1301 = vmatprep.subr.mxu0 0.0
    %1302 = vmatpush1.xpose.msra.mxu0 0.0
    %1303 = vmatprep.subr.mxu0 0.0
    %1304 = vmatpush1.xpose.msra.mxu0 0.0
    %1305 = vmatprep.mubr.f32.mxu0 0.0
    %1306 = vmatmul.mubr.f32.gmra.mrb[0].mxu0 %v1237
    %v1307 = vpop.f32.mrb[0].mxu0
    %v1308 = vadd.f32 %v117, %v1307
    %v1309 = vpop.f32.mrb[0].mxu0
    %1310 = vdwg.mxu0
    %1311 = vrot.lane.b32.xlu0 %v241, 104
    %v1312 = vpop.permute.xlu0 %1311
    %1313 = vrot.lane.b32.xlu0 %v237, 72
    %v1314 = vpop.permute.xlu0 %1313
    %v1315 = vsel %vm245, %v1312, 0
    %v1317 = vsel %vm245, %v1314, 0
    %1319 = vmatprep.subr.mxu0 0.0
    %1320 = vmatpush1.xpose.msra.mxu0 %v1317
    %1321 = vmatprep.subr.mxu0 0.0
    %1322 = vmatpush1.xpose.msra.mxu0 0.0
    %1323 = vmatprep.subr.mxu0 0.0
    %1324 = vmatpush1.xpose.msra.mxu0 0.0
    %1325 = vmatprep.subr.mxu0 0.0
    %1326 = vmatpush1.xpose.msra.mxu0 0.0
    %1327 = vmatprep.subr.mxu0 0.0
    %1328 = vmatpush1.xpose.msra.mxu0 0.0
    %1329 = vmatprep.subr.mxu0 0.0
    %1330 = vmatpush1.xpose.msra.mxu0 0.0
    %1331 = vmatprep.subr.mxu0 0.0
    %1332 = vmatpush1.xpose.msra.mxu0 0.0
    %1333 = vmatprep.subr.mxu0 0.0
    %1334 = vmatpush1.xpose.msra.mxu0 0.0
    %1335 = vmatprep.subr.mxu0 0.0
    %1336 = vmatpush1.xpose.msra.mxu0 0.0
    %1337 = vmatprep.subr.mxu0 0.0
    %1338 = vmatpush1.xpose.msra.mxu0 0.0
    %1339 = vmatprep.subr.mxu0 0.0
    %1340 = vmatpush1.xpose.msra.mxu0 0.0
    %1341 = vmatprep.subr.mxu0 0.0
    %1342 = vmatpush1.xpose.msra.mxu0 0.0
    %1343 = vmatprep.subr.mxu0 0.0
    %1344 = vmatpush1.xpose.msra.mxu0 0.0
    %1345 = vmatprep.subr.mxu0 0.0
    %1346 = vmatpush1.xpose.msra.mxu0 0.0
    %1347 = vmatprep.subr.mxu0 0.0
    %1348 = vmatpush1.xpose.msra.mxu0 0.0
    %1349 = vmatprep.subr.mxu0 0.0
    %1350 = vmatpush1.xpose.msra.mxu0 0.0
    %1351 = vmatprep.subr.mxu0 0.0
    %1352 = vmatpush1.xpose.msra.mxu0 0.0
    %1353 = vmatprep.subr.mxu0 0.0
    %1354 = vmatpush1.xpose.msra.mxu0 0.0
    %1355 = vmatprep.subr.mxu0 0.0
    %1356 = vmatpush1.xpose.msra.mxu0 0.0
    %1357 = vmatprep.subr.mxu0 0.0
    %1358 = vmatpush1.xpose.msra.mxu0 0.0
    %1359 = vmatprep.subr.mxu0 0.0
    %1360 = vmatpush1.xpose.msra.mxu0 0.0
    %1361 = vmatprep.subr.mxu0 0.0
    %1362 = vmatpush1.xpose.msra.mxu0 0.0
    %1363 = vmatprep.subr.mxu0 0.0
    %1364 = vmatpush1.xpose.msra.mxu0 0.0
    %1365 = vmatprep.subr.mxu0 0.0
    %1366 = vmatpush1.xpose.msra.mxu0 0.0
    %1367 = vmatprep.subr.mxu0 0.0
    %1368 = vmatpush1.xpose.msra.mxu0 0.0
    %1369 = vmatprep.subr.mxu0 0.0
    %1370 = vmatpush1.xpose.msra.mxu0 0.0
    %1371 = vmatprep.subr.mxu0 0.0
    %1372 = vmatpush1.xpose.msra.mxu0 0.0
    %1373 = vmatprep.subr.mxu0 0.0
    %1374 = vmatpush1.xpose.msra.mxu0 0.0
    %1375 = vmatprep.subr.mxu0 0.0
    %1376 = vmatpush1.xpose.msra.mxu0 0.0
    %1377 = vmatprep.subr.mxu0 0.0
    %1378 = vmatpush1.xpose.msra.mxu0 0.0
    %1379 = vmatprep.subr.mxu0 0.0
    %1380 = vmatpush1.xpose.msra.mxu0 0.0
    %1381 = vmatprep.subr.mxu0 0.0
    %1382 = vmatpush1.xpose.msra.mxu0 0.0
    %1383 = vmatprep.mubr.f32.mxu0 0.0
    %1384 = vmatmul.mubr.f32.gmra.mrb[0].mxu0 %v1315
    %v1385 = vpop.f32.mrb[0].mxu0
    %v1386 = vadd.f32 %v117, %v1385
    %v1387 = vpop.f32.mrb[0].mxu0
    %1388 = vdwg.mxu0
    %v1389 = vsel %vm245, %v1308, -inf
    %1390 = vmax.xlane.f32.xlu0 %v1389
    %v1391 = vpop.xlane.xlu0 %1390
    %v1392 = vsel %vm245, %v1386, -inf
    %1393 = vmax.xlane.f32.xlu0 %v1392
    %v1394 = vpop.xlane.xlu0 %1393
    %v1395 = vsub.f32 %v1308, %v1391
    %v1396 = vsub.f32 %v1386, %v1394
    %v1397 = vmul.f32 %v1395, 1.442695
    %v1398 = vpow.pop %v1397
    %v1399 = vmul.f32 %v1396, 1.442695
    %v1400 = vpow.pop %v1399
    %v1401 = vsel %vm245, %v1398, 0.0
    %1402 = vadd.xlane.f32.xlu0 %v1401
    %v1403 = vpop.xlane.xlu0 %1402
    %v1404 = vsel %vm245, %v1400, 0.0
    %1405 = vadd.xlane.f32.xlu0 %v1404
    %v1406 = vpop.xlane.xlu0 %1405
    %v1407 = vrcp.pop %v1403
    %v1408 = vmul.f32 %v1398, %v1407
    %v1409 = vrcp.pop %v1406
    %v1410 = vmul.f32 %v1400, %v1409
    %1411 = vrot.lane.b32.xlu0 %v232, 40
    %v1412 = vpop.permute.xlu0 %1411
    %v1415 = vsel %vm245, %v1408, 0
    %1417 = vmatprep.subr.mxu0 0.0
    %1418 = vmatpush1.msra.mxu0 %v1412
    %1419 = vmatprep.subr.mxu0 0.0
    %1420 = vmatpush1.msra.mxu0 0.0
    %1421 = vmatprep.subr.mxu0 0.0
    %1422 = vmatpush1.msra.mxu0 0.0
    %1423 = vmatprep.subr.mxu0 0.0
    %1424 = vmatpush1.msra.mxu0 0.0
    %1425 = vmatprep.subr.mxu0 0.0
    %1426 = vmatpush1.msra.mxu0 0.0
    %1427 = vmatprep.subr.mxu0 0.0
    %1428 = vmatpush1.msra.mxu0 0.0
    %1429 = vmatprep.subr.mxu0 0.0
    %1430 = vmatpush1.msra.mxu0 0.0
    %1431 = vmatprep.subr.mxu0 0.0
    %1432 = vmatpush1.msra.mxu0 0.0
    %1433 = vmatprep.subr.mxu0 0.0
    %1434 = vmatpush1.msra.mxu0 0.0
    %1435 = vmatprep.subr.mxu0 0.0
    %1436 = vmatpush1.msra.mxu0 0.0
    %1437 = vmatprep.subr.mxu0 0.0
    %1438 = vmatpush1.msra.mxu0 0.0
    %1439 = vmatprep.subr.mxu0 0.0
    %1440 = vmatpush1.msra.mxu0 0.0
    %1441 = vmatprep.subr.mxu0 0.0
    %1442 = vmatpush1.msra.mxu0 0.0
    %1443 = vmatprep.subr.mxu0 0.0
    %1444 = vmatpush1.msra.mxu0 0.0
    %1445 = vmatprep.subr.mxu0 0.0
    %1446 = vmatpush1.msra.mxu0 0.0
    %1447 = vmatprep.subr.mxu0 0.0
    %1448 = vmatpush1.msra.mxu0 0.0
    %1449 = vmatprep.subr.mxu0 0.0
    %1450 = vmatpush1.msra.mxu0 0.0
    %1451 = vmatprep.subr.mxu0 0.0
    %1452 = vmatpush1.msra.mxu0 0.0
    %1453 = vmatprep.subr.mxu0 0.0
    %1454 = vmatpush1.msra.mxu0 0.0
    %1455 = vmatprep.subr.mxu0 0.0
    %1456 = vmatpush1.msra.mxu0 0.0
    %1457 = vmatprep.subr.mxu0 0.0
    %1458 = vmatpush1.msra.mxu0 0.0
    %1459 = vmatprep.subr.mxu0 0.0
    %1460 = vmatpush1.msra.mxu0 0.0
    %1461 = vmatprep.subr.mxu0 0.0
    %1462 = vmatpush1.msra.mxu0 0.0
    %1463 = vmatprep.subr.mxu0 0.0
    %1464 = vmatpush1.msra.mxu0 0.0
    %1465 = vmatprep.subr.mxu0 0.0
    %1466 = vmatpush1.msra.mxu0 0.0
    %1467 = vmatprep.subr.mxu0 0.0
    %1468 = vmatpush1.msra.mxu0 0.0
    %1469 = vmatprep.subr.mxu0 0.0
    %1470 = vmatpush1.msra.mxu0 0.0
    %1471 = vmatprep.subr.mxu0 0.0
    %1472 = vmatpush1.msra.mxu0 0.0
    %1473 = vmatprep.subr.mxu0 0.0
    %1474 = vmatpush1.msra.mxu0 0.0
    %1475 = vmatprep.subr.mxu0 0.0
    %1476 = vmatpush1.msra.mxu0 0.0
    %1477 = vmatprep.subr.mxu0 0.0
    %1478 = vmatpush1.msra.mxu0 0.0
    %1479 = vmatprep.subr.mxu0 0.0
    %1480 = vmatpush1.msra.mxu0 0.0
    %1481 = vmatprep.mubr.f32.mxu0 0.0
    %1482 = vmatmul.mubr.f32.gmra.mrb[0].mxu0 %v1415
    %v1483 = vpop.f32.mrb[0].mxu0
    %v1484 = vadd.f32 0.0, %v1483
    %v1485 = vpop.f32.mrb[0].mxu0
    %1486 = vdwg.mxu0
    %1487 = vrot.lane.b32.xlu0 %v237, 40
    %v1488 = vpop.permute.xlu0 %1487
    %v1491 = vsel %vm245, %v1410, 0
    %1493 = vmatprep.subr.mxu0 0.0
    %1494 = vmatpush1.msra.mxu0 %v1488
    %1495 = vmatprep.subr.mxu0 0.0
    %1496 = vmatpush1.msra.mxu0 0.0
    %1497 = vmatprep.subr.mxu0 0.0
    %1498 = vmatpush1.msra.mxu0 0.0
    %1499 = vmatprep.subr.mxu0 0.0
    %1500 = vmatpush1.msra.mxu0 0.0
    %1501 = vmatprep.subr.mxu0 0.0
    %1502 = vmatpush1.msra.mxu0 0.0
    %1503 = vmatprep.subr.mxu0 0.0
    %1504 = vmatpush1.msra.mxu0 0.0
    %1505 = vmatprep.subr.mxu0 0.0
    %1506 = vmatpush1.msra.mxu0 0.0
    %1507 = vmatprep.subr.mxu0 0.0
    %1508 = vmatpush1.msra.mxu0 0.0
    %1509 = vmatprep.subr.mxu0 0.0
    %1510 = vmatpush1.msra.mxu0 0.0
    %1511 = vmatprep.subr.mxu0 0.0
    %1512 = vmatpush1.msra.mxu0 0.0
    %1513 = vmatprep.subr.mxu0 0.0
    %1514 = vmatpush1.msra.mxu0 0.0
    %1515 = vmatprep.subr.mxu0 0.0
    %1516 = vmatpush1.msra.mxu0 0.0
    %1517 = vmatprep.subr.mxu0 0.0
    %1518 = vmatpush1.msra.mxu0 0.0
    %1519 = vmatprep.subr.mxu0 0.0
    %1520 = vmatpush1.msra.mxu0 0.0
    %1521 = vmatprep.subr.mxu0 0.0
    %1522 = vmatpush1.msra.mxu0 0.0
    %1523 = vmatprep.subr.mxu0 0.0
    %1524 = vmatpush1.msra.mxu0 0.0
    %1525 = vmatprep.subr.mxu0 0.0
    %1526 = vmatpush1.msra.mxu0 0.0
    %1527 = vmatprep.subr.mxu0 0.0
    %1528 = vmatpush1.msra.mxu0 0.0
    %1529 = vmatprep.subr.mxu0 0.0
    %1530 = vmatpush1.msra.mxu0 0.0
    %1531 = vmatprep.subr.mxu0 0.0
    %1532 = vmatpush1.msra.mxu0 0.0
    %1533 = vmatprep.subr.mxu0 0.0
    %1534 = vmatpush1.msra.mxu0 0.0
    %1535 = vmatprep.subr.mxu0 0.0
    %1536 = vmatpush1.msra.mxu0 0.0
    %1537 = vmatprep.subr.mxu0 0.0
    %1538 = vmatpush1.msra.mxu0 0.0
    %1539 = vmatprep.subr.mxu0 0.0
    %1540 = vmatpush1.msra.mxu0 0.0
    %1541 = vmatprep.subr.mxu0 0.0
    %1542 = vmatpush1.msra.mxu0 0.0
    %1543 = vmatprep.subr.mxu0 0.0
    %1544 = vmatpush1.msra.mxu0 0.0
    %1545 = vmatprep.subr.mxu0 0.0
    %1546 = vmatpush1.msra.mxu0 0.0
    %1547 = vmatprep.subr.mxu0 0.0
    %1548 = vmatpush1.msra.mxu0 0.0
    %1549 = vmatprep.subr.mxu0 0.0
    %1550 = vmatpush1.msra.mxu0 0.0
    %1551 = vmatprep.subr.mxu0 0.0
    %1552 = vmatpush1.msra.mxu0 0.0
    %1553 = vmatprep.subr.mxu0 0.0
    %1554 = vmatpush1.msra.mxu0 0.0
    %1555 = vmatprep.subr.mxu0 0.0
    %1556 = vmatpush1.msra.mxu0 0.0
    %1557 = vmatprep.mubr.f32.mxu0 0.0
    %1558 = vmatmul.mubr.f32.gmra.mrb[0].mxu0 %v1491
    %v1559 = vpop.f32.mrb[0].mxu0
    %v1560 = vadd.f32 0.0, %v1559
    %v1561 = vpop.f32.mrb[0].mxu0
    %1562 = vdwg.mxu0
    %1565 = vrot.lane.b32.xlu0 %v824, 8
    %v1566 = vpop.permute.xlu0 %1565
    %1567 = vrot.lane.b32.xlu0 %v900, 8
    %v1568 = vpop.permute.xlu0 %1567
    %1573 = vrot.lane.b32.xlu0 %v1154, 16
    %v1574 = vpop.permute.xlu0 %1573
    %1575 = vrot.lane.b32.xlu0 %v1230, 16
    %v1576 = vpop.permute.xlu0 %1575
    %1581 = vrot.lane.b32.xlu0 %v1484, 24
    %v1582 = vpop.permute.xlu0 %1581
    %1583 = vrot.lane.b32.xlu0 %v1560, 24
    %v1584 = vpop.permute.xlu0 %1583
    %v1587 = vsel %vm245, %v494, %v1566
    %v1588 = vsel %vm245, %v570, %v1568
    %vm1589 = vcmask 130048
    %v1590 = vsel %vm1589, %v1587, %v1574
    %v1591 = vsel %vm1589, %v1588, %v1576
    %vm1592 = vcmask 195584
    %v1593 = vsel %vm1592, %v1590, %v1582
    %v1594 = vsel %vm1592, %v1591, %v1584
    %v1595 = vlaneseq
    %v1596 = vshrl.u32 %v1595, 7
    %v1597 = vsub.s32 3, %v1596
    %v1598 = vrot.slane %v118, %v1597
    %v1600 = vsel %vm158, %v1593, 0
    %v1603 = vsel %vm158, %v1594, 0
    %1605 = vmatprep.subr.mxu0 0.0
    %1606 = vmatpush1.msra.mxu0 %v128
    %1607 = vmatprep.subr.mxu0 0.0
    %1608 = vmatpush1.msra.mxu0 %v129
    %1609 = vmatprep.subr.mxu0 0.0
    %1610 = vmatpush1.msra.mxu0 %v130
    %1611 = vmatprep.subr.mxu0 0.0
    %1612 = vmatpush1.msra.mxu0 %v131
    %1613 = vmatprep.subr.mxu0 0.0
    %1614 = vmatpush1.msra.mxu0 0.0
    %1615 = vmatprep.subr.mxu0 0.0
    %1616 = vmatpush1.msra.mxu0 0.0
    %1617 = vmatprep.subr.mxu0 0.0
    %1618 = vmatpush1.msra.mxu0 0.0
    %1619 = vmatprep.subr.mxu0 0.0
    %1620 = vmatpush1.msra.mxu0 0.0
    %1621 = vmatprep.subr.mxu0 0.0
    %1622 = vmatpush1.msra.mxu0 0.0
    %1623 = vmatprep.subr.mxu0 0.0
    %1624 = vmatpush1.msra.mxu0 0.0
    %1625 = vmatprep.subr.mxu0 0.0
    %1626 = vmatpush1.msra.mxu0 0.0
    %1627 = vmatprep.subr.mxu0 0.0
    %1628 = vmatpush1.msra.mxu0 0.0
    %1629 = vmatprep.subr.mxu0 0.0
    %1630 = vmatpush1.msra.mxu0 0.0
    %1631 = vmatprep.subr.mxu0 0.0
    %1632 = vmatpush1.msra.mxu0 0.0
    %1633 = vmatprep.subr.mxu0 0.0
    %1634 = vmatpush1.msra.mxu0 0.0
    %1635 = vmatprep.subr.mxu0 0.0
    %1636 = vmatpush1.msra.mxu0 0.0
    %1637 = vmatprep.subr.mxu0 0.0
    %1638 = vmatpush1.msra.mxu0 0.0
    %1639 = vmatprep.subr.mxu0 0.0
    %1640 = vmatpush1.msra.mxu0 0.0
    %1641 = vmatprep.subr.mxu0 0.0
    %1642 = vmatpush1.msra.mxu0 0.0
    %1643 = vmatprep.subr.mxu0 0.0
    %1644 = vmatpush1.msra.mxu0 0.0
    %1645 = vmatprep.subr.mxu0 0.0
    %1646 = vmatpush1.msra.mxu0 0.0
    %1647 = vmatprep.subr.mxu0 0.0
    %1648 = vmatpush1.msra.mxu0 0.0
    %1649 = vmatprep.subr.mxu0 0.0
    %1650 = vmatpush1.msra.mxu0 0.0
    %1651 = vmatprep.subr.mxu0 0.0
    %1652 = vmatpush1.msra.mxu0 0.0
    %1653 = vmatprep.subr.mxu0 0.0
    %1654 = vmatpush1.msra.mxu0 0.0
    %1655 = vmatprep.subr.mxu0 0.0
    %1656 = vmatpush1.msra.mxu0 0.0
    %1657 = vmatprep.subr.mxu0 0.0
    %1658 = vmatpush1.msra.mxu0 0.0
    %1659 = vmatprep.subr.mxu0 0.0
    %1660 = vmatpush1.msra.mxu0 0.0
    %1661 = vmatprep.subr.mxu0 0.0
    %1662 = vmatpush1.msra.mxu0 0.0
    %1663 = vmatprep.subr.mxu0 0.0
    %1664 = vmatpush1.msra.mxu0 0.0
    %1665 = vmatprep.subr.mxu0 0.0
    %1666 = vmatpush1.msra.mxu0 0.0
    %1667 = vmatprep.subr.mxu0 0.0
    %1668 = vmatpush1.msra.mxu0 0.0
    %1669 = vmatprep.mubr.f32.mxu0 0.0
    %1670 = vmatmul.mubr.f32.gmra.mrb[0].mxu0 %v1600
    %v1671 = vpop.f32.mrb[0].mxu0
    %v1672 = vadd.f32 %v1598, %v1671
    %v1673 = vpop.f32.mrb[0].mxu0
    %1674 = vmatprep.mubr.f32.mxu0 0.0
    %1675 = vmatmul.mubr.f32.gmra.mrb[0].mxu0 %v1603
    %v1676 = vpop.f32.mrb[0].mxu0
    %v1677 = vadd.f32 %v1598, %v1676
    %v1678 = vpop.f32.mrb[0].mxu0
    %1679 = vdwg.mxu0
    %v1680 = vadd.f32 %v113, %v1672
    %v1681 = vadd.f32 %v114, %v1677
    %v1682 = vsel %vm158, %v1680, 0.0
    %1683 = vadd.xlane.f32.xlu0 %v1682
    %v1684 = vpop.xlane.xlu0 %1683
    %v1685 = vsel %vm158, %v1681, 0.0
    %1686 = vadd.xlane.f32.xlu0 %v1685
    %v1687 = vpop.xlane.xlu0 %1686
    %v1688 = vrcp.pop 32.0
    %v1689 = vmul.f32 %v1684, %v1688
    %v1690 = vmul.f32 %v1687, %v1688
    %v1691 = vsub.f32 %v1680, %v1689
    %v1692 = vsub.f32 %v1681, %v1690
    %v1693 = vmul.f32 %v1691, %v1691
    %v1694 = vmul.f32 %v1692, %v1692
    %v1695 = vsel %vm158, %v1693, 0.0
    %1696 = vadd.xlane.f32.xlu0 %v1695
    %v1697 = vpop.xlane.xlu0 %1696
    %v1698 = vsel %vm158, %v1694, 0.0
    %1699 = vadd.xlane.f32.xlu0 %v1698
    %v1700 = vpop.xlane.xlu0 %1699
    %v1701 = vmul.f32 %v1697, %v1688
    %v1702 = vmul.f32 %v1700, %v1688
    %v1703 = vadd.f32 %v1701, 1e-05
    %v1704 = vadd.f32 %v1702, 1e-05
    %v1705 = vrsqrt.pop %v1703
    %v1706 = vrsqrt.pop %v1704
    %v1707 = vmul.f32 %v1691, %v1705
    %v1708 = vmul.f32 %v1692, %v1706
    %v1709 = vlaneseq
    %v1710 = vshrl.u32 %v1709, 7
    %v1711 = vsub.s32 7, %v1710
    %v1712 = vrot.slane %v118, %v1711
    %v1713 = vmul.f32 %v1707, %v1712
    %v1714 = vmul.f32 %v1708, %v1712
    %v1715 = vlaneseq
    %v1716 = vshrl.u32 %v1715, 7
    %v1717 = vsub.s32 0, %v1716
    %v1718 = vrot.slane %v119, %v1717
    %v1719 = vadd.f32 %v1713, %v1718
    %v1720 = vadd.f32 %v1714, %v1718
    %v1721 = vlaneseq
    %v1722 = vshrl.u32 %v1721, 7
    %v1723 = vsub.s32 4, %v1722
    %v1724 = vrot.slane %v118, %v1723
    %v1726 = vsel %vm158, %v1719, 0
    %v1729 = vsel %vm158, %v1720, 0
    %1731 = vmatprep.subr.mxu0 0.0
    %1732 = vmatpush1.msra.mxu0 %v133
    %1733 = vmatprep.subr.mxu0 0.0
    %1734 = vmatpush1.msra.mxu0 %v134
    %1735 = vmatprep.subr.mxu0 0.0
    %1736 = vmatpush1.msra.mxu0 %v135
    %1737 = vmatprep.subr.mxu0 0.0
    %1738 = vmatpush1.msra.mxu0 %v136
    %1739 = vmatprep.subr.mxu0 0.0
    %1740 = vmatpush1.msra.mxu0 0.0
    %1741 = vmatprep.subr.mxu0 0.0
    %1742 = vmatpush1.msra.mxu0 0.0
    %1743 = vmatprep.subr.mxu0 0.0
    %1744 = vmatpush1.msra.mxu0 0.0
    %1745 = vmatprep.subr.mxu0 0.0
    %1746 = vmatpush1.msra.mxu0 0.0
    %1747 = vmatprep.subr.mxu0 0.0
    %1748 = vmatpush1.msra.mxu0 0.0
    %1749 = vmatprep.subr.mxu0 0.0
    %1750 = vmatpush1.msra.mxu0 0.0
    %1751 = vmatprep.subr.mxu0 0.0
    %1752 = vmatpush1.msra.mxu0 0.0
    %1753 = vmatprep.subr.mxu0 0.0
    %1754 = vmatpush1.msra.mxu0 0.0
    %1755 = vmatprep.subr.mxu0 0.0
    %1756 = vmatpush1.msra.mxu0 0.0
    %1757 = vmatprep.subr.mxu0 0.0
    %1758 = vmatpush1.msra.mxu0 0.0
    %1759 = vmatprep.subr.mxu0 0.0
    %1760 = vmatpush1.msra.mxu0 0.0
    %1761 = vmatprep.subr.mxu0 0.0
    %1762 = vmatpush1.msra.mxu0 0.0
    %1763 = vmatprep.subr.mxu0 0.0
    %1764 = vmatpush1.msra.mxu0 0.0
    %1765 = vmatprep.subr.mxu0 0.0
    %1766 = vmatpush1.msra.mxu0 0.0
    %1767 = vmatprep.subr.mxu0 0.0
    %1768 = vmatpush1.msra.mxu0 0.0
    %1769 = vmatprep.subr.mxu0 0.0
    %1770 = vmatpush1.msra.mxu0 0.0
    %1771 = vmatprep.subr.mxu0 0.0
    %1772 = vmatpush1.msra.mxu0 0.0
    %1773 = vmatprep.subr.mxu0 0.0
    %1774 = vmatpush1.msra.mxu0 0.0
    %1775 = vmatprep.subr.mxu0 0.0
    %1776 = vmatpush1.msra.mxu0 0.0
    %1777 = vmatprep.subr.mxu0 0.0
    %1778 = vmatpush1.msra.mxu0 0.0
    %1779 = vmatprep.subr.mxu0 0.0
    %1780 = vmatpush1.msra.mxu0 0.0
    %1781 = vmatprep.subr.mxu0 0.0
    %1782 = vmatpush1.msra.mxu0 0.0
    %1783 = vmatprep.subr.mxu0 0.0
    %1784 = vmatpush1.msra.mxu0 0.0
    %1785 = vmatprep.subr.mxu0 0.0
    %1786 = vmatpush1.msra.mxu0 0.0
    %1787 = vmatprep.subr.mxu0 0.0
    %1788 = vmatpush1.msra.mxu0 0.0
    %1789 = vmatprep.subr.mxu0 0.0
    %1790 = vmatpush1.msra.mxu0 0.0
    %1791 = vmatprep.subr.mxu0 0.0
    %1792 = vmatpush1.msra.mxu0 0.0
    %1793 = vmatprep.subr.mxu0 0.0
    %1794 = vmatpush1.msra.mxu0 0.0
    %1795 = vmatprep.mubr.f32.mxu0 0.0
    %1796 = vmatmul.mubr.f32.gmra.mrb[0].mxu0 %v1726
    %v1797 = vpop.f32.mrb[0].mxu0
    %v1798 = vadd.f32 %v1724, %v1797
    %v1799 = vpop.f32.mrb[0].mxu0
    %1800 = vmatprep.mubr.f32.mxu0 0.0
    %1801 = vmatmul.mubr.f32.gmra.mrb[0].mxu0 %v1729
    %v1802 = vpop.f32.mrb[0].mxu0
    %v1803 = vadd.f32 %v1724, %v1802
    %v1804 = vpop.f32.mrb[0].mxu0
    %1805 = vdwg.mxu0
    %v1806 = vlaneseq
    %v1807 = vshrl.u32 %v1806, 7
    %v1808 = vsub.s32 1, %v1807
    %v1809 = vrot.slane %v118, %v1808
    %v1811 = vsel %vm158, %v115, 0
    %v1814 = vsel %vm158, %v116, 0
    %1816 = vmatprep.subr.mxu0 0.0
    %1817 = vmatpush1.msra.mxu0 %v124
    %1818 = vmatprep.subr.mxu0 0.0
    %1819 = vmatpush1.msra.mxu0 %v125
    %1820 = vmatprep.subr.mxu0 0.0
    %1821 = vmatpush1.msra.mxu0 %v126
    %1822 = vmatprep.subr.mxu0 0.0
    %1823 = vmatpush1.msra.mxu0 %v127
    %1824 = vmatprep.subr.mxu0 0.0
    %1825 = vmatpush1.msra.mxu0 0.0
    %1826 = vmatprep.subr.mxu0 0.0
    %1827 = vmatpush1.msra.mxu0 0.0
    %1828 = vmatprep.subr.mxu0 0.0
    %1829 = vmatpush1.msra.mxu0 0.0
    %1830 = vmatprep.subr.mxu0 0.0
    %1831 = vmatpush1.msra.mxu0 0.0
    %1832 = vmatprep.subr.mxu0 0.0
    %1833 = vmatpush1.msra.mxu0 0.0
    %1834 = vmatprep.subr.mxu0 0.0
    %1835 = vmatpush1.msra.mxu0 0.0
    %1836 = vmatprep.subr.mxu0 0.0
    %1837 = vmatpush1.msra.mxu0 0.0
    %1838 = vmatprep.subr.mxu0 0.0
    %1839 = vmatpush1.msra.mxu0 0.0
    %1840 = vmatprep.subr.mxu0 0.0
    %1841 = vmatpush1.msra.mxu0 0.0
    %1842 = vmatprep.subr.mxu0 0.0
    %1843 = vmatpush1.msra.mxu0 0.0
    %1844 = vmatprep.subr.mxu0 0.0
    %1845 = vmatpush1.msra.mxu0 0.0
    %1846 = vmatprep.subr.mxu0 0.0
    %1847 = vmatpush1.msra.mxu0 0.0
    %1848 = vmatprep.subr.mxu0 0.0
    %1849 = vmatpush1.msra.mxu0 0.0
    %1850 = vmatprep.subr.mxu0 0.0
    %1851 = vmatpush1.msra.mxu0 0.0
    %1852 = vmatprep.subr.mxu0 0.0
    %1853 = vmatpush1.msra.mxu0 0.0
    %1854 = vmatprep.subr.mxu0 0.0
    %1855 = vmatpush1.msra.mxu0 0.0
    %1856 = vmatprep.subr.mxu0 0.0
    %1857 = vmatpush1.msra.mxu0 0.0
    %1858 = vmatprep.subr.mxu0 0.0
    %1859 = vmatpush1.msra.mxu0 0.0
    %1860 = vmatprep.subr.mxu0 0.0
    %1861 = vmatpush1.msra.mxu0 0.0
    %1862 = vmatprep.subr.mxu0 0.0
    %1863 = vmatpush1.msra.mxu0 0.0
    %1864 = vmatprep.subr.mxu0 0.0
    %1865 = vmatpush1.msra.mxu0 0.0
    %1866 = vmatprep.subr.mxu0 0.0
    %1867 = vmatpush1.msra.mxu0 0.0
    %1868 = vmatprep.subr.mxu0 0.0
    %1869 = vmatpush1.msra.mxu0 0.0
    %1870 = vmatprep.subr.mxu0 0.0
    %1871 = vmatpush1.msra.mxu0 0.0
    %1872 = vmatprep.subr.mxu0 0.0
    %1873 = vmatpush1.msra.mxu0 0.0
    %1874 = vmatprep.subr.mxu0 0.0
    %1875 = vmatpush1.msra.mxu0 0.0
    %1876 = vmatprep.subr.mxu0 0.0
    %1877 = vmatpush1.msra.mxu0 0.0
    %1878 = vmatprep.subr.mxu0 0.0
    %1879 = vmatpush1.msra.mxu0 0.0
    %1880 = vmatprep.mubr.f32.mxu0 0.0
    %1881 = vmatmul.mubr.f32.gmra.mrb[0].mxu0 %v1811
    %v1882 = vpop.f32.mrb[0].mxu0
    %v1883 = vadd.f32 %v1809, %v1882
    %v1884 = vpop.f32.mrb[0].mxu0
    %1885 = vmatprep.mubr.f32.mxu0 0.0
    %1886 = vmatmul.mubr.f32.gmra.mrb[0].mxu0 %v1814
    %v1887 = vpop.f32.mrb[0].mxu0
    %v1888 = vadd.f32 %v1809, %v1887
    %v1889 = vpop.f32.mrb[0].mxu0
    %1890 = vdwg.mxu0
    %v1891 = vmul.f32 %v1798, 0.35355338
    %v1892 = vmul.f32 %v1803, 0.35355338
    %v1894 = vsel %vm245, %v1891, 0
    %v1897 = vsel %vm245, %v1883, 0
    %1899 = vmatprep.subr.mxu0 0.0
    %1900 = vmatpush1.xpose.msra.mxu0 %v1897
    %1901 = vmatprep.subr.mxu0 0.0
    %1902 = vmatpush1.xpose.msra.mxu0 0.0
    %1903 = vmatprep.subr.mxu0 0.0
    %1904 = vmatpush1.xpose.msra.mxu0 0.0
    %1905 = vmatprep.subr.mxu0 0.0
    %1906 = vmatpush1.xpose.msra.mxu0 0.0
    %1907 = vmatprep.subr.mxu0 0.0
    %1908 = vmatpush1.xpose.msra.mxu0 0.0
    %1909 = vmatprep.subr.mxu0 0.0
    %1910 = vmatpush1.xpose.msra.mxu0 0.0
    %1911 = vmatprep.subr.mxu0 0.0
    %1912 = vmatpush1.xpose.msra.mxu0 0.0
    %1913 = vmatprep.subr.mxu0 0.0
    %1914 = vmatpush1.xpose.msra.mxu0 0.0
    %1915 = vmatprep.subr.mxu0 0.0
    %1916 = vmatpush1.xpose.msra.mxu0 0.0
    %1917 = vmatprep.subr.mxu0 0.0
    %1918 = vmatpush1.xpose.msra.mxu0 0.0
    %1919 = vmatprep.subr.mxu0 0.0
    %1920 = vmatpush1.xpose.msra.mxu0 0.0
    %1921 = vmatprep.subr.mxu0 0.0
    %1922 = vmatpush1.xpose.msra.mxu0 0.0
    %1923 = vmatprep.subr.mxu0 0.0
    %1924 = vmatpush1.xpose.msra.mxu0 0.0
    %1925 = vmatprep.subr.mxu0 0.0
    %1926 = vmatpush1.xpose.msra.mxu0 0.0
    %1927 = vmatprep.subr.mxu0 0.0
    %1928 = vmatpush1.xpose.msra.mxu0 0.0
    %1929 = vmatprep.subr.mxu0 0.0
    %1930 = vmatpush1.xpose.msra.mxu0 0.0
    %1931 = vmatprep.subr.mxu0 0.0
    %1932 = vmatpush1.xpose.msra.mxu0 0.0
    %1933 = vmatprep.subr.mxu0 0.0
    %1934 = vmatpush1.xpose.msra.mxu0 0.0
    %1935 = vmatprep.subr.mxu0 0.0
    %1936 = vmatpush1.xpose.msra.mxu0 0.0
    %1937 = vmatprep.subr.mxu0 0.0
    %1938 = vmatpush1.xpose.msra.mxu0 0.0
    %1939 = vmatprep.subr.mxu0 0.0
    %1940 = vmatpush1.xpose.msra.mxu0 0.0
    %1941 = vmatprep.subr.mxu0 0.0
    %1942 = vmatpush1.xpose.msra.mxu0 0.0
    %1943 = vmatprep.subr.mxu0 0.0
    %1944 = vmatpush1.xpose.msra.mxu0 0.0
    %1945 = vmatprep.subr.mxu0 0.0
    %1946 = vmatpush1.xpose.msra.mxu0 0.0
    %1947 = vmatprep.subr.mxu0 0.0
    %1948 = vmatpush1.xpose.msra.mxu0 0.0
    %1949 = vmatprep.subr.mxu0 0.0
    %1950 = vmatpush1.xpose.msra.mxu0 0.0
    %1951 = vmatprep.subr.mxu0 0.0
    %1952 = vmatpush1.xpose.msra.mxu0 0.0
    %1953 = vmatprep.subr.mxu0 0.0
    %1954 = vmatpush1.xpose.msra.mxu0 0.0
    %1955 = vmatprep.subr.mxu0 0.0
    %1956 = vmatpush1.xpose.msra.mxu0 0.0
    %1957 = vmatprep.subr.mxu0 0.0
    %1958 = vmatpush1.xpose.msra.mxu0 0.0
    %1959 = vmatprep.subr.mxu0 0.0
    %1960 = vmatpush1.xpose.msra.mxu0 0.0
    %1961 = vmatprep.subr.mxu0 0.0
    %1962 = vmatpush1.xpose.msra.mxu0 0.0
    %1963 = vmatprep.mubr.f32.mxu0 0.0
    %1964 = vmatmul.mubr.f32.gmra.mrb[0].mxu0 %v1894
    %v1965 = vpop.f32.mrb[0].mxu0
    %v1966 = vadd.f32 0.0, %v1965
    %v1967 = vpop.f32.mrb[0].mxu0
    %1968 = vdwg.mxu0
    %v1970 = vsel %vm245, %v1892, 0
    %v1973 = vsel %vm245, %v1888, 0
    %1975 = vmatprep.subr.mxu0 0.0
    %1976 = vmatpush1.xpose.msra.mxu0 %v1973
    %1977 = vmatprep.subr.mxu0 0.0
    %1978 = vmatpush1.xpose.msra.mxu0 0.0
    %1979 = vmatprep.subr.mxu0 0.0
    %1980 = vmatpush1.xpose.msra.mxu0 0.0
    %1981 = vmatprep.subr.mxu0 0.0
    %1982 = vmatpush1.xpose.msra.mxu0 0.0
    %1983 = vmatprep.subr.mxu0 0.0
    %1984 = vmatpush1.xpose.msra.mxu0 0.0
    %1985 = vmatprep.subr.mxu0 0.0
    %1986 = vmatpush1.xpose.msra.mxu0 0.0
    %1987 = vmatprep.subr.mxu0 0.0
    %1988 = vmatpush1.xpose.msra.mxu0 0.0
    %1989 = vmatprep.subr.mxu0 0.0
    %1990 = vmatpush1.xpose.msra.mxu0 0.0
    %1991 = vmatprep.subr.mxu0 0.0
    %1992 = vmatpush1.xpose.msra.mxu0 0.0
    %1993 = vmatprep.subr.mxu0 0.0
    %1994 = vmatpush1.xpose.msra.mxu0 0.0
    %1995 = vmatprep.subr.mxu0 0.0
    %1996 = vmatpush1.xpose.msra.mxu0 0.0
    %1997 = vmatprep.subr.mxu0 0.0
    %1998 = vmatpush1.xpose.msra.mxu0 0.0
    %1999 = vmatprep.subr.mxu0 0.0
    %2000 = vmatpush1.xpose.msra.mxu0 0.0
    %2001 = vmatprep.subr.mxu0 0.0
    %2002 = vmatpush1.xpose.msra.mxu0 0.0
    %2003 = vmatprep.subr.mxu0 0.0
    %2004 = vmatpush1.xpose.msra.mxu0 0.0
    %2005 = vmatprep.subr.mxu0 0.0
    %2006 = vmatpush1.xpose.msra.mxu0 0.0
    %2007 = vmatprep.subr.mxu0 0.0
    %2008 = vmatpush1.xpose.msra.mxu0 0.0
    %2009 = vmatprep.subr.mxu0 0.0
    %2010 = vmatpush1.xpose.msra.mxu0 0.0
    %2011 = vmatprep.subr.mxu0 0.0
    %2012 = vmatpush1.xpose.msra.mxu0 0.0
    %2013 = vmatprep.subr.mxu0 0.0
    %2014 = vmatpush1.xpose.msra.mxu0 0.0
    %2015 = vmatprep.subr.mxu0 0.0
    %2016 = vmatpush1.xpose.msra.mxu0 0.0
    %2017 = vmatprep.subr.mxu0 0.0
    %2018 = vmatpush1.xpose.msra.mxu0 0.0
    %2019 = vmatprep.subr.mxu0 0.0
    %2020 = vmatpush1.xpose.msra.mxu0 0.0
    %2021 = vmatprep.subr.mxu0 0.0
    %2022 = vmatpush1.xpose.msra.mxu0 0.0
    %2023 = vmatprep.subr.mxu0 0.0
    %2024 = vmatpush1.xpose.msra.mxu0 0.0
    %2025 = vmatprep.subr.mxu0 0.0
    %2026 = vmatpush1.xpose.msra.mxu0 0.0
    %2027 = vmatprep.subr.mxu0 0.0
    %2028 = vmatpush1.xpose.msra.mxu0 0.0
    %2029 = vmatprep.subr.mxu0 0.0
    %2030 = vmatpush1.xpose.msra.mxu0 0.0
    %2031 = vmatprep.subr.mxu0 0.0
    %2032 = vmatpush1.xpose.msra.mxu0 0.0
    %2033 = vmatprep.subr.mxu0 0.0
    %2034 = vmatpush1.xpose.msra.mxu0 0.0
    %2035 = vmatprep.subr.mxu0 0.0
    %2036 = vmatpush1.xpose.msra.mxu0 0.0
    %2037 = vmatprep.subr.mxu0 0.0
    %2038 = vmatpush1.xpose.msra.mxu0 0.0
    %2039 = vmatprep.mubr.f32.mxu0 0.0
    %2040 = vmatmul.mubr.f32.gmra.mrb[0].mxu0 %v1970
    %v2041 = vpop.f32.mrb[0].mxu0
    %v2042 = vadd.f32 0.0, %v2041
    %v2043 = vpop.f32.mrb[0].mxu0
    %2044 = vdwg.mxu0
    %v2045 = vsel %vm245, %v1966, -inf
    %2046 = vmax.xlane.f32.xlu0 %v2045
    %v2047 = vpop.xlane.xlu0 %2046
    %v2048 = vsel %vm245, %v2042, -inf
    %2049 = vmax.xlane.f32.xlu0 %v2048
    %v2050 = vpop.xlane.xlu0 %2049
    %v2051 = vsub.f32 %v1966, %v2047
    %v2052 = vsub.f32 %v2042, %v2050
    %v2053 = vmul.f32 %v2051, 1.442695
    %v2054 = vpow.pop %v2053
    %v2055 = vmul.f32 %v2052, 1.442695
    %v2056 = vpow.pop %v2055
    %v2057 = vsel %vm245, %v2054, 0.0
    %2058 = vadd.xlane.f32.xlu0 %v2057
    %v2059 = vpop.xlane.xlu0 %2058
    %v2060 = vsel %vm245, %v2056, 0.0
    %2061 = vadd.xlane.f32.xlu0 %v2060
    %v2062 = vpop.xlane.xlu0 %2061
    %v2063 = vrcp.pop %v2059
    %v2064 = vmul.f32 %v2054, %v2063
    %v2065 = vrcp.pop %v2062
    %v2066 = vmul.f32 %v2056, %v2065
    %2067 = vrot.lane.b32.xlu0 %v1883, 96
    %v2068 = vpop.permute.xlu0 %2067
    %v2071 = vsel %vm245, %v2064, 0
    %2073 = vmatprep.subr.mxu0 0.0
    %2074 = vmatpush1.msra.mxu0 %v2068
    %2075 = vmatprep.subr.mxu0 0.0
    %2076 = vmatpush1.msra.mxu0 0.0
    %2077 = vmatprep.subr.mxu0 0.0
    %2078 = vmatpush1.msra.mxu0 0.0
    %2079 = vmatprep.subr.mxu0 0.0
    %2080 = vmatpush1.msra.mxu0 0.0
    %2081 = vmatprep.subr.mxu0 0.0
    %2082 = vmatpush1.msra.mxu0 0.0
    %2083 = vmatprep.subr.mxu0 0.0
    %2084 = vmatpush1.msra.mxu0 0.0
    %2085 = vmatprep.subr.mxu0 0.0
    %2086 = vmatpush1.msra.mxu0 0.0
    %2087 = vmatprep.subr.mxu0 0.0
    %2088 = vmatpush1.msra.mxu0 0.0
    %2089 = vmatprep.subr.mxu0 0.0
    %2090 = vmatpush1.msra.mxu0 0.0
    %2091 = vmatprep.subr.mxu0 0.0
    %2092 = vmatpush1.msra.mxu0 0.0
    %2093 = vmatprep.subr.mxu0 0.0
    %2094 = vmatpush1.msra.mxu0 0.0
    %2095 = vmatprep.subr.mxu0 0.0
    %2096 = vmatpush1.msra.mxu0 0.0
    %2097 = vmatprep.subr.mxu0 0.0
    %2098 = vmatpush1.msra.mxu0 0.0
    %2099 = vmatprep.subr.mxu0 0.0
    %2100 = vmatpush1.msra.mxu0 0.0
    %2101 = vmatprep.subr.mxu0 0.0
    %2102 = vmatpush1.msra.mxu0 0.0
    %2103 = vmatprep.subr.mxu0 0.0
    %2104 = vmatpush1.msra.mxu0 0.0
    %2105 = vmatprep.subr.mxu0 0.0
    %2106 = vmatpush1.msra.mxu0 0.0
    %2107 = vmatprep.subr.mxu0 0.0
    %2108 = vmatpush1.msra.mxu0 0.0
    %2109 = vmatprep.subr.mxu0 0.0
    %2110 = vmatpush1.msra.mxu0 0.0
    %2111 = vmatprep.subr.mxu0 0.0
    %2112 = vmatpush1.msra.mxu0 0.0
    %2113 = vmatprep.subr.mxu0 0.0
    %2114 = vmatpush1.msra.mxu0 0.0
    %2115 = vmatprep.subr.mxu0 0.0
    %2116 = vmatpush1.msra.mxu0 0.0
    %2117 = vmatprep.subr.mxu0 0.0
    %2118 = vmatpush1.msra.mxu0 0.0
    %2119 = vmatprep.subr.mxu0 0.0
    %2120 = vmatpush1.msra.mxu0 0.0
    %2121 = vmatprep.subr.mxu0 0.0
    %2122 = vmatpush1.msra.mxu0 0.0
    %2123 = vmatprep.subr.mxu0 0.0
    %2124 = vmatpush1.msra.mxu0 0.0
    %2125 = vmatprep.subr.mxu0 0.0
    %2126 = vmatpush1.msra.mxu0 0.0
    %2127 = vmatprep.subr.mxu0 0.0
    %2128 = vmatpush1.msra.mxu0 0.0
    %2129 = vmatprep.subr.mxu0 0.0
    %2130 = vmatpush1.msra.mxu0 0.0
    %2131 = vmatprep.subr.mxu0 0.0
    %2132 = vmatpush1.msra.mxu0 0.0
    %2133 = vmatprep.subr.mxu0 0.0
    %2134 = vmatpush1.msra.mxu0 0.0
    %2135 = vmatprep.subr.mxu0 0.0
    %2136 = vmatpush1.msra.mxu0 0.0
    %2137 = vmatprep.mubr.f32.mxu0 0.0
    %2138 = vmatmul.mubr.f32.gmra.mrb[0].mxu0 %v2071
    %v2139 = vpop.f32.mrb[0].mxu0
    %v2140 = vadd.f32 0.0, %v2139
    %v2141 = vpop.f32.mrb[0].mxu0
    %2142 = vdwg.mxu0
    %2143 = vrot.lane.b32.xlu0 %v1888, 96
    %v2144 = vpop.permute.xlu0 %2143
    %v2147 = vsel %vm245, %v2066, 0
    %2149 = vmatprep.subr.mxu0 0.0
    %2150 = vmatpush1.msra.mxu0 %v2144
    %2151 = vmatprep.subr.mxu0 0.0
    %2152 = vmatpush1.msra.mxu0 0.0
    %2153 = vmatprep.subr.mxu0 0.0
    %2154 = vmatpush1.msra.mxu0 0.0
    %2155 = vmatprep.subr.mxu0 0.0
    %2156 = vmatpush1.msra.mxu0 0.0
    %2157 = vmatprep.subr.mxu0 0.0
    %2158 = vmatpush1.msra.mxu0 0.0
    %2159 = vmatprep.subr.mxu0 0.0
    %2160 = vmatpush1.msra.mxu0 0.0
    %2161 = vmatprep.subr.mxu0 0.0
    %2162 = vmatpush1.msra.mxu0 0.0
    %2163 = vmatprep.subr.mxu0 0.0
    %2164 = vmatpush1.msra.mxu0 0.0
    %2165 = vmatprep.subr.mxu0 0.0
    %2166 = vmatpush1.msra.mxu0 0.0
    %2167 = vmatprep.subr.mxu0 0.0
    %2168 = vmatpush1.msra.mxu0 0.0
    %2169 = vmatprep.subr.mxu0 0.0
    %2170 = vmatpush1.msra.mxu0 0.0
    %2171 = vmatprep.subr.mxu0 0.0
    %2172 = vmatpush1.msra.mxu0 0.0
    %2173 = vmatprep.subr.mxu0 0.0
    %2174 = vmatpush1.msra.mxu0 0.0
    %2175 = vmatprep.subr.mxu0 0.0
    %2176 = vmatpush1.msra.mxu0 0.0
    %2177 = vmatprep.subr.mxu0 0.0
    %2178 = vmatpush1.msra.mxu0 0.0
    %2179 = vmatprep.subr.mxu0 0.0
    %2180 = vmatpush1.msra.mxu0 0.0
    %2181 = vmatprep.subr.mxu0 0.0
    %2182 = vmatpush1.msra.mxu0 0.0
    %2183 = vmatprep.subr.mxu0 0.0
    %2184 = vmatpush1.msra.mxu0 0.0
    %2185 = vmatprep.subr.mxu0 0.0
    %2186 = vmatpush1.msra.mxu0 0.0
    %2187 = vmatprep.subr.mxu0 0.0
    %2188 = vmatpush1.msra.mxu0 0.0
    %2189 = vmatprep.subr.mxu0 0.0
    %2190 = vmatpush1.msra.mxu0 0.0
    %2191 = vmatprep.subr.mxu0 0.0
    %2192 = vmatpush1.msra.mxu0 0.0
    %2193 = vmatprep.subr.mxu0 0.0
    %2194 = vmatpush1.msra.mxu0 0.0
    %2195 = vmatprep.subr.mxu0 0.0
    %2196 = vmatpush1.msra.mxu0 0.0
    %2197 = vmatprep.subr.mxu0 0.0
    %2198 = vmatpush1.msra.mxu0 0.0
    %2199 = vmatprep.subr.mxu0 0.0
    %2200 = vmatpush1.msra.mxu0 0.0
    %2201 = vmatprep.subr.mxu0 0.0
    %2202 = vmatpush1.msra.mxu0 0.0
    %2203 = vmatprep.subr.mxu0 0.0
    %2204 = vmatpush1.msra.mxu0 0.0
    %2205 = vmatprep.subr.mxu0 0.0
    %2206 = vmatpush1.msra.mxu0 0.0
    %2207 = vmatprep.subr.mxu0 0.0
    %2208 = vmatpush1.msra.mxu0 0.0
    %2209 = vmatprep.subr.mxu0 0.0
    %2210 = vmatpush1.msra.mxu0 0.0
    %2211 = vmatprep.subr.mxu0 0.0
    %2212 = vmatpush1.msra.mxu0 0.0
    %2213 = vmatprep.mubr.f32.mxu0 0.0
    %2214 = vmatmul.mubr.f32.gmra.mrb[0].mxu0 %v2147
    %v2215 = vpop.f32.mrb[0].mxu0
    %v2216 = vadd.f32 0.0, %v2215
    %v2217 = vpop.f32.mrb[0].mxu0
    %2218 = vdwg.mxu0
    %2219 = vrot.lane.b32.xlu0 %v1891, 120
    %v2220 = vpop.permute.xlu0 %2219
    %2221 = vrot.lane.b32.xlu0 %v1883, 120
    %v2222 = vpop.permute.xlu0 %2221
    %v2223 = vsel %vm245, %v2220, 0
    %v2225 = vsel %vm245, %v2222, 0
    %2227 = vmatprep.subr.mxu0 0.0
    %2228 = vmatpush1.xpose.msra.mxu0 %v2225
    %2229 = vmatprep.subr.mxu0 0.0
    %2230 = vmatpush1.xpose.msra.mxu0 0.0
    %2231 = vmatprep.subr.mxu0 0.0
    %2232 = vmatpush1.xpose.msra.mxu0 0.0
    %2233 = vmatprep.subr.mxu0 0.0
    %2234 = vmatpush1.xpose.msra.mxu0 0.0
    %2235 = vmatprep.subr.mxu0 0.0
    %2236 = vmatpush1.xpose.msra.mxu0 0.0
    %2237 = vmatprep.subr.mxu0 0.0
    %2238 = vmatpush1.xpose.msra.mxu0 0.0
    %2239 = vmatprep.subr.mxu0 0.0
    %2240 = vmatpush1.xpose.msra.mxu0 0.0
    %2241 = vmatprep.subr.mxu0 0.0
    %2242 = vmatpush1.xpose.msra.mxu0 0.0
    %2243 = vmatprep.subr.mxu0 0.0
    %2244 = vmatpush1.xpose.msra.mxu0 0.0
    %2245 = vmatprep.subr.mxu0 0.0
    %2246 = vmatpush1.xpose.msra.mxu0 0.0
    %2247 = vmatprep.subr.mxu0 0.0
    %2248 = vmatpush1.xpose.msra.mxu0 0.0
    %2249 = vmatprep.subr.mxu0 0.0
    %2250 = vmatpush1.xpose.msra.mxu0 0.0
    %2251 = vmatprep.subr.mxu0 0.0
    %2252 = vmatpush1.xpose.msra.mxu0 0.0
    %2253 = vmatprep.subr.mxu0 0.0
    %2254 = vmatpush1.xpose.msra.mxu0 0.0
    %2255 = vmatprep.subr.mxu0 0.0
    %2256 = vmatpush1.xpose.msra.mxu0 0.0
    %2257 = vmatprep.subr.mxu0 0.0
    %2258 = vmatpush1.xpose.msra.mxu0 0.0
    %2259 = vmatprep.subr.mxu0 0.0
    %2260 = vmatpush1.xpose.msra.mxu0 0.0
    %2261 = vmatprep.subr.mxu0 0.0
    %2262 = vmatpush1.xpose.msra.mxu0 0.0
    %2263 = vmatprep.subr.mxu0 0.0
    %2264 = vmatpush1.xpose.msra.mxu0 0.0
    %2265 = vmatprep.subr.mxu0 0.0
    %2266 = vmatpush1.xpose.msra.mxu0 0.0
    %2267 = vmatprep.subr.mxu0 0.0
    %2268 = vmatpush1.xpose.msra.mxu0 0.0
    %2269 = vmatprep.subr.mxu0 0.0
    %2270 = vmatpush1.xpose.msra.mxu0 0.0
    %2271 = vmatprep.subr.mxu0 0.0
    %2272 = vmatpush1.xpose.msra.mxu0 0.0
    %2273 = vmatprep.subr.mxu0 0.0
    %2274 = vmatpush1.xpose.msra.mxu0 0.0
    %2275 = vmatprep.subr.mxu0 0.0
    %2276 = vmatpush1.xpose.msra.mxu0 0.0
    %2277 = vmatprep.subr.mxu0 0.0
    %2278 = vmatpush1.xpose.msra.mxu0 0.0
    %2279 = vmatprep.subr.mxu0 0.0
    %2280 = vmatpush1.xpose.msra.mxu0 0.0
    %2281 = vmatprep.subr.mxu0 0.0
    %2282 = vmatpush1.xpose.msra.mxu0 0.0
    %2283 = vmatprep.subr.mxu0 0.0
    %2284 = vmatpush1.xpose.msra.mxu0 0.0
    %2285 = vmatprep.subr.mxu0 0.0
    %2286 = vmatpush1.xpose.msra.mxu0 0.0
    %2287 = vmatprep.subr.mxu0 0.0
    %2288 = vmatpush1.xpose.msra.mxu0 0.0
    %2289 = vmatprep.subr.mxu0 0.0
    %2290 = vmatpush1.xpose.msra.mxu0 0.0
    %2291 = vmatprep.mubr.f32.mxu0 0.0
    %2292 = vmatmul.mubr.f32.gmra.mrb[0].mxu0 %v2223
    %v2293 = vpop.f32.mrb[0].mxu0
    %v2294 = vadd.f32 0.0, %v2293
    %v2295 = vpop.f32.mrb[0].mxu0
    %2296 = vdwg.mxu0
    %2297 = vrot.lane.b32.xlu0 %v1892, 120
    %v2298 = vpop.permute.xlu0 %2297
    %2299 = vrot.lane.b32.xlu0 %v1888, 120
    %v2300 = vpop.permute.xlu0 %2299
    %v2301 = vsel %vm245, %v2298, 0
    %v2303 = vsel %vm245, %v2300, 0
    %2305 = vmatprep.subr.mxu0 0.0
    %2306 = vmatpush1.xpose.msra.mxu0 %v2303
    %2307 = vmatprep.subr.mxu0 0.0
    %2308 = vmatpush1.xpose.msra.mxu0 0.0
    %2309 = vmatprep.subr.mxu0 0.0
    %2310 = vmatpush1.xpose.msra.mxu0 0.0
    %2311 = vmatprep.subr.mxu0 0.0
    %2312 = vmatpush1.xpose.msra.mxu0 0.0
    %2313 = vmatprep.subr.mxu0 0.0
    %2314 = vmatpush1.xpose.msra.mxu0 0.0
    %2315 = vmatprep.subr.mxu0 0.0
    %2316 = vmatpush1.xpose.msra.mxu0 0.0
    %2317 = vmatprep.subr.mxu0 0.0
    %2318 = vmatpush1.xpose.msra.mxu0 0.0
    %2319 = vmatprep.subr.mxu0 0.0
    %2320 = vmatpush1.xpose.msra.mxu0 0.0
    %2321 = vmatprep.subr.mxu0 0.0
    %2322 = vmatpush1.xpose.msra.mxu0 0.0
    %2323 = vmatprep.subr.mxu0 0.0
    %2324 = vmatpush1.xpose.msra.mxu0 0.0
    %2325 = vmatprep.subr.mxu0 0.0
    %2326 = vmatpush1.xpose.msra.mxu0 0.0
    %2327 = vmatprep.subr.mxu0 0.0
    %2328 = vmatpush1.xpose.msra.mxu0 0.0
    %2329 = vmatprep.subr.mxu0 0.0
    %2330 = vmatpush1.xpose.msra.mxu0 0.0
    %2331 = vmatprep.subr.mxu0 0.0
    %2332 = vmatpush1.xpose.msra.mxu0 0.0
    %2333 = vmatprep.subr.mxu0 0.0
    %2334 = vmatpush1.xpose.msra.mxu0 0.0
    %2335 = vmatprep.subr.mxu0 0.0
    %2336 = vmatpush1.xpose.msra.mxu0 0.0
    %2337 = vmatprep.subr.mxu0 0.0
    %2338 = vmatpush1.xpose.msra.mxu0 0.0
    %2339 = vmatprep.subr.mxu0 0.0
    %2340 = vmatpush1.xpose.msra.mxu0 0.0
    %2341 = vmatprep.subr.mxu0 0.0
    %2342 = vmatpush1.xpose.msra.mxu0 0.0
    %2343 = vmatprep.subr.mxu0 0.0
    %2344 = vmatpush1.xpose.msra.mxu0 0.0
    %2345 = vmatprep.subr.mxu0 0.0
    %2346 = vmatpush1.xpose.msra.mxu0 0.0
    %2347 = vmatprep.subr.mxu0 0.0
    %2348 = vmatpush1.xpose.msra.mxu0 0.0
    %2349 = vmatprep.subr.mxu0 0.0
    %2350 = vmatpush1.xpose.msra.mxu0 0.0
    %2351 = vmatprep.subr.mxu0 0.0
    %2352 = vmatpush1.xpose.msra.mxu0 0.0
    %2353 = vmatprep.subr.mxu0 0.0
    %2354 = vmatpush1.xpose.msra.mxu0 0.0
    %2355 = vmatprep.subr.mxu0 0.0
    %2356 = vmatpush1.xpose.msra.mxu0 0.0
    %2357 = vmatprep.subr.mxu0 0.0
    %2358 = vmatpush1.xpose.msra.mxu0 0.0
    %2359 = vmatprep.subr.mxu0 0.0
    %2360 = vmatpush1.xpose.msra.mxu0 0.0
    %2361 = vmatprep.subr.mxu0 0.0
    %2362 = vmatpush1.xpose.msra.mxu0 0.0
    %2363 = vmatprep.subr.mxu0 0.0
    %2364 = vmatpush1.xpose.msra.mxu0 0.0
    %2365 = vmatprep.subr.mxu0 0.0
    %2366 = vmatpush1.xpose.msra.mxu0 0.0
    %2367 = vmatprep.subr.mxu0 0.0
    %2368 = vmatpush1.xpose.msra.mxu0 0.0
    %2369 = vmatprep.mubr.f32.mxu0 0.0
    %2370 = vmatmul.mubr.f32.gmra.mrb[0].mxu0 %v2301
    %v2371 = vpop.f32.mrb[0].mxu0
    %v2372 = vadd.f32 0.0, %v2371
    %v2373 = vpop.f32.mrb[0].mxu0
    %2374 = vdwg.mxu0
    %v2375 = vsel %vm245, %v2294, -inf
    %2376 = vmax.xlane.f32.xlu0 %v2375
    %v2377 = vpop.xlane.xlu0 %2376
    %v2378 = vsel %vm245, %v2372, -inf
    %2379 = vmax.xlane.f32.xlu0 %v2378
    %v2380 = vpop.xlane.xlu0 %2379
    %v2381 = vsub.f32 %v2294, %v2377
    %v2382 = vsub.f32 %v2372, %v2380
    %v2383 = vmul.f32 %v2381, 1.442695
    %v2384 = vpow.pop %v2383
    %v2385 = vmul.f32 %v2382, 1.442695
    %v2386 = vpow.pop %v2385
    %v2387 = vsel %vm245, %v2384, 0.0
    %2388 = vadd.xlane.f32.xlu0 %v2387
    %v2389 = vpop.xlane.xlu0 %2388
    %v2390 = vsel %vm245, %v2386, 0.0
    %2391 = vadd.xlane.f32.xlu0 %v2390
    %v2392 = vpop.xlane.xlu0 %2391
    %v2393 = vrcp.pop %v2389
    %v2394 = vmul.f32 %v2384, %v2393
    %v2395 = vrcp.pop %v2392
    %v2396 = vmul.f32 %v2386, %v2395
    %2397 = vrot.lane.b32.xlu0 %v1883, 88
    %v2398 = vpop.permute.xlu0 %2397
    %v2401 = vsel %vm245, %v2394, 0
    %2403 = vmatprep.subr.mxu0 0.0
    %2404 = vmatpush1.msra.mxu0 %v2398
    %2405 = vmatprep.subr.mxu0 0.0
    %2406 = vmatpush1.msra.mxu0 0.0
    %2407 = vmatprep.subr.mxu0 0.0
    %2408 = vmatpush1.msra.mxu0 0.0
    %2409 = vmatprep.subr.mxu0 0.0
    %2410 = vmatpush1.msra.mxu0 0.0
    %2411 = vmatprep.subr.mxu0 0.0
    %2412 = vmatpush1.msra.mxu0 0.0
    %2413 = vmatprep.subr.mxu0 0.0
    %2414 = vmatpush1.msra.mxu0 0.0
    %2415 = vmatprep.subr.mxu0 0.0
    %2416 = vmatpush1.msra.mxu0 0.0
    %2417 = vmatprep.subr.mxu0 0.0
    %2418 = vmatpush1.msra.mxu0 0.0
    %2419 = vmatprep.subr.mxu0 0.0
    %2420 = vmatpush1.msra.mxu0 0.0
    %2421 = vmatprep.subr.mxu0 0.0
    %2422 = vmatpush1.msra.mxu0 0.0
    %2423 = vmatprep.subr.mxu0 0.0
    %2424 = vmatpush1.msra.mxu0 0.0
    %2425 = vmatprep.subr.mxu0 0.0
    %2426 = vmatpush1.msra.mxu0 0.0
    %2427 = vmatprep.subr.mxu0 0.0
    %2428 = vmatpush1.msra.mxu0 0.0
    %2429 = vmatprep.subr.mxu0 0.0
    %2430 = vmatpush1.msra.mxu0 0.0
    %2431 = vmatprep.subr.mxu0 0.0
    %2432 = vmatpush1.msra.mxu0 0.0
    %2433 = vmatprep.subr.mxu0 0.0
    %2434 = vmatpush1.msra.mxu0 0.0
    %2435 = vmatprep.subr.mxu0 0.0
    %2436 = vmatpush1.msra.mxu0 0.0
    %2437 = vmatprep.subr.mxu0 0.0
    %2438 = vmatpush1.msra.mxu0 0.0
    %2439 = vmatprep.subr.mxu0 0.0
    %2440 = vmatpush1.msra.mxu0 0.0
    %2441 = vmatprep.subr.mxu0 0.0
    %2442 = vmatpush1.msra.mxu0 0.0
    %2443 = vmatprep.subr.mxu0 0.0
    %2444 = vmatpush1.msra.mxu0 0.0
    %2445 = vmatprep.subr.mxu0 0.0
    %2446 = vmatpush1.msra.mxu0 0.0
    %2447 = vmatprep.subr.mxu0 0.0
    %2448 = vmatpush1.msra.mxu0 0.0
    %2449 = vmatprep.subr.mxu0 0.0
    %2450 = vmatpush1.msra.mxu0 0.0
    %2451 = vmatprep.subr.mxu0 0.0
    %2452 = vmatpush1.msra.mxu0 0.0
    %2453 = vmatprep.subr.mxu0 0.0
    %2454 = vmatpush1.msra.mxu0 0.0
    %2455 = vmatprep.subr.mxu0 0.0
    %2456 = vmatpush1.msra.mxu0 0.0
    %2457 = vmatprep.subr.mxu0 0.0
    %2458 = vmatpush1.msra.mxu0 0.0
    %2459 = vmatprep.subr.mxu0 0.0
    %2460 = vmatpush1.msra.mxu0 0.0
    %2461 = vmatprep.subr.mxu0 0.0
    %2462 = vmatpush1.msra.mxu0 0.0
    %2463 = vmatprep.subr.mxu0 0.0
    %2464 = vmatpush1.msra.mxu0 0.0
    %2465 = vmatprep.subr.mxu0 0.0
    %2466 = vmatpush1.msra.mxu0 0.0
    %2467 = vmatprep.mubr.f32.mxu0 0.0
    %2468 = vmatmul.mubr.f32.gmra.mrb[0].mxu0 %v2401
    %v2469 = vpop.f32.mrb[0].mxu0
    %v2470 = vadd.f32 0.0, %v2469
    %v2471 = vpop.f32.mrb[0].mxu0
    %2472 = vdwg.mxu0
    %2473 = vrot.lane.b32.xlu0 %v1888, 88
    %v2474 = vpop.permute.xlu0 %2473
    %v2477 = vsel %vm245, %v2396, 0
    %2479 = vmatprep.subr.mxu0 0.0
    %2480 = vmatpush1.msra.mxu0 %v2474
    %2481 = vmatprep.subr.mxu0 0.0
    %2482 = vmatpush1.msra.mxu0 0.0
    %2483 = vmatprep.subr.mxu0 0.0
    %2484 = vmatpush1.msra.mxu0 0.0
    %2485 = vmatprep.subr.mxu0 0.0
    %2486 = vmatpush1.msra.mxu0 0.0
    %2487 = vmatprep.subr.mxu0 0.0
    %2488 = vmatpush1.msra.mxu0 0.0
    %2489 = vmatprep.subr.mxu0 0.0
    %2490 = vmatpush1.msra.mxu0 0.0
    %2491 = vmatprep.subr.mxu0 0.0
    %2492 = vmatpush1.msra.mxu0 0.0
    %2493 = vmatprep.subr.mxu0 0.0
    %2494 = vmatpush1.msra.mxu0 0.0
    %2495 = vmatprep.subr.mxu0 0.0
    %2496 = vmatpush1.msra.mxu0 0.0
    %2497 = vmatprep.subr.mxu0 0.0
    %2498 = vmatpush1.msra.mxu0 0.0
    %2499 = vmatprep.subr.mxu0 0.0
    %2500 = vmatpush1.msra.mxu0 0.0
    %2501 = vmatprep.subr.mxu0 0.0
    %2502 = vmatpush1.msra.mxu0 0.0
    %2503 = vmatprep.subr.mxu0 0.0
    %2504 = vmatpush1.msra.mxu0 0.0
    %2505 = vmatprep.subr.mxu0 0.0
    %2506 = vmatpush1.msra.mxu0 0.0
    %2507 = vmatprep.subr.mxu0 0.0
    %2508 = vmatpush1.msra.mxu0 0.0
    %2509 = vmatprep.subr.mxu0 0.0
    %2510 = vmatpush1.msra.mxu0 0.0
    %2511 = vmatprep.subr.mxu0 0.0
    %2512 = vmatpush1.msra.mxu0 0.0
    %2513 = vmatprep.subr.mxu0 0.0
    %2514 = vmatpush1.msra.mxu0 0.0
    %2515 = vmatprep.subr.mxu0 0.0
    %2516 = vmatpush1.msra.mxu0 0.0
    %2517 = vmatprep.subr.mxu0 0.0
    %2518 = vmatpush1.msra.mxu0 0.0
    %2519 = vmatprep.subr.mxu0 0.0
    %2520 = vmatpush1.msra.mxu0 0.0
    %2521 = vmatprep.subr.mxu0 0.0
    %2522 = vmatpush1.msra.mxu0 0.0
    %2523 = vmatprep.subr.mxu0 0.0
    %2524 = vmatpush1.msra.mxu0 0.0
    %2525 = vmatprep.subr.mxu0 0.0
    %2526 = vmatpush1.msra.mxu0 0.0
    %2527 = vmatprep.subr.mxu0 0.0
    %2528 = vmatpush1.msra.mxu0 0.0
    %2529 = vmatprep.subr.mxu0 0.0
    %2530 = vmatpush1.msra.mxu0 0.0
    %2531 = vmatprep.subr.mxu0 0.0
    %2532 = vmatpush1.msra.mxu0 0.0
    %2533 = vmatprep.subr.mxu0 0.0
    %2534 = vmatpush1.msra.mxu0 0.0
    %2535 = vmatprep.subr.mxu0 0.0
    %2536 = vmatpush1.msra.mxu0 0.0
    %2537 = vmatprep.subr.mxu0 0.0
    %2538 = vmatpush1.msra.mxu0 0.0
    %2539 = vmatprep.subr.mxu0 0.0
    %2540 = vmatpush1.msra.mxu0 0.0
    %2541 = vmatprep.subr.mxu0 0.0
    %2542 = vmatpush1.msra.mxu0 0.0
    %2543 = vmatprep.mubr.f32.mxu0 0.0
    %2544 = vmatmul.mubr.f32.gmra.mrb[0].mxu0 %v2477
    %v2545 = vpop.f32.mrb[0].mxu0
    %v2546 = vadd.f32 0.0, %v2545
    %v2547 = vpop.f32.mrb[0].mxu0
    %2548 = vdwg.mxu0
    %2549 = vrot.lane.b32.xlu0 %v1891, 112
    %v2550 = vpop.permute.xlu0 %2549
    %2551 = vrot.lane.b32.xlu0 %v1883, 112
    %v2552 = vpop.permute.xlu0 %2551
    %v2553 = vsel %vm245, %v2550, 0
    %v2555 = vsel %vm245, %v2552, 0
    %2557 = vmatprep.subr.mxu0 0.0
    %2558 = vmatpush1.xpose.msra.mxu0 %v2555
    %2559 = vmatprep.subr.mxu0 0.0
    %2560 = vmatpush1.xpose.msra.mxu0 0.0
    %2561 = vmatprep.subr.mxu0 0.0
    %2562 = vmatpush1.xpose.msra.mxu0 0.0
    %2563 = vmatprep.subr.mxu0 0.0
    %2564 = vmatpush1.xpose.msra.mxu0 0.0
    %2565 = vmatprep.subr.mxu0 0.0
    %2566 = vmatpush1.xpose.msra.mxu0 0.0
    %2567 = vmatprep.subr.mxu0 0.0
    %2568 = vmatpush1.xpose.msra.mxu0 0.0
    %2569 = vmatprep.subr.mxu0 0.0
    %2570 = vmatpush1.xpose.msra.mxu0 0.0
    %2571 = vmatprep.subr.mxu0 0.0
    %2572 = vmatpush1.xpose.msra.mxu0 0.0
    %2573 = vmatprep.subr.mxu0 0.0
    %2574 = vmatpush1.xpose.msra.mxu0 0.0
    %2575 = vmatprep.subr.mxu0 0.0
    %2576 = vmatpush1.xpose.msra.mxu0 0.0
    %2577 = vmatprep.subr.mxu0 0.0
    %2578 = vmatpush1.xpose.msra.mxu0 0.0
    %2579 = vmatprep.subr.mxu0 0.0
    %2580 = vmatpush1.xpose.msra.mxu0 0.0
    %2581 = vmatprep.subr.mxu0 0.0
    %2582 = vmatpush1.xpose.msra.mxu0 0.0
    %2583 = vmatprep.subr.mxu0 0.0
    %2584 = vmatpush1.xpose.msra.mxu0 0.0
    %2585 = vmatprep.subr.mxu0 0.0
    %2586 = vmatpush1.xpose.msra.mxu0 0.0
    %2587 = vmatprep.subr.mxu0 0.0
    %2588 = vmatpush1.xpose.msra.mxu0 0.0
    %2589 = vmatprep.subr.mxu0 0.0
    %2590 = vmatpush1.xpose.msra.mxu0 0.0
    %2591 = vmatprep.subr.mxu0 0.0
    %2592 = vmatpush1.xpose.msra.mxu0 0.0
    %2593 = vmatprep.subr.mxu0 0.0
    %2594 = vmatpush1.xpose.msra.mxu0 0.0
    %2595 = vmatprep.subr.mxu0 0.0
    %2596 = vmatpush1.xpose.msra.mxu0 0.0
    %2597 = vmatprep.subr.mxu0 0.0
    %2598 = vmatpush1.xpose.msra.mxu0 0.0
    %2599 = vmatprep.subr.mxu0 0.0
    %2600 = vmatpush1.xpose.msra.mxu0 0.0
    %2601 = vmatprep.subr.mxu0 0.0
    %2602 = vmatpush1.xpose.msra.mxu0 0.0
    %2603 = vmatprep.subr.mxu0 0.0
    %2604 = vmatpush1.xpose.msra.mxu0 0.0
    %2605 = vmatprep.subr.mxu0 0.0
    %2606 = vmatpush1.xpose.msra.mxu0 0.0
    %2607 = vmatprep.subr.mxu0 0.0
    %2608 = vmatpush1.xpose.msra.mxu0 0.0
    %2609 = vmatprep.subr.mxu0 0.0
    %2610 = vmatpush1.xpose.msra.mxu0 0.0
    %2611 = vmatprep.subr.mxu0 0.0
    %2612 = vmatpush1.xpose.msra.mxu0 0.0
    %2613 = vmatprep.subr.mxu0 0.0
    %2614 = vmatpush1.xpose.msra.mxu0 0.0
    %2615 = vmatprep.subr.mxu0 0.0
    %2616 = vmatpush1.xpose.msra.mxu0 0.0
    %2617 = vmatprep.subr.mxu0 0.0
    %2618 = vmatpush1.xpose.msra.mxu0 0.0
    %2619 = vmatprep.subr.mxu0 0.0
    %2620 = vmatpush1.xpose.msra.mxu0 0.0
    %2621 = vmatprep.mubr.f32.mxu0 0.0
    %2622 = vmatmul.mubr.f32.gmra.mrb[0].mxu0 %v2553
    %v2623 = vpop.f32.mrb[0].mxu0
    %v2624 = vadd.f32 0.0, %v2623
    %v2625 = vpop.f32.mrb[0].mxu0
    %2626 = vdwg.mxu0
    %2627 = vrot.lane.b32.xlu0 %v1892, 112
    %v2628 = vpop.permute.xlu0 %2627
    %2629 = vrot.lane.b32.xlu0 %v1888, 112
    %v2630 = vpop.permute.xlu0 %2629
    %v2631 = vsel %vm245, %v2628, 0
    %v2633 = vsel %vm245, %v2630, 0
    %2635 = vmatprep.subr.mxu0 0.0
    %2636 = vmatpush1.xpose.msra.mxu0 %v2633
    %2637 = vmatprep.subr.mxu0 0.0
    %2638 = vmatpush1.xpose.msra.mxu0 0.0
    %2639 = vmatprep.subr.mxu0 0.0
    %2640 = vmatpush1.xpose.msra.mxu0 0.0
    %2641 = vmatprep.subr.mxu0 0.0
    %2642 = vmatpush1.xpose.msra.mxu0 0.0
    %2643 = vmatprep.subr.mxu0 0.0
    %2644 = vmatpush1.xpose.msra.mxu0 0.0
    %2645 = vmatprep.subr.mxu0 0.0
    %2646 = vmatpush1.xpose.msra.mxu0 0.0
    %2647 = vmatprep.subr.mxu0 0.0
    %2648 = vmatpush1.xpose.msra.mxu0 0.0
    %2649 = vmatprep.subr.mxu0 0.0
    %2650 = vmatpush1.xpose.msra.mxu0 0.0
    %2651 = vmatprep.subr.mxu0 0.0
    %2652 = vmatpush1.xpose.msra.mxu0 0.0
    %2653 = vmatprep.subr.mxu0 0.0
    %2654 = vmatpush1.xpose.msra.mxu0 0.0
    %2655 = vmatprep.subr.mxu0 0.0
    %2656 = vmatpush1.xpose.msra.mxu0 0.0
    %2657 = vmatprep.subr.mxu0 0.0
    %2658 = vmatpush1.xpose.msra.mxu0 0.0
    %2659 = vmatprep.subr.mxu0 0.0
    %2660 = vmatpush1.xpose.msra.mxu0 0.0
    %2661 = vmatprep.subr.mxu0 0.0
    %2662 = vmatpush1.xpose.msra.mxu0 0.0
    %2663 = vmatprep.subr.mxu0 0.0
    %2664 = vmatpush1.xpose.msra.mxu0 0.0
    %2665 = vmatprep.subr.mxu0 0.0
    %2666 = vmatpush1.xpose.msra.mxu0 0.0
    %2667 = vmatprep.subr.mxu0 0.0
    %2668 = vmatpush1.xpose.msra.mxu0 0.0
    %2669 = vmatprep.subr.mxu0 0.0
    %2670 = vmatpush1.xpose.msra.mxu0 0.0
    %2671 = vmatprep.subr.mxu0 0.0
    %2672 = vmatpush1.xpose.msra.mxu0 0.0
    %2673 = vmatprep.subr.mxu0 0.0
    %2674 = vmatpush1.xpose.msra.mxu0 0.0
    %2675 = vmatprep.subr.mxu0 0.0
    %2676 = vmatpush1.xpose.msra.mxu0 0.0
    %2677 = vmatprep.subr.mxu0 0.0
    %2678 = vmatpush1.xpose.msra.mxu0 0.0
    %2679 = vmatprep.subr.mxu0 0.0
    %2680 = vmatpush1.xpose.msra.mxu0 0.0
    %2681 = vmatprep.subr.mxu0 0.0
    %2682 = vmatpush1.xpose.msra.mxu0 0.0
    %2683 = vmatprep.subr.mxu0 0.0
    %2684 = vmatpush1.xpose.msra.mxu0 0.0
    %2685 = vmatprep.subr.mxu0 0.0
    %2686 = vmatpush1.xpose.msra.mxu0 0.0
    %2687 = vmatprep.subr.mxu0 0.0
    %2688 = vmatpush1.xpose.msra.mxu0 0.0
    %2689 = vmatprep.subr.mxu0 0.0
    %2690 = vmatpush1.xpose.msra.mxu0 0.0
    %2691 = vmatprep.subr.mxu0 0.0
    %2692 = vmatpush1.xpose.msra.mxu0 0.0
    %2693 = vmatprep.subr.mxu0 0.0
    %2694 = vmatpush1.xpose.msra.mxu0 0.0
    %2695 = vmatprep.subr.mxu0 0.0
    %2696 = vmatpush1.xpose.msra.mxu0 0.0
    %2697 = vmatprep.subr.mxu0 0.0
    %2698 = vmatpush1.xpose.msra.mxu0 0.0
    %2699 = vmatprep.mubr.f32.mxu0 0.0
    %2700 = vmatmul.mubr.f32.gmra.mrb[0].mxu0 %v2631
    %v2701 = vpop.f32.mrb[0].mxu0
    %v2702 = vadd.f32 0.0, %v2701
    %v2703 = vpop.f32.mrb[0].mxu0
    %2704 = vdwg.mxu0
    %v2705 = vsel %vm245, %v2624, -inf
    %2706 = vmax.xlane.f32.xlu0 %v2705
    %v2707 = vpop.xlane.xlu0 %2706
    %v2708 = vsel %vm245, %v2702, -inf
    %2709 = vmax.xlane.f32.xlu0 %v2708
    %v2710 = vpop.xlane.xlu0 %2709
    %v2711 = vsub.f32 %v2624, %v2707
    %v2712 = vsub.f32 %v2702, %v2710
    %v2713 = vmul.f32 %v2711, 1.442695
    %v2714 = vpow.pop %v2713
    %v2715 = vmul.f32 %v2712, 1.442695
    %v2716 = vpow.pop %v2715
    %v2717 = vsel %vm245, %v2714, 0.0
    %2718 = vadd.xlane.f32.xlu0 %v2717
    %v2719 = vpop.xlane.xlu0 %2718
    %v2720 = vsel %vm245, %v2716, 0.0
    %2721 = vadd.xlane.f32.xlu0 %v2720
    %v2722 = vpop.xlane.xlu0 %2721
    %v2723 = vrcp.pop %v2719
    %v2724 = vmul.f32 %v2714, %v2723
    %v2725 = vrcp.pop %v2722
    %v2726 = vmul.f32 %v2716, %v2725
    %2727 = vrot.lane.b32.xlu0 %v1883, 80
    %v2728 = vpop.permute.xlu0 %2727
    %v2731 = vsel %vm245, %v2724, 0
    %2733 = vmatprep.subr.mxu0 0.0
    %2734 = vmatpush1.msra.mxu0 %v2728
    %2735 = vmatprep.subr.mxu0 0.0
    %2736 = vmatpush1.msra.mxu0 0.0
    %2737 = vmatprep.subr.mxu0 0.0
    %2738 = vmatpush1.msra.mxu0 0.0
    %2739 = vmatprep.subr.mxu0 0.0
    %2740 = vmatpush1.msra.mxu0 0.0
    %2741 = vmatprep.subr.mxu0 0.0
    %2742 = vmatpush1.msra.mxu0 0.0
    %2743 = vmatprep.subr.mxu0 0.0
    %2744 = vmatpush1.msra.mxu0 0.0
    %2745 = vmatprep.subr.mxu0 0.0
    %2746 = vmatpush1.msra.mxu0 0.0
    %2747 = vmatprep.subr.mxu0 0.0
    %2748 = vmatpush1.msra.mxu0 0.0
    %2749 = vmatprep.subr.mxu0 0.0
    %2750 = vmatpush1.msra.mxu0 0.0
    %2751 = vmatprep.subr.mxu0 0.0
    %2752 = vmatpush1.msra.mxu0 0.0
    %2753 = vmatprep.subr.mxu0 0.0
    %2754 = vmatpush1.msra.mxu0 0.0
    %2755 = vmatprep.subr.mxu0 0.0
    %2756 = vmatpush1.msra.mxu0 0.0
    %2757 = vmatprep.subr.mxu0 0.0
    %2758 = vmatpush1.msra.mxu0 0.0
    %2759 = vmatprep.subr.mxu0 0.0
    %2760 = vmatpush1.msra.mxu0 0.0
    %2761 = vmatprep.subr.mxu0 0.0
    %2762 = vmatpush1.msra.mxu0 0.0
    %2763 = vmatprep.subr.mxu0 0.0
    %2764 = vmatpush1.msra.mxu0 0.0
    %2765 = vmatprep.subr.mxu0 0.0
    %2766 = vmatpush1.msra.mxu0 0.0
    %2767 = vmatprep.subr.mxu0 0.0
    %2768 = vmatpush1.msra.mxu0 0.0
    %2769 = vmatprep.subr.mxu0 0.0
    %2770 = vmatpush1.msra.mxu0 0.0
    %2771 = vmatprep.subr.mxu0 0.0
    %2772 = vmatpush1.msra.mxu0 0.0
    %2773 = vmatprep.subr.mxu0 0.0
    %2774 = vmatpush1.msra.mxu0 0.0
    %2775 = vmatprep.subr.mxu0 0.0
    %2776 = vmatpush1.msra.mxu0 0.0
    %2777 = vmatprep.subr.mxu0 0.0
    %2778 = vmatpush1.msra.mxu0 0.0
    %2779 = vmatprep.subr.mxu0 0.0
    %2780 = vmatpush1.msra.mxu0 0.0
    %2781 = vmatprep.subr.mxu0 0.0
    %2782 = vmatpush1.msra.mxu0 0.0
    %2783 = vmatprep.subr.mxu0 0.0
    %2784 = vmatpush1.msra.mxu0 0.0
    %2785 = vmatprep.subr.mxu0 0.0
    %2786 = vmatpush1.msra.mxu0 0.0
    %2787 = vmatprep.subr.mxu0 0.0
    %2788 = vmatpush1.msra.mxu0 0.0
    %2789 = vmatprep.subr.mxu0 0.0
    %2790 = vmatpush1.msra.mxu0 0.0
    %2791 = vmatprep.subr.mxu0 0.0
    %2792 = vmatpush1.msra.mxu0 0.0
    %2793 = vmatprep.subr.mxu0 0.0
    %2794 = vmatpush1.msra.mxu0 0.0
    %2795 = vmatprep.subr.mxu0 0.0
    %2796 = vmatpush1.msra.mxu0 0.0
    %2797 = vmatprep.mubr.f32.mxu0 0.0
    %2798 = vmatmul.mubr.f32.gmra.mrb[0].mxu0 %v2731
    %v2799 = vpop.f32.mrb[0].mxu0
    %v2800 = vadd.f32 0.0, %v2799
    %v2801 = vpop.f32.mrb[0].mxu0
    %2802 = vdwg.mxu0
    %2803 = vrot.lane.b32.xlu0 %v1888, 80
    %v2804 = vpop.permute.xlu0 %2803
    %v2807 = vsel %vm245, %v2726, 0
    %2809 = vmatprep.subr.mxu0 0.0
    %2810 = vmatpush1.msra.mxu0 %v2804
    %2811 = vmatprep.subr.mxu0 0.0
    %2812 = vmatpush1.msra.mxu0 0.0
    %2813 = vmatprep.subr.mxu0 0.0
    %2814 = vmatpush1.msra.mxu0 0.0
    %2815 = vmatprep.subr.mxu0 0.0
    %2816 = vmatpush1.msra.mxu0 0.0
    %2817 = vmatprep.subr.mxu0 0.0
    %2818 = vmatpush1.msra.mxu0 0.0
    %2819 = vmatprep.subr.mxu0 0.0
    %2820 = vmatpush1.msra.mxu0 0.0
    %2821 = vmatprep.subr.mxu0 0.0
    %2822 = vmatpush1.msra.mxu0 0.0
    %2823 = vmatprep.subr.mxu0 0.0
    %2824 = vmatpush1.msra.mxu0 0.0
    %2825 = vmatprep.subr.mxu0 0.0
    %2826 = vmatpush1.msra.mxu0 0.0
    %2827 = vmatprep.subr.mxu0 0.0
    %2828 = vmatpush1.msra.mxu0 0.0
    %2829 = vmatprep.subr.mxu0 0.0
    %2830 = vmatpush1.msra.mxu0 0.0
    %2831 = vmatprep.subr.mxu0 0.0
    %2832 = vmatpush1.msra.mxu0 0.0
    %2833 = vmatprep.subr.mxu0 0.0
    %2834 = vmatpush1.msra.mxu0 0.0
    %2835 = vmatprep.subr.mxu0 0.0
    %2836 = vmatpush1.msra.mxu0 0.0
    %2837 = vmatprep.subr.mxu0 0.0
    %2838 = vmatpush1.msra.mxu0 0.0
    %2839 = vmatprep.subr.mxu0 0.0
    %2840 = vmatpush1.msra.mxu0 0.0
    %2841 = vmatprep.subr.mxu0 0.0
    %2842 = vmatpush1.msra.mxu0 0.0
    %2843 = vmatprep.subr.mxu0 0.0
    %2844 = vmatpush1.msra.mxu0 0.0
    %2845 = vmatprep.subr.mxu0 0.0
    %2846 = vmatpush1.msra.mxu0 0.0
    %2847 = vmatprep.subr.mxu0 0.0
    %2848 = vmatpush1.msra.mxu0 0.0
    %2849 = vmatprep.subr.mxu0 0.0
    %2850 = vmatpush1.msra.mxu0 0.0
    %2851 = vmatprep.subr.mxu0 0.0
    %2852 = vmatpush1.msra.mxu0 0.0
    %2853 = vmatprep.subr.mxu0 0.0
    %2854 = vmatpush1.msra.mxu0 0.0
    %2855 = vmatprep.subr.mxu0 0.0
    %2856 = vmatpush1.msra.mxu0 0.0
    %2857 = vmatprep.subr.mxu0 0.0
    %2858 = vmatpush1.msra.mxu0 0.0
    %2859 = vmatprep.subr.mxu0 0.0
    %2860 = vmatpush1.msra.mxu0 0.0
    %2861 = vmatprep.subr.mxu0 0.0
    %2862 = vmatpush1.msra.mxu0 0.0
    %2863 = vmatprep.subr.mxu0 0.0
    %2864 = vmatpush1.msra.mxu0 0.0
    %2865 = vmatprep.subr.mxu0 0.0
    %2866 = vmatpush1.msra.mxu0 0.0
    %2867 = vmatprep.subr.mxu0 0.0
    %2868 = vmatpush1.msra.mxu0 0.0
    %2869 = vmatprep.subr.mxu0 0.0
    %2870 = vmatpush1.msra.mxu0 0.0
    %2871 = vmatprep.subr.mxu0 0.0
    %2872 = vmatpush1.msra.mxu0 0.0
    %2873 = vmatprep.mubr.f32.mxu0 0.0
    %2874 = vmatmul.mubr.f32.gmra.mrb[0].mxu0 %v2807
    %v2875 = vpop.f32.mrb[0].mxu0
    %v2876 = vadd.f32 0.0, %v2875
    %v2877 = vpop.f32.mrb[0].mxu0
    %2878 = vdwg.mxu0
    %2879 = vrot.lane.b32.xlu0 %v1891, 104
    %v2880 = vpop.permute.xlu0 %2879
    %2881 = vrot.lane.b32.xlu0 %v1883, 104
    %v2882 = vpop.permute.xlu0 %2881
    %v2883 = vsel %vm245, %v2880, 0
    %v2885 = vsel %vm245, %v2882, 0
    %2887 = vmatprep.subr.mxu0 0.0
    %2888 = vmatpush1.xpose.msra.mxu0 %v2885
    %2889 = vmatprep.subr.mxu0 0.0
    %2890 = vmatpush1.xpose.msra.mxu0 0.0
    %2891 = vmatprep.subr.mxu0 0.0
    %2892 = vmatpush1.xpose.msra.mxu0 0.0
    %2893 = vmatprep.subr.mxu0 0.0
    %2894 = vmatpush1.xpose.msra.mxu0 0.0
    %2895 = vmatprep.subr.mxu0 0.0
    %2896 = vmatpush1.xpose.msra.mxu0 0.0
    %2897 = vmatprep.subr.mxu0 0.0
    %2898 = vmatpush1.xpose.msra.mxu0 0.0
    %2899 = vmatprep.subr.mxu0 0.0
    %2900 = vmatpush1.xpose.msra.mxu0 0.0
    %2901 = vmatprep.subr.mxu0 0.0
    %2902 = vmatpush1.xpose.msra.mxu0 0.0
    %2903 = vmatprep.subr.mxu0 0.0
    %2904 = vmatpush1.xpose.msra.mxu0 0.0
    %2905 = vmatprep.subr.mxu0 0.0
    %2906 = vmatpush1.xpose.msra.mxu0 0.0
    %2907 = vmatprep.subr.mxu0 0.0
    %2908 = vmatpush1.xpose.msra.mxu0 0.0
    %2909 = vmatprep.subr.mxu0 0.0
    %2910 = vmatpush1.xpose.msra.mxu0 0.0
    %2911 = vmatprep.subr.mxu0 0.0
    %2912 = vmatpush1.xpose.msra.mxu0 0.0
    %2913 = vmatprep.subr.mxu0 0.0
    %2914 = vmatpush1.xpose.msra.mxu0 0.0
    %2915 = vmatprep.subr.mxu0 0.0
    %2916 = vmatpush1.xpose.msra.mxu0 0.0
    %2917 = vmatprep.subr.mxu0 0.0
    %2918 = vmatpush1.xpose.msra.mxu0 0.0
    %2919 = vmatprep.subr.mxu0 0.0
    %2920 = vmatpush1.xpose.msra.mxu0 0.0
    %2921 = vmatprep.subr.mxu0 0.0
    %2922 = vmatpush1.xpose.msra.mxu0 0.0
    %2923 = vmatprep.subr.mxu0 0.0
    %2924 = vmatpush1.xpose.msra.mxu0 0.0
    %2925 = vmatprep.subr.mxu0 0.0
    %2926 = vmatpush1.xpose.msra.mxu0 0.0
    %2927 = vmatprep.subr.mxu0 0.0
    %2928 = vmatpush1.xpose.msra.mxu0 0.0
    %2929 = vmatprep.subr.mxu0 0.0
    %2930 = vmatpush1.xpose.msra.mxu0 0.0
    %2931 = vmatprep.subr.mxu0 0.0
    %2932 = vmatpush1.xpose.msra.mxu0 0.0
    %2933 = vmatprep.subr.mxu0 0.0
    %2934 = vmatpush1.xpose.msra.mxu0 0.0
    %2935 = vmatprep.subr.mxu0 0.0
    %2936 = vmatpush1.xpose.msra.mxu0 0.0
    %2937 = vmatprep.subr.mxu0 0.0
    %2938 = vmatpush1.xpose.msra.mxu0 0.0
    %2939 = vmatprep.subr.mxu0 0.0
    %2940 = vmatpush1.xpose.msra.mxu0 0.0
    %2941 = vmatprep.subr.mxu0 0.0
    %2942 = vmatpush1.xpose.msra.mxu0 0.0
    %2943 = vmatprep.subr.mxu0 0.0
    %2944 = vmatpush1.xpose.msra.mxu0 0.0
    %2945 = vmatprep.subr.mxu0 0.0
    %2946 = vmatpush1.xpose.msra.mxu0 0.0
    %2947 = vmatprep.subr.mxu0 0.0
    %2948 = vmatpush1.xpose.msra.mxu0 0.0
    %2949 = vmatprep.subr.mxu0 0.0
    %2950 = vmatpush1.xpose.msra.mxu0 0.0
    %2951 = vmatprep.mubr.f32.mxu0 0.0
    %2952 = vmatmul.mubr.f32.gmra.mrb[0].mxu0 %v2883
    %v2953 = vpop.f32.mrb[0].mxu0
    %v2954 = vadd.f32 0.0, %v2953
    %v2955 = vpop.f32.mrb[0].mxu0
    %2956 = vdwg.mxu0
    %2957 = vrot.lane.b32.xlu0 %v1892, 104
    %v2958 = vpop.permute.xlu0 %2957
    %2959 = vrot.lane.b32.xlu0 %v1888, 104
    %v2960 = vpop.permute.xlu0 %2959
    %v2961 = vsel %vm245, %v2958, 0
    %v2963 = vsel %vm245, %v2960, 0
    %2965 = vmatprep.subr.mxu0 0.0
    %2966 = vmatpush1.xpose.msra.mxu0 %v2963
    %2967 = vmatprep.subr.mxu0 0.0
    %2968 = vmatpush1.xpose.msra.mxu0 0.0
    %2969 = vmatprep.subr.mxu0 0.0
    %2970 = vmatpush1.xpose.msra.mxu0 0.0
    %2971 = vmatprep.subr.mxu0 0.0
    %2972 = vmatpush1.xpose.msra.mxu0 0.0
    %2973 = vmatprep.subr.mxu0 0.0
    %2974 = vmatpush1.xpose.msra.mxu0 0.0
    %2975 = vmatprep.subr.mxu0 0.0
    %2976 = vmatpush1.xpose.msra.mxu0 0.0
    %2977 = vmatprep.subr.mxu0 0.0
    %2978 = vmatpush1.xpose.msra.mxu0 0.0
    %2979 = vmatprep.subr.mxu0 0.0
    %2980 = vmatpush1.xpose.msra.mxu0 0.0
    %2981 = vmatprep.subr.mxu0 0.0
    %2982 = vmatpush1.xpose.msra.mxu0 0.0
    %2983 = vmatprep.subr.mxu0 0.0
    %2984 = vmatpush1.xpose.msra.mxu0 0.0
    %2985 = vmatprep.subr.mxu0 0.0
    %2986 = vmatpush1.xpose.msra.mxu0 0.0
    %2987 = vmatprep.subr.mxu0 0.0
    %2988 = vmatpush1.xpose.msra.mxu0 0.0
    %2989 = vmatprep.subr.mxu0 0.0
    %2990 = vmatpush1.xpose.msra.mxu0 0.0
    %2991 = vmatprep.subr.mxu0 0.0
    %2992 = vmatpush1.xpose.msra.mxu0 0.0
    %2993 = vmatprep.subr.mxu0 0.0
    %2994 = vmatpush1.xpose.msra.mxu0 0.0
    %2995 = vmatprep.subr.mxu0 0.0
    %2996 = vmatpush1.xpose.msra.mxu0 0.0
    %2997 = vmatprep.subr.mxu0 0.0
    %2998 = vmatpush1.xpose.msra.mxu0 0.0
    %2999 = vmatprep.subr.mxu0 0.0
    %3000 = vmatpush1.xpose.msra.mxu0 0.0
    %3001 = vmatprep.subr.mxu0 0.0
    %3002 = vmatpush1.xpose.msra.mxu0 0.0
    %3003 = vmatprep.subr.mxu0 0.0
    %3004 = vmatpush1.xpose.msra.mxu0 0.0
    %3005 = vmatprep.subr.mxu0 0.0
    %3006 = vmatpush1.xpose.msra.mxu0 0.0
    %3007 = vmatprep.subr.mxu0 0.0
    %3008 = vmatpush1.xpose.msra.mxu0 0.0
    %3009 = vmatprep.subr.mxu0 0.0
    %3010 = vmatpush1.xpose.msra.mxu0 0.0
    %3011 = vmatprep.subr.mxu0 0.0
    %3012 = vmatpush1.xpose.msra.mxu0 0.0
    %3013 = vmatprep.subr.mxu0 0.0
    %3014 = vmatpush1.xpose.msra.mxu0 0.0
    %3015 = vmatprep.subr.mxu0 0.0
    %3016 = vmatpush1.xpose.msra.mxu0 0.0
    %3017 = vmatprep.subr.mxu0 0.0
    %3018 = vmatpush1.xpose.msra.mxu0 0.0
    %3019 = vmatprep.subr.mxu0 0.0
    %3020 = vmatpush1.xpose.msra.mxu0 0.0
    %3021 = vmatprep.subr.mxu0 0.0
    %3022 = vmatpush1.xpose.msra.mxu0 0.0
    %3023 = vmatprep.subr.mxu0 0.0
    %3024 = vmatpush1.xpose.msra.mxu0 0.0
    %3025 = vmatprep.subr.mxu0 0.0
    %3026 = vmatpush1.xpose.msra.mxu0 0.0
    %3027 = vmatprep.subr.mxu0 0.0
    %3028 = vmatpush1.xpose.msra.mxu0 0.0
    %3029 = vmatprep.mubr.f32.mxu0 0.0
    %3030 = vmatmul.mubr.f32.gmra.mrb[0].mxu0 %v2961
    %v3031 = vpop.f32.mrb[0].mxu0
    %v3032 = vadd.f32 0.0, %v3031
    %v3033 = vpop.f32.mrb[0].mxu0
    %3034 = vdwg.mxu0
    %v3035 = vsel %vm245, %v2954, -inf
    %3036 = vmax.xlane.f32.xlu0 %v3035
    %v3037 = vpop.xlane.xlu0 %3036
    %v3038 = vsel %vm245, %v3032, -inf
    %3039 = vmax.xlane.f32.xlu0 %v3038
    %v3040 = vpop.xlane.xlu0 %3039
    %v3041 = vsub.f32 %v2954, %v3037
    %v3042 = vsub.f32 %v3032, %v3040
    %v3043 = vmul.f32 %v3041, 1.442695
    %v3044 = vpow.pop %v3043
    %v3045 = vmul.f32 %v3042, 1.442695
    %v3046 = vpow.pop %v3045
    %v3047 = vsel %vm245, %v3044, 0.0
    %3048 = vadd.xlane.f32.xlu0 %v3047
    %v3049 = vpop.xlane.xlu0 %3048
    %v3050 = vsel %vm245, %v3046, 0.0
    %3051 = vadd.xlane.f32.xlu0 %v3050
    %v3052 = vpop.xlane.xlu0 %3051
    %v3053 = vrcp.pop %v3049
    %v3054 = vmul.f32 %v3044, %v3053
    %v3055 = vrcp.pop %v3052
    %v3056 = vmul.f32 %v3046, %v3055
    %3057 = vrot.lane.b32.xlu0 %v1883, 72
    %v3058 = vpop.permute.xlu0 %3057
    %v3061 = vsel %vm245, %v3054, 0
    %3063 = vmatprep.subr.mxu0 0.0
    %3064 = vmatpush1.msra.mxu0 %v3058
    %3065 = vmatprep.subr.mxu0 0.0
    %3066 = vmatpush1.msra.mxu0 0.0
    %3067 = vmatprep.subr.mxu0 0.0
    %3068 = vmatpush1.msra.mxu0 0.0
    %3069 = vmatprep.subr.mxu0 0.0
    %3070 = vmatpush1.msra.mxu0 0.0
    %3071 = vmatprep.subr.mxu0 0.0
    %3072 = vmatpush1.msra.mxu0 0.0
    %3073 = vmatprep.subr.mxu0 0.0
    %3074 = vmatpush1.msra.mxu0 0.0
    %3075 = vmatprep.subr.mxu0 0.0
    %3076 = vmatpush1.msra.mxu0 0.0
    %3077 = vmatprep.subr.mxu0 0.0
    %3078 = vmatpush1.msra.mxu0 0.0
    %3079 = vmatprep.subr.mxu0 0.0
    %3080 = vmatpush1.msra.mxu0 0.0
    %3081 = vmatprep.subr.mxu0 0.0
    %3082 = vmatpush1.msra.mxu0 0.0
    %3083 = vmatprep.subr.mxu0 0.0
    %3084 = vmatpush1.msra.mxu0 0.0
    %3085 = vmatprep.subr.mxu0 0.0
    %3086 = vmatpush1.msra.mxu0 0.0
    %3087 = vmatprep.subr.mxu0 0.0
    %3088 = vmatpush1.msra.mxu0 0.0
    %3089 = vmatprep.subr.mxu0 0.0
    %3090 = vmatpush1.msra.mxu0 0.0
    %3091 = vmatprep.subr.mxu0 0.0
    %3092 = vmatpush1.msra.mxu0 0.0
    %3093 = vmatprep.subr.mxu0 0.0
    %3094 = vmatpush1.msra.mxu0 0.0
    %3095 = vmatprep.subr.mxu0 0.0
    %3096 = vmatpush1.msra.mxu0 0.0
    %3097 = vmatprep.subr.mxu0 0.0
    %3098 = vmatpush1.msra.mxu0 0.0
    %3099 = vmatprep.subr.mxu0 0.0
    %3100 = vmatpush1.msra.mxu0 0.0
    %3101 = vmatprep.subr.mxu0 0.0
    %3102 = vmatpush1.msra.mxu0 0.0
    %3103 = vmatprep.subr.mxu0 0.0
    %3104 = vmatpush1.msra.mxu0 0.0
    %3105 = vmatprep.subr.mxu0 0.0
    %3106 = vmatpush1.msra.mxu0 0.0
    %3107 = vmatprep.subr.mxu0 0.0
    %3108 = vmatpush1.msra.mxu0 0.0
    %3109 = vmatprep.subr.mxu0 0.0
    %3110 = vmatpush1.msra.mxu0 0.0
    %3111 = vmatprep.subr.mxu0 0.0
    %3112 = vmatpush1.msra.mxu0 0.0
    %3113 = vmatprep.subr.mxu0 0.0
    %3114 = vmatpush1.msra.mxu0 0.0
    %3115 = vmatprep.subr.mxu0 0.0
    %3116 = vmatpush1.msra.mxu0 0.0
    %3117 = vmatprep.subr.mxu0 0.0
    %3118 = vmatpush1.msra.mxu0 0.0
    %3119 = vmatprep.subr.mxu0 0.0
    %3120 = vmatpush1.msra.mxu0 0.0
    %3121 = vmatprep.subr.mxu0 0.0
    %3122 = vmatpush1.msra.mxu0 0.0
    %3123 = vmatprep.subr.mxu0 0.0
    %3124 = vmatpush1.msra.mxu0 0.0
    %3125 = vmatprep.subr.mxu0 0.0
    %3126 = vmatpush1.msra.mxu0 0.0
    %3127 = vmatprep.mubr.f32.mxu0 0.0
    %3128 = vmatmul.mubr.f32.gmra.mrb[0].mxu0 %v3061
    %v3129 = vpop.f32.mrb[0].mxu0
    %v3130 = vadd.f32 0.0, %v3129
    %v3131 = vpop.f32.mrb[0].mxu0
    %3132 = vdwg.mxu0
    %3133 = vrot.lane.b32.xlu0 %v1888, 72
    %v3134 = vpop.permute.xlu0 %3133
    %v3137 = vsel %vm245, %v3056, 0
    %3139 = vmatprep.subr.mxu0 0.0
    %3140 = vmatpush1.msra.mxu0 %v3134
    %3141 = vmatprep.subr.mxu0 0.0
    %3142 = vmatpush1.msra.mxu0 0.0
    %3143 = vmatprep.subr.mxu0 0.0
    %3144 = vmatpush1.msra.mxu0 0.0
    %3145 = vmatprep.subr.mxu0 0.0
    %3146 = vmatpush1.msra.mxu0 0.0
    %3147 = vmatprep.subr.mxu0 0.0
    %3148 = vmatpush1.msra.mxu0 0.0
    %3149 = vmatprep.subr.mxu0 0.0
    %3150 = vmatpush1.msra.mxu0 0.0
    %3151 = vmatprep.subr.mxu0 0.0
    %3152 = vmatpush1.msra.mxu0 0.0
    %3153 = vmatprep.subr.mxu0 0.0
    %3154 = vmatpush1.msra.mxu0 0.0
    %3155 = vmatprep.subr.mxu0 0.0
    %3156 = vmatpush1.msra.mxu0 0.0
    %3157 = vmatprep.subr.mxu0 0.0
    %3158 = vmatpush1.msra.mxu0 0.0
    %3159 = vmatprep.subr.mxu0 0.0
    %3160 = vmatpush1.msra.mxu0 0.0
    %3161 = vmatprep.subr.mxu0 0.0
    %3162 = vmatpush1.msra.mxu0 0.0
    %3163 = vmatprep.subr.mxu0 0.0
    %3164 = vmatpush1.msra.mxu0 0.0
    %3165 = vmatprep.subr.mxu0 0.0
    %3166 = vmatpush1.msra.mxu0 0.0
    %3167 = vmatprep.subr.mxu0 0.0
    %3168 = vmatpush1.msra.mxu0 0.0
    %3169 = vmatprep.subr.mxu0 0.0
    %3170 = vmatpush1.msra.mxu0 0.0
    %3171 = vmatprep.subr.mxu0 0.0
    %3172 = vmatpush1.msra.mxu0 0.0
    %3173 = vmatprep.subr.mxu0 0.0
    %3174 = vmatpush1.msra.mxu0 0.0
    %3175 = vmatprep.subr.mxu0 0.0
    %3176 = vmatpush1.msra.mxu0 0.0
    %3177 = vmatprep.subr.mxu0 0.0
    %3178 = vmatpush1.msra.mxu0 0.0
    %3179 = vmatprep.subr.mxu0 0.0
    %3180 = vmatpush1.msra.mxu0 0.0
    %3181 = vmatprep.subr.mxu0 0.0
    %3182 = vmatpush1.msra.mxu0 0.0
    %3183 = vmatprep.subr.mxu0 0.0
    %3184 = vmatpush1.msra.mxu0 0.0
    %3185 = vmatprep.subr.mxu0 0.0
    %3186 = vmatpush1.msra.mxu0 0.0
    %3187 = vmatprep.subr.mxu0 0.0
    %3188 = vmatpush1.msra.mxu0 0.0
    %3189 = vmatprep.subr.mxu0 0.0
    %3190 = vmatpush1.msra.mxu0 0.0
    %3191 = vmatprep.subr.mxu0 0.0
    %3192 = vmatpush1.msra.mxu0 0.0
    %3193 = vmatprep.subr.mxu0 0.0
    %3194 = vmatpush1.msra.mxu0 0.0
    %3195 = vmatprep.subr.mxu0 0.0
    %3196 = vmatpush1.msra.mxu0 0.0
    %3197 = vmatprep.subr.mxu0 0.0
    %3198 = vmatpush1.msra.mxu0 0.0
    %3199 = vmatprep.subr.mxu0 0.0
    %3200 = vmatpush1.msra.mxu0 0.0
    %3201 = vmatprep.subr.mxu0 0.0
    %3202 = vmatpush1.msra.mxu0 0.0
    %3203 = vmatprep.mubr.f32.mxu0 0.0
    %3204 = vmatmul.mubr.f32.gmra.mrb[0].mxu0 %v3137
    %v3205 = vpop.f32.mrb[0].mxu0
    %v3206 = vadd.f32 0.0, %v3205
    %v3207 = vpop.f32.mrb[0].mxu0
    %3208 = vdwg.mxu0
    %3211 = vrot.lane.b32.xlu0 %v2470, 8
    %v3212 = vpop.permute.xlu0 %3211
    %3213 = vrot.lane.b32.xlu0 %v2546, 8
    %v3214 = vpop.permute.xlu0 %3213
    %3219 = vrot.lane.b32.xlu0 %v2800, 16
    %v3220 = vpop.permute.xlu0 %3219
    %3221 = vrot.lane.b32.xlu0 %v2876, 16
    %v3222 = vpop.permute.xlu0 %3221
    %3227 = vrot.lane.b32.xlu0 %v3130, 24
    %v3228 = vpop.permute.xlu0 %3227
    %3229 = vrot.lane.b32.xlu0 %v3206, 24
    %v3230 = vpop.permute.xlu0 %3229
    %v3233 = vsel %vm245, %v2140, %v3212
    %v3234 = vsel %vm245, %v2216, %v3214
    %v3235 = vsel %vm1589, %v3233, %v3220
    %v3236 = vsel %vm1589, %v3234, %v3222
    %v3237 = vsel %vm1592, %v3235, %v3228
    %v3238 = vsel %vm1592, %v3236, %v3230
    %v3239 = vlaneseq
    %v3240 = vshrl.u32 %v3239, 7
    %v3241 = vsub.s32 5, %v3240
    %v3242 = vrot.slane %v118, %v3241
    %v3244 = vsel %vm158, %v3237, 0
    %v3247 = vsel %vm158, %v3238, 0
    %3249 = vmatprep.subr.mxu0 0.0
    %3250 = vmatpush1.msra.mxu0 %v138
    %3251 = vmatprep.subr.mxu0 0.0
    %3252 = vmatpush1.msra.mxu0 %v139
    %3253 = vmatprep.subr.mxu0 0.0
    %3254 = vmatpush1.msra.mxu0 %v140
    %3255 = vmatprep.subr.mxu0 0.0
    %3256 = vmatpush1.msra.mxu0 %v141
    %3257 = vmatprep.subr.mxu0 0.0
    %3258 = vmatpush1.msra.mxu0 0.0
    %3259 = vmatprep.subr.mxu0 0.0
    %3260 = vmatpush1.msra.mxu0 0.0
    %3261 = vmatprep.subr.mxu0 0.0
    %3262 = vmatpush1.msra.mxu0 0.0
    %3263 = vmatprep.subr.mxu0 0.0
    %3264 = vmatpush1.msra.mxu0 0.0
    %3265 = vmatprep.subr.mxu0 0.0
    %3266 = vmatpush1.msra.mxu0 0.0
    %3267 = vmatprep.subr.mxu0 0.0
    %3268 = vmatpush1.msra.mxu0 0.0
    %3269 = vmatprep.subr.mxu0 0.0
    %3270 = vmatpush1.msra.mxu0 0.0
    %3271 = vmatprep.subr.mxu0 0.0
    %3272 = vmatpush1.msra.mxu0 0.0
    %3273 = vmatprep.subr.mxu0 0.0
    %3274 = vmatpush1.msra.mxu0 0.0
    %3275 = vmatprep.subr.mxu0 0.0
    %3276 = vmatpush1.msra.mxu0 0.0
    %3277 = vmatprep.subr.mxu0 0.0
    %3278 = vmatpush1.msra.mxu0 0.0
    %3279 = vmatprep.subr.mxu0 0.0
    %3280 = vmatpush1.msra.mxu0 0.0
    %3281 = vmatprep.subr.mxu0 0.0
    %3282 = vmatpush1.msra.mxu0 0.0
    %3283 = vmatprep.subr.mxu0 0.0
    %3284 = vmatpush1.msra.mxu0 0.0
    %3285 = vmatprep.subr.mxu0 0.0
    %3286 = vmatpush1.msra.mxu0 0.0
    %3287 = vmatprep.subr.mxu0 0.0
    %3288 = vmatpush1.msra.mxu0 0.0
    %3289 = vmatprep.subr.mxu0 0.0
    %3290 = vmatpush1.msra.mxu0 0.0
    %3291 = vmatprep.subr.mxu0 0.0
    %3292 = vmatpush1.msra.mxu0 0.0
    %3293 = vmatprep.subr.mxu0 0.0
    %3294 = vmatpush1.msra.mxu0 0.0
    %3295 = vmatprep.subr.mxu0 0.0
    %3296 = vmatpush1.msra.mxu0 0.0
    %3297 = vmatprep.subr.mxu0 0.0
    %3298 = vmatpush1.msra.mxu0 0.0
    %3299 = vmatprep.subr.mxu0 0.0
    %3300 = vmatpush1.msra.mxu0 0.0
    %3301 = vmatprep.subr.mxu0 0.0
    %3302 = vmatpush1.msra.mxu0 0.0
    %3303 = vmatprep.subr.mxu0 0.0
    %3304 = vmatpush1.msra.mxu0 0.0
    %3305 = vmatprep.subr.mxu0 0.0
    %3306 = vmatpush1.msra.mxu0 0.0
    %3307 = vmatprep.subr.mxu0 0.0
    %3308 = vmatpush1.msra.mxu0 0.0
    %3309 = vmatprep.subr.mxu0 0.0
    %3310 = vmatpush1.msra.mxu0 0.0
    %3311 = vmatprep.subr.mxu0 0.0
    %3312 = vmatpush1.msra.mxu0 0.0
    %3313 = vmatprep.mubr.f32.mxu0 0.0
    %3314 = vmatmul.mubr.f32.gmra.mrb[0].mxu0 %v3244
    %v3315 = vpop.f32.mrb[0].mxu0
    %v3316 = vadd.f32 %v3242, %v3315
    %v3317 = vpop.f32.mrb[0].mxu0
    %3318 = vmatprep.mubr.f32.mxu0 0.0
    %3319 = vmatmul.mubr.f32.gmra.mrb[0].mxu0 %v3247
    %v3320 = vpop.f32.mrb[0].mxu0
    %v3321 = vadd.f32 %v3242, %v3320
    %v3322 = vpop.f32.mrb[0].mxu0
    %3323 = vdwg.mxu0
    %v3324 = vadd.f32 %v1719, %v3316
    %v3325 = vadd.f32 %v1720, %v3321
    %v3326 = vsel %vm158, %v3324, 0.0
    %3327 = vadd.xlane.f32.xlu0 %v3326
    %v3328 = vpop.xlane.xlu0 %3327
    %v3329 = vsel %vm158, %v3325, 0.0
    %3330 = vadd.xlane.f32.xlu0 %v3329
    %v3331 = vpop.xlane.xlu0 %3330
    %v3332 = vmul.f32 %v3328, %v1688
    %v3333 = vmul.f32 %v3331, %v1688
    %v3334 = vsub.f32 %v3324, %v3332
    %v3335 = vsub.f32 %v3325, %v3333
    %v3336 = vmul.f32 %v3334, %v3334
    %v3337 = vmul.f32 %v3335, %v3335
    %v3338 = vsel %vm158, %v3336, 0.0
    %3339 = vadd.xlane.f32.xlu0 %v3338
    %v3340 = vpop.xlane.xlu0 %3339
    %v3341 = vsel %vm158, %v3337, 0.0
    %3342 = vadd.xlane.f32.xlu0 %v3341
    %v3343 = vpop.xlane.xlu0 %3342
    %v3344 = vmul.f32 %v3340, %v1688
    %v3345 = vmul.f32 %v3343, %v1688
    %v3346 = vadd.f32 %v3344, 1e-05
    %v3347 = vadd.f32 %v3345, 1e-05
    %v3348 = vrsqrt.pop %v3346
    %v3349 = vrsqrt.pop %v3347
    %v3350 = vmul.f32 %v3334, %v3348
    %v3351 = vmul.f32 %v3335, %v3349
    %v3352 = vmul.f32 %v3350, %v1712
    %v3353 = vmul.f32 %v3351, %v1712
    %v3354 = vadd.f32 %v3352, %v1718
    %v3355 = vadd.f32 %v3353, %v1718
    %v3356 = vlaneseq
    %v3357 = vshrl.u32 %v3356, 7
    %v3358 = vsub.s32 2, %v3357
    %v3359 = vrot.slane %v118, %v3358
    %v3361 = vsel %vm158, %v3354, 0
    %v3364 = vsel %vm158, %v3355, 0
    %3366 = vmatprep.subr.mxu0 0.0
    %3367 = vmatpush1.msra.mxu0 %v142
    %3368 = vmatprep.subr.mxu0 0.0
    %3369 = vmatpush1.msra.mxu0 %v143
    %3370 = vmatprep.subr.mxu0 0.0
    %3371 = vmatpush1.msra.mxu0 %v144
    %3372 = vmatprep.subr.mxu0 0.0
    %3373 = vmatpush1.msra.mxu0 %v145
    %3374 = vmatprep.subr.mxu0 0.0
    %3375 = vmatpush1.msra.mxu0 0.0
    %3376 = vmatprep.subr.mxu0 0.0
    %3377 = vmatpush1.msra.mxu0 0.0
    %3378 = vmatprep.subr.mxu0 0.0
    %3379 = vmatpush1.msra.mxu0 0.0
    %3380 = vmatprep.subr.mxu0 0.0
    %3381 = vmatpush1.msra.mxu0 0.0
    %3382 = vmatprep.subr.mxu0 0.0
    %3383 = vmatpush1.msra.mxu0 0.0
    %3384 = vmatprep.subr.mxu0 0.0
    %3385 = vmatpush1.msra.mxu0 0.0
    %3386 = vmatprep.subr.mxu0 0.0
    %3387 = vmatpush1.msra.mxu0 0.0
    %3388 = vmatprep.subr.mxu0 0.0
    %3389 = vmatpush1.msra.mxu0 0.0
    %3390 = vmatprep.subr.mxu0 0.0
    %3391 = vmatpush1.msra.mxu0 0.0
    %3392 = vmatprep.subr.mxu0 0.0
    %3393 = vmatpush1.msra.mxu0 0.0
    %3394 = vmatprep.subr.mxu0 0.0
    %3395 = vmatpush1.msra.mxu0 0.0
    %3396 = vmatprep.subr.mxu0 0.0
    %3397 = vmatpush1.msra.mxu0 0.0
    %3398 = vmatprep.subr.mxu0 0.0
    %3399 = vmatpush1.msra.mxu0 0.0
    %3400 = vmatprep.subr.mxu0 0.0
    %3401 = vmatpush1.msra.mxu0 0.0
    %3402 = vmatprep.subr.mxu0 0.0
    %3403 = vmatpush1.msra.mxu0 0.0
    %3404 = vmatprep.subr.mxu0 0.0
    %3405 = vmatpush1.msra.mxu0 0.0
    %3406 = vmatprep.subr.mxu0 0.0
    %3407 = vmatpush1.msra.mxu0 0.0
    %3408 = vmatprep.subr.mxu0 0.0
    %3409 = vmatpush1.msra.mxu0 0.0
    %3410 = vmatprep.subr.mxu0 0.0
    %3411 = vmatpush1.msra.mxu0 0.0
    %3412 = vmatprep.subr.mxu0 0.0
    %3413 = vmatpush1.msra.mxu0 0.0
    %3414 = vmatprep.subr.mxu0 0.0
    %3415 = vmatpush1.msra.mxu0 0.0
    %3416 = vmatprep.subr.mxu0 0.0
    %3417 = vmatpush1.msra.mxu0 0.0
    %3418 = vmatprep.subr.mxu0 0.0
    %3419 = vmatpush1.msra.mxu0 0.0
    %3420 = vmatprep.subr.mxu0 0.0
    %3421 = vmatpush1.msra.mxu0 0.0
    %3422 = vmatprep.subr.mxu0 0.0
    %3423 = vmatpush1.msra.mxu0 0.0
    %3424 = vmatprep.subr.mxu0 0.0
    %3425 = vmatpush1.msra.mxu0 0.0
    %3426 = vmatprep.subr.mxu0 0.0
    %3427 = vmatpush1.msra.mxu0 0.0
    %3428 = vmatprep.subr.mxu0 0.0
    %3429 = vmatpush1.msra.mxu0 0.0
    %3430 = vmatprep.mubr.f32.mxu0 0.0
    %3431 = vmatmul.mubr.f32.gmra.mrb[0].mxu0 %v3361
    %v3432 = vpop.f32.mrb[0].mxu0
    %v3433 = vadd.f32 %v3359, %v3432
    %v3434 = vpop.f32.mrb[0].mxu0
    %3435 = vmatprep.mubr.f32.mxu0 0.0
    %3436 = vmatmul.mubr.f32.gmra.mrb[0].mxu0 %v3364
    %v3437 = vpop.f32.mrb[0].mxu0
    %v3438 = vadd.f32 %v3359, %v3437
    %v3439 = vpop.f32.mrb[0].mxu0
    %3440 = vdwg.mxu0
    %v3441 = vmax.f32 %v3433, 0.0
    %v3442 = vmax.f32 %v3438, 0.0
    %v3443 = vlaneseq
    %v3444 = vshrl.u32 %v3443, 7
    %v3445 = vsub.s32 6, %v3444
    %v3446 = vrot.slane %v118, %v3445
    %vm3447 = vcmask 523264
    %v3449 = vsel %vm3447, %v3441, 0
    %v3452 = vsel %vm3447, %v3442, 0
    %3454 = vmatprep.subr.mxu0 0.0
    %3455 = vmatpush1.msra.mxu0 %v146
    %3456 = vmatprep.subr.mxu0 0.0
    %3457 = vmatpush1.msra.mxu0 %v147
    %3458 = vmatprep.subr.mxu0 0.0
    %3459 = vmatpush1.msra.mxu0 %v148
    %3460 = vmatprep.subr.mxu0 0.0
    %3461 = vmatpush1.msra.mxu0 %v149
    %3462 = vmatprep.subr.mxu0 0.0
    %3463 = vmatpush1.msra.mxu0 %v150
    %3464 = vmatprep.subr.mxu0 0.0
    %3465 = vmatpush1.msra.mxu0 %v151
    %3466 = vmatprep.subr.mxu0 0.0
    %3467 = vmatpush1.msra.mxu0 %v152
    %3468 = vmatprep.subr.mxu0 0.0
    %3469 = vmatpush1.msra.mxu0 %v153
    %3470 = vmatprep.subr.mxu0 0.0
    %3471 = vmatpush1.msra.mxu0 0.0
    %3472 = vmatprep.subr.mxu0 0.0
    %3473 = vmatpush1.msra.mxu0 0.0
    %3474 = vmatprep.subr.mxu0 0.0
    %3475 = vmatpush1.msra.mxu0 0.0
    %3476 = vmatprep.subr.mxu0 0.0
    %3477 = vmatpush1.msra.mxu0 0.0
    %3478 = vmatprep.subr.mxu0 0.0
    %3479 = vmatpush1.msra.mxu0 0.0
    %3480 = vmatprep.subr.mxu0 0.0
    %3481 = vmatpush1.msra.mxu0 0.0
    %3482 = vmatprep.subr.mxu0 0.0
    %3483 = vmatpush1.msra.mxu0 0.0
    %3484 = vmatprep.subr.mxu0 0.0
    %3485 = vmatpush1.msra.mxu0 0.0
    %3486 = vmatprep.subr.mxu0 0.0
    %3487 = vmatpush1.msra.mxu0 0.0
    %3488 = vmatprep.subr.mxu0 0.0
    %3489 = vmatpush1.msra.mxu0 0.0
    %3490 = vmatprep.subr.mxu0 0.0
    %3491 = vmatpush1.msra.mxu0 0.0
    %3492 = vmatprep.subr.mxu0 0.0
    %3493 = vmatpush1.msra.mxu0 0.0
    %3494 = vmatprep.subr.mxu0 0.0
    %3495 = vmatpush1.msra.mxu0 0.0
    %3496 = vmatprep.subr.mxu0 0.0
    %3497 = vmatpush1.msra.mxu0 0.0
    %3498 = vmatprep.subr.mxu0 0.0
    %3499 = vmatpush1.msra.mxu0 0.0
    %3500 = vmatprep.subr.mxu0 0.0
    %3501 = vmatpush1.msra.mxu0 0.0
    %3502 = vmatprep.subr.mxu0 0.0
    %3503 = vmatpush1.msra.mxu0 0.0
    %3504 = vmatprep.subr.mxu0 0.0
    %3505 = vmatpush1.msra.mxu0 0.0
    %3506 = vmatprep.subr.mxu0 0.0
    %3507 = vmatpush1.msra.mxu0 0.0
    %3508 = vmatprep.subr.mxu0 0.0
    %3509 = vmatpush1.msra.mxu0 0.0
    %3510 = vmatprep.subr.mxu0 0.0
    %3511 = vmatpush1.msra.mxu0 0.0
    %3512 = vmatprep.subr.mxu0 0.0
    %3513 = vmatpush1.msra.mxu0 0.0
    %3514 = vmatprep.subr.mxu0 0.0
    %3515 = vmatpush1.msra.mxu0 0.0
    %3516 = vmatprep.subr.mxu0 0.0
    %3517 = vmatpush1.msra.mxu0 0.0
    %3518 = vmatprep.mubr.f32.mxu0 0.0
    %3519 = vmatmul.mubr.f32.gmra.mrb[0].mxu0 %v3449
    %v3520 = vpop.f32.mrb[0].mxu0
    %v3521 = vadd.f32 %v3446, %v3520
    %v3522 = vpop.f32.mrb[0].mxu0
    %3523 = vmatprep.mubr.f32.mxu0 0.0
    %3524 = vmatmul.mubr.f32.gmra.mrb[0].mxu0 %v3452
    %v3525 = vpop.f32.mrb[0].mxu0
    %v3526 = vadd.f32 %v3446, %v3525
    %v3527 = vpop.f32.mrb[0].mxu0
    %3528 = vdwg.mxu0
    %v3529 = vadd.f32 %v3354, %v3521
    %v3530 = vadd.f32 %v3355, %v3526
    %v3531 = vsel %vm158, %v3529, 0.0
    %3532 = vadd.xlane.f32.xlu0 %v3531
    %v3533 = vpop.xlane.xlu0 %3532
    %v3534 = vsel %vm158, %v3530, 0.0
    %3535 = vadd.xlane.f32.xlu0 %v3534
    %v3536 = vpop.xlane.xlu0 %3535
    %v3537 = vmul.f32 %v3533, %v1688
    %v3538 = vmul.f32 %v3536, %v1688
    %v3539 = vsub.f32 %v3529, %v3537
    %v3540 = vsub.f32 %v3530, %v3538
    %v3541 = vmul.f32 %v3539, %v3539
    %v3542 = vmul.f32 %v3540, %v3540
    %v3543 = vsel %vm158, %v3541, 0.0
    %3544 = vadd.xlane.f32.xlu0 %v3543
    %v3545 = vpop.xlane.xlu0 %3544
    %v3546 = vsel %vm158, %v3542, 0.0
    %3547 = vadd.xlane.f32.xlu0 %v3546
    %v3548 = vpop.xlane.xlu0 %3547
    %v3549 = vmul.f32 %v3545, %v1688
    %v3550 = vmul.f32 %v3548, %v1688
    %v3551 = vadd.f32 %v3549, 1e-05
    %v3552 = vadd.f32 %v3550, 1e-05
    %v3553 = vrsqrt.pop %v3551
    %v3554 = vrsqrt.pop %v3552
    %v3555 = vmul.f32 %v3539, %v3553
    %v3556 = vmul.f32 %v3540, %v3554
    %v3557 = vlaneseq
    %v3558 = vshrl.u32 %v3557, 7
    %v3559 = vsub.s32 1, %v3558
    %v3560 = vrot.slane %v119, %v3559
    %v3561 = vmul.f32 %v3555, %v3560
    %v3562 = vmul.f32 %v3556, %v3560
    %v3563 = vlaneseq
    %v3564 = vshrl.u32 %v3563, 7
    %v3565 = vsub.s32 2, %v3564
    %v3566 = vrot.slane %v119, %v3565
    %v3567 = vadd.f32 %v3561, %v3566
    %v3568 = vadd.f32 %v3562, %v3566
    %s3569 = scalar_lea.vmem [#allocation11], 16
    %v3570 = vld [vmem:[%s3569] sm:$0xff]
    %v3571 = vld [vmem:[%s3569 + $0x8] sm:$0xff]
    %s3572 = scalar_lea.vmem [#allocation7], 32
    %v3573 = vld [vmem:[%s3572] sm:$0xff]
    %v3574 = vld [vmem:[%s3572 + $0x8] sm:$0xff]
    %v3575 = vld [vmem:[%s3572 + $0x10] sm:$0xff]
    %v3576 = vld [vmem:[%s3572 + $0x18] sm:$0xff]
    %s3577 = scalar_lea.vmem [#allocation8], 32
    %v3578 = vld [vmem:[%s3577] sm:$0xff]
    %v3579 = vld [vmem:[%s3577 + $0x8] sm:$0xff]
    %v3580 = vld [vmem:[%s3577 + $0x10] sm:$0xff]
    %v3581 = vld [vmem:[%s3577 + $0x18] sm:$0xff]
    %s3582 = scalar_lea.vmem %s5, 96
    %v3583 = vld [vmem:[%s3582] sm:$0xff]
    %v3584 = vld [vmem:[%s3582 + $0x8] sm:$0xff]
    %v3585 = vld [vmem:[%s3582 + $0x10] sm:$0xff]
    %v3586 = vld [vmem:[%s3582 + $0x18] sm:$0xff]
    %s3587 = scalar_lea.vmem %s5, 128
    %v3588 = vld [vmem:[%s3587] sm:$0xff]
    %v3589 = vld [vmem:[%s3587 + $0x8] sm:$0xff]
    %v3590 = vld [vmem:[%s3587 + $0x10] sm:$0xff]
    %v3591 = vld [vmem:[%s3587 + $0x18] sm:$0xff]
    %s3592 = scalar_lea.vmem %s5, 160
    %v3593 = vld [vmem:[%s3592] sm:$0xff]
    %v3594 = vld [vmem:[%s3592 + $0x8] sm:$0xff]
    %v3595 = vld [vmem:[%s3592 + $0x10] sm:$0xff]
    %v3596 = vld [vmem:[%s3592 + $0x18] sm:$0xff]
    %s3597 = scalar_lea.vmem [#allocation10], 32
    %v3598 = vld [vmem:[%s3597] sm:$0xff]
    %v3599 = vld [vmem:[%s3597 + $0x8] sm:$0xff]
    %v3600 = vld [vmem:[%s3597 + $0x10] sm:$0xff]
    %v3601 = vld [vmem:[%s3597 + $0x18] sm:$0xff]
    %s3602 = scalar_lea.vmem %s7, 64
    %v3603 = vld [vmem:[%s3602] sm:$0xff]
    %v3604 = vld [vmem:[%s3602 + $0x8] sm:$0xff]
    %v3605 = vld [vmem:[%s3602 + $0x10] sm:$0xff]
    %v3606 = vld [vmem:[%s3602 + $0x18] sm:$0xff]
    %v3607 = vld [vmem:[%s3602 + $0x20] sm:$0xff]
    %v3608 = vld [vmem:[%s3602 + $0x28] sm:$0xff]
    %v3609 = vld [vmem:[%s3602 + $0x30] sm:$0xff]
    %v3610 = vld [vmem:[%s3602 + $0x38] sm:$0xff]
    %v3611 = vlaneseq
    %v3612 = vshrl.u32 %v3611, 7
    %v3613 = vsub.s32 0, %v3612
    %v3614 = vrot.slane %v3570, %v3613
    %v3616 = vsel %vm158, %v3567, 0
    %v3619 = vsel %vm158, %v3568, 0
    %3621 = vmatprep.subr.mxu0 0.0
    %3622 = vmatpush1.msra.mxu0 %v3573
    %3623 = vmatprep.subr.mxu0 0.0
    %3624 = vmatpush1.msra.mxu0 %v3574
    %3625 = vmatprep.subr.mxu0 0.0
    %3626 = vmatpush1.msra.mxu0 %v3575
    %3627 = vmatprep.subr.mxu0 0.0
    %3628 = vmatpush1.msra.mxu0 %v3576
    %3629 = vmatprep.subr.mxu0 0.0
    %3630 = vmatpush1.msra.mxu0 0.0
    %3631 = vmatprep.subr.mxu0 0.0
    %3632 = vmatpush1.msra.mxu0 0.0
    %3633 = vmatprep.subr.mxu0 0.0
    %3634 = vmatpush1.msra.mxu0 0.0
    %3635 = vmatprep.subr.mxu0 0.0
    %3636 = vmatpush1.msra.mxu0 0.0
    %3637 = vmatprep.subr.mxu0 0.0
    %3638 = vmatpush1.msra.mxu0 0.0
    %3639 = vmatprep.subr.mxu0 0.0
    %3640 = vmatpush1.msra.mxu0 0.0
    %3641 = vmatprep.subr.mxu0 0.0
    %3642 = vmatpush1.msra.mxu0 0.0
    %3643 = vmatprep.subr.mxu0 0.0
    %3644 = vmatpush1.msra.mxu0 0.0
    %3645 = vmatprep.subr.mxu0 0.0
    %3646 = vmatpush1.msra.mxu0 0.0
    %3647 = vmatprep.subr.mxu0 0.0
    %3648 = vmatpush1.msra.mxu0 0.0
    %3649 = vmatprep.subr.mxu0 0.0
    %3650 = vmatpush1.msra.mxu0 0.0
    %3651 = vmatprep.subr.mxu0 0.0
    %3652 = vmatpush1.msra.mxu0 0.0
    %3653 = vmatprep.subr.mxu0 0.0
    %3654 = vmatpush1.msra.mxu0 0.0
    %3655 = vmatprep.subr.mxu0 0.0
    %3656 = vmatpush1.msra.mxu0 0.0
    %3657 = vmatprep.subr.mxu0 0.0
    %3658 = vmatpush1.msra.mxu0 0.0
    %3659 = vmatprep.subr.mxu0 0.0
    %3660 = vmatpush1.msra.mxu0 0.0
    %3661 = vmatprep.subr.mxu0 0.0
    %3662 = vmatpush1.msra.mxu0 0.0
    %3663 = vmatprep.subr.mxu0 0.0
    %3664 = vmatpush1.msra.mxu0 0.0
    %3665 = vmatprep.subr.mxu0 0.0
    %3666 = vmatpush1.msra.mxu0 0.0
    %3667 = vmatprep.subr.mxu0 0.0
    %3668 = vmatpush1.msra.mxu0 0.0
    %3669 = vmatprep.subr.mxu0 0.0
    %3670 = vmatpush1.msra.mxu0 0.0
    %3671 = vmatprep.subr.mxu0 0.0
    %3672 = vmatpush1.msra.mxu0 0.0
    %3673 = vmatprep.subr.mxu0 0.0
    %3674 = vmatpush1.msra.mxu0 0.0
    %3675 = vmatprep.subr.mxu0 0.0
    %3676 = vmatpush1.msra.mxu0 0.0
    %3677 = vmatprep.subr.mxu0 0.0
    %3678 = vmatpush1.msra.mxu0 0.0
    %3679 = vmatprep.subr.mxu0 0.0
    %3680 = vmatpush1.msra.mxu0 0.0
    %3681 = vmatprep.subr.mxu0 0.0
    %3682 = vmatpush1.msra.mxu0 0.0
    %3683 = vmatprep.subr.mxu0 0.0
    %3684 = vmatpush1.msra.mxu0 0.0
    %3685 = vmatprep.mubr.f32.mxu0 0.0
    %3686 = vmatmul.mubr.f32.gmra.mrb[0].mxu0 %v3616
    %v3687 = vpop.f32.mrb[0].mxu0
    %v3688 = vadd.f32 %v3614, %v3687
    %v3689 = vpop.f32.mrb[0].mxu0
    %3690 = vmatprep.mubr.f32.mxu0 0.0
    %3691 = vmatmul.mubr.f32.gmra.mrb[0].mxu0 %v3619
    %v3692 = vpop.f32.mrb[0].mxu0
    %v3693 = vadd.f32 %v3614, %v3692
    %v3694 = vpop.f32.mrb[0].mxu0
    %3695 = vdwg.mxu0
    %v3696 = vmul.f32 %v3688, 0.35355338
    %v3697 = vmul.f32 %v3693, 0.35355338
    %3699 = vrot.lane.b32.xlu0 %v3688, 96
    %v3700 = vpop.permute.xlu0 %3699
    %v3702 = vsel %vm245, %v3696, 0
    %v3704 = vsel %vm245, %v3700, 0
    %3706 = vmatprep.subr.mxu0 0.0
    %3707 = vmatpush1.xpose.msra.mxu0 %v3704
    %3708 = vmatprep.subr.mxu0 0.0
    %3709 = vmatpush1.xpose.msra.mxu0 0.0
    %3710 = vmatprep.subr.mxu0 0.0
    %3711 = vmatpush1.xpose.msra.mxu0 0.0
    %3712 = vmatprep.subr.mxu0 0.0
    %3713 = vmatpush1.xpose.msra.mxu0 0.0
    %3714 = vmatprep.subr.mxu0 0.0
    %3715 = vmatpush1.xpose.msra.mxu0 0.0
    %3716 = vmatprep.subr.mxu0 0.0
    %3717 = vmatpush1.xpose.msra.mxu0 0.0
    %3718 = vmatprep.subr.mxu0 0.0
    %3719 = vmatpush1.xpose.msra.mxu0 0.0
    %3720 = vmatprep.subr.mxu0 0.0
    %3721 = vmatpush1.xpose.msra.mxu0 0.0
    %3722 = vmatprep.subr.mxu0 0.0
    %3723 = vmatpush1.xpose.msra.mxu0 0.0
    %3724 = vmatprep.subr.mxu0 0.0
    %3725 = vmatpush1.xpose.msra.mxu0 0.0
    %3726 = vmatprep.subr.mxu0 0.0
    %3727 = vmatpush1.xpose.msra.mxu0 0.0
    %3728 = vmatprep.subr.mxu0 0.0
    %3729 = vmatpush1.xpose.msra.mxu0 0.0
    %3730 = vmatprep.subr.mxu0 0.0
    %3731 = vmatpush1.xpose.msra.mxu0 0.0
    %3732 = vmatprep.subr.mxu0 0.0
    %3733 = vmatpush1.xpose.msra.mxu0 0.0
    %3734 = vmatprep.subr.mxu0 0.0
    %3735 = vmatpush1.xpose.msra.mxu0 0.0
    %3736 = vmatprep.subr.mxu0 0.0
    %3737 = vmatpush1.xpose.msra.mxu0 0.0
    %3738 = vmatprep.subr.mxu0 0.0
    %3739 = vmatpush1.xpose.msra.mxu0 0.0
    %3740 = vmatprep.subr.mxu0 0.0
    %3741 = vmatpush1.xpose.msra.mxu0 0.0
    %3742 = vmatprep.subr.mxu0 0.0
    %3743 = vmatpush1.xpose.msra.mxu0 0.0
    %3744 = vmatprep.subr.mxu0 0.0
    %3745 = vmatpush1.xpose.msra.mxu0 0.0
    %3746 = vmatprep.subr.mxu0 0.0
    %3747 = vmatpush1.xpose.msra.mxu0 0.0
    %3748 = vmatprep.subr.mxu0 0.0
    %3749 = vmatpush1.xpose.msra.mxu0 0.0
    %3750 = vmatprep.subr.mxu0 0.0
    %3751 = vmatpush1.xpose.msra.mxu0 0.0
    %3752 = vmatprep.subr.mxu0 0.0
    %3753 = vmatpush1.xpose.msra.mxu0 0.0
    %3754 = vmatprep.subr.mxu0 0.0
    %3755 = vmatpush1.xpose.msra.mxu0 0.0
    %3756 = vmatprep.subr.mxu0 0.0
    %3757 = vmatpush1.xpose.msra.mxu0 0.0
    %3758 = vmatprep.subr.mxu0 0.0
    %3759 = vmatpush1.xpose.msra.mxu0 0.0
    %3760 = vmatprep.subr.mxu0 0.0
    %3761 = vmatpush1.xpose.msra.mxu0 0.0
    %3762 = vmatprep.subr.mxu0 0.0
    %3763 = vmatpush1.xpose.msra.mxu0 0.0
    %3764 = vmatprep.subr.mxu0 0.0
    %3765 = vmatpush1.xpose.msra.mxu0 0.0
    %3766 = vmatprep.subr.mxu0 0.0
    %3767 = vmatpush1.xpose.msra.mxu0 0.0
    %3768 = vmatprep.subr.mxu0 0.0
    %3769 = vmatpush1.xpose.msra.mxu0 0.0
    %3770 = vmatprep.mubr.f32.mxu0 0.0
    %3771 = vmatmul.mubr.f32.gmra.mrb[0].mxu0 %v3702
    %v3772 = vpop.f32.mrb[0].mxu0
    %v3773 = vadd.f32 %v117, %v3772
    %v3774 = vpop.f32.mrb[0].mxu0
    %3775 = vdwg.mxu0
    %3777 = vrot.lane.b32.xlu0 %v3693, 96
    %v3778 = vpop.permute.xlu0 %3777
    %v3780 = vsel %vm245, %v3697, 0
    %v3782 = vsel %vm245, %v3778, 0
    %3784 = vmatprep.subr.mxu0 0.0
    %3785 = vmatpush1.xpose.msra.mxu0 %v3782
    %3786 = vmatprep.subr.mxu0 0.0
    %3787 = vmatpush1.xpose.msra.mxu0 0.0
    %3788 = vmatprep.subr.mxu0 0.0
    %3789 = vmatpush1.xpose.msra.mxu0 0.0
    %3790 = vmatprep.subr.mxu0 0.0
    %3791 = vmatpush1.xpose.msra.mxu0 0.0
    %3792 = vmatprep.subr.mxu0 0.0
    %3793 = vmatpush1.xpose.msra.mxu0 0.0
    %3794 = vmatprep.subr.mxu0 0.0
    %3795 = vmatpush1.xpose.msra.mxu0 0.0
    %3796 = vmatprep.subr.mxu0 0.0
    %3797 = vmatpush1.xpose.msra.mxu0 0.0
    %3798 = vmatprep.subr.mxu0 0.0
    %3799 = vmatpush1.xpose.msra.mxu0 0.0
    %3800 = vmatprep.subr.mxu0 0.0
    %3801 = vmatpush1.xpose.msra.mxu0 0.0
    %3802 = vmatprep.subr.mxu0 0.0
    %3803 = vmatpush1.xpose.msra.mxu0 0.0
    %3804 = vmatprep.subr.mxu0 0.0
    %3805 = vmatpush1.xpose.msra.mxu0 0.0
    %3806 = vmatprep.subr.mxu0 0.0
    %3807 = vmatpush1.xpose.msra.mxu0 0.0
    %3808 = vmatprep.subr.mxu0 0.0
    %3809 = vmatpush1.xpose.msra.mxu0 0.0
    %3810 = vmatprep.subr.mxu0 0.0
    %3811 = vmatpush1.xpose.msra.mxu0 0.0
    %3812 = vmatprep.subr.mxu0 0.0
    %3813 = vmatpush1.xpose.msra.mxu0 0.0
    %3814 = vmatprep.subr.mxu0 0.0
    %3815 = vmatpush1.xpose.msra.mxu0 0.0
    %3816 = vmatprep.subr.mxu0 0.0
    %3817 = vmatpush1.xpose.msra.mxu0 0.0
    %3818 = vmatprep.subr.mxu0 0.0
    %3819 = vmatpush1.xpose.msra.mxu0 0.0
    %3820 = vmatprep.subr.mxu0 0.0
    %3821 = vmatpush1.xpose.msra.mxu0 0.0
    %3822 = vmatprep.subr.mxu0 0.0
    %3823 = vmatpush1.xpose.msra.mxu0 0.0
    %3824 = vmatprep.subr.mxu0 0.0
    %3825 = vmatpush1.xpose.msra.mxu0 0.0
    %3826 = vmatprep.subr.mxu0 0.0
    %3827 = vmatpush1.xpose.msra.mxu0 0.0
    %3828 = vmatprep.subr.mxu0 0.0
    %3829 = vmatpush1.xpose.msra.mxu0 0.0
    %3830 = vmatprep.subr.mxu0 0.0
    %3831 = vmatpush1.xpose.msra.mxu0 0.0
    %3832 = vmatprep.subr.mxu0 0.0
    %3833 = vmatpush1.xpose.msra.mxu0 0.0
    %3834 = vmatprep.subr.mxu0 0.0
    %3835 = vmatpush1.xpose.msra.mxu0 0.0
    %3836 = vmatprep.subr.mxu0 0.0
    %3837 = vmatpush1.xpose.msra.mxu0 0.0
    %3838 = vmatprep.subr.mxu0 0.0
    %3839 = vmatpush1.xpose.msra.mxu0 0.0
    %3840 = vmatprep.subr.mxu0 0.0
    %3841 = vmatpush1.xpose.msra.mxu0 0.0
    %3842 = vmatprep.subr.mxu0 0.0
    %3843 = vmatpush1.xpose.msra.mxu0 0.0
    %3844 = vmatprep.subr.mxu0 0.0
    %3845 = vmatpush1.xpose.msra.mxu0 0.0
    %3846 = vmatprep.subr.mxu0 0.0
    %3847 = vmatpush1.xpose.msra.mxu0 0.0
    %3848 = vmatprep.mubr.f32.mxu0 0.0
    %3849 = vmatmul.mubr.f32.gmra.mrb[0].mxu0 %v3780
    %v3850 = vpop.f32.mrb[0].mxu0
    %v3851 = vadd.f32 %v117, %v3850
    %v3852 = vpop.f32.mrb[0].mxu0
    %3853 = vdwg.mxu0
    %v3854 = vsel %vm245, %v3773, -inf
    %3855 = vmax.xlane.f32.xlu0 %v3854
    %v3856 = vpop.xlane.xlu0 %3855
    %v3857 = vsel %vm245, %v3851, -inf
    %3858 = vmax.xlane.f32.xlu0 %v3857
    %v3859 = vpop.xlane.xlu0 %3858
    %v3860 = vsub.f32 %v3773, %v3856
    %v3861 = vsub.f32 %v3851, %v3859
    %v3862 = vmul.f32 %v3860, 1.442695
    %v3863 = vpow.pop %v3862
    %v3864 = vmul.f32 %v3861, 1.442695
    %v3865 = vpow.pop %v3864
    %v3866 = vsel %vm245, %v3863, 0.0
    %3867 = vadd.xlane.f32.xlu0 %v3866
    %v3868 = vpop.xlane.xlu0 %3867
    %v3869 = vsel %vm245, %v3865, 0.0
    %3870 = vadd.xlane.f32.xlu0 %v3869
    %v3871 = vpop.xlane.xlu0 %3870
    %v3872 = vrcp.pop %v3868
    %v3873 = vmul.f32 %v3863, %v3872
    %v3874 = vrcp.pop %v3871
    %v3875 = vmul.f32 %v3865, %v3874
    %3876 = vrot.lane.b32.xlu0 %v3688, 64
    %v3877 = vpop.permute.xlu0 %3876
    %v3880 = vsel %vm245, %v3873, 0
    %3882 = vmatprep.subr.mxu0 0.0
    %3883 = vmatpush1.msra.mxu0 %v3877
    %3884 = vmatprep.subr.mxu0 0.0
    %3885 = vmatpush1.msra.mxu0 0.0
    %3886 = vmatprep.subr.mxu0 0.0
    %3887 = vmatpush1.msra.mxu0 0.0
    %3888 = vmatprep.subr.mxu0 0.0
    %3889 = vmatpush1.msra.mxu0 0.0
    %3890 = vmatprep.subr.mxu0 0.0
    %3891 = vmatpush1.msra.mxu0 0.0
    %3892 = vmatprep.subr.mxu0 0.0
    %3893 = vmatpush1.msra.mxu0 0.0
    %3894 = vmatprep.subr.mxu0 0.0
    %3895 = vmatpush1.msra.mxu0 0.0
    %3896 = vmatprep.subr.mxu0 0.0
    %3897 = vmatpush1.msra.mxu0 0.0
    %3898 = vmatprep.subr.mxu0 0.0
    %3899 = vmatpush1.msra.mxu0 0.0
    %3900 = vmatprep.subr.mxu0 0.0
    %3901 = vmatpush1.msra.mxu0 0.0
    %3902 = vmatprep.subr.mxu0 0.0
    %3903 = vmatpush1.msra.mxu0 0.0
    %3904 = vmatprep.subr.mxu0 0.0
    %3905 = vmatpush1.msra.mxu0 0.0
    %3906 = vmatprep.subr.mxu0 0.0
    %3907 = vmatpush1.msra.mxu0 0.0
    %3908 = vmatprep.subr.mxu0 0.0
    %3909 = vmatpush1.msra.mxu0 0.0
    %3910 = vmatprep.subr.mxu0 0.0
    %3911 = vmatpush1.msra.mxu0 0.0
    %3912 = vmatprep.subr.mxu0 0.0
    %3913 = vmatpush1.msra.mxu0 0.0
    %3914 = vmatprep.subr.mxu0 0.0
    %3915 = vmatpush1.msra.mxu0 0.0
    %3916 = vmatprep.subr.mxu0 0.0
    %3917 = vmatpush1.msra.mxu0 0.0
    %3918 = vmatprep.subr.mxu0 0.0
    %3919 = vmatpush1.msra.mxu0 0.0
    %3920 = vmatprep.subr.mxu0 0.0
    %3921 = vmatpush1.msra.mxu0 0.0
    %3922 = vmatprep.subr.mxu0 0.0
    %3923 = vmatpush1.msra.mxu0 0.0
    %3924 = vmatprep.subr.mxu0 0.0
    %3925 = vmatpush1.msra.mxu0 0.0
    %3926 = vmatprep.subr.mxu0 0.0
    %3927 = vmatpush1.msra.mxu0 0.0
    %3928 = vmatprep.subr.mxu0 0.0
    %3929 = vmatpush1.msra.mxu0 0.0
    %3930 = vmatprep.subr.mxu0 0.0
    %3931 = vmatpush1.msra.mxu0 0.0
    %3932 = vmatprep.subr.mxu0 0.0
    %3933 = vmatpush1.msra.mxu0 0.0
    %3934 = vmatprep.subr.mxu0 0.0
    %3935 = vmatpush1.msra.mxu0 0.0
    %3936 = vmatprep.subr.mxu0 0.0
    %3937 = vmatpush1.msra.mxu0 0.0
    %3938 = vmatprep.subr.mxu0 0.0
    %3939 = vmatpush1.msra.mxu0 0.0
    %3940 = vmatprep.subr.mxu0 0.0
    %3941 = vmatpush1.msra.mxu0 0.0
    %3942 = vmatprep.subr.mxu0 0.0
    %3943 = vmatpush1.msra.mxu0 0.0
    %3944 = vmatprep.subr.mxu0 0.0
    %3945 = vmatpush1.msra.mxu0 0.0
    %3946 = vmatprep.mubr.f32.mxu0 0.0
    %3947 = vmatmul.mubr.f32.gmra.mrb[0].mxu0 %v3880
    %v3948 = vpop.f32.mrb[0].mxu0
    %v3949 = vadd.f32 0.0, %v3948
    %v3950 = vpop.f32.mrb[0].mxu0
    %3951 = vdwg.mxu0
    %3952 = vrot.lane.b32.xlu0 %v3693, 64
    %v3953 = vpop.permute.xlu0 %3952
    %v3956 = vsel %vm245, %v3875, 0
    %3958 = vmatprep.subr.mxu0 0.0
    %3959 = vmatpush1.msra.mxu0 %v3953
    %3960 = vmatprep.subr.mxu0 0.0
    %3961 = vmatpush1.msra.mxu0 0.0
    %3962 = vmatprep.subr.mxu0 0.0
    %3963 = vmatpush1.msra.mxu0 0.0
    %3964 = vmatprep.subr.mxu0 0.0
    %3965 = vmatpush1.msra.mxu0 0.0
    %3966 = vmatprep.subr.mxu0 0.0
    %3967 = vmatpush1.msra.mxu0 0.0
    %3968 = vmatprep.subr.mxu0 0.0
    %3969 = vmatpush1.msra.mxu0 0.0
    %3970 = vmatprep.subr.mxu0 0.0
    %3971 = vmatpush1.msra.mxu0 0.0
    %3972 = vmatprep.subr.mxu0 0.0
    %3973 = vmatpush1.msra.mxu0 0.0
    %3974 = vmatprep.subr.mxu0 0.0
    %3975 = vmatpush1.msra.mxu0 0.0
    %3976 = vmatprep.subr.mxu0 0.0
    %3977 = vmatpush1.msra.mxu0 0.0
    %3978 = vmatprep.subr.mxu0 0.0
    %3979 = vmatpush1.msra.mxu0 0.0
    %3980 = vmatprep.subr.mxu0 0.0
    %3981 = vmatpush1.msra.mxu0 0.0
    %3982 = vmatprep.subr.mxu0 0.0
    %3983 = vmatpush1.msra.mxu0 0.0
    %3984 = vmatprep.subr.mxu0 0.0
    %3985 = vmatpush1.msra.mxu0 0.0
    %3986 = vmatprep.subr.mxu0 0.0
    %3987 = vmatpush1.msra.mxu0 0.0
    %3988 = vmatprep.subr.mxu0 0.0
    %3989 = vmatpush1.msra.mxu0 0.0
    %3990 = vmatprep.subr.mxu0 0.0
    %3991 = vmatpush1.msra.mxu0 0.0
    %3992 = vmatprep.subr.mxu0 0.0
    %3993 = vmatpush1.msra.mxu0 0.0
    %3994 = vmatprep.subr.mxu0 0.0
    %3995 = vmatpush1.msra.mxu0 0.0
    %3996 = vmatprep.subr.mxu0 0.0
    %3997 = vmatpush1.msra.mxu0 0.0
    %3998 = vmatprep.subr.mxu0 0.0
    %3999 = vmatpush1.msra.mxu0 0.0
    %4000 = vmatprep.subr.mxu0 0.0
    %4001 = vmatpush1.msra.mxu0 0.0
    %4002 = vmatprep.subr.mxu0 0.0
    %4003 = vmatpush1.msra.mxu0 0.0
    %4004 = vmatprep.subr.mxu0 0.0
    %4005 = vmatpush1.msra.mxu0 0.0
    %4006 = vmatprep.subr.mxu0 0.0
    %4007 = vmatpush1.msra.mxu0 0.0
    %4008 = vmatprep.subr.mxu0 0.0
    %4009 = vmatpush1.msra.mxu0 0.0
    %4010 = vmatprep.subr.mxu0 0.0
    %4011 = vmatpush1.msra.mxu0 0.0
    %4012 = vmatprep.subr.mxu0 0.0
    %4013 = vmatpush1.msra.mxu0 0.0
    %4014 = vmatprep.subr.mxu0 0.0
    %4015 = vmatpush1.msra.mxu0 0.0
    %4016 = vmatprep.subr.mxu0 0.0
    %4017 = vmatpush1.msra.mxu0 0.0
    %4018 = vmatprep.subr.mxu0 0.0
    %4019 = vmatpush1.msra.mxu0 0.0
    %4020 = vmatprep.subr.mxu0 0.0
    %4021 = vmatpush1.msra.mxu0 0.0
    %4022 = vmatprep.mubr.f32.mxu0 0.0
    %4023 = vmatmul.mubr.f32.gmra.mrb[0].mxu0 %v3956
    %v4024 = vpop.f32.mrb[0].mxu0
    %v4025 = vadd.f32 0.0, %v4024
    %v4026 = vpop.f32.mrb[0].mxu0
    %4027 = vdwg.mxu0
    %4028 = vrot.lane.b32.xlu0 %v3696, 120
    %v4029 = vpop.permute.xlu0 %4028
    %4030 = vrot.lane.b32.xlu0 %v3688, 88
    %v4031 = vpop.permute.xlu0 %4030
    %v4032 = vsel %vm245, %v4029, 0
    %v4034 = vsel %vm245, %v4031, 0
    %4036 = vmatprep.subr.mxu0 0.0
    %4037 = vmatpush1.xpose.msra.mxu0 %v4034
    %4038 = vmatprep.subr.mxu0 0.0
    %4039 = vmatpush1.xpose.msra.mxu0 0.0
    %4040 = vmatprep.subr.mxu0 0.0
    %4041 = vmatpush1.xpose.msra.mxu0 0.0
    %4042 = vmatprep.subr.mxu0 0.0
    %4043 = vmatpush1.xpose.msra.mxu0 0.0
    %4044 = vmatprep.subr.mxu0 0.0
    %4045 = vmatpush1.xpose.msra.mxu0 0.0
    %4046 = vmatprep.subr.mxu0 0.0
    %4047 = vmatpush1.xpose.msra.mxu0 0.0
    %4048 = vmatprep.subr.mxu0 0.0
    %4049 = vmatpush1.xpose.msra.mxu0 0.0
    %4050 = vmatprep.subr.mxu0 0.0
    %4051 = vmatpush1.xpose.msra.mxu0 0.0
    %4052 = vmatprep.subr.mxu0 0.0
    %4053 = vmatpush1.xpose.msra.mxu0 0.0
    %4054 = vmatprep.subr.mxu0 0.0
    %4055 = vmatpush1.xpose.msra.mxu0 0.0
    %4056 = vmatprep.subr.mxu0 0.0
    %4057 = vmatpush1.xpose.msra.mxu0 0.0
    %4058 = vmatprep.subr.mxu0 0.0
    %4059 = vmatpush1.xpose.msra.mxu0 0.0
    %4060 = vmatprep.subr.mxu0 0.0
    %4061 = vmatpush1.xpose.msra.mxu0 0.0
    %4062 = vmatprep.subr.mxu0 0.0
    %4063 = vmatpush1.xpose.msra.mxu0 0.0
    %4064 = vmatprep.subr.mxu0 0.0
    %4065 = vmatpush1.xpose.msra.mxu0 0.0
    %4066 = vmatprep.subr.mxu0 0.0
    %4067 = vmatpush1.xpose.msra.mxu0 0.0
    %4068 = vmatprep.subr.mxu0 0.0
    %4069 = vmatpush1.xpose.msra.mxu0 0.0
    %4070 = vmatprep.subr.mxu0 0.0
    %4071 = vmatpush1.xpose.msra.mxu0 0.0
    %4072 = vmatprep.subr.mxu0 0.0
    %4073 = vmatpush1.xpose.msra.mxu0 0.0
    %4074 = vmatprep.subr.mxu0 0.0
    %4075 = vmatpush1.xpose.msra.mxu0 0.0
    %4076 = vmatprep.subr.mxu0 0.0
    %4077 = vmatpush1.xpose.msra.mxu0 0.0
    %4078 = vmatprep.subr.mxu0 0.0
    %4079 = vmatpush1.xpose.msra.mxu0 0.0
    %4080 = vmatprep.subr.mxu0 0.0
    %4081 = vmatpush1.xpose.msra.mxu0 0.0
    %4082 = vmatprep.subr.mxu0 0.0
    %4083 = vmatpush1.xpose.msra.mxu0 0.0
    %4084 = vmatprep.subr.mxu0 0.0
    %4085 = vmatpush1.xpose.msra.mxu0 0.0
    %4086 = vmatprep.subr.mxu0 0.0
    %4087 = vmatpush1.xpose.msra.mxu0 0.0
    %4088 = vmatprep.subr.mxu0 0.0
    %4089 = vmatpush1.xpose.msra.mxu0 0.0
    %4090 = vmatprep.subr.mxu0 0.0
    %4091 = vmatpush1.xpose.msra.mxu0 0.0
    %4092 = vmatprep.subr.mxu0 0.0
    %4093 = vmatpush1.xpose.msra.mxu0 0.0
    %4094 = vmatprep.subr.mxu0 0.0
    %4095 = vmatpush1.xpose.msra.mxu0 0.0
    %4096 = vmatprep.subr.mxu0 0.0
    %4097 = vmatpush1.xpose.msra.mxu0 0.0
    %4098 = vmatprep.subr.mxu0 0.0
    %4099 = vmatpush1.xpose.msra.mxu0 0.0
    %4100 = vmatprep.mubr.f32.mxu0 0.0
    %4101 = vmatmul.mubr.f32.gmra.mrb[0].mxu0 %v4032
    %v4102 = vpop.f32.mrb[0].mxu0
    %v4103 = vadd.f32 %v117, %v4102
    %v4104 = vpop.f32.mrb[0].mxu0
    %4105 = vdwg.mxu0
    %4106 = vrot.lane.b32.xlu0 %v3697, 120
    %v4107 = vpop.permute.xlu0 %4106
    %4108 = vrot.lane.b32.xlu0 %v3693, 88
    %v4109 = vpop.permute.xlu0 %4108
    %v4110 = vsel %vm245, %v4107, 0
    %v4112 = vsel %vm245, %v4109, 0
    %4114 = vmatprep.subr.mxu0 0.0
    %4115 = vmatpush1.xpose.msra.mxu0 %v4112
    %4116 = vmatprep.subr.mxu0 0.0
    %4117 = vmatpush1.xpose.msra.mxu0 0.0
    %4118 = vmatprep.subr.mxu0 0.0
    %4119 = vmatpush1.xpose.msra.mxu0 0.0
    %4120 = vmatprep.subr.mxu0 0.0
    %4121 = vmatpush1.xpose.msra.mxu0 0.0
    %4122 = vmatprep.subr.mxu0 0.0
    %4123 = vmatpush1.xpose.msra.mxu0 0.0
    %4124 = vmatprep.subr.mxu0 0.0
    %4125 = vmatpush1.xpose.msra.mxu0 0.0
    %4126 = vmatprep.subr.mxu0 0.0
    %4127 = vmatpush1.xpose.msra.mxu0 0.0
    %4128 = vmatprep.subr.mxu0 0.0
    %4129 = vmatpush1.xpose.msra.mxu0 0.0
    %4130 = vmatprep.subr.mxu0 0.0
    %4131 = vmatpush1.xpose.msra.mxu0 0.0
    %4132 = vmatprep.subr.mxu0 0.0
    %4133 = vmatpush1.xpose.msra.mxu0 0.0
    %4134 = vmatprep.subr.mxu0 0.0
    %4135 = vmatpush1.xpose.msra.mxu0 0.0
    %4136 = vmatprep.subr.mxu0 0.0
    %4137 = vmatpush1.xpose.msra.mxu0 0.0
    %4138 = vmatprep.subr.mxu0 0.0
    %4139 = vmatpush1.xpose.msra.mxu0 0.0
    %4140 = vmatprep.subr.mxu0 0.0
    %4141 = vmatpush1.xpose.msra.mxu0 0.0
    %4142 = vmatprep.subr.mxu0 0.0
    %4143 = vmatpush1.xpose.msra.mxu0 0.0
    %4144 = vmatprep.subr.mxu0 0.0
    %4145 = vmatpush1.xpose.msra.mxu0 0.0
    %4146 = vmatprep.subr.mxu0 0.0
    %4147 = vmatpush1.xpose.msra.mxu0 0.0
    %4148 = vmatprep.subr.mxu0 0.0
    %4149 = vmatpush1.xpose.msra.mxu0 0.0
    %4150 = vmatprep.subr.mxu0 0.0
    %4151 = vmatpush1.xpose.msra.mxu0 0.0
    %4152 = vmatprep.subr.mxu0 0.0
    %4153 = vmatpush1.xpose.msra.mxu0 0.0
    %4154 = vmatprep.subr.mxu0 0.0
    %4155 = vmatpush1.xpose.msra.mxu0 0.0
    %4156 = vmatprep.subr.mxu0 0.0
    %4157 = vmatpush1.xpose.msra.mxu0 0.0
    %4158 = vmatprep.subr.mxu0 0.0
    %4159 = vmatpush1.xpose.msra.mxu0 0.0
    %4160 = vmatprep.subr.mxu0 0.0
    %4161 = vmatpush1.xpose.msra.mxu0 0.0
    %4162 = vmatprep.subr.mxu0 0.0
    %4163 = vmatpush1.xpose.msra.mxu0 0.0
    %4164 = vmatprep.subr.mxu0 0.0
    %4165 = vmatpush1.xpose.msra.mxu0 0.0
    %4166 = vmatprep.subr.mxu0 0.0
    %4167 = vmatpush1.xpose.msra.mxu0 0.0
    %4168 = vmatprep.subr.mxu0 0.0
    %4169 = vmatpush1.xpose.msra.mxu0 0.0
    %4170 = vmatprep.subr.mxu0 0.0
    %4171 = vmatpush1.xpose.msra.mxu0 0.0
    %4172 = vmatprep.subr.mxu0 0.0
    %4173 = vmatpush1.xpose.msra.mxu0 0.0
    %4174 = vmatprep.subr.mxu0 0.0
    %4175 = vmatpush1.xpose.msra.mxu0 0.0
    %4176 = vmatprep.subr.mxu0 0.0
    %4177 = vmatpush1.xpose.msra.mxu0 0.0
    %4178 = vmatprep.mubr.f32.mxu0 0.0
    %4179 = vmatmul.mubr.f32.gmra.mrb[0].mxu0 %v4110
    %v4180 = vpop.f32.mrb[0].mxu0
    %v4181 = vadd.f32 %v117, %v4180
    %v4182 = vpop.f32.mrb[0].mxu0
    %4183 = vdwg.mxu0
    %v4184 = vsel %vm245, %v4103, -inf
    %4185 = vmax.xlane.f32.xlu0 %v4184
    %v4186 = vpop.xlane.xlu0 %4185
    %v4187 = vsel %vm245, %v4181, -inf
    %4188 = vmax.xlane.f32.xlu0 %v4187
    %v4189 = vpop.xlane.xlu0 %4188
    %v4190 = vsub.f32 %v4103, %v4186
    %v4191 = vsub.f32 %v4181, %v4189
    %v4192 = vmul.f32 %v4190, 1.442695
    %v4193 = vpow.pop %v4192
    %v4194 = vmul.f32 %v4191, 1.442695
    %v4195 = vpow.pop %v4194
    %v4196 = vsel %vm245, %v4193, 0.0
    %4197 = vadd.xlane.f32.xlu0 %v4196
    %v4198 = vpop.xlane.xlu0 %4197
    %v4199 = vsel %vm245, %v4195, 0.0
    %4200 = vadd.xlane.f32.xlu0 %v4199
    %v4201 = vpop.xlane.xlu0 %4200
    %v4202 = vrcp.pop %v4198
    %v4203 = vmul.f32 %v4193, %v4202
    %v4204 = vrcp.pop %v4201
    %v4205 = vmul.f32 %v4195, %v4204
    %4206 = vrot.lane.b32.xlu0 %v3688, 56
    %v4207 = vpop.permute.xlu0 %4206
    %v4210 = vsel %vm245, %v4203, 0
    %4212 = vmatprep.subr.mxu0 0.0
    %4213 = vmatpush1.msra.mxu0 %v4207
    %4214 = vmatprep.subr.mxu0 0.0
    %4215 = vmatpush1.msra.mxu0 0.0
    %4216 = vmatprep.subr.mxu0 0.0
    %4217 = vmatpush1.msra.mxu0 0.0
    %4218 = vmatprep.subr.mxu0 0.0
    %4219 = vmatpush1.msra.mxu0 0.0
    %4220 = vmatprep.subr.mxu0 0.0
    %4221 = vmatpush1.msra.mxu0 0.0
    %4222 = vmatprep.subr.mxu0 0.0
    %4223 = vmatpush1.msra.mxu0 0.0
    %4224 = vmatprep.subr.mxu0 0.0
    %4225 = vmatpush1.msra.mxu0 0.0
    %4226 = vmatprep.subr.mxu0 0.0
    %4227 = vmatpush1.msra.mxu0 0.0
    %4228 = vmatprep.subr.mxu0 0.0
    %4229 = vmatpush1.msra.mxu0 0.0
    %4230 = vmatprep.subr.mxu0 0.0
    %4231 = vmatpush1.msra.mxu0 0.0
    %4232 = vmatprep.subr.mxu0 0.0
    %4233 = vmatpush1.msra.mxu0 0.0
    %4234 = vmatprep.subr.mxu0 0.0
    %4235 = vmatpush1.msra.mxu0 0.0
    %4236 = vmatprep.subr.mxu0 0.0
    %4237 = vmatpush1.msra.mxu0 0.0
    %4238 = vmatprep.subr.mxu0 0.0
    %4239 = vmatpush1.msra.mxu0 0.0
    %4240 = vmatprep.subr.mxu0 0.0
    %4241 = vmatpush1.msra.mxu0 0.0
    %4242 = vmatprep.subr.mxu0 0.0
    %4243 = vmatpush1.msra.mxu0 0.0
    %4244 = vmatprep.subr.mxu0 0.0
    %4245 = vmatpush1.msra.mxu0 0.0
    %4246 = vmatprep.subr.mxu0 0.0
    %4247 = vmatpush1.msra.mxu0 0.0
    %4248 = vmatprep.subr.mxu0 0.0
    %4249 = vmatpush1.msra.mxu0 0.0
    %4250 = vmatprep.subr.mxu0 0.0
    %4251 = vmatpush1.msra.mxu0 0.0
    %4252 = vmatprep.subr.mxu0 0.0
    %4253 = vmatpush1.msra.mxu0 0.0
    %4254 = vmatprep.subr.mxu0 0.0
    %4255 = vmatpush1.msra.mxu0 0.0
    %4256 = vmatprep.subr.mxu0 0.0
    %4257 = vmatpush1.msra.mxu0 0.0
    %4258 = vmatprep.subr.mxu0 0.0
    %4259 = vmatpush1.msra.mxu0 0.0
    %4260 = vmatprep.subr.mxu0 0.0
    %4261 = vmatpush1.msra.mxu0 0.0
    %4262 = vmatprep.subr.mxu0 0.0
    %4263 = vmatpush1.msra.mxu0 0.0
    %4264 = vmatprep.subr.mxu0 0.0
    %4265 = vmatpush1.msra.mxu0 0.0
    %4266 = vmatprep.subr.mxu0 0.0
    %4267 = vmatpush1.msra.mxu0 0.0
    %4268 = vmatprep.subr.mxu0 0.0
    %4269 = vmatpush1.msra.mxu0 0.0
    %4270 = vmatprep.subr.mxu0 0.0
    %4271 = vmatpush1.msra.mxu0 0.0
    %4272 = vmatprep.subr.mxu0 0.0
    %4273 = vmatpush1.msra.mxu0 0.0
    %4274 = vmatprep.subr.mxu0 0.0
    %4275 = vmatpush1.msra.mxu0 0.0
    %4276 = vmatprep.mubr.f32.mxu0 0.0
    %4277 = vmatmul.mubr.f32.gmra.mrb[0].mxu0 %v4210
    %v4278 = vpop.f32.mrb[0].mxu0
    %v4279 = vadd.f32 0.0, %v4278
    %v4280 = vpop.f32.mrb[0].mxu0
    %4281 = vdwg.mxu0
    %4282 = vrot.lane.b32.xlu0 %v3693, 56
    %v4283 = vpop.permute.xlu0 %4282
    %v4286 = vsel %vm245, %v4205, 0
    %4288 = vmatprep.subr.mxu0 0.0
    %4289 = vmatpush1.msra.mxu0 %v4283
    %4290 = vmatprep.subr.mxu0 0.0
    %4291 = vmatpush1.msra.mxu0 0.0
    %4292 = vmatprep.subr.mxu0 0.0
    %4293 = vmatpush1.msra.mxu0 0.0
    %4294 = vmatprep.subr.mxu0 0.0
    %4295 = vmatpush1.msra.mxu0 0.0
    %4296 = vmatprep.subr.mxu0 0.0
    %4297 = vmatpush1.msra.mxu0 0.0
    %4298 = vmatprep.subr.mxu0 0.0
    %4299 = vmatpush1.msra.mxu0 0.0
    %4300 = vmatprep.subr.mxu0 0.0
    %4301 = vmatpush1.msra.mxu0 0.0
    %4302 = vmatprep.subr.mxu0 0.0
    %4303 = vmatpush1.msra.mxu0 0.0
    %4304 = vmatprep.subr.mxu0 0.0
    %4305 = vmatpush1.msra.mxu0 0.0
    %4306 = vmatprep.subr.mxu0 0.0
    %4307 = vmatpush1.msra.mxu0 0.0
    %4308 = vmatprep.subr.mxu0 0.0
    %4309 = vmatpush1.msra.mxu0 0.0
    %4310 = vmatprep.subr.mxu0 0.0
    %4311 = vmatpush1.msra.mxu0 0.0
    %4312 = vmatprep.subr.mxu0 0.0
    %4313 = vmatpush1.msra.mxu0 0.0
    %4314 = vmatprep.subr.mxu0 0.0
    %4315 = vmatpush1.msra.mxu0 0.0
    %4316 = vmatprep.subr.mxu0 0.0
    %4317 = vmatpush1.msra.mxu0 0.0
    %4318 = vmatprep.subr.mxu0 0.0
    %4319 = vmatpush1.msra.mxu0 0.0
    %4320 = vmatprep.subr.mxu0 0.0
    %4321 = vmatpush1.msra.mxu0 0.0
    %4322 = vmatprep.subr.mxu0 0.0
    %4323 = vmatpush1.msra.mxu0 0.0
    %4324 = vmatprep.subr.mxu0 0.0
    %4325 = vmatpush1.msra.mxu0 0.0
    %4326 = vmatprep.subr.mxu0 0.0
    %4327 = vmatpush1.msra.mxu0 0.0
    %4328 = vmatprep.subr.mxu0 0.0
    %4329 = vmatpush1.msra.mxu0 0.0
    %4330 = vmatprep.subr.mxu0 0.0
    %4331 = vmatpush1.msra.mxu0 0.0
    %4332 = vmatprep.subr.mxu0 0.0
    %4333 = vmatpush1.msra.mxu0 0.0
    %4334 = vmatprep.subr.mxu0 0.0
    %4335 = vmatpush1.msra.mxu0 0.0
    %4336 = vmatprep.subr.mxu0 0.0
    %4337 = vmatpush1.msra.mxu0 0.0
    %4338 = vmatprep.subr.mxu0 0.0
    %4339 = vmatpush1.msra.mxu0 0.0
    %4340 = vmatprep.subr.mxu0 0.0
    %4341 = vmatpush1.msra.mxu0 0.0
    %4342 = vmatprep.subr.mxu0 0.0
    %4343 = vmatpush1.msra.mxu0 0.0
    %4344 = vmatprep.subr.mxu0 0.0
    %4345 = vmatpush1.msra.mxu0 0.0
    %4346 = vmatprep.subr.mxu0 0.0
    %4347 = vmatpush1.msra.mxu0 0.0
    %4348 = vmatprep.subr.mxu0 0.0
    %4349 = vmatpush1.msra.mxu0 0.0
    %4350 = vmatprep.subr.mxu0 0.0
    %4351 = vmatpush1.msra.mxu0 0.0
    %4352 = vmatprep.mubr.f32.mxu0 0.0
    %4353 = vmatmul.mubr.f32.gmra.mrb[0].mxu0 %v4286
    %v4354 = vpop.f32.mrb[0].mxu0
    %v4355 = vadd.f32 0.0, %v4354
    %v4356 = vpop.f32.mrb[0].mxu0
    %4357 = vdwg.mxu0
    %4358 = vrot.lane.b32.xlu0 %v3696, 112
    %v4359 = vpop.permute.xlu0 %4358
    %4360 = vrot.lane.b32.xlu0 %v3688, 80
    %v4361 = vpop.permute.xlu0 %4360
    %v4362 = vsel %vm245, %v4359, 0
    %v4364 = vsel %vm245, %v4361, 0
    %4366 = vmatprep.subr.mxu0 0.0
    %4367 = vmatpush1.xpose.msra.mxu0 %v4364
    %4368 = vmatprep.subr.mxu0 0.0
    %4369 = vmatpush1.xpose.msra.mxu0 0.0
    %4370 = vmatprep.subr.mxu0 0.0
    %4371 = vmatpush1.xpose.msra.mxu0 0.0
    %4372 = vmatprep.subr.mxu0 0.0
    %4373 = vmatpush1.xpose.msra.mxu0 0.0
    %4374 = vmatprep.subr.mxu0 0.0
    %4375 = vmatpush1.xpose.msra.mxu0 0.0
    %4376 = vmatprep.subr.mxu0 0.0
    %4377 = vmatpush1.xpose.msra.mxu0 0.0
    %4378 = vmatprep.subr.mxu0 0.0
    %4379 = vmatpush1.xpose.msra.mxu0 0.0
    %4380 = vmatprep.subr.mxu0 0.0
    %4381 = vmatpush1.xpose.msra.mxu0 0.0
    %4382 = vmatprep.subr.mxu0 0.0
    %4383 = vmatpush1.xpose.msra.mxu0 0.0
    %4384 = vmatprep.subr.mxu0 0.0
    %4385 = vmatpush1.xpose.msra.mxu0 0.0
    %4386 = vmatprep.subr.mxu0 0.0
    %4387 = vmatpush1.xpose.msra.mxu0 0.0
    %4388 = vmatprep.subr.mxu0 0.0
    %4389 = vmatpush1.xpose.msra.mxu0 0.0
    %4390 = vmatprep.subr.mxu0 0.0
    %4391 = vmatpush1.xpose.msra.mxu0 0.0
    %4392 = vmatprep.subr.mxu0 0.0
    %4393 = vmatpush1.xpose.msra.mxu0 0.0
    %4394 = vmatprep.subr.mxu0 0.0
    %4395 = vmatpush1.xpose.msra.mxu0 0.0
    %4396 = vmatprep.subr.mxu0 0.0
    %4397 = vmatpush1.xpose.msra.mxu0 0.0
    %4398 = vmatprep.subr.mxu0 0.0
    %4399 = vmatpush1.xpose.msra.mxu0 0.0
    %4400 = vmatprep.subr.mxu0 0.0
    %4401 = vmatpush1.xpose.msra.mxu0 0.0
    %4402 = vmatprep.subr.mxu0 0.0
    %4403 = vmatpush1.xpose.msra.mxu0 0.0
    %4404 = vmatprep.subr.mxu0 0.0
    %4405 = vmatpush1.xpose.msra.mxu0 0.0
    %4406 = vmatprep.subr.mxu0 0.0
    %4407 = vmatpush1.xpose.msra.mxu0 0.0
    %4408 = vmatprep.subr.mxu0 0.0
    %4409 = vmatpush1.xpose.msra.mxu0 0.0
    %4410 = vmatprep.subr.mxu0 0.0
    %4411 = vmatpush1.xpose.msra.mxu0 0.0
    %4412 = vmatprep.subr.mxu0 0.0
    %4413 = vmatpush1.xpose.msra.mxu0 0.0
    %4414 = vmatprep.subr.mxu0 0.0
    %4415 = vmatpush1.xpose.msra.mxu0 0.0
    %4416 = vmatprep.subr.mxu0 0.0
    %4417 = vmatpush1.xpose.msra.mxu0 0.0
    %4418 = vmatprep.subr.mxu0 0.0
    %4419 = vmatpush1.xpose.msra.mxu0 0.0
    %4420 = vmatprep.subr.mxu0 0.0
    %4421 = vmatpush1.xpose.msra.mxu0 0.0
    %4422 = vmatprep.subr.mxu0 0.0
    %4423 = vmatpush1.xpose.msra.mxu0 0.0
    %4424 = vmatprep.subr.mxu0 0.0
    %4425 = vmatpush1.xpose.msra.mxu0 0.0
    %4426 = vmatprep.subr.mxu0 0.0
    %4427 = vmatpush1.xpose.msra.mxu0 0.0
    %4428 = vmatprep.subr.mxu0 0.0
    %4429 = vmatpush1.xpose.msra.mxu0 0.0
    %4430 = vmatprep.mubr.f32.mxu0 0.0
    %4431 = vmatmul.mubr.f32.gmra.mrb[0].mxu0 %v4362
    %v4432 = vpop.f32.mrb[0].mxu0
    %v4433 = vadd.f32 %v117, %v4432
    %v4434 = vpop.f32.mrb[0].mxu0
    %4435 = vdwg.mxu0
    %4436 = vrot.lane.b32.xlu0 %v3697, 112
    %v4437 = vpop.permute.xlu0 %4436
    %4438 = vrot.lane.b32.xlu0 %v3693, 80
    %v4439 = vpop.permute.xlu0 %4438
    %v4440 = vsel %vm245, %v4437, 0
    %v4442 = vsel %vm245, %v4439, 0
    %4444 = vmatprep.subr.mxu0 0.0
    %4445 = vmatpush1.xpose.msra.mxu0 %v4442
    %4446 = vmatprep.subr.mxu0 0.0
    %4447 = vmatpush1.xpose.msra.mxu0 0.0
    %4448 = vmatprep.subr.mxu0 0.0
    %4449 = vmatpush1.xpose.msra.mxu0 0.0
    %4450 = vmatprep.subr.mxu0 0.0
    %4451 = vmatpush1.xpose.msra.mxu0 0.0
    %4452 = vmatprep.subr.mxu0 0.0
    %4453 = vmatpush1.xpose.msra.mxu0 0.0
    %4454 = vmatprep.subr.mxu0 0.0
    %4455 = vmatpush1.xpose.msra.mxu0 0.0
    %4456 = vmatprep.subr.mxu0 0.0
    %4457 = vmatpush1.xpose.msra.mxu0 0.0
    %4458 = vmatprep.subr.mxu0 0.0
    %4459 = vmatpush1.xpose.msra.mxu0 0.0
    %4460 = vmatprep.subr.mxu0 0.0
    %4461 = vmatpush1.xpose.msra.mxu0 0.0
    %4462 = vmatprep.subr.mxu0 0.0
    %4463 = vmatpush1.xpose.msra.mxu0 0.0
    %4464 = vmatprep.subr.mxu0 0.0
    %4465 = vmatpush1.xpose.msra.mxu0 0.0
    %4466 = vmatprep.subr.mxu0 0.0
    %4467 = vmatpush1.xpose.msra.mxu0 0.0
    %4468 = vmatprep.subr.mxu0 0.0
    %4469 = vmatpush1.xpose.msra.mxu0 0.0
    %4470 = vmatprep.subr.mxu0 0.0
    %4471 = vmatpush1.xpose.msra.mxu0 0.0
    %4472 = vmatprep.subr.mxu0 0.0
    %4473 = vmatpush1.xpose.msra.mxu0 0.0
    %4474 = vmatprep.subr.mxu0 0.0
    %4475 = vmatpush1.xpose.msra.mxu0 0.0
    %4476 = vmatprep.subr.mxu0 0.0
    %4477 = vmatpush1.xpose.msra.mxu0 0.0
    %4478 = vmatprep.subr.mxu0 0.0
    %4479 = vmatpush1.xpose.msra.mxu0 0.0
    %4480 = vmatprep.subr.mxu0 0.0
    %4481 = vmatpush1.xpose.msra.mxu0 0.0
    %4482 = vmatprep.subr.mxu0 0.0
    %4483 = vmatpush1.xpose.msra.mxu0 0.0
    %4484 = vmatprep.subr.mxu0 0.0
    %4485 = vmatpush1.xpose.msra.mxu0 0.0
    %4486 = vmatprep.subr.mxu0 0.0
    %4487 = vmatpush1.xpose.msra.mxu0 0.0
    %4488 = vmatprep.subr.mxu0 0.0
    %4489 = vmatpush1.xpose.msra.mxu0 0.0
    %4490 = vmatprep.subr.mxu0 0.0
    %4491 = vmatpush1.xpose.msra.mxu0 0.0
    %4492 = vmatprep.subr.mxu0 0.0
    %4493 = vmatpush1.xpose.msra.mxu0 0.0
    %4494 = vmatprep.subr.mxu0 0.0
    %4495 = vmatpush1.xpose.msra.mxu0 0.0
    %4496 = vmatprep.subr.mxu0 0.0
    %4497 = vmatpush1.xpose.msra.mxu0 0.0
    %4498 = vmatprep.subr.mxu0 0.0
    %4499 = vmatpush1.xpose.msra.mxu0 0.0
    %4500 = vmatprep.subr.mxu0 0.0
    %4501 = vmatpush1.xpose.msra.mxu0 0.0
    %4502 = vmatprep.subr.mxu0 0.0
    %4503 = vmatpush1.xpose.msra.mxu0 0.0
    %4504 = vmatprep.subr.mxu0 0.0
    %4505 = vmatpush1.xpose.msra.mxu0 0.0
    %4506 = vmatprep.subr.mxu0 0.0
    %4507 = vmatpush1.xpose.msra.mxu0 0.0
    %4508 = vmatprep.mubr.f32.mxu0 0.0
    %4509 = vmatmul.mubr.f32.gmra.mrb[0].mxu0 %v4440
    %v4510 = vpop.f32.mrb[0].mxu0
    %v4511 = vadd.f32 %v117, %v4510
    %v4512 = vpop.f32.mrb[0].mxu0
    %4513 = vdwg.mxu0
    %v4514 = vsel %vm245, %v4433, -inf
    %4515 = vmax.xlane.f32.xlu0 %v4514
    %v4516 = vpop.xlane.xlu0 %4515
    %v4517 = vsel %vm245, %v4511, -inf
    %4518 = vmax.xlane.f32.xlu0 %v4517
    %v4519 = vpop.xlane.xlu0 %4518
    %v4520 = vsub.f32 %v4433, %v4516
    %v4521 = vsub.f32 %v4511, %v4519
    %v4522 = vmul.f32 %v4520, 1.442695
    %v4523 = vpow.pop %v4522
    %v4524 = vmul.f32 %v4521, 1.442695
    %v4525 = vpow.pop %v4524
    %v4526 = vsel %vm245, %v4523, 0.0
    %4527 = vadd.xlane.f32.xlu0 %v4526
    %v4528 = vpop.xlane.xlu0 %4527
    %v4529 = vsel %vm245, %v4525, 0.0
    %4530 = vadd.xlane.f32.xlu0 %v4529
    %v4531 = vpop.xlane.xlu0 %4530
    %v4532 = vrcp.pop %v4528
    %v4533 = vmul.f32 %v4523, %v4532
    %v4534 = vrcp.pop %v4531
    %v4535 = vmul.f32 %v4525, %v4534
    %4536 = vrot.lane.b32.xlu0 %v3688, 48
    %v4537 = vpop.permute.xlu0 %4536
    %v4540 = vsel %vm245, %v4533, 0
    %4542 = vmatprep.subr.mxu0 0.0
    %4543 = vmatpush1.msra.mxu0 %v4537
    %4544 = vmatprep.subr.mxu0 0.0
    %4545 = vmatpush1.msra.mxu0 0.0
    %4546 = vmatprep.subr.mxu0 0.0
    %4547 = vmatpush1.msra.mxu0 0.0
    %4548 = vmatprep.subr.mxu0 0.0
    %4549 = vmatpush1.msra.mxu0 0.0
    %4550 = vmatprep.subr.mxu0 0.0
    %4551 = vmatpush1.msra.mxu0 0.0
    %4552 = vmatprep.subr.mxu0 0.0
    %4553 = vmatpush1.msra.mxu0 0.0
    %4554 = vmatprep.subr.mxu0 0.0
    %4555 = vmatpush1.msra.mxu0 0.0
    %4556 = vmatprep.subr.mxu0 0.0
    %4557 = vmatpush1.msra.mxu0 0.0
    %4558 = vmatprep.subr.mxu0 0.0
    %4559 = vmatpush1.msra.mxu0 0.0
    %4560 = vmatprep.subr.mxu0 0.0
    %4561 = vmatpush1.msra.mxu0 0.0
    %4562 = vmatprep.subr.mxu0 0.0
    %4563 = vmatpush1.msra.mxu0 0.0
    %4564 = vmatprep.subr.mxu0 0.0
    %4565 = vmatpush1.msra.mxu0 0.0
    %4566 = vmatprep.subr.mxu0 0.0
    %4567 = vmatpush1.msra.mxu0 0.0
    %4568 = vmatprep.subr.mxu0 0.0
    %4569 = vmatpush1.msra.mxu0 0.0
    %4570 = vmatprep.subr.mxu0 0.0
    %4571 = vmatpush1.msra.mxu0 0.0
    %4572 = vmatprep.subr.mxu0 0.0
    %4573 = vmatpush1.msra.mxu0 0.0
    %4574 = vmatprep.subr.mxu0 0.0
    %4575 = vmatpush1.msra.mxu0 0.0
    %4576 = vmatprep.subr.mxu0 0.0
    %4577 = vmatpush1.msra.mxu0 0.0
    %4578 = vmatprep.subr.mxu0 0.0
    %4579 = vmatpush1.msra.mxu0 0.0
    %4580 = vmatprep.subr.mxu0 0.0
    %4581 = vmatpush1.msra.mxu0 0.0
    %4582 = vmatprep.subr.mxu0 0.0
    %4583 = vmatpush1.msra.mxu0 0.0
    %4584 = vmatprep.subr.mxu0 0.0
    %4585 = vmatpush1.msra.mxu0 0.0
    %4586 = vmatprep.subr.mxu0 0.0
    %4587 = vmatpush1.msra.mxu0 0.0
    %4588 = vmatprep.subr.mxu0 0.0
    %4589 = vmatpush1.msra.mxu0 0.0
    %4590 = vmatprep.subr.mxu0 0.0
    %4591 = vmatpush1.msra.mxu0 0.0
    %4592 = vmatprep.subr.mxu0 0.0
    %4593 = vmatpush1.msra.mxu0 0.0
    %4594 = vmatprep.subr.mxu0 0.0
    %4595 = vmatpush1.msra.mxu0 0.0
    %4596 = vmatprep.subr.mxu0 0.0
    %4597 = vmatpush1.msra.mxu0 0.0
    %4598 = vmatprep.subr.mxu0 0.0
    %4599 = vmatpush1.msra.mxu0 0.0
    %4600 = vmatprep.subr.mxu0 0.0
    %4601 = vmatpush1.msra.mxu0 0.0
    %4602 = vmatprep.subr.mxu0 0.0
    %4603 = vmatpush1.msra.mxu0 0.0
    %4604 = vmatprep.subr.mxu0 0.0
    %4605 = vmatpush1.msra.mxu0 0.0
    %4606 = vmatprep.mubr.f32.mxu0 0.0
    %4607 = vmatmul.mubr.f32.gmra.mrb[0].mxu0 %v4540
    %v4608 = vpop.f32.mrb[0].mxu0
    %v4609 = vadd.f32 0.0, %v4608
    %v4610 = vpop.f32.mrb[0].mxu0
    %4611 = vdwg.mxu0
    %4612 = vrot.lane.b32.xlu0 %v3693, 48
    %v4613 = vpop.permute.xlu0 %4612
    %v4616 = vsel %vm245, %v4535, 0
    %4618 = vmatprep.subr.mxu0 0.0
    %4619 = vmatpush1.msra.mxu0 %v4613
    %4620 = vmatprep.subr.mxu0 0.0
    %4621 = vmatpush1.msra.mxu0 0.0
    %4622 = vmatprep.subr.mxu0 0.0
    %4623 = vmatpush1.msra.mxu0 0.0
    %4624 = vmatprep.subr.mxu0 0.0
    %4625 = vmatpush1.msra.mxu0 0.0
    %4626 = vmatprep.subr.mxu0 0.0
    %4627 = vmatpush1.msra.mxu0 0.0
    %4628 = vmatprep.subr.mxu0 0.0
    %4629 = vmatpush1.msra.mxu0 0.0
    %4630 = vmatprep.subr.mxu0 0.0
    %4631 = vmatpush1.msra.mxu0 0.0
    %4632 = vmatprep.subr.mxu0 0.0
    %4633 = vmatpush1.msra.mxu0 0.0
    %4634 = vmatprep.subr.mxu0 0.0
    %4635 = vmatpush1.msra.mxu0 0.0
    %4636 = vmatprep.subr.mxu0 0.0
    %4637 = vmatpush1.msra.mxu0 0.0
    %4638 = vmatprep.subr.mxu0 0.0
    %4639 = vmatpush1.msra.mxu0 0.0
    %4640 = vmatprep.subr.mxu0 0.0
    %4641 = vmatpush1.msra.mxu0 0.0
    %4642 = vmatprep.subr.mxu0 0.0
    %4643 = vmatpush1.msra.mxu0 0.0
    %4644 = vmatprep.subr.mxu0 0.0
    %4645 = vmatpush1.msra.mxu0 0.0
    %4646 = vmatprep.subr.mxu0 0.0
    %4647 = vmatpush1.msra.mxu0 0.0
    %4648 = vmatprep.subr.mxu0 0.0
    %4649 = vmatpush1.msra.mxu0 0.0
    %4650 = vmatprep.subr.mxu0 0.0
    %4651 = vmatpush1.msra.mxu0 0.0
    %4652 = vmatprep.subr.mxu0 0.0
    %4653 = vmatpush1.msra.mxu0 0.0
    %4654 = vmatprep.subr.mxu0 0.0
    %4655 = vmatpush1.msra.mxu0 0.0
    %4656 = vmatprep.subr.mxu0 0.0
    %4657 = vmatpush1.msra.mxu0 0.0
    %4658 = vmatprep.subr.mxu0 0.0
    %4659 = vmatpush1.msra.mxu0 0.0
    %4660 = vmatprep.subr.mxu0 0.0
    %4661 = vmatpush1.msra.mxu0 0.0
    %4662 = vmatprep.subr.mxu0 0.0
    %4663 = vmatpush1.msra.mxu0 0.0
    %4664 = vmatprep.subr.mxu0 0.0
    %4665 = vmatpush1.msra.mxu0 0.0
    %4666 = vmatprep.subr.mxu0 0.0
    %4667 = vmatpush1.msra.mxu0 0.0
    %4668 = vmatprep.subr.mxu0 0.0
    %4669 = vmatpush1.msra.mxu0 0.0
    %4670 = vmatprep.subr.mxu0 0.0
    %4671 = vmatpush1.msra.mxu0 0.0
    %4672 = vmatprep.subr.mxu0 0.0
    %4673 = vmatpush1.msra.mxu0 0.0
    %4674 = vmatprep.subr.mxu0 0.0
    %4675 = vmatpush1.msra.mxu0 0.0
    %4676 = vmatprep.subr.mxu0 0.0
    %4677 = vmatpush1.msra.mxu0 0.0
    %4678 = vmatprep.subr.mxu0 0.0
    %4679 = vmatpush1.msra.mxu0 0.0
    %4680 = vmatprep.subr.mxu0 0.0
    %4681 = vmatpush1.msra.mxu0 0.0
    %4682 = vmatprep.mubr.f32.mxu0 0.0
    %4683 = vmatmul.mubr.f32.gmra.mrb[0].mxu0 %v4616
    %v4684 = vpop.f32.mrb[0].mxu0
    %v4685 = vadd.f32 0.0, %v4684
    %v4686 = vpop.f32.mrb[0].mxu0
    %4687 = vdwg.mxu0
    %4688 = vrot.lane.b32.xlu0 %v3696, 104
    %v4689 = vpop.permute.xlu0 %4688
    %4690 = vrot.lane.b32.xlu0 %v3688, 72
    %v4691 = vpop.permute.xlu0 %4690
    %v4692 = vsel %vm245, %v4689, 0
    %v4694 = vsel %vm245, %v4691, 0
    %4696 = vmatprep.subr.mxu0 0.0
    %4697 = vmatpush1.xpose.msra.mxu0 %v4694
    %4698 = vmatprep.subr.mxu0 0.0
    %4699 = vmatpush1.xpose.msra.mxu0 0.0
    %4700 = vmatprep.subr.mxu0 0.0
    %4701 = vmatpush1.xpose.msra.mxu0 0.0
    %4702 = vmatprep.subr.mxu0 0.0
    %4703 = vmatpush1.xpose.msra.mxu0 0.0
    %4704 = vmatprep.subr.mxu0 0.0
    %4705 = vmatpush1.xpose.msra.mxu0 0.0
    %4706 = vmatprep.subr.mxu0 0.0
    %4707 = vmatpush1.xpose.msra.mxu0 0.0
    %4708 = vmatprep.subr.mxu0 0.0
    %4709 = vmatpush1.xpose.msra.mxu0 0.0
    %4710 = vmatprep.subr.mxu0 0.0
    %4711 = vmatpush1.xpose.msra.mxu0 0.0
    %4712 = vmatprep.subr.mxu0 0.0
    %4713 = vmatpush1.xpose.msra.mxu0 0.0
    %4714 = vmatprep.subr.mxu0 0.0
    %4715 = vmatpush1.xpose.msra.mxu0 0.0
    %4716 = vmatprep.subr.mxu0 0.0
    %4717 = vmatpush1.xpose.msra.mxu0 0.0
    %4718 = vmatprep.subr.mxu0 0.0
    %4719 = vmatpush1.xpose.msra.mxu0 0.0
    %4720 = vmatprep.subr.mxu0 0.0
    %4721 = vmatpush1.xpose.msra.mxu0 0.0
    %4722 = vmatprep.subr.mxu0 0.0
    %4723 = vmatpush1.xpose.msra.mxu0 0.0
    %4724 = vmatprep.subr.mxu0 0.0
    %4725 = vmatpush1.xpose.msra.mxu0 0.0
    %4726 = vmatprep.subr.mxu0 0.0
    %4727 = vmatpush1.xpose.msra.mxu0 0.0
    %4728 = vmatprep.subr.mxu0 0.0
    %4729 = vmatpush1.xpose.msra.mxu0 0.0
    %4730 = vmatprep.subr.mxu0 0.0
    %4731 = vmatpush1.xpose.msra.mxu0 0.0
    %4732 = vmatprep.subr.mxu0 0.0
    %4733 = vmatpush1.xpose.msra.mxu0 0.0
    %4734 = vmatprep.subr.mxu0 0.0
    %4735 = vmatpush1.xpose.msra.mxu0 0.0
    %4736 = vmatprep.subr.mxu0 0.0
    %4737 = vmatpush1.xpose.msra.mxu0 0.0
    %4738 = vmatprep.subr.mxu0 0.0
    %4739 = vmatpush1.xpose.msra.mxu0 0.0
    %4740 = vmatprep.subr.mxu0 0.0
    %4741 = vmatpush1.xpose.msra.mxu0 0.0
    %4742 = vmatprep.subr.mxu0 0.0
    %4743 = vmatpush1.xpose.msra.mxu0 0.0
    %4744 = vmatprep.subr.mxu0 0.0
    %4745 = vmatpush1.xpose.msra.mxu0 0.0
    %4746 = vmatprep.subr.mxu0 0.0
    %4747 = vmatpush1.xpose.msra.mxu0 0.0
    %4748 = vmatprep.subr.mxu0 0.0
    %4749 = vmatpush1.xpose.msra.mxu0 0.0
    %4750 = vmatprep.subr.mxu0 0.0
    %4751 = vmatpush1.xpose.msra.mxu0 0.0
    %4752 = vmatprep.subr.mxu0 0.0
    %4753 = vmatpush1.xpose.msra.mxu0 0.0
    %4754 = vmatprep.subr.mxu0 0.0
    %4755 = vmatpush1.xpose.msra.mxu0 0.0
    %4756 = vmatprep.subr.mxu0 0.0
    %4757 = vmatpush1.xpose.msra.mxu0 0.0
    %4758 = vmatprep.subr.mxu0 0.0
    %4759 = vmatpush1.xpose.msra.mxu0 0.0
    %4760 = vmatprep.mubr.f32.mxu0 0.0
    %4761 = vmatmul.mubr.f32.gmra.mrb[0].mxu0 %v4692
    %v4762 = vpop.f32.mrb[0].mxu0
    %v4763 = vadd.f32 %v117, %v4762
    %v4764 = vpop.f32.mrb[0].mxu0
    %4765 = vdwg.mxu0
    %4766 = vrot.lane.b32.xlu0 %v3697, 104
    %v4767 = vpop.permute.xlu0 %4766
    %4768 = vrot.lane.b32.xlu0 %v3693, 72
    %v4769 = vpop.permute.xlu0 %4768
    %v4770 = vsel %vm245, %v4767, 0
    %v4772 = vsel %vm245, %v4769, 0
    %4774 = vmatprep.subr.mxu0 0.0
    %4775 = vmatpush1.xpose.msra.mxu0 %v4772
    %4776 = vmatprep.subr.mxu0 0.0
    %4777 = vmatpush1.xpose.msra.mxu0 0.0
    %4778 = vmatprep.subr.mxu0 0.0
    %4779 = vmatpush1.xpose.msra.mxu0 0.0
    %4780 = vmatprep.subr.mxu0 0.0
    %4781 = vmatpush1.xpose.msra.mxu0 0.0
    %4782 = vmatprep.subr.mxu0 0.0
    %4783 = vmatpush1.xpose.msra.mxu0 0.0
    %4784 = vmatprep.subr.mxu0 0.0
    %4785 = vmatpush1.xpose.msra.mxu0 0.0
    %4786 = vmatprep.subr.mxu0 0.0
    %4787 = vmatpush1.xpose.msra.mxu0 0.0
    %4788 = vmatprep.subr.mxu0 0.0
    %4789 = vmatpush1.xpose.msra.mxu0 0.0
    %4790 = vmatprep.subr.mxu0 0.0
    %4791 = vmatpush1.xpose.msra.mxu0 0.0
    %4792 = vmatprep.subr.mxu0 0.0
    %4793 = vmatpush1.xpose.msra.mxu0 0.0
    %4794 = vmatprep.subr.mxu0 0.0
    %4795 = vmatpush1.xpose.msra.mxu0 0.0
    %4796 = vmatprep.subr.mxu0 0.0
    %4797 = vmatpush1.xpose.msra.mxu0 0.0
    %4798 = vmatprep.subr.mxu0 0.0
    %4799 = vmatpush1.xpose.msra.mxu0 0.0
    %4800 = vmatprep.subr.mxu0 0.0
    %4801 = vmatpush1.xpose.msra.mxu0 0.0
    %4802 = vmatprep.subr.mxu0 0.0
    %4803 = vmatpush1.xpose.msra.mxu0 0.0
    %4804 = vmatprep.subr.mxu0 0.0
    %4805 = vmatpush1.xpose.msra.mxu0 0.0
    %4806 = vmatprep.subr.mxu0 0.0
    %4807 = vmatpush1.xpose.msra.mxu0 0.0
    %4808 = vmatprep.subr.mxu0 0.0
    %4809 = vmatpush1.xpose.msra.mxu0 0.0
    %4810 = vmatprep.subr.mxu0 0.0
    %4811 = vmatpush1.xpose.msra.mxu0 0.0
    %4812 = vmatprep.subr.mxu0 0.0
    %4813 = vmatpush1.xpose.msra.mxu0 0.0
    %4814 = vmatprep.subr.mxu0 0.0
    %4815 = vmatpush1.xpose.msra.mxu0 0.0
    %4816 = vmatprep.subr.mxu0 0.0
    %4817 = vmatpush1.xpose.msra.mxu0 0.0
    %4818 = vmatprep.subr.mxu0 0.0
    %4819 = vmatpush1.xpose.msra.mxu0 0.0
    %4820 = vmatprep.subr.mxu0 0.0
    %4821 = vmatpush1.xpose.msra.mxu0 0.0
    %4822 = vmatprep.subr.mxu0 0.0
    %4823 = vmatpush1.xpose.msra.mxu0 0.0
    %4824 = vmatprep.subr.mxu0 0.0
    %4825 = vmatpush1.xpose.msra.mxu0 0.0
    %4826 = vmatprep.subr.mxu0 0.0
    %4827 = vmatpush1.xpose.msra.mxu0 0.0
    %4828 = vmatprep.subr.mxu0 0.0
    %4829 = vmatpush1.xpose.msra.mxu0 0.0
    %4830 = vmatprep.subr.mxu0 0.0
    %4831 = vmatpush1.xpose.msra.mxu0 0.0
    %4832 = vmatprep.subr.mxu0 0.0
    %4833 = vmatpush1.xpose.msra.mxu0 0.0
    %4834 = vmatprep.subr.mxu0 0.0
    %4835 = vmatpush1.xpose.msra.mxu0 0.0
    %4836 = vmatprep.subr.mxu0 0.0
    %4837 = vmatpush1.xpose.msra.mxu0 0.0
    %4838 = vmatprep.mubr.f32.mxu0 0.0
    %4839 = vmatmul.mubr.f32.gmra.mrb[0].mxu0 %v4770
    %v4840 = vpop.f32.mrb[0].mxu0
    %v4841 = vadd.f32 %v117, %v4840
    %v4842 = vpop.f32.mrb[0].mxu0
    %4843 = vdwg.mxu0
    %v4844 = vsel %vm245, %v4763, -inf
    %4845 = vmax.xlane.f32.xlu0 %v4844
    %v4846 = vpop.xlane.xlu0 %4845
    %v4847 = vsel %vm245, %v4841, -inf
    %4848 = vmax.xlane.f32.xlu0 %v4847
    %v4849 = vpop.xlane.xlu0 %4848
    %v4850 = vsub.f32 %v4763, %v4846
    %v4851 = vsub.f32 %v4841, %v4849
    %v4852 = vmul.f32 %v4850, 1.442695
    %v4853 = vpow.pop %v4852
    %v4854 = vmul.f32 %v4851, 1.442695
    %v4855 = vpow.pop %v4854
    %v4856 = vsel %vm245, %v4853, 0.0
    %4857 = vadd.xlane.f32.xlu0 %v4856
    %v4858 = vpop.xlane.xlu0 %4857
    %v4859 = vsel %vm245, %v4855, 0.0
    %4860 = vadd.xlane.f32.xlu0 %v4859
    %v4861 = vpop.xlane.xlu0 %4860
    %v4862 = vrcp.pop %v4858
    %v4863 = vmul.f32 %v4853, %v4862
    %v4864 = vrcp.pop %v4861
    %v4865 = vmul.f32 %v4855, %v4864
    %4866 = vrot.lane.b32.xlu0 %v3688, 40
    %v4867 = vpop.permute.xlu0 %4866
    %v4870 = vsel %vm245, %v4863, 0
    %4872 = vmatprep.subr.mxu0 0.0
    %4873 = vmatpush1.msra.mxu0 %v4867
    %4874 = vmatprep.subr.mxu0 0.0
    %4875 = vmatpush1.msra.mxu0 0.0
    %4876 = vmatprep.subr.mxu0 0.0
    %4877 = vmatpush1.msra.mxu0 0.0
    %4878 = vmatprep.subr.mxu0 0.0
    %4879 = vmatpush1.msra.mxu0 0.0
    %4880 = vmatprep.subr.mxu0 0.0
    %4881 = vmatpush1.msra.mxu0 0.0
    %4882 = vmatprep.subr.mxu0 0.0
    %4883 = vmatpush1.msra.mxu0 0.0
    %4884 = vmatprep.subr.mxu0 0.0
    %4885 = vmatpush1.msra.mxu0 0.0
    %4886 = vmatprep.subr.mxu0 0.0
    %4887 = vmatpush1.msra.mxu0 0.0
    %4888 = vmatprep.subr.mxu0 0.0
    %4889 = vmatpush1.msra.mxu0 0.0
    %4890 = vmatprep.subr.mxu0 0.0
    %4891 = vmatpush1.msra.mxu0 0.0
    %4892 = vmatprep.subr.mxu0 0.0
    %4893 = vmatpush1.msra.mxu0 0.0
    %4894 = vmatprep.subr.mxu0 0.0
    %4895 = vmatpush1.msra.mxu0 0.0
    %4896 = vmatprep.subr.mxu0 0.0
    %4897 = vmatpush1.msra.mxu0 0.0
    %4898 = vmatprep.subr.mxu0 0.0
    %4899 = vmatpush1.msra.mxu0 0.0
    %4900 = vmatprep.subr.mxu0 0.0
    %4901 = vmatpush1.msra.mxu0 0.0
    %4902 = vmatprep.subr.mxu0 0.0
    %4903 = vmatpush1.msra.mxu0 0.0
    %4904 = vmatprep.subr.mxu0 0.0
    %4905 = vmatpush1.msra.mxu0 0.0
    %4906 = vmatprep.subr.mxu0 0.0
    %4907 = vmatpush1.msra.mxu0 0.0
    %4908 = vmatprep.subr.mxu0 0.0
    %4909 = vmatpush1.msra.mxu0 0.0
    %4910 = vmatprep.subr.mxu0 0.0
    %4911 = vmatpush1.msra.mxu0 0.0
    %4912 = vmatprep.subr.mxu0 0.0
    %4913 = vmatpush1.msra.mxu0 0.0
    %4914 = vmatprep.subr.mxu0 0.0
    %4915 = vmatpush1.msra.mxu0 0.0
    %4916 = vmatprep.subr.mxu0 0.0
    %4917 = vmatpush1.msra.mxu0 0.0
    %4918 = vmatprep.subr.mxu0 0.0
    %4919 = vmatpush1.msra.mxu0 0.0
    %4920 = vmatprep.subr.mxu0 0.0
    %4921 = vmatpush1.msra.mxu0 0.0
    %4922 = vmatprep.subr.mxu0 0.0
    %4923 = vmatpush1.msra.mxu0 0.0
    %4924 = vmatprep.subr.mxu0 0.0
    %4925 = vmatpush1.msra.mxu0 0.0
    %4926 = vmatprep.subr.mxu0 0.0
    %4927 = vmatpush1.msra.mxu0 0.0
    %4928 = vmatprep.subr.mxu0 0.0
    %4929 = vmatpush1.msra.mxu0 0.0
    %4930 = vmatprep.subr.mxu0 0.0
    %4931 = vmatpush1.msra.mxu0 0.0
    %4932 = vmatprep.subr.mxu0 0.0
    %4933 = vmatpush1.msra.mxu0 0.0
    %4934 = vmatprep.subr.mxu0 0.0
    %4935 = vmatpush1.msra.mxu0 0.0
    %4936 = vmatprep.mubr.f32.mxu0 0.0
    %4937 = vmatmul.mubr.f32.gmra.mrb[0].mxu0 %v4870
    %v4938 = vpop.f32.mrb[0].mxu0
    %v4939 = vadd.f32 0.0, %v4938
    %v4940 = vpop.f32.mrb[0].mxu0
    %4941 = vdwg.mxu0
    %4942 = vrot.lane.b32.xlu0 %v3693, 40
    %v4943 = vpop.permute.xlu0 %4942
    %v4946 = vsel %vm245, %v4865, 0
    %4948 = vmatprep.subr.mxu0 0.0
    %4949 = vmatpush1.msra.mxu0 %v4943
    %4950 = vmatprep.subr.mxu0 0.0
    %4951 = vmatpush1.msra.mxu0 0.0
    %4952 = vmatprep.subr.mxu0 0.0
    %4953 = vmatpush1.msra.mxu0 0.0
    %4954 = vmatprep.subr.mxu0 0.0
    %4955 = vmatpush1.msra.mxu0 0.0
    %4956 = vmatprep.subr.mxu0 0.0
    %4957 = vmatpush1.msra.mxu0 0.0
    %4958 = vmatprep.subr.mxu0 0.0
    %4959 = vmatpush1.msra.mxu0 0.0
    %4960 = vmatprep.subr.mxu0 0.0
    %4961 = vmatpush1.msra.mxu0 0.0
    %4962 = vmatprep.subr.mxu0 0.0
    %4963 = vmatpush1.msra.mxu0 0.0
    %4964 = vmatprep.subr.mxu0 0.0
    %4965 = vmatpush1.msra.mxu0 0.0
    %4966 = vmatprep.subr.mxu0 0.0
    %4967 = vmatpush1.msra.mxu0 0.0
    %4968 = vmatprep.subr.mxu0 0.0
    %4969 = vmatpush1.msra.mxu0 0.0
    %4970 = vmatprep.subr.mxu0 0.0
    %4971 = vmatpush1.msra.mxu0 0.0
    %4972 = vmatprep.subr.mxu0 0.0
    %4973 = vmatpush1.msra.mxu0 0.0
    %4974 = vmatprep.subr.mxu0 0.0
    %4975 = vmatpush1.msra.mxu0 0.0
    %4976 = vmatprep.subr.mxu0 0.0
    %4977 = vmatpush1.msra.mxu0 0.0
    %4978 = vmatprep.subr.mxu0 0.0
    %4979 = vmatpush1.msra.mxu0 0.0
    %4980 = vmatprep.subr.mxu0 0.0
    %4981 = vmatpush1.msra.mxu0 0.0
    %4982 = vmatprep.subr.mxu0 0.0
    %4983 = vmatpush1.msra.mxu0 0.0
    %4984 = vmatprep.subr.mxu0 0.0
    %4985 = vmatpush1.msra.mxu0 0.0
    %4986 = vmatprep.subr.mxu0 0.0
    %4987 = vmatpush1.msra.mxu0 0.0
    %4988 = vmatprep.subr.mxu0 0.0
    %4989 = vmatpush1.msra.mxu0 0.0
    %4990 = vmatprep.subr.mxu0 0.0
    %4991 = vmatpush1.msra.mxu0 0.0
    %4992 = vmatprep.subr.mxu0 0.0
    %4993 = vmatpush1.msra.mxu0 0.0
    %4994 = vmatprep.subr.mxu0 0.0
    %4995 = vmatpush1.msra.mxu0 0.0
    %4996 = vmatprep.subr.mxu0 0.0
    %4997 = vmatpush1.msra.mxu0 0.0
    %4998 = vmatprep.subr.mxu0 0.0
    %4999 = vmatpush1.msra.mxu0 0.0
    %5000 = vmatprep.subr.mxu0 0.0
    %5001 = vmatpush1.msra.mxu0 0.0
    %5002 = vmatprep.subr.mxu0 0.0
    %5003 = vmatpush1.msra.mxu0 0.0
    %5004 = vmatprep.subr.mxu0 0.0
    %5005 = vmatpush1.msra.mxu0 0.0
    %5006 = vmatprep.subr.mxu0 0.0
    %5007 = vmatpush1.msra.mxu0 0.0
    %5008 = vmatprep.subr.mxu0 0.0
    %5009 = vmatpush1.msra.mxu0 0.0
    %5010 = vmatprep.subr.mxu0 0.0
    %5011 = vmatpush1.msra.mxu0 0.0
    %5012 = vmatprep.mubr.f32.mxu0 0.0
    %5013 = vmatmul.mubr.f32.gmra.mrb[0].mxu0 %v4946
    %v5014 = vpop.f32.mrb[0].mxu0
    %v5015 = vadd.f32 0.0, %v5014
    %v5016 = vpop.f32.mrb[0].mxu0
    %5017 = vdwg.mxu0
    %5020 = vrot.lane.b32.xlu0 %v4279, 8
    %v5021 = vpop.permute.xlu0 %5020
    %5022 = vrot.lane.b32.xlu0 %v4355, 8
    %v5023 = vpop.permute.xlu0 %5022
    %5028 = vrot.lane.b32.xlu0 %v4609, 16
    %v5029 = vpop.permute.xlu0 %5028
    %5030 = vrot.lane.b32.xlu0 %v4685, 16
    %v5031 = vpop.permute.xlu0 %5030
    %5036 = vrot.lane.b32.xlu0 %v4939, 24
    %v5037 = vpop.permute.xlu0 %5036
    %5038 = vrot.lane.b32.xlu0 %v5015, 24
    %v5039 = vpop.permute.xlu0 %5038
    %v5042 = vsel %vm245, %v3949, %v5021
    %v5043 = vsel %vm245, %v4025, %v5023
    %v5044 = vsel %vm1589, %v5042, %v5029
    %v5045 = vsel %vm1589, %v5043, %v5031
    %v5046 = vsel %vm1592, %v5044, %v5037
    %v5047 = vsel %vm1592, %v5045, %v5039
    %v5048 = vlaneseq
    %v5049 = vshrl.u32 %v5048, 7
    %v5050 = vsub.s32 3, %v5049
    %v5051 = vrot.slane %v3570, %v5050
    %v5053 = vsel %vm158, %v5046, 0
    %v5056 = vsel %vm158, %v5047, 0
    %5058 = vmatprep.subr.mxu0 0.0
    %5059 = vmatpush1.msra.mxu0 %v3583
    %5060 = vmatprep.subr.mxu0 0.0
    %5061 = vmatpush1.msra.mxu0 %v3584
    %5062 = vmatprep.subr.mxu0 0.0
    %5063 = vmatpush1.msra.mxu0 %v3585
    %5064 = vmatprep.subr.mxu0 0.0
    %5065 = vmatpush1.msra.mxu0 %v3586
    %5066 = vmatprep.subr.mxu0 0.0
    %5067 = vmatpush1.msra.mxu0 0.0
    %5068 = vmatprep.subr.mxu0 0.0
    %5069 = vmatpush1.msra.mxu0 0.0
    %5070 = vmatprep.subr.mxu0 0.0
    %5071 = vmatpush1.msra.mxu0 0.0
    %5072 = vmatprep.subr.mxu0 0.0
    %5073 = vmatpush1.msra.mxu0 0.0
    %5074 = vmatprep.subr.mxu0 0.0
    %5075 = vmatpush1.msra.mxu0 0.0
    %5076 = vmatprep.subr.mxu0 0.0
    %5077 = vmatpush1.msra.mxu0 0.0
    %5078 = vmatprep.subr.mxu0 0.0
    %5079 = vmatpush1.msra.mxu0 0.0
    %5080 = vmatprep.subr.mxu0 0.0
    %5081 = vmatpush1.msra.mxu0 0.0
    %5082 = vmatprep.subr.mxu0 0.0
    %5083 = vmatpush1.msra.mxu0 0.0
    %5084 = vmatprep.subr.mxu0 0.0
    %5085 = vmatpush1.msra.mxu0 0.0
    %5086 = vmatprep.subr.mxu0 0.0
    %5087 = vmatpush1.msra.mxu0 0.0
    %5088 = vmatprep.subr.mxu0 0.0
    %5089 = vmatpush1.msra.mxu0 0.0
    %5090 = vmatprep.subr.mxu0 0.0
    %5091 = vmatpush1.msra.mxu0 0.0
    %5092 = vmatprep.subr.mxu0 0.0
    %5093 = vmatpush1.msra.mxu0 0.0
    %5094 = vmatprep.subr.mxu0 0.0
    %5095 = vmatpush1.msra.mxu0 0.0
    %5096 = vmatprep.subr.mxu0 0.0
    %5097 = vmatpush1.msra.mxu0 0.0
    %5098 = vmatprep.subr.mxu0 0.0
    %5099 = vmatpush1.msra.mxu0 0.0
    %5100 = vmatprep.subr.mxu0 0.0
    %5101 = vmatpush1.msra.mxu0 0.0
    %5102 = vmatprep.subr.mxu0 0.0
    %5103 = vmatpush1.msra.mxu0 0.0
    %5104 = vmatprep.subr.mxu0 0.0
    %5105 = vmatpush1.msra.mxu0 0.0
    %5106 = vmatprep.subr.mxu0 0.0
    %5107 = vmatpush1.msra.mxu0 0.0
    %5108 = vmatprep.subr.mxu0 0.0
    %5109 = vmatpush1.msra.mxu0 0.0
    %5110 = vmatprep.subr.mxu0 0.0
    %5111 = vmatpush1.msra.mxu0 0.0
    %5112 = vmatprep.subr.mxu0 0.0
    %5113 = vmatpush1.msra.mxu0 0.0
    %5114 = vmatprep.subr.mxu0 0.0
    %5115 = vmatpush1.msra.mxu0 0.0
    %5116 = vmatprep.subr.mxu0 0.0
    %5117 = vmatpush1.msra.mxu0 0.0
    %5118 = vmatprep.subr.mxu0 0.0
    %5119 = vmatpush1.msra.mxu0 0.0
    %5120 = vmatprep.subr.mxu0 0.0
    %5121 = vmatpush1.msra.mxu0 0.0
    %5122 = vmatprep.mubr.f32.mxu0 0.0
    %5123 = vmatmul.mubr.f32.gmra.mrb[0].mxu0 %v5053
    %v5124 = vpop.f32.mrb[0].mxu0
    %v5125 = vadd.f32 %v5051, %v5124
    %v5126 = vpop.f32.mrb[0].mxu0
    %5127 = vmatprep.mubr.f32.mxu0 0.0
    %5128 = vmatmul.mubr.f32.gmra.mrb[0].mxu0 %v5056
    %v5129 = vpop.f32.mrb[0].mxu0
    %v5130 = vadd.f32 %v5051, %v5129
    %v5131 = vpop.f32.mrb[0].mxu0
    %5132 = vdwg.mxu0
    %v5133 = vadd.f32 %v3567, %v5125
    %v5134 = vadd.f32 %v3568, %v5130
    %v5135 = vsel %vm158, %v5133, 0.0
    %5136 = vadd.xlane.f32.xlu0 %v5135
    %v5137 = vpop.xlane.xlu0 %5136
    %v5138 = vsel %vm158, %v5134, 0.0
    %5139 = vadd.xlane.f32.xlu0 %v5138
    %v5140 = vpop.xlane.xlu0 %5139
    %v5141 = vmul.f32 %v5137, %v1688
    %v5142 = vmul.f32 %v5140, %v1688
    %v5143 = vsub.f32 %v5133, %v5141
    %v5144 = vsub.f32 %v5134, %v5142
    %v5145 = vmul.f32 %v5143, %v5143
    %v5146 = vmul.f32 %v5144, %v5144
    %v5147 = vsel %vm158, %v5145, 0.0
    %5148 = vadd.xlane.f32.xlu0 %v5147
    %v5149 = vpop.xlane.xlu0 %5148
    %v5150 = vsel %vm158, %v5146, 0.0
    %5151 = vadd.xlane.f32.xlu0 %v5150
    %v5152 = vpop.xlane.xlu0 %5151
    %v5153 = vmul.f32 %v5149, %v1688
    %v5154 = vmul.f32 %v5152, %v1688
    %v5155 = vadd.f32 %v5153, 1e-05
    %v5156 = vadd.f32 %v5154, 1e-05
    %v5157 = vrsqrt.pop %v5155
    %v5158 = vrsqrt.pop %v5156
    %v5159 = vmul.f32 %v5143, %v5157
    %v5160 = vmul.f32 %v5144, %v5158
    %v5161 = vlaneseq
    %v5162 = vshrl.u32 %v5161, 7
    %v5163 = vsub.s32 7, %v5162
    %v5164 = vrot.slane %v3570, %v5163
    %v5165 = vmul.f32 %v5159, %v5164
    %v5166 = vmul.f32 %v5160, %v5164
    %v5167 = vlaneseq
    %v5168 = vshrl.u32 %v5167, 7
    %v5169 = vsub.s32 0, %v5168
    %v5170 = vrot.slane %v3571, %v5169
    %v5171 = vadd.f32 %v5165, %v5170
    %v5172 = vadd.f32 %v5166, %v5170
    %v5173 = vlaneseq
    %v5174 = vshrl.u32 %v5173, 7
    %v5175 = vsub.s32 4, %v5174
    %v5176 = vrot.slane %v3570, %v5175
    %v5178 = vsel %vm158, %v5171, 0
    %v5181 = vsel %vm158, %v5172, 0
    %5183 = vmatprep.subr.mxu0 0.0
    %5184 = vmatpush1.msra.mxu0 %v3588
    %5185 = vmatprep.subr.mxu0 0.0
    %5186 = vmatpush1.msra.mxu0 %v3589
    %5187 = vmatprep.subr.mxu0 0.0
    %5188 = vmatpush1.msra.mxu0 %v3590
    %5189 = vmatprep.subr.mxu0 0.0
    %5190 = vmatpush1.msra.mxu0 %v3591
    %5191 = vmatprep.subr.mxu0 0.0
    %5192 = vmatpush1.msra.mxu0 0.0
    %5193 = vmatprep.subr.mxu0 0.0
    %5194 = vmatpush1.msra.mxu0 0.0
    %5195 = vmatprep.subr.mxu0 0.0
    %5196 = vmatpush1.msra.mxu0 0.0
    %5197 = vmatprep.subr.mxu0 0.0
    %5198 = vmatpush1.msra.mxu0 0.0
    %5199 = vmatprep.subr.mxu0 0.0
    %5200 = vmatpush1.msra.mxu0 0.0
    %5201 = vmatprep.subr.mxu0 0.0
    %5202 = vmatpush1.msra.mxu0 0.0
    %5203 = vmatprep.subr.mxu0 0.0
    %5204 = vmatpush1.msra.mxu0 0.0
    %5205 = vmatprep.subr.mxu0 0.0
    %5206 = vmatpush1.msra.mxu0 0.0
    %5207 = vmatprep.subr.mxu0 0.0
    %5208 = vmatpush1.msra.mxu0 0.0
    %5209 = vmatprep.subr.mxu0 0.0
    %5210 = vmatpush1.msra.mxu0 0.0
    %5211 = vmatprep.subr.mxu0 0.0
    %5212 = vmatpush1.msra.mxu0 0.0
    %5213 = vmatprep.subr.mxu0 0.0
    %5214 = vmatpush1.msra.mxu0 0.0
    %5215 = vmatprep.subr.mxu0 0.0
    %5216 = vmatpush1.msra.mxu0 0.0
    %5217 = vmatprep.subr.mxu0 0.0
    %5218 = vmatpush1.msra.mxu0 0.0
    %5219 = vmatprep.subr.mxu0 0.0
    %5220 = vmatpush1.msra.mxu0 0.0
    %5221 = vmatprep.subr.mxu0 0.0
    %5222 = vmatpush1.msra.mxu0 0.0
    %5223 = vmatprep.subr.mxu0 0.0
    %5224 = vmatpush1.msra.mxu0 0.0
    %5225 = vmatprep.subr.mxu0 0.0
    %5226 = vmatpush1.msra.mxu0 0.0
    %5227 = vmatprep.subr.mxu0 0.0
    %5228 = vmatpush1.msra.mxu0 0.0
    %5229 = vmatprep.subr.mxu0 0.0
    %5230 = vmatpush1.msra.mxu0 0.0
    %5231 = vmatprep.subr.mxu0 0.0
    %5232 = vmatpush1.msra.mxu0 0.0
    %5233 = vmatprep.subr.mxu0 0.0
    %5234 = vmatpush1.msra.mxu0 0.0
    %5235 = vmatprep.subr.mxu0 0.0
    %5236 = vmatpush1.msra.mxu0 0.0
    %5237 = vmatprep.subr.mxu0 0.0
    %5238 = vmatpush1.msra.mxu0 0.0
    %5239 = vmatprep.subr.mxu0 0.0
    %5240 = vmatpush1.msra.mxu0 0.0
    %5241 = vmatprep.subr.mxu0 0.0
    %5242 = vmatpush1.msra.mxu0 0.0
    %5243 = vmatprep.subr.mxu0 0.0
    %5244 = vmatpush1.msra.mxu0 0.0
    %5245 = vmatprep.subr.mxu0 0.0
    %5246 = vmatpush1.msra.mxu0 0.0
    %5247 = vmatprep.mubr.f32.mxu0 0.0
    %5248 = vmatmul.mubr.f32.gmra.mrb[0].mxu0 %v5178
    %v5249 = vpop.f32.mrb[0].mxu0
    %v5250 = vadd.f32 %v5176, %v5249
    %v5251 = vpop.f32.mrb[0].mxu0
    %5252 = vmatprep.mubr.f32.mxu0 0.0
    %5253 = vmatmul.mubr.f32.gmra.mrb[0].mxu0 %v5181
    %v5254 = vpop.f32.mrb[0].mxu0
    %v5255 = vadd.f32 %v5176, %v5254
    %v5256 = vpop.f32.mrb[0].mxu0
    %5257 = vdwg.mxu0
    %v5258 = vlaneseq
    %v5259 = vshrl.u32 %v5258, 7
    %v5260 = vsub.s32 1, %v5259
    %v5261 = vrot.slane %v3570, %v5260
    %5262 = vmatprep.subr.mxu0 0.0
    %5263 = vmatpush1.msra.mxu0 %v3578
    %5264 = vmatprep.subr.mxu0 0.0
    %5265 = vmatpush1.msra.mxu0 %v3579
    %5266 = vmatprep.subr.mxu0 0.0
    %5267 = vmatpush1.msra.mxu0 %v3580
    %5268 = vmatprep.subr.mxu0 0.0
    %5269 = vmatpush1.msra.mxu0 %v3581
    %5270 = vmatprep.subr.mxu0 0.0
    %5271 = vmatpush1.msra.mxu0 0.0
    %5272 = vmatprep.subr.mxu0 0.0
    %5273 = vmatpush1.msra.mxu0 0.0
    %5274 = vmatprep.subr.mxu0 0.0
    %5275 = vmatpush1.msra.mxu0 0.0
    %5276 = vmatprep.subr.mxu0 0.0
    %5277 = vmatpush1.msra.mxu0 0.0
    %5278 = vmatprep.subr.mxu0 0.0
    %5279 = vmatpush1.msra.mxu0 0.0
    %5280 = vmatprep.subr.mxu0 0.0
    %5281 = vmatpush1.msra.mxu0 0.0
    %5282 = vmatprep.subr.mxu0 0.0
    %5283 = vmatpush1.msra.mxu0 0.0
    %5284 = vmatprep.subr.mxu0 0.0
    %5285 = vmatpush1.msra.mxu0 0.0
    %5286 = vmatprep.subr.mxu0 0.0
    %5287 = vmatpush1.msra.mxu0 0.0
    %5288 = vmatprep.subr.mxu0 0.0
    %5289 = vmatpush1.msra.mxu0 0.0
    %5290 = vmatprep.subr.mxu0 0.0
    %5291 = vmatpush1.msra.mxu0 0.0
    %5292 = vmatprep.subr.mxu0 0.0
    %5293 = vmatpush1.msra.mxu0 0.0
    %5294 = vmatprep.subr.mxu0 0.0
    %5295 = vmatpush1.msra.mxu0 0.0
    %5296 = vmatprep.subr.mxu0 0.0
    %5297 = vmatpush1.msra.mxu0 0.0
    %5298 = vmatprep.subr.mxu0 0.0
    %5299 = vmatpush1.msra.mxu0 0.0
    %5300 = vmatprep.subr.mxu0 0.0
    %5301 = vmatpush1.msra.mxu0 0.0
    %5302 = vmatprep.subr.mxu0 0.0
    %5303 = vmatpush1.msra.mxu0 0.0
    %5304 = vmatprep.subr.mxu0 0.0
    %5305 = vmatpush1.msra.mxu0 0.0
    %5306 = vmatprep.subr.mxu0 0.0
    %5307 = vmatpush1.msra.mxu0 0.0
    %5308 = vmatprep.subr.mxu0 0.0
    %5309 = vmatpush1.msra.mxu0 0.0
    %5310 = vmatprep.subr.mxu0 0.0
    %5311 = vmatpush1.msra.mxu0 0.0
    %5312 = vmatprep.subr.mxu0 0.0
    %5313 = vmatpush1.msra.mxu0 0.0
    %5314 = vmatprep.subr.mxu0 0.0
    %5315 = vmatpush1.msra.mxu0 0.0
    %5316 = vmatprep.subr.mxu0 0.0
    %5317 = vmatpush1.msra.mxu0 0.0
    %5318 = vmatprep.subr.mxu0 0.0
    %5319 = vmatpush1.msra.mxu0 0.0
    %5320 = vmatprep.subr.mxu0 0.0
    %5321 = vmatpush1.msra.mxu0 0.0
    %5322 = vmatprep.subr.mxu0 0.0
    %5323 = vmatpush1.msra.mxu0 0.0
    %5324 = vmatprep.subr.mxu0 0.0
    %5325 = vmatpush1.msra.mxu0 0.0
    %5326 = vmatprep.mubr.f32.mxu0 0.0
    %5327 = vmatmul.mubr.f32.gmra.mrb[0].mxu0 %v1811
    %v5328 = vpop.f32.mrb[0].mxu0
    %v5329 = vadd.f32 %v5261, %v5328
    %v5330 = vpop.f32.mrb[0].mxu0
    %5331 = vmatprep.mubr.f32.mxu0 0.0
    %5332 = vmatmul.mubr.f32.gmra.mrb[0].mxu0 %v1814
    %v5333 = vpop.f32.mrb[0].mxu0
    %v5334 = vadd.f32 %v5261, %v5333
    %v5335 = vpop.f32.mrb[0].mxu0
    %5336 = vdwg.mxu0
    %v5337 = vmul.f32 %v5250, 0.35355338
    %v5338 = vmul.f32 %v5255, 0.35355338
    %v5340 = vsel %vm245, %v5337, 0
    %v5343 = vsel %vm245, %v5329, 0
    %5345 = vmatprep.subr.mxu0 0.0
    %5346 = vmatpush1.xpose.msra.mxu0 %v5343
    %5347 = vmatprep.subr.mxu0 0.0
    %5348 = vmatpush1.xpose.msra.mxu0 0.0
    %5349 = vmatprep.subr.mxu0 0.0
    %5350 = vmatpush1.xpose.msra.mxu0 0.0
    %5351 = vmatprep.subr.mxu0 0.0
    %5352 = vmatpush1.xpose.msra.mxu0 0.0
    %5353 = vmatprep.subr.mxu0 0.0
    %5354 = vmatpush1.xpose.msra.mxu0 0.0
    %5355 = vmatprep.subr.mxu0 0.0
    %5356 = vmatpush1.xpose.msra.mxu0 0.0
    %5357 = vmatprep.subr.mxu0 0.0
    %5358 = vmatpush1.xpose.msra.mxu0 0.0
    %5359 = vmatprep.subr.mxu0 0.0
    %5360 = vmatpush1.xpose.msra.mxu0 0.0
    %5361 = vmatprep.subr.mxu0 0.0
    %5362 = vmatpush1.xpose.msra.mxu0 0.0
    %5363 = vmatprep.subr.mxu0 0.0
    %5364 = vmatpush1.xpose.msra.mxu0 0.0
    %5365 = vmatprep.subr.mxu0 0.0
    %5366 = vmatpush1.xpose.msra.mxu0 0.0
    %5367 = vmatprep.subr.mxu0 0.0
    %5368 = vmatpush1.xpose.msra.mxu0 0.0
    %5369 = vmatprep.subr.mxu0 0.0
    %5370 = vmatpush1.xpose.msra.mxu0 0.0
    %5371 = vmatprep.subr.mxu0 0.0
    %5372 = vmatpush1.xpose.msra.mxu0 0.0
    %5373 = vmatprep.subr.mxu0 0.0
    %5374 = vmatpush1.xpose.msra.mxu0 0.0
    %5375 = vmatprep.subr.mxu0 0.0
    %5376 = vmatpush1.xpose.msra.mxu0 0.0
    %5377 = vmatprep.subr.mxu0 0.0
    %5378 = vmatpush1.xpose.msra.mxu0 0.0
    %5379 = vmatprep.subr.mxu0 0.0
    %5380 = vmatpush1.xpose.msra.mxu0 0.0
    %5381 = vmatprep.subr.mxu0 0.0
    %5382 = vmatpush1.xpose.msra.mxu0 0.0
    %5383 = vmatprep.subr.mxu0 0.0
    %5384 = vmatpush1.xpose.msra.mxu0 0.0
    %5385 = vmatprep.subr.mxu0 0.0
    %5386 = vmatpush1.xpose.msra.mxu0 0.0
    %5387 = vmatprep.subr.mxu0 0.0
    %5388 = vmatpush1.xpose.msra.mxu0 0.0
    %5389 = vmatprep.subr.mxu0 0.0
    %5390 = vmatpush1.xpose.msra.mxu0 0.0
    %5391 = vmatprep.subr.mxu0 0.0
    %5392 = vmatpush1.xpose.msra.mxu0 0.0
    %5393 = vmatprep.subr.mxu0 0.0
    %5394 = vmatpush1.xpose.msra.mxu0 0.0
    %5395 = vmatprep.subr.mxu0 0.0
    %5396 = vmatpush1.xpose.msra.mxu0 0.0
    %5397 = vmatprep.subr.mxu0 0.0
    %5398 = vmatpush1.xpose.msra.mxu0 0.0
    %5399 = vmatprep.subr.mxu0 0.0
    %5400 = vmatpush1.xpose.msra.mxu0 0.0
    %5401 = vmatprep.subr.mxu0 0.0
    %5402 = vmatpush1.xpose.msra.mxu0 0.0
    %5403 = vmatprep.subr.mxu0 0.0
    %5404 = vmatpush1.xpose.msra.mxu0 0.0
    %5405 = vmatprep.subr.mxu0 0.0
    %5406 = vmatpush1.xpose.msra.mxu0 0.0
    %5407 = vmatprep.subr.mxu0 0.0
    %5408 = vmatpush1.xpose.msra.mxu0 0.0
    %5409 = vmatprep.mubr.f32.mxu0 0.0
    %5410 = vmatmul.mubr.f32.gmra.mrb[0].mxu0 %v5340
    %v5411 = vpop.f32.mrb[0].mxu0
    %v5412 = vadd.f32 0.0, %v5411
    %v5413 = vpop.f32.mrb[0].mxu0
    %5414 = vdwg.mxu0
    %v5416 = vsel %vm245, %v5338, 0
    %v5419 = vsel %vm245, %v5334, 0
    %5421 = vmatprep.subr.mxu0 0.0
    %5422 = vmatpush1.xpose.msra.mxu0 %v5419
    %5423 = vmatprep.subr.mxu0 0.0
    %5424 = vmatpush1.xpose.msra.mxu0 0.0
    %5425 = vmatprep.subr.mxu0 0.0
    %5426 = vmatpush1.xpose.msra.mxu0 0.0
    %5427 = vmatprep.subr.mxu0 0.0
    %5428 = vmatpush1.xpose.msra.mxu0 0.0
    %5429 = vmatprep.subr.mxu0 0.0
    %5430 = vmatpush1.xpose.msra.mxu0 0.0
    %5431 = vmatprep.subr.mxu0 0.0
    %5432 = vmatpush1.xpose.msra.mxu0 0.0
    %5433 = vmatprep.subr.mxu0 0.0
    %5434 = vmatpush1.xpose.msra.mxu0 0.0
    %5435 = vmatprep.subr.mxu0 0.0
    %5436 = vmatpush1.xpose.msra.mxu0 0.0
    %5437 = vmatprep.subr.mxu0 0.0
    %5438 = vmatpush1.xpose.msra.mxu0 0.0
    %5439 = vmatprep.subr.mxu0 0.0
    %5440 = vmatpush1.xpose.msra.mxu0 0.0
    %5441 = vmatprep.subr.mxu0 0.0
    %5442 = vmatpush1.xpose.msra.mxu0 0.0
    %5443 = vmatprep.subr.mxu0 0.0
    %5444 = vmatpush1.xpose.msra.mxu0 0.0
    %5445 = vmatprep.subr.mxu0 0.0
    %5446 = vmatpush1.xpose.msra.mxu0 0.0
    %5447 = vmatprep.subr.mxu0 0.0
    %5448 = vmatpush1.xpose.msra.mxu0 0.0
    %5449 = vmatprep.subr.mxu0 0.0
    %5450 = vmatpush1.xpose.msra.mxu0 0.0
    %5451 = vmatprep.subr.mxu0 0.0
    %5452 = vmatpush1.xpose.msra.mxu0 0.0
    %5453 = vmatprep.subr.mxu0 0.0
    %5454 = vmatpush1.xpose.msra.mxu0 0.0
    %5455 = vmatprep.subr.mxu0 0.0
    %5456 = vmatpush1.xpose.msra.mxu0 0.0
    %5457 = vmatprep.subr.mxu0 0.0
    %5458 = vmatpush1.xpose.msra.mxu0 0.0
    %5459 = vmatprep.subr.mxu0 0.0
    %5460 = vmatpush1.xpose.msra.mxu0 0.0
    %5461 = vmatprep.subr.mxu0 0.0
    %5462 = vmatpush1.xpose.msra.mxu0 0.0
    %5463 = vmatprep.subr.mxu0 0.0
    %5464 = vmatpush1.xpose.msra.mxu0 0.0
    %5465 = vmatprep.subr.mxu0 0.0
    %5466 = vmatpush1.xpose.msra.mxu0 0.0
    %5467 = vmatprep.subr.mxu0 0.0
    %5468 = vmatpush1.xpose.msra.mxu0 0.0
    %5469 = vmatprep.subr.mxu0 0.0
    %5470 = vmatpush1.xpose.msra.mxu0 0.0
    %5471 = vmatprep.subr.mxu0 0.0
    %5472 = vmatpush1.xpose.msra.mxu0 0.0
    %5473 = vmatprep.subr.mxu0 0.0
    %5474 = vmatpush1.xpose.msra.mxu0 0.0
    %5475 = vmatprep.subr.mxu0 0.0
    %5476 = vmatpush1.xpose.msra.mxu0 0.0
    %5477 = vmatprep.subr.mxu0 0.0
    %5478 = vmatpush1.xpose.msra.mxu0 0.0
    %5479 = vmatprep.subr.mxu0 0.0
    %5480 = vmatpush1.xpose.msra.mxu0 0.0
    %5481 = vmatprep.subr.mxu0 0.0
    %5482 = vmatpush1.xpose.msra.mxu0 0.0
    %5483 = vmatprep.subr.mxu0 0.0
    %5484 = vmatpush1.xpose.msra.mxu0 0.0
    %5485 = vmatprep.mubr.f32.mxu0 0.0
    %5486 = vmatmul.mubr.f32.gmra.mrb[0].mxu0 %v5416
    %v5487 = vpop.f32.mrb[0].mxu0
    %v5488 = vadd.f32 0.0, %v5487
    %v5489 = vpop.f32.mrb[0].mxu0
    %5490 = vdwg.mxu0
    %v5491 = vsel %vm245, %v5412, -inf
    %5492 = vmax.xlane.f32.xlu0 %v5491
    %v5493 = vpop.xlane.xlu0 %5492
    %v5494 = vsel %vm245, %v5488, -inf
    %5495 = vmax.xlane.f32.xlu0 %v5494
    %v5496 = vpop.xlane.xlu0 %5495
    %v5497 = vsub.f32 %v5412, %v5493
    %v5498 = vsub.f32 %v5488, %v5496
    %v5499 = vmul.f32 %v5497, 1.442695
    %v5500 = vpow.pop %v5499
    %v5501 = vmul.f32 %v5498, 1.442695
    %v5502 = vpow.pop %v5501
    %v5503 = vsel %vm245, %v5500, 0.0
    %5504 = vadd.xlane.f32.xlu0 %v5503
    %v5505 = vpop.xlane.xlu0 %5504
    %v5506 = vsel %vm245, %v5502, 0.0
    %5507 = vadd.xlane.f32.xlu0 %v5506
    %v5508 = vpop.xlane.xlu0 %5507
    %v5509 = vrcp.pop %v5505
    %v5510 = vmul.f32 %v5500, %v5509
    %v5511 = vrcp.pop %v5508
    %v5512 = vmul.f32 %v5502, %v5511
    %5513 = vrot.lane.b32.xlu0 %v5329, 96
    %v5514 = vpop.permute.xlu0 %5513
    %v5517 = vsel %vm245, %v5510, 0
    %5519 = vmatprep.subr.mxu0 0.0
    %5520 = vmatpush1.msra.mxu0 %v5514
    %5521 = vmatprep.subr.mxu0 0.0
    %5522 = vmatpush1.msra.mxu0 0.0
    %5523 = vmatprep.subr.mxu0 0.0
    %5524 = vmatpush1.msra.mxu0 0.0
    %5525 = vmatprep.subr.mxu0 0.0
    %5526 = vmatpush1.msra.mxu0 0.0
    %5527 = vmatprep.subr.mxu0 0.0
    %5528 = vmatpush1.msra.mxu0 0.0
    %5529 = vmatprep.subr.mxu0 0.0
    %5530 = vmatpush1.msra.mxu0 0.0
    %5531 = vmatprep.subr.mxu0 0.0
    %5532 = vmatpush1.msra.mxu0 0.0
    %5533 = vmatprep.subr.mxu0 0.0
    %5534 = vmatpush1.msra.mxu0 0.0
    %5535 = vmatprep.subr.mxu0 0.0
    %5536 = vmatpush1.msra.mxu0 0.0
    %5537 = vmatprep.subr.mxu0 0.0
    %5538 = vmatpush1.msra.mxu0 0.0
    %5539 = vmatprep.subr.mxu0 0.0
    %5540 = vmatpush1.msra.mxu0 0.0
    %5541 = vmatprep.subr.mxu0 0.0
    %5542 = vmatpush1.msra.mxu0 0.0
    %5543 = vmatprep.subr.mxu0 0.0
    %5544 = vmatpush1.msra.mxu0 0.0
    %5545 = vmatprep.subr.mxu0 0.0
    %5546 = vmatpush1.msra.mxu0 0.0
    %5547 = vmatprep.subr.mxu0 0.0
    %5548 = vmatpush1.msra.mxu0 0.0
    %5549 = vmatprep.subr.mxu0 0.0
    %5550 = vmatpush1.msra.mxu0 0.0
    %5551 = vmatprep.subr.mxu0 0.0
    %5552 = vmatpush1.msra.mxu0 0.0
    %5553 = vmatprep.subr.mxu0 0.0
    %5554 = vmatpush1.msra.mxu0 0.0
    %5555 = vmatprep.subr.mxu0 0.0
    %5556 = vmatpush1.msra.mxu0 0.0
    %5557 = vmatprep.subr.mxu0 0.0
    %5558 = vmatpush1.msra.mxu0 0.0
    %5559 = vmatprep.subr.mxu0 0.0
    %5560 = vmatpush1.msra.mxu0 0.0
    %5561 = vmatprep.subr.mxu0 0.0
    %5562 = vmatpush1.msra.mxu0 0.0
    %5563 = vmatprep.subr.mxu0 0.0
    %5564 = vmatpush1.msra.mxu0 0.0
    %5565 = vmatprep.subr.mxu0 0.0
    %5566 = vmatpush1.msra.mxu0 0.0
    %5567 = vmatprep.subr.mxu0 0.0
    %5568 = vmatpush1.msra.mxu0 0.0
    %5569 = vmatprep.subr.mxu0 0.0
    %5570 = vmatpush1.msra.mxu0 0.0
    %5571 = vmatprep.subr.mxu0 0.0
    %5572 = vmatpush1.msra.mxu0 0.0
    %5573 = vmatprep.subr.mxu0 0.0
    %5574 = vmatpush1.msra.mxu0 0.0
    %5575 = vmatprep.subr.mxu0 0.0
    %5576 = vmatpush1.msra.mxu0 0.0
    %5577 = vmatprep.subr.mxu0 0.0
    %5578 = vmatpush1.msra.mxu0 0.0
    %5579 = vmatprep.subr.mxu0 0.0
    %5580 = vmatpush1.msra.mxu0 0.0
    %5581 = vmatprep.subr.mxu0 0.0
    %5582 = vmatpush1.msra.mxu0 0.0
    %5583 = vmatprep.mubr.f32.mxu0 0.0
    %5584 = vmatmul.mubr.f32.gmra.mrb[0].mxu0 %v5517
    %v5585 = vpop.f32.mrb[0].mxu0
    %v5586 = vadd.f32 0.0, %v5585
    %v5587 = vpop.f32.mrb[0].mxu0
    %5588 = vdwg.mxu0
    %5589 = vrot.lane.b32.xlu0 %v5334, 96
    %v5590 = vpop.permute.xlu0 %5589
    %v5593 = vsel %vm245, %v5512, 0
    %5595 = vmatprep.subr.mxu0 0.0
    %5596 = vmatpush1.msra.mxu0 %v5590
    %5597 = vmatprep.subr.mxu0 0.0
    %5598 = vmatpush1.msra.mxu0 0.0
    %5599 = vmatprep.subr.mxu0 0.0
    %5600 = vmatpush1.msra.mxu0 0.0
    %5601 = vmatprep.subr.mxu0 0.0
    %5602 = vmatpush1.msra.mxu0 0.0
    %5603 = vmatprep.subr.mxu0 0.0
    %5604 = vmatpush1.msra.mxu0 0.0
    %5605 = vmatprep.subr.mxu0 0.0
    %5606 = vmatpush1.msra.mxu0 0.0
    %5607 = vmatprep.subr.mxu0 0.0
    %5608 = vmatpush1.msra.mxu0 0.0
    %5609 = vmatprep.subr.mxu0 0.0
    %5610 = vmatpush1.msra.mxu0 0.0
    %5611 = vmatprep.subr.mxu0 0.0
    %5612 = vmatpush1.msra.mxu0 0.0
    %5613 = vmatprep.subr.mxu0 0.0
    %5614 = vmatpush1.msra.mxu0 0.0
    %5615 = vmatprep.subr.mxu0 0.0
    %5616 = vmatpush1.msra.mxu0 0.0
    %5617 = vmatprep.subr.mxu0 0.0
    %5618 = vmatpush1.msra.mxu0 0.0
    %5619 = vmatprep.subr.mxu0 0.0
    %5620 = vmatpush1.msra.mxu0 0.0
    %5621 = vmatprep.subr.mxu0 0.0
    %5622 = vmatpush1.msra.mxu0 0.0
    %5623 = vmatprep.subr.mxu0 0.0
    %5624 = vmatpush1.msra.mxu0 0.0
    %5625 = vmatprep.subr.mxu0 0.0
    %5626 = vmatpush1.msra.mxu0 0.0
    %5627 = vmatprep.subr.mxu0 0.0
    %5628 = vmatpush1.msra.mxu0 0.0
    %5629 = vmatprep.subr.mxu0 0.0
    %5630 = vmatpush1.msra.mxu0 0.0
    %5631 = vmatprep.subr.mxu0 0.0
    %5632 = vmatpush1.msra.mxu0 0.0
    %5633 = vmatprep.subr.mxu0 0.0
    %5634 = vmatpush1.msra.mxu0 0.0
    %5635 = vmatprep.subr.mxu0 0.0
    %5636 = vmatpush1.msra.mxu0 0.0
    %5637 = vmatprep.subr.mxu0 0.0
    %5638 = vmatpush1.msra.mxu0 0.0
    %5639 = vmatprep.subr.mxu0 0.0
    %5640 = vmatpush1.msra.mxu0 0.0
    %5641 = vmatprep.subr.mxu0 0.0
    %5642 = vmatpush1.msra.mxu0 0.0
    %5643 = vmatprep.subr.mxu0 0.0
    %5644 = vmatpush1.msra.mxu0 0.0
    %5645 = vmatprep.subr.mxu0 0.0
    %5646 = vmatpush1.msra.mxu0 0.0
    %5647 = vmatprep.subr.mxu0 0.0
    %5648 = vmatpush1.msra.mxu0 0.0
    %5649 = vmatprep.subr.mxu0 0.0
    %5650 = vmatpush1.msra.mxu0 0.0
    %5651 = vmatprep.subr.mxu0 0.0
    %5652 = vmatpush1.msra.mxu0 0.0
    %5653 = vmatprep.subr.mxu0 0.0
    %5654 = vmatpush1.msra.mxu0 0.0
    %5655 = vmatprep.subr.mxu0 0.0
    %5656 = vmatpush1.msra.mxu0 0.0
    %5657 = vmatprep.subr.mxu0 0.0
    %5658 = vmatpush1.msra.mxu0 0.0
    %5659 = vmatprep.mubr.f32.mxu0 0.0
    %5660 = vmatmul.mubr.f32.gmra.mrb[0].mxu0 %v5593
    %v5661 = vpop.f32.mrb[0].mxu0
    %v5662 = vadd.f32 0.0, %v5661
    %v5663 = vpop.f32.mrb[0].mxu0
    %5664 = vdwg.mxu0
    %5665 = vrot.lane.b32.xlu0 %v5337, 120
    %v5666 = vpop.permute.xlu0 %5665
    %5667 = vrot.lane.b32.xlu0 %v5329, 120
    %v5668 = vpop.permute.xlu0 %5667
    %v5669 = vsel %vm245, %v5666, 0
    %v5671 = vsel %vm245, %v5668, 0
    %5673 = vmatprep.subr.mxu0 0.0
    %5674 = vmatpush1.xpose.msra.mxu0 %v5671
    %5675 = vmatprep.subr.mxu0 0.0
    %5676 = vmatpush1.xpose.msra.mxu0 0.0
    %5677 = vmatprep.subr.mxu0 0.0
    %5678 = vmatpush1.xpose.msra.mxu0 0.0
    %5679 = vmatprep.subr.mxu0 0.0
    %5680 = vmatpush1.xpose.msra.mxu0 0.0
    %5681 = vmatprep.subr.mxu0 0.0
    %5682 = vmatpush1.xpose.msra.mxu0 0.0
    %5683 = vmatprep.subr.mxu0 0.0
    %5684 = vmatpush1.xpose.msra.mxu0 0.0
    %5685 = vmatprep.subr.mxu0 0.0
    %5686 = vmatpush1.xpose.msra.mxu0 0.0
    %5687 = vmatprep.subr.mxu0 0.0
    %5688 = vmatpush1.xpose.msra.mxu0 0.0
    %5689 = vmatprep.subr.mxu0 0.0
    %5690 = vmatpush1.xpose.msra.mxu0 0.0
    %5691 = vmatprep.subr.mxu0 0.0
    %5692 = vmatpush1.xpose.msra.mxu0 0.0
    %5693 = vmatprep.subr.mxu0 0.0
    %5694 = vmatpush1.xpose.msra.mxu0 0.0
    %5695 = vmatprep.subr.mxu0 0.0
    %5696 = vmatpush1.xpose.msra.mxu0 0.0
    %5697 = vmatprep.subr.mxu0 0.0
    %5698 = vmatpush1.xpose.msra.mxu0 0.0
    %5699 = vmatprep.subr.mxu0 0.0
    %5700 = vmatpush1.xpose.msra.mxu0 0.0
    %5701 = vmatprep.subr.mxu0 0.0
    %5702 = vmatpush1.xpose.msra.mxu0 0.0
    %5703 = vmatprep.subr.mxu0 0.0
    %5704 = vmatpush1.xpose.msra.mxu0 0.0
    %5705 = vmatprep.subr.mxu0 0.0
    %5706 = vmatpush1.xpose.msra.mxu0 0.0
    %5707 = vmatprep.subr.mxu0 0.0
    %5708 = vmatpush1.xpose.msra.mxu0 0.0
    %5709 = vmatprep.subr.mxu0 0.0
    %5710 = vmatpush1.xpose.msra.mxu0 0.0
    %5711 = vmatprep.subr.mxu0 0.0
    %5712 = vmatpush1.xpose.msra.mxu0 0.0
    %5713 = vmatprep.subr.mxu0 0.0
    %5714 = vmatpush1.xpose.msra.mxu0 0.0
    %5715 = vmatprep.subr.mxu0 0.0
    %5716 = vmatpush1.xpose.msra.mxu0 0.0
    %5717 = vmatprep.subr.mxu0 0.0
    %5718 = vmatpush1.xpose.msra.mxu0 0.0
    %5719 = vmatprep.subr.mxu0 0.0
    %5720 = vmatpush1.xpose.msra.mxu0 0.0
    %5721 = vmatprep.subr.mxu0 0.0
    %5722 = vmatpush1.xpose.msra.mxu0 0.0
    %5723 = vmatprep.subr.mxu0 0.0
    %5724 = vmatpush1.xpose.msra.mxu0 0.0
    %5725 = vmatprep.subr.mxu0 0.0
    %5726 = vmatpush1.xpose.msra.mxu0 0.0
    %5727 = vmatprep.subr.mxu0 0.0
    %5728 = vmatpush1.xpose.msra.mxu0 0.0
    %5729 = vmatprep.subr.mxu0 0.0
    %5730 = vmatpush1.xpose.msra.mxu0 0.0
    %5731 = vmatprep.subr.mxu0 0.0
    %5732 = vmatpush1.xpose.msra.mxu0 0.0
    %5733 = vmatprep.subr.mxu0 0.0
    %5734 = vmatpush1.xpose.msra.mxu0 0.0
    %5735 = vmatprep.subr.mxu0 0.0
    %5736 = vmatpush1.xpose.msra.mxu0 0.0
    %5737 = vmatprep.mubr.f32.mxu0 0.0
    %5738 = vmatmul.mubr.f32.gmra.mrb[0].mxu0 %v5669
    %v5739 = vpop.f32.mrb[0].mxu0
    %v5740 = vadd.f32 0.0, %v5739
    %v5741 = vpop.f32.mrb[0].mxu0
    %5742 = vdwg.mxu0
    %5743 = vrot.lane.b32.xlu0 %v5338, 120
    %v5744 = vpop.permute.xlu0 %5743
    %5745 = vrot.lane.b32.xlu0 %v5334, 120
    %v5746 = vpop.permute.xlu0 %5745
    %v5747 = vsel %vm245, %v5744, 0
    %v5749 = vsel %vm245, %v5746, 0
    %5751 = vmatprep.subr.mxu0 0.0
    %5752 = vmatpush1.xpose.msra.mxu0 %v5749
    %5753 = vmatprep.subr.mxu0 0.0
    %5754 = vmatpush1.xpose.msra.mxu0 0.0
    %5755 = vmatprep.subr.mxu0 0.0
    %5756 = vmatpush1.xpose.msra.mxu0 0.0
    %5757 = vmatprep.subr.mxu0 0.0
    %5758 = vmatpush1.xpose.msra.mxu0 0.0
    %5759 = vmatprep.subr.mxu0 0.0
    %5760 = vmatpush1.xpose.msra.mxu0 0.0
    %5761 = vmatprep.subr.mxu0 0.0
    %5762 = vmatpush1.xpose.msra.mxu0 0.0
    %5763 = vmatprep.subr.mxu0 0.0
    %5764 = vmatpush1.xpose.msra.mxu0 0.0
    %5765 = vmatprep.subr.mxu0 0.0
    %5766 = vmatpush1.xpose.msra.mxu0 0.0
    %5767 = vmatprep.subr.mxu0 0.0
    %5768 = vmatpush1.xpose.msra.mxu0 0.0
    %5769 = vmatprep.subr.mxu0 0.0
    %5770 = vmatpush1.xpose.msra.mxu0 0.0
    %5771 = vmatprep.subr.mxu0 0.0
    %5772 = vmatpush1.xpose.msra.mxu0 0.0
    %5773 = vmatprep.subr.mxu0 0.0
    %5774 = vmatpush1.xpose.msra.mxu0 0.0
    %5775 = vmatprep.subr.mxu0 0.0
    %5776 = vmatpush1.xpose.msra.mxu0 0.0
    %5777 = vmatprep.subr.mxu0 0.0
    %5778 = vmatpush1.xpose.msra.mxu0 0.0
    %5779 = vmatprep.subr.mxu0 0.0
    %5780 = vmatpush1.xpose.msra.mxu0 0.0
    %5781 = vmatprep.subr.mxu0 0.0
    %5782 = vmatpush1.xpose.msra.mxu0 0.0
    %5783 = vmatprep.subr.mxu0 0.0
    %5784 = vmatpush1.xpose.msra.mxu0 0.0
    %5785 = vmatprep.subr.mxu0 0.0
    %5786 = vmatpush1.xpose.msra.mxu0 0.0
    %5787 = vmatprep.subr.mxu0 0.0
    %5788 = vmatpush1.xpose.msra.mxu0 0.0
    %5789 = vmatprep.subr.mxu0 0.0
    %5790 = vmatpush1.xpose.msra.mxu0 0.0
    %5791 = vmatprep.subr.mxu0 0.0
    %5792 = vmatpush1.xpose.msra.mxu0 0.0
    %5793 = vmatprep.subr.mxu0 0.0
    %5794 = vmatpush1.xpose.msra.mxu0 0.0
    %5795 = vmatprep.subr.mxu0 0.0
    %5796 = vmatpush1.xpose.msra.mxu0 0.0
    %5797 = vmatprep.subr.mxu0 0.0
    %5798 = vmatpush1.xpose.msra.mxu0 0.0
    %5799 = vmatprep.subr.mxu0 0.0
    %5800 = vmatpush1.xpose.msra.mxu0 0.0
    %5801 = vmatprep.subr.mxu0 0.0
    %5802 = vmatpush1.xpose.msra.mxu0 0.0
    %5803 = vmatprep.subr.mxu0 0.0
    %5804 = vmatpush1.xpose.msra.mxu0 0.0
    %5805 = vmatprep.subr.mxu0 0.0
    %5806 = vmatpush1.xpose.msra.mxu0 0.0
    %5807 = vmatprep.subr.mxu0 0.0
    %5808 = vmatpush1.xpose.msra.mxu0 0.0
    %5809 = vmatprep.subr.mxu0 0.0
    %5810 = vmatpush1.xpose.msra.mxu0 0.0
    %5811 = vmatprep.subr.mxu0 0.0
    %5812 = vmatpush1.xpose.msra.mxu0 0.0
    %5813 = vmatprep.subr.mxu0 0.0
    %5814 = vmatpush1.xpose.msra.mxu0 0.0
    %5815 = vmatprep.mubr.f32.mxu0 0.0
    %5816 = vmatmul.mubr.f32.gmra.mrb[0].mxu0 %v5747
    %v5817 = vpop.f32.mrb[0].mxu0
    %v5818 = vadd.f32 0.0, %v5817
    %v5819 = vpop.f32.mrb[0].mxu0
    %5820 = vdwg.mxu0
    %v5821 = vsel %vm245, %v5740, -inf
    %5822 = vmax.xlane.f32.xlu0 %v5821
    %v5823 = vpop.xlane.xlu0 %5822
    %v5824 = vsel %vm245, %v5818, -inf
    %5825 = vmax.xlane.f32.xlu0 %v5824
    %v5826 = vpop.xlane.xlu0 %5825
    %v5827 = vsub.f32 %v5740, %v5823
    %v5828 = vsub.f32 %v5818, %v5826
    %v5829 = vmul.f32 %v5827, 1.442695
    %v5830 = vpow.pop %v5829
    %v5831 = vmul.f32 %v5828, 1.442695
    %v5832 = vpow.pop %v5831
    %v5833 = vsel %vm245, %v5830, 0.0
    %5834 = vadd.xlane.f32.xlu0 %v5833
    %v5835 = vpop.xlane.xlu0 %5834
    %v5836 = vsel %vm245, %v5832, 0.0
    %5837 = vadd.xlane.f32.xlu0 %v5836
    %v5838 = vpop.xlane.xlu0 %5837
    %v5839 = vrcp.pop %v5835
    %v5840 = vmul.f32 %v5830, %v5839
    %v5841 = vrcp.pop %v5838
    %v5842 = vmul.f32 %v5832, %v5841
    %5843 = vrot.lane.b32.xlu0 %v5329, 88
    %v5844 = vpop.permute.xlu0 %5843
    %v5847 = vsel %vm245, %v5840, 0
    %5849 = vmatprep.subr.mxu0 0.0
    %5850 = vmatpush1.msra.mxu0 %v5844
    %5851 = vmatprep.subr.mxu0 0.0
    %5852 = vmatpush1.msra.mxu0 0.0
    %5853 = vmatprep.subr.mxu0 0.0
    %5854 = vmatpush1.msra.mxu0 0.0
    %5855 = vmatprep.subr.mxu0 0.0
    %5856 = vmatpush1.msra.mxu0 0.0
    %5857 = vmatprep.subr.mxu0 0.0
    %5858 = vmatpush1.msra.mxu0 0.0
    %5859 = vmatprep.subr.mxu0 0.0
    %5860 = vmatpush1.msra.mxu0 0.0
    %5861 = vmatprep.subr.mxu0 0.0
    %5862 = vmatpush1.msra.mxu0 0.0
    %5863 = vmatprep.subr.mxu0 0.0
    %5864 = vmatpush1.msra.mxu0 0.0
    %5865 = vmatprep.subr.mxu0 0.0
    %5866 = vmatpush1.msra.mxu0 0.0
    %5867 = vmatprep.subr.mxu0 0.0
    %5868 = vmatpush1.msra.mxu0 0.0
    %5869 = vmatprep.subr.mxu0 0.0
    %5870 = vmatpush1.msra.mxu0 0.0
    %5871 = vmatprep.subr.mxu0 0.0
    %5872 = vmatpush1.msra.mxu0 0.0
    %5873 = vmatprep.subr.mxu0 0.0
    %5874 = vmatpush1.msra.mxu0 0.0
    %5875 = vmatprep.subr.mxu0 0.0
    %5876 = vmatpush1.msra.mxu0 0.0
    %5877 = vmatprep.subr.mxu0 0.0
    %5878 = vmatpush1.msra.mxu0 0.0
    %5879 = vmatprep.subr.mxu0 0.0
    %5880 = vmatpush1.msra.mxu0 0.0
    %5881 = vmatprep.subr.mxu0 0.0
    %5882 = vmatpush1.msra.mxu0 0.0
    %5883 = vmatprep.subr.mxu0 0.0
    %5884 = vmatpush1.msra.mxu0 0.0
    %5885 = vmatprep.subr.mxu0 0.0
    %5886 = vmatpush1.msra.mxu0 0.0
    %5887 = vmatprep.subr.mxu0 0.0
    %5888 = vmatpush1.msra.mxu0 0.0
    %5889 = vmatprep.subr.mxu0 0.0
    %5890 = vmatpush1.msra.mxu0 0.0
    %5891 = vmatprep.subr.mxu0 0.0
    %5892 = vmatpush1.msra.mxu0 0.0
    %5893 = vmatprep.subr.mxu0 0.0
    %5894 = vmatpush1.msra.mxu0 0.0
    %5895 = vmatprep.subr.mxu0 0.0
    %5896 = vmatpush1.msra.mxu0 0.0
    %5897 = vmatprep.subr.mxu0 0.0
    %5898 = vmatpush1.msra.mxu0 0.0
    %5899 = vmatprep.subr.mxu0 0.0
    %5900 = vmatpush1.msra.mxu0 0.0
    %5901 = vmatprep.subr.mxu0 0.0
    %5902 = vmatpush1.msra.mxu0 0.0
    %5903 = vmatprep.subr.mxu0 0.0
    %5904 = vmatpush1.msra.mxu0 0.0
    %5905 = vmatprep.subr.mxu0 0.0
    %5906 = vmatpush1.msra.mxu0 0.0
    %5907 = vmatprep.subr.mxu0 0.0
    %5908 = vmatpush1.msra.mxu0 0.0
    %5909 = vmatprep.subr.mxu0 0.0
    %5910 = vmatpush1.msra.mxu0 0.0
    %5911 = vmatprep.subr.mxu0 0.0
    %5912 = vmatpush1.msra.mxu0 0.0
    %5913 = vmatprep.mubr.f32.mxu0 0.0
    %5914 = vmatmul.mubr.f32.gmra.mrb[0].mxu0 %v5847
    %v5915 = vpop.f32.mrb[0].mxu0
    %v5916 = vadd.f32 0.0, %v5915
    %v5917 = vpop.f32.mrb[0].mxu0
    %5918 = vdwg.mxu0
    %5919 = vrot.lane.b32.xlu0 %v5334, 88
    %v5920 = vpop.permute.xlu0 %5919
    %v5923 = vsel %vm245, %v5842, 0
    %5925 = vmatprep.subr.mxu0 0.0
    %5926 = vmatpush1.msra.mxu0 %v5920
    %5927 = vmatprep.subr.mxu0 0.0
    %5928 = vmatpush1.msra.mxu0 0.0
    %5929 = vmatprep.subr.mxu0 0.0
    %5930 = vmatpush1.msra.mxu0 0.0
    %5931 = vmatprep.subr.mxu0 0.0
    %5932 = vmatpush1.msra.mxu0 0.0
    %5933 = vmatprep.subr.mxu0 0.0
    %5934 = vmatpush1.msra.mxu0 0.0
    %5935 = vmatprep.subr.mxu0 0.0
    %5936 = vmatpush1.msra.mxu0 0.0
    %5937 = vmatprep.subr.mxu0 0.0
    %5938 = vmatpush1.msra.mxu0 0.0
    %5939 = vmatprep.subr.mxu0 0.0
    %5940 = vmatpush1.msra.mxu0 0.0
    %5941 = vmatprep.subr.mxu0 0.0
    %5942 = vmatpush1.msra.mxu0 0.0
    %5943 = vmatprep.subr.mxu0 0.0
    %5944 = vmatpush1.msra.mxu0 0.0
    %5945 = vmatprep.subr.mxu0 0.0
    %5946 = vmatpush1.msra.mxu0 0.0
    %5947 = vmatprep.subr.mxu0 0.0
    %5948 = vmatpush1.msra.mxu0 0.0
    %5949 = vmatprep.subr.mxu0 0.0
    %5950 = vmatpush1.msra.mxu0 0.0
    %5951 = vmatprep.subr.mxu0 0.0
    %5952 = vmatpush1.msra.mxu0 0.0
    %5953 = vmatprep.subr.mxu0 0.0
    %5954 = vmatpush1.msra.mxu0 0.0
    %5955 = vmatprep.subr.mxu0 0.0
    %5956 = vmatpush1.msra.mxu0 0.0
    %5957 = vmatprep.subr.mxu0 0.0
    %5958 = vmatpush1.msra.mxu0 0.0
    %5959 = vmatprep.subr.mxu0 0.0
    %5960 = vmatpush1.msra.mxu0 0.0
    %5961 = vmatprep.subr.mxu0 0.0
    %5962 = vmatpush1.msra.mxu0 0.0
    %5963 = vmatprep.subr.mxu0 0.0
    %5964 = vmatpush1.msra.mxu0 0.0
    %5965 = vmatprep.subr.mxu0 0.0
    %5966 = vmatpush1.msra.mxu0 0.0
    %5967 = vmatprep.subr.mxu0 0.0
    %5968 = vmatpush1.msra.mxu0 0.0
    %5969 = vmatprep.subr.mxu0 0.0
    %5970 = vmatpush1.msra.mxu0 0.0
    %5971 = vmatprep.subr.mxu0 0.0
    %5972 = vmatpush1.msra.mxu0 0.0
    %5973 = vmatprep.subr.mxu0 0.0
    %5974 = vmatpush1.msra.mxu0 0.0
    %5975 = vmatprep.subr.mxu0 0.0
    %5976 = vmatpush1.msra.mxu0 0.0
    %5977 = vmatprep.subr.mxu0 0.0
    %5978 = vmatpush1.msra.mxu0 0.0
    %5979 = vmatprep.subr.mxu0 0.0
    %5980 = vmatpush1.msra.mxu0 0.0
    %5981 = vmatprep.subr.mxu0 0.0
    %5982 = vmatpush1.msra.mxu0 0.0
    %5983 = vmatprep.subr.mxu0 0.0
    %5984 = vmatpush1.msra.mxu0 0.0
    %5985 = vmatprep.subr.mxu0 0.0
    %5986 = vmatpush1.msra.mxu0 0.0
    %5987 = vmatprep.subr.mxu0 0.0
    %5988 = vmatpush1.msra.mxu0 0.0
    %5989 = vmatprep.mubr.f32.mxu0 0.0
    %5990 = vmatmul.mubr.f32.gmra.mrb[0].mxu0 %v5923
    %v5991 = vpop.f32.mrb[0].mxu0
    %v5992 = vadd.f32 0.0, %v5991
    %v5993 = vpop.f32.mrb[0].mxu0
    %5994 = vdwg.mxu0
    %5995 = vrot.lane.b32.xlu0 %v5337, 112
    %v5996 = vpop.permute.xlu0 %5995
    %5997 = vrot.lane.b32.xlu0 %v5329, 112
    %v5998 = vpop.permute.xlu0 %5997
    %v5999 = vsel %vm245, %v5996, 0
    %v6001 = vsel %vm245, %v5998, 0
    %6003 = vmatprep.subr.mxu0 0.0
    %6004 = vmatpush1.xpose.msra.mxu0 %v6001
    %6005 = vmatprep.subr.mxu0 0.0
    %6006 = vmatpush1.xpose.msra.mxu0 0.0
    %6007 = vmatprep.subr.mxu0 0.0
    %6008 = vmatpush1.xpose.msra.mxu0 0.0
    %6009 = vmatprep.subr.mxu0 0.0
    %6010 = vmatpush1.xpose.msra.mxu0 0.0
    %6011 = vmatprep.subr.mxu0 0.0
    %6012 = vmatpush1.xpose.msra.mxu0 0.0
    %6013 = vmatprep.subr.mxu0 0.0
    %6014 = vmatpush1.xpose.msra.mxu0 0.0
    %6015 = vmatprep.subr.mxu0 0.0
    %6016 = vmatpush1.xpose.msra.mxu0 0.0
    %6017 = vmatprep.subr.mxu0 0.0
    %6018 = vmatpush1.xpose.msra.mxu0 0.0
    %6019 = vmatprep.subr.mxu0 0.0
    %6020 = vmatpush1.xpose.msra.mxu0 0.0
    %6021 = vmatprep.subr.mxu0 0.0
    %6022 = vmatpush1.xpose.msra.mxu0 0.0
    %6023 = vmatprep.subr.mxu0 0.0
    %6024 = vmatpush1.xpose.msra.mxu0 0.0
    %6025 = vmatprep.subr.mxu0 0.0
    %6026 = vmatpush1.xpose.msra.mxu0 0.0
    %6027 = vmatprep.subr.mxu0 0.0
    %6028 = vmatpush1.xpose.msra.mxu0 0.0
    %6029 = vmatprep.subr.mxu0 0.0
    %6030 = vmatpush1.xpose.msra.mxu0 0.0
    %6031 = vmatprep.subr.mxu0 0.0
    %6032 = vmatpush1.xpose.msra.mxu0 0.0
    %6033 = vmatprep.subr.mxu0 0.0
    %6034 = vmatpush1.xpose.msra.mxu0 0.0
    %6035 = vmatprep.subr.mxu0 0.0
    %6036 = vmatpush1.xpose.msra.mxu0 0.0
    %6037 = vmatprep.subr.mxu0 0.0
    %6038 = vmatpush1.xpose.msra.mxu0 0.0
    %6039 = vmatprep.subr.mxu0 0.0
    %6040 = vmatpush1.xpose.msra.mxu0 0.0
    %6041 = vmatprep.subr.mxu0 0.0
    %6042 = vmatpush1.xpose.msra.mxu0 0.0
    %6043 = vmatprep.subr.mxu0 0.0
    %6044 = vmatpush1.xpose.msra.mxu0 0.0
    %6045 = vmatprep.subr.mxu0 0.0
    %6046 = vmatpush1.xpose.msra.mxu0 0.0
    %6047 = vmatprep.subr.mxu0 0.0
    %6048 = vmatpush1.xpose.msra.mxu0 0.0
    %6049 = vmatprep.subr.mxu0 0.0
    %6050 = vmatpush1.xpose.msra.mxu0 0.0
    %6051 = vmatprep.subr.mxu0 0.0
    %6052 = vmatpush1.xpose.msra.mxu0 0.0
    %6053 = vmatprep.subr.mxu0 0.0
    %6054 = vmatpush1.xpose.msra.mxu0 0.0
    %6055 = vmatprep.subr.mxu0 0.0
    %6056 = vmatpush1.xpose.msra.mxu0 0.0
    %6057 = vmatprep.subr.mxu0 0.0
    %6058 = vmatpush1.xpose.msra.mxu0 0.0
    %6059 = vmatprep.subr.mxu0 0.0
    %6060 = vmatpush1.xpose.msra.mxu0 0.0
    %6061 = vmatprep.subr.mxu0 0.0
    %6062 = vmatpush1.xpose.msra.mxu0 0.0
    %6063 = vmatprep.subr.mxu0 0.0
    %6064 = vmatpush1.xpose.msra.mxu0 0.0
    %6065 = vmatprep.subr.mxu0 0.0
    %6066 = vmatpush1.xpose.msra.mxu0 0.0
    %6067 = vmatprep.mubr.f32.mxu0 0.0
    %6068 = vmatmul.mubr.f32.gmra.mrb[0].mxu0 %v5999
    %v6069 = vpop.f32.mrb[0].mxu0
    %v6070 = vadd.f32 0.0, %v6069
    %v6071 = vpop.f32.mrb[0].mxu0
    %6072 = vdwg.mxu0
    %6073 = vrot.lane.b32.xlu0 %v5338, 112
    %v6074 = vpop.permute.xlu0 %6073
    %6075 = vrot.lane.b32.xlu0 %v5334, 112
    %v6076 = vpop.permute.xlu0 %6075
    %v6077 = vsel %vm245, %v6074, 0
    %v6079 = vsel %vm245, %v6076, 0
    %6081 = vmatprep.subr.mxu0 0.0
    %6082 = vmatpush1.xpose.msra.mxu0 %v6079
    %6083 = vmatprep.subr.mxu0 0.0
    %6084 = vmatpush1.xpose.msra.mxu0 0.0
    %6085 = vmatprep.subr.mxu0 0.0
    %6086 = vmatpush1.xpose.msra.mxu0 0.0
    %6087 = vmatprep.subr.mxu0 0.0
    %6088 = vmatpush1.xpose.msra.mxu0 0.0
    %6089 = vmatprep.subr.mxu0 0.0
    %6090 = vmatpush1.xpose.msra.mxu0 0.0
    %6091 = vmatprep.subr.mxu0 0.0
    %6092 = vmatpush1.xpose.msra.mxu0 0.0
    %6093 = vmatprep.subr.mxu0 0.0
    %6094 = vmatpush1.xpose.msra.mxu0 0.0
    %6095 = vmatprep.subr.mxu0 0.0
    %6096 = vmatpush1.xpose.msra.mxu0 0.0
    %6097 = vmatprep.subr.mxu0 0.0
    %6098 = vmatpush1.xpose.msra.mxu0 0.0
    %6099 = vmatprep.subr.mxu0 0.0
    %6100 = vmatpush1.xpose.msra.mxu0 0.0
    %6101 = vmatprep.subr.mxu0 0.0
    %6102 = vmatpush1.xpose.msra.mxu0 0.0
    %6103 = vmatprep.subr.mxu0 0.0
    %6104 = vmatpush1.xpose.msra.mxu0 0.0
    %6105 = vmatprep.subr.mxu0 0.0
    %6106 = vmatpush1.xpose.msra.mxu0 0.0
    %6107 = vmatprep.subr.mxu0 0.0
    %6108 = vmatpush1.xpose.msra.mxu0 0.0
    %6109 = vmatprep.subr.mxu0 0.0
    %6110 = vmatpush1.xpose.msra.mxu0 0.0
    %6111 = vmatprep.subr.mxu0 0.0
    %6112 = vmatpush1.xpose.msra.mxu0 0.0
    %6113 = vmatprep.subr.mxu0 0.0
    %6114 = vmatpush1.xpose.msra.mxu0 0.0
    %6115 = vmatprep.subr.mxu0 0.0
    %6116 = vmatpush1.xpose.msra.mxu0 0.0
    %6117 = vmatprep.subr.mxu0 0.0
    %6118 = vmatpush1.xpose.msra.mxu0 0.0
    %6119 = vmatprep.subr.mxu0 0.0
    %6120 = vmatpush1.xpose.msra.mxu0 0.0
    %6121 = vmatprep.subr.mxu0 0.0
    %6122 = vmatpush1.xpose.msra.mxu0 0.0
    %6123 = vmatprep.subr.mxu0 0.0
    %6124 = vmatpush1.xpose.msra.mxu0 0.0
    %6125 = vmatprep.subr.mxu0 0.0
    %6126 = vmatpush1.xpose.msra.mxu0 0.0
    %6127 = vmatprep.subr.mxu0 0.0
    %6128 = vmatpush1.xpose.msra.mxu0 0.0
    %6129 = vmatprep.subr.mxu0 0.0
    %6130 = vmatpush1.xpose.msra.mxu0 0.0
    %6131 = vmatprep.subr.mxu0 0.0
    %6132 = vmatpush1.xpose.msra.mxu0 0.0
    %6133 = vmatprep.subr.mxu0 0.0
    %6134 = vmatpush1.xpose.msra.mxu0 0.0
    %6135 = vmatprep.subr.mxu0 0.0
    %6136 = vmatpush1.xpose.msra.mxu0 0.0
    %6137 = vmatprep.subr.mxu0 0.0
    %6138 = vmatpush1.xpose.msra.mxu0 0.0
    %6139 = vmatprep.subr.mxu0 0.0
    %6140 = vmatpush1.xpose.msra.mxu0 0.0
    %6141 = vmatprep.subr.mxu0 0.0
    %6142 = vmatpush1.xpose.msra.mxu0 0.0
    %6143 = vmatprep.subr.mxu0 0.0
    %6144 = vmatpush1.xpose.msra.mxu0 0.0
    %6145 = vmatprep.mubr.f32.mxu0 0.0
    %6146 = vmatmul.mubr.f32.gmra.mrb[0].mxu0 %v6077
    %v6147 = vpop.f32.mrb[0].mxu0
    %v6148 = vadd.f32 0.0, %v6147
    %v6149 = vpop.f32.mrb[0].mxu0
    %6150 = vdwg.mxu0
    %v6151 = vsel %vm245, %v6070, -inf
    %6152 = vmax.xlane.f32.xlu0 %v6151
    %v6153 = vpop.xlane.xlu0 %6152
    %v6154 = vsel %vm245, %v6148, -inf
    %6155 = vmax.xlane.f32.xlu0 %v6154
    %v6156 = vpop.xlane.xlu0 %6155
    %v6157 = vsub.f32 %v6070, %v6153
    %v6158 = vsub.f32 %v6148, %v6156
    %v6159 = vmul.f32 %v6157, 1.442695
    %v6160 = vpow.pop %v6159
    %v6161 = vmul.f32 %v6158, 1.442695
    %v6162 = vpow.pop %v6161
    %v6163 = vsel %vm245, %v6160, 0.0
    %6164 = vadd.xlane.f32.xlu0 %v6163
    %v6165 = vpop.xlane.xlu0 %6164
    %v6166 = vsel %vm245, %v6162, 0.0
    %6167 = vadd.xlane.f32.xlu0 %v6166
    %v6168 = vpop.xlane.xlu0 %6167
    %v6169 = vrcp.pop %v6165
    %v6170 = vmul.f32 %v6160, %v6169
    %v6171 = vrcp.pop %v6168
    %v6172 = vmul.f32 %v6162, %v6171
    %6173 = vrot.lane.b32.xlu0 %v5329, 80
    %v6174 = vpop.permute.xlu0 %6173
    %v6177 = vsel %vm245, %v6170, 0
    %6179 = vmatprep.subr.mxu0 0.0
    %6180 = vmatpush1.msra.mxu0 %v6174
    %6181 = vmatprep.subr.mxu0 0.0
    %6182 = vmatpush1.msra.mxu0 0.0
    %6183 = vmatprep.subr.mxu0 0.0
    %6184 = vmatpush1.msra.mxu0 0.0
    %6185 = vmatprep.subr.mxu0 0.0
    %6186 = vmatpush1.msra.mxu0 0.0
    %6187 = vmatprep.subr.mxu0 0.0
    %6188 = vmatpush1.msra.mxu0 0.0
    %6189 = vmatprep.subr.mxu0 0.0
    %6190 = vmatpush1.msra.mxu0 0.0
    %6191 = vmatprep.subr.mxu0 0.0
    %6192 = vmatpush1.msra.mxu0 0.0
    %6193 = vmatprep.subr.mxu0 0.0
    %6194 = vmatpush1.msra.mxu0 0.0
    %6195 = vmatprep.subr.mxu0 0.0
    %6196 = vmatpush1.msra.mxu0 0.0
    %6197 = vmatprep.subr.mxu0 0.0
    %6198 = vmatpush1.msra.mxu0 0.0
    %6199 = vmatprep.subr.mxu0 0.0
    %6200 = vmatpush1.msra.mxu0 0.0
    %6201 = vmatprep.subr.mxu0 0.0
    %6202 = vmatpush1.msra.mxu0 0.0
    %6203 = vmatprep.subr.mxu0 0.0
    %6204 = vmatpush1.msra.mxu0 0.0
    %6205 = vmatprep.subr.mxu0 0.0
    %6206 = vmatpush1.msra.mxu0 0.0
    %6207 = vmatprep.subr.mxu0 0.0
    %6208 = vmatpush1.msra.mxu0 0.0
    %6209 = vmatprep.subr.mxu0 0.0
    %6210 = vmatpush1.msra.mxu0 0.0
    %6211 = vmatprep.subr.mxu0 0.0
    %6212 = vmatpush1.msra.mxu0 0.0
    %6213 = vmatprep.subr.mxu0 0.0
    %6214 = vmatpush1.msra.mxu0 0.0
    %6215 = vmatprep.subr.mxu0 0.0
    %6216 = vmatpush1.msra.mxu0 0.0
    %6217 = vmatprep.subr.mxu0 0.0
    %6218 = vmatpush1.msra.mxu0 0.0
    %6219 = vmatprep.subr.mxu0 0.0
    %6220 = vmatpush1.msra.mxu0 0.0
    %6221 = vmatprep.subr.mxu0 0.0
    %6222 = vmatpush1.msra.mxu0 0.0
    %6223 = vmatprep.subr.mxu0 0.0
    %6224 = vmatpush1.msra.mxu0 0.0
    %6225 = vmatprep.subr.mxu0 0.0
    %6226 = vmatpush1.msra.mxu0 0.0
    %6227 = vmatprep.subr.mxu0 0.0
    %6228 = vmatpush1.msra.mxu0 0.0
    %6229 = vmatprep.subr.mxu0 0.0
    %6230 = vmatpush1.msra.mxu0 0.0
    %6231 = vmatprep.subr.mxu0 0.0
    %6232 = vmatpush1.msra.mxu0 0.0
    %6233 = vmatprep.subr.mxu0 0.0
    %6234 = vmatpush1.msra.mxu0 0.0
    %6235 = vmatprep.subr.mxu0 0.0
    %6236 = vmatpush1.msra.mxu0 0.0
    %6237 = vmatprep.subr.mxu0 0.0
    %6238 = vmatpush1.msra.mxu0 0.0
    %6239 = vmatprep.subr.mxu0 0.0
    %6240 = vmatpush1.msra.mxu0 0.0
    %6241 = vmatprep.subr.mxu0 0.0
    %6242 = vmatpush1.msra.mxu0 0.0
    %6243 = vmatprep.mubr.f32.mxu0 0.0
    %6244 = vmatmul.mubr.f32.gmra.mrb[0].mxu0 %v6177
    %v6245 = vpop.f32.mrb[0].mxu0
    %v6246 = vadd.f32 0.0, %v6245
    %v6247 = vpop.f32.mrb[0].mxu0
    %6248 = vdwg.mxu0
    %6249 = vrot.lane.b32.xlu0 %v5334, 80
    %v6250 = vpop.permute.xlu0 %6249
    %v6253 = vsel %vm245, %v6172, 0
    %6255 = vmatprep.subr.mxu0 0.0
    %6256 = vmatpush1.msra.mxu0 %v6250
    %6257 = vmatprep.subr.mxu0 0.0
    %6258 = vmatpush1.msra.mxu0 0.0
    %6259 = vmatprep.subr.mxu0 0.0
    %6260 = vmatpush1.msra.mxu0 0.0
    %6261 = vmatprep.subr.mxu0 0.0
    %6262 = vmatpush1.msra.mxu0 0.0
    %6263 = vmatprep.subr.mxu0 0.0
    %6264 = vmatpush1.msra.mxu0 0.0
    %6265 = vmatprep.subr.mxu0 0.0
    %6266 = vmatpush1.msra.mxu0 0.0
    %6267 = vmatprep.subr.mxu0 0.0
    %6268 = vmatpush1.msra.mxu0 0.0
    %6269 = vmatprep.subr.mxu0 0.0
    %6270 = vmatpush1.msra.mxu0 0.0
    %6271 = vmatprep.subr.mxu0 0.0
    %6272 = vmatpush1.msra.mxu0 0.0
    %6273 = vmatprep.subr.mxu0 0.0
    %6274 = vmatpush1.msra.mxu0 0.0
    %6275 = vmatprep.subr.mxu0 0.0
    %6276 = vmatpush1.msra.mxu0 0.0
    %6277 = vmatprep.subr.mxu0 0.0
    %6278 = vmatpush1.msra.mxu0 0.0
    %6279 = vmatprep.subr.mxu0 0.0
    %6280 = vmatpush1.msra.mxu0 0.0
    %6281 = vmatprep.subr.mxu0 0.0
    %6282 = vmatpush1.msra.mxu0 0.0
    %6283 = vmatprep.subr.mxu0 0.0
    %6284 = vmatpush1.msra.mxu0 0.0
    %6285 = vmatprep.subr.mxu0 0.0
    %6286 = vmatpush1.msra.mxu0 0.0
    %6287 = vmatprep.subr.mxu0 0.0
    %6288 = vmatpush1.msra.mxu0 0.0
    %6289 = vmatprep.subr.mxu0 0.0
    %6290 = vmatpush1.msra.mxu0 0.0
    %6291 = vmatprep.subr.mxu0 0.0
    %6292 = vmatpush1.msra.mxu0 0.0
    %6293 = vmatprep.subr.mxu0 0.0
    %6294 = vmatpush1.msra.mxu0 0.0
    %6295 = vmatprep.subr.mxu0 0.0
    %6296 = vmatpush1.msra.mxu0 0.0
    %6297 = vmatprep.subr.mxu0 0.0
    %6298 = vmatpush1.msra.mxu0 0.0
    %6299 = vmatprep.subr.mxu0 0.0
    %6300 = vmatpush1.msra.mxu0 0.0
    %6301 = vmatprep.subr.mxu0 0.0
    %6302 = vmatpush1.msra.mxu0 0.0
    %6303 = vmatprep.subr.mxu0 0.0
    %6304 = vmatpush1.msra.mxu0 0.0
    %6305 = vmatprep.subr.mxu0 0.0
    %6306 = vmatpush1.msra.mxu0 0.0
    %6307 = vmatprep.subr.mxu0 0.0
    %6308 = vmatpush1.msra.mxu0 0.0
    %6309 = vmatprep.subr.mxu0 0.0
    %6310 = vmatpush1.msra.mxu0 0.0
    %6311 = vmatprep.subr.mxu0 0.0
    %6312 = vmatpush1.msra.mxu0 0.0
    %6313 = vmatprep.subr.mxu0 0.0
    %6314 = vmatpush1.msra.mxu0 0.0
    %6315 = vmatprep.subr.mxu0 0.0
    %6316 = vmatpush1.msra.mxu0 0.0
    %6317 = vmatprep.subr.mxu0 0.0
    %6318 = vmatpush1.msra.mxu0 0.0
    %6319 = vmatprep.mubr.f32.mxu0 0.0
    %6320 = vmatmul.mubr.f32.gmra.mrb[0].mxu0 %v6253
    %v6321 = vpop.f32.mrb[0].mxu0
    %v6322 = vadd.f32 0.0, %v6321
    %v6323 = vpop.f32.mrb[0].mxu0
    %6324 = vdwg.mxu0
    %6325 = vrot.lane.b32.xlu0 %v5337, 104
    %v6326 = vpop.permute.xlu0 %6325
    %6327 = vrot.lane.b32.xlu0 %v5329, 104
    %v6328 = vpop.permute.xlu0 %6327
    %v6329 = vsel %vm245, %v6326, 0
    %v6331 = vsel %vm245, %v6328, 0
    %6333 = vmatprep.subr.mxu0 0.0
    %6334 = vmatpush1.xpose.msra.mxu0 %v6331
    %6335 = vmatprep.subr.mxu0 0.0
    %6336 = vmatpush1.xpose.msra.mxu0 0.0
    %6337 = vmatprep.subr.mxu0 0.0
    %6338 = vmatpush1.xpose.msra.mxu0 0.0
    %6339 = vmatprep.subr.mxu0 0.0
    %6340 = vmatpush1.xpose.msra.mxu0 0.0
    %6341 = vmatprep.subr.mxu0 0.0
    %6342 = vmatpush1.xpose.msra.mxu0 0.0
    %6343 = vmatprep.subr.mxu0 0.0
    %6344 = vmatpush1.xpose.msra.mxu0 0.0
    %6345 = vmatprep.subr.mxu0 0.0
    %6346 = vmatpush1.xpose.msra.mxu0 0.0
    %6347 = vmatprep.subr.mxu0 0.0
    %6348 = vmatpush1.xpose.msra.mxu0 0.0
    %6349 = vmatprep.subr.mxu0 0.0
    %6350 = vmatpush1.xpose.msra.mxu0 0.0
    %6351 = vmatprep.subr.mxu0 0.0
    %6352 = vmatpush1.xpose.msra.mxu0 0.0
    %6353 = vmatprep.subr.mxu0 0.0
    %6354 = vmatpush1.xpose.msra.mxu0 0.0
    %6355 = vmatprep.subr.mxu0 0.0
    %6356 = vmatpush1.xpose.msra.mxu0 0.0
    %6357 = vmatprep.subr.mxu0 0.0
    %6358 = vmatpush1.xpose.msra.mxu0 0.0
    %6359 = vmatprep.subr.mxu0 0.0
    %6360 = vmatpush1.xpose.msra.mxu0 0.0
    %6361 = vmatprep.subr.mxu0 0.0
    %6362 = vmatpush1.xpose.msra.mxu0 0.0
    %6363 = vmatprep.subr.mxu0 0.0
    %6364 = vmatpush1.xpose.msra.mxu0 0.0
    %6365 = vmatprep.subr.mxu0 0.0
    %6366 = vmatpush1.xpose.msra.mxu0 0.0
    %6367 = vmatprep.subr.mxu0 0.0
    %6368 = vmatpush1.xpose.msra.mxu0 0.0
    %6369 = vmatprep.subr.mxu0 0.0
    %6370 = vmatpush1.xpose.msra.mxu0 0.0
    %6371 = vmatprep.subr.mxu0 0.0
    %6372 = vmatpush1.xpose.msra.mxu0 0.0
    %6373 = vmatprep.subr.mxu0 0.0
    %6374 = vmatpush1.xpose.msra.mxu0 0.0
    %6375 = vmatprep.subr.mxu0 0.0
    %6376 = vmatpush1.xpose.msra.mxu0 0.0
    %6377 = vmatprep.subr.mxu0 0.0
    %6378 = vmatpush1.xpose.msra.mxu0 0.0
    %6379 = vmatprep.subr.mxu0 0.0
    %6380 = vmatpush1.xpose.msra.mxu0 0.0
    %6381 = vmatprep.subr.mxu0 0.0
    %6382 = vmatpush1.xpose.msra.mxu0 0.0
    %6383 = vmatprep.subr.mxu0 0.0
    %6384 = vmatpush1.xpose.msra.mxu0 0.0
    %6385 = vmatprep.subr.mxu0 0.0
    %6386 = vmatpush1.xpose.msra.mxu0 0.0
    %6387 = vmatprep.subr.mxu0 0.0
    %6388 = vmatpush1.xpose.msra.mxu0 0.0
    %6389 = vmatprep.subr.mxu0 0.0
    %6390 = vmatpush1.xpose.msra.mxu0 0.0
    %6391 = vmatprep.subr.mxu0 0.0
    %6392 = vmatpush1.xpose.msra.mxu0 0.0
    %6393 = vmatprep.subr.mxu0 0.0
    %6394 = vmatpush1.xpose.msra.mxu0 0.0
    %6395 = vmatprep.subr.mxu0 0.0
    %6396 = vmatpush1.xpose.msra.mxu0 0.0
    %6397 = vmatprep.mubr.f32.mxu0 0.0
    %6398 = vmatmul.mubr.f32.gmra.mrb[0].mxu0 %v6329
    %v6399 = vpop.f32.mrb[0].mxu0
    %v6400 = vadd.f32 0.0, %v6399
    %v6401 = vpop.f32.mrb[0].mxu0
    %6402 = vdwg.mxu0
    %6403 = vrot.lane.b32.xlu0 %v5338, 104
    %v6404 = vpop.permute.xlu0 %6403
    %6405 = vrot.lane.b32.xlu0 %v5334, 104
    %v6406 = vpop.permute.xlu0 %6405
    %v6407 = vsel %vm245, %v6404, 0
    %v6409 = vsel %vm245, %v6406, 0
    %6411 = vmatprep.subr.mxu0 0.0
    %6412 = vmatpush1.xpose.msra.mxu0 %v6409
    %6413 = vmatprep.subr.mxu0 0.0
    %6414 = vmatpush1.xpose.msra.mxu0 0.0
    %6415 = vmatprep.subr.mxu0 0.0
    %6416 = vmatpush1.xpose.msra.mxu0 0.0
    %6417 = vmatprep.subr.mxu0 0.0
    %6418 = vmatpush1.xpose.msra.mxu0 0.0
    %6419 = vmatprep.subr.mxu0 0.0
    %6420 = vmatpush1.xpose.msra.mxu0 0.0
    %6421 = vmatprep.subr.mxu0 0.0
    %6422 = vmatpush1.xpose.msra.mxu0 0.0
    %6423 = vmatprep.subr.mxu0 0.0
    %6424 = vmatpush1.xpose.msra.mxu0 0.0
    %6425 = vmatprep.subr.mxu0 0.0
    %6426 = vmatpush1.xpose.msra.mxu0 0.0
    %6427 = vmatprep.subr.mxu0 0.0
    %6428 = vmatpush1.xpose.msra.mxu0 0.0
    %6429 = vmatprep.subr.mxu0 0.0
    %6430 = vmatpush1.xpose.msra.mxu0 0.0
    %6431 = vmatprep.subr.mxu0 0.0
    %6432 = vmatpush1.xpose.msra.mxu0 0.0
    %6433 = vmatprep.subr.mxu0 0.0
    %6434 = vmatpush1.xpose.msra.mxu0 0.0
    %6435 = vmatprep.subr.mxu0 0.0
    %6436 = vmatpush1.xpose.msra.mxu0 0.0
    %6437 = vmatprep.subr.mxu0 0.0
    %6438 = vmatpush1.xpose.msra.mxu0 0.0
    %6439 = vmatprep.subr.mxu0 0.0
    %6440 = vmatpush1.xpose.msra.mxu0 0.0
    %6441 = vmatprep.subr.mxu0 0.0
    %6442 = vmatpush1.xpose.msra.mxu0 0.0
    %6443 = vmatprep.subr.mxu0 0.0
    %6444 = vmatpush1.xpose.msra.mxu0 0.0
    %6445 = vmatprep.subr.mxu0 0.0
    %6446 = vmatpush1.xpose.msra.mxu0 0.0
    %6447 = vmatprep.subr.mxu0 0.0
    %6448 = vmatpush1.xpose.msra.mxu0 0.0
    %6449 = vmatprep.subr.mxu0 0.0
    %6450 = vmatpush1.xpose.msra.mxu0 0.0
    %6451 = vmatprep.subr.mxu0 0.0
    %6452 = vmatpush1.xpose.msra.mxu0 0.0
    %6453 = vmatprep.subr.mxu0 0.0
    %6454 = vmatpush1.xpose.msra.mxu0 0.0
    %6455 = vmatprep.subr.mxu0 0.0
    %6456 = vmatpush1.xpose.msra.mxu0 0.0
    %6457 = vmatprep.subr.mxu0 0.0
    %6458 = vmatpush1.xpose.msra.mxu0 0.0
    %6459 = vmatprep.subr.mxu0 0.0
    %6460 = vmatpush1.xpose.msra.mxu0 0.0
    %6461 = vmatprep.subr.mxu0 0.0
    %6462 = vmatpush1.xpose.msra.mxu0 0.0
    %6463 = vmatprep.subr.mxu0 0.0
    %6464 = vmatpush1.xpose.msra.mxu0 0.0
    %6465 = vmatprep.subr.mxu0 0.0
    %6466 = vmatpush1.xpose.msra.mxu0 0.0
    %6467 = vmatprep.subr.mxu0 0.0
    %6468 = vmatpush1.xpose.msra.mxu0 0.0
    %6469 = vmatprep.subr.mxu0 0.0
    %6470 = vmatpush1.xpose.msra.mxu0 0.0
    %6471 = vmatprep.subr.mxu0 0.0
    %6472 = vmatpush1.xpose.msra.mxu0 0.0
    %6473 = vmatprep.subr.mxu0 0.0
    %6474 = vmatpush1.xpose.msra.mxu0 0.0
    %6475 = vmatprep.mubr.f32.mxu0 0.0
    %6476 = vmatmul.mubr.f32.gmra.mrb[0].mxu0 %v6407
    %v6477 = vpop.f32.mrb[0].mxu0
    %v6478 = vadd.f32 0.0, %v6477
    %v6479 = vpop.f32.mrb[0].mxu0
    %6480 = vdwg.mxu0
    %v6481 = vsel %vm245, %v6400, -inf
    %6482 = vmax.xlane.f32.xlu0 %v6481
    %v6483 = vpop.xlane.xlu0 %6482
    %v6484 = vsel %vm245, %v6478, -inf
    %6485 = vmax.xlane.f32.xlu0 %v6484
    %v6486 = vpop.xlane.xlu0 %6485
    %v6487 = vsub.f32 %v6400, %v6483
    %v6488 = vsub.f32 %v6478, %v6486
    %v6489 = vmul.f32 %v6487, 1.442695
    %v6490 = vpow.pop %v6489
    %v6491 = vmul.f32 %v6488, 1.442695
    %v6492 = vpow.pop %v6491
    %v6493 = vsel %vm245, %v6490, 0.0
    %6494 = vadd.xlane.f32.xlu0 %v6493
    %v6495 = vpop.xlane.xlu0 %6494
    %v6496 = vsel %vm245, %v6492, 0.0
    %6497 = vadd.xlane.f32.xlu0 %v6496
    %v6498 = vpop.xlane.xlu0 %6497
    %v6499 = vrcp.pop %v6495
    %v6500 = vmul.f32 %v6490, %v6499
    %v6501 = vrcp.pop %v6498
    %v6502 = vmul.f32 %v6492, %v6501
    %6503 = vrot.lane.b32.xlu0 %v5329, 72
    %v6504 = vpop.permute.xlu0 %6503
    %v6507 = vsel %vm245, %v6500, 0
    %6509 = vmatprep.subr.mxu0 0.0
    %6510 = vmatpush1.msra.mxu0 %v6504
    %6511 = vmatprep.subr.mxu0 0.0
    %6512 = vmatpush1.msra.mxu0 0.0
    %6513 = vmatprep.subr.mxu0 0.0
    %6514 = vmatpush1.msra.mxu0 0.0
    %6515 = vmatprep.subr.mxu0 0.0
    %6516 = vmatpush1.msra.mxu0 0.0
    %6517 = vmatprep.subr.mxu0 0.0
    %6518 = vmatpush1.msra.mxu0 0.0
    %6519 = vmatprep.subr.mxu0 0.0
    %6520 = vmatpush1.msra.mxu0 0.0
    %6521 = vmatprep.subr.mxu0 0.0
    %6522 = vmatpush1.msra.mxu0 0.0
    %6523 = vmatprep.subr.mxu0 0.0
    %6524 = vmatpush1.msra.mxu0 0.0
    %6525 = vmatprep.subr.mxu0 0.0
    %6526 = vmatpush1.msra.mxu0 0.0
    %6527 = vmatprep.subr.mxu0 0.0
    %6528 = vmatpush1.msra.mxu0 0.0
    %6529 = vmatprep.subr.mxu0 0.0
    %6530 = vmatpush1.msra.mxu0 0.0
    %6531 = vmatprep.subr.mxu0 0.0
    %6532 = vmatpush1.msra.mxu0 0.0
    %6533 = vmatprep.subr.mxu0 0.0
    %6534 = vmatpush1.msra.mxu0 0.0
    %6535 = vmatprep.subr.mxu0 0.0
    %6536 = vmatpush1.msra.mxu0 0.0
    %6537 = vmatprep.subr.mxu0 0.0
    %6538 = vmatpush1.msra.mxu0 0.0
    %6539 = vmatprep.subr.mxu0 0.0
    %6540 = vmatpush1.msra.mxu0 0.0
    %6541 = vmatprep.subr.mxu0 0.0
    %6542 = vmatpush1.msra.mxu0 0.0
    %6543 = vmatprep.subr.mxu0 0.0
    %6544 = vmatpush1.msra.mxu0 0.0
    %6545 = vmatprep.subr.mxu0 0.0
    %6546 = vmatpush1.msra.mxu0 0.0
    %6547 = vmatprep.subr.mxu0 0.0
    %6548 = vmatpush1.msra.mxu0 0.0
    %6549 = vmatprep.subr.mxu0 0.0
    %6550 = vmatpush1.msra.mxu0 0.0
    %6551 = vmatprep.subr.mxu0 0.0
    %6552 = vmatpush1.msra.mxu0 0.0
    %6553 = vmatprep.subr.mxu0 0.0
    %6554 = vmatpush1.msra.mxu0 0.0
    %6555 = vmatprep.subr.mxu0 0.0
    %6556 = vmatpush1.msra.mxu0 0.0
    %6557 = vmatprep.subr.mxu0 0.0
    %6558 = vmatpush1.msra.mxu0 0.0
    %6559 = vmatprep.subr.mxu0 0.0
    %6560 = vmatpush1.msra.mxu0 0.0
    %6561 = vmatprep.subr.mxu0 0.0
    %6562 = vmatpush1.msra.mxu0 0.0
    %6563 = vmatprep.subr.mxu0 0.0
    %6564 = vmatpush1.msra.mxu0 0.0
    %6565 = vmatprep.subr.mxu0 0.0
    %6566 = vmatpush1.msra.mxu0 0.0
    %6567 = vmatprep.subr.mxu0 0.0
    %6568 = vmatpush1.msra.mxu0 0.0
    %6569 = vmatprep.subr.mxu0 0.0
    %6570 = vmatpush1.msra.mxu0 0.0
    %6571 = vmatprep.subr.mxu0 0.0
    %6572 = vmatpush1.msra.mxu0 0.0
    %6573 = vmatprep.mubr.f32.mxu0 0.0
    %6574 = vmatmul.mubr.f32.gmra.mrb[0].mxu0 %v6507
    %v6575 = vpop.f32.mrb[0].mxu0
    %v6576 = vadd.f32 0.0, %v6575
    %v6577 = vpop.f32.mrb[0].mxu0
    %6578 = vdwg.mxu0
    %6579 = vrot.lane.b32.xlu0 %v5334, 72
    %v6580 = vpop.permute.xlu0 %6579
    %v6583 = vsel %vm245, %v6502, 0
    %6585 = vmatprep.subr.mxu0 0.0
    %6586 = vmatpush1.msra.mxu0 %v6580
    %6587 = vmatprep.subr.mxu0 0.0
    %6588 = vmatpush1.msra.mxu0 0.0
    %6589 = vmatprep.subr.mxu0 0.0
    %6590 = vmatpush1.msra.mxu0 0.0
    %6591 = vmatprep.subr.mxu0 0.0
    %6592 = vmatpush1.msra.mxu0 0.0
    %6593 = vmatprep.subr.mxu0 0.0
    %6594 = vmatpush1.msra.mxu0 0.0
    %6595 = vmatprep.subr.mxu0 0.0
    %6596 = vmatpush1.msra.mxu0 0.0
    %6597 = vmatprep.subr.mxu0 0.0
    %6598 = vmatpush1.msra.mxu0 0.0
    %6599 = vmatprep.subr.mxu0 0.0
    %6600 = vmatpush1.msra.mxu0 0.0
    %6601 = vmatprep.subr.mxu0 0.0
    %6602 = vmatpush1.msra.mxu0 0.0
    %6603 = vmatprep.subr.mxu0 0.0
    %6604 = vmatpush1.msra.mxu0 0.0
    %6605 = vmatprep.subr.mxu0 0.0
    %6606 = vmatpush1.msra.mxu0 0.0
    %6607 = vmatprep.subr.mxu0 0.0
    %6608 = vmatpush1.msra.mxu0 0.0
    %6609 = vmatprep.subr.mxu0 0.0
    %6610 = vmatpush1.msra.mxu0 0.0
    %6611 = vmatprep.subr.mxu0 0.0
    %6612 = vmatpush1.msra.mxu0 0.0
    %6613 = vmatprep.subr.mxu0 0.0
    %6614 = vmatpush1.msra.mxu0 0.0
    %6615 = vmatprep.subr.mxu0 0.0
    %6616 = vmatpush1.msra.mxu0 0.0
    %6617 = vmatprep.subr.mxu0 0.0
    %6618 = vmatpush1.msra.mxu0 0.0
    %6619 = vmatprep.subr.mxu0 0.0
    %6620 = vmatpush1.msra.mxu0 0.0
    %6621 = vmatprep.subr.mxu0 0.0
    %6622 = vmatpush1.msra.mxu0 0.0
    %6623 = vmatprep.subr.mxu0 0.0
    %6624 = vmatpush1.msra.mxu0 0.0
    %6625 = vmatprep.subr.mxu0 0.0
    %6626 = vmatpush1.msra.mxu0 0.0
    %6627 = vmatprep.subr.mxu0 0.0
    %6628 = vmatpush1.msra.mxu0 0.0
    %6629 = vmatprep.subr.mxu0 0.0
    %6630 = vmatpush1.msra.mxu0 0.0
    %6631 = vmatprep.subr.mxu0 0.0
    %6632 = vmatpush1.msra.mxu0 0.0
    %6633 = vmatprep.subr.mxu0 0.0
    %6634 = vmatpush1.msra.mxu0 0.0
    %6635 = vmatprep.subr.mxu0 0.0
    %6636 = vmatpush1.msra.mxu0 0.0
    %6637 = vmatprep.subr.mxu0 0.0
    %6638 = vmatpush1.msra.mxu0 0.0
    %6639 = vmatprep.subr.mxu0 0.0
    %6640 = vmatpush1.msra.mxu0 0.0
    %6641 = vmatprep.subr.mxu0 0.0
    %6642 = vmatpush1.msra.mxu0 0.0
    %6643 = vmatprep.subr.mxu0 0.0
    %6644 = vmatpush1.msra.mxu0 0.0
    %6645 = vmatprep.subr.mxu0 0.0
    %6646 = vmatpush1.msra.mxu0 0.0
    %6647 = vmatprep.subr.mxu0 0.0
    %6648 = vmatpush1.msra.mxu0 0.0
    %6649 = vmatprep.mubr.f32.mxu0 0.0
    %6650 = vmatmul.mubr.f32.gmra.mrb[0].mxu0 %v6583
    %v6651 = vpop.f32.mrb[0].mxu0
    %v6652 = vadd.f32 0.0, %v6651
    %v6653 = vpop.f32.mrb[0].mxu0
    %6654 = vdwg.mxu0
    %6657 = vrot.lane.b32.xlu0 %v5916, 8
    %v6658 = vpop.permute.xlu0 %6657
    %6659 = vrot.lane.b32.xlu0 %v5992, 8
    %v6660 = vpop.permute.xlu0 %6659
    %6665 = vrot.lane.b32.xlu0 %v6246, 16
    %v6666 = vpop.permute.xlu0 %6665
    %6667 = vrot.lane.b32.xlu0 %v6322, 16
    %v6668 = vpop.permute.xlu0 %6667
    %6673 = vrot.lane.b32.xlu0 %v6576, 24
    %v6674 = vpop.permute.xlu0 %6673
    %6675 = vrot.lane.b32.xlu0 %v6652, 24
    %v6676 = vpop.permute.xlu0 %6675
    %v6679 = vsel %vm245, %v5586, %v6658
    %v6680 = vsel %vm245, %v5662, %v6660
    %v6681 = vsel %vm1589, %v6679, %v6666
    %v6682 = vsel %vm1589, %v6680, %v6668
    %v6683 = vsel %vm1592, %v6681, %v6674
    %v6684 = vsel %vm1592, %v6682, %v6676
    %v6685 = vlaneseq
    %v6686 = vshrl.u32 %v6685, 7
    %v6687 = vsub.s32 5, %v6686
    %v6688 = vrot.slane %v3570, %v6687
    %v6690 = vsel %vm158, %v6683, 0
    %v6693 = vsel %vm158, %v6684, 0
    %6695 = vmatprep.subr.mxu0 0.0
    %6696 = vmatpush1.msra.mxu0 %v3593
    %6697 = vmatprep.subr.mxu0 0.0
    %6698 = vmatpush1.msra.mxu0 %v3594
    %6699 = vmatprep.subr.mxu0 0.0
    %6700 = vmatpush1.msra.mxu0 %v3595
    %6701 = vmatprep.subr.mxu0 0.0
    %6702 = vmatpush1.msra.mxu0 %v3596
    %6703 = vmatprep.subr.mxu0 0.0
    %6704 = vmatpush1.msra.mxu0 0.0
    %6705 = vmatprep.subr.mxu0 0.0
    %6706 = vmatpush1.msra.mxu0 0.0
    %6707 = vmatprep.subr.mxu0 0.0
    %6708 = vmatpush1.msra.mxu0 0.0
    %6709 = vmatprep.subr.mxu0 0.0
    %6710 = vmatpush1.msra.mxu0 0.0
    %6711 = vmatprep.subr.mxu0 0.0
    %6712 = vmatpush1.msra.mxu0 0.0
    %6713 = vmatprep.subr.mxu0 0.0
    %6714 = vmatpush1.msra.mxu0 0.0
    %6715 = vmatprep.subr.mxu0 0.0
    %6716 = vmatpush1.msra.mxu0 0.0
    %6717 = vmatprep.subr.mxu0 0.0
    %6718 = vmatpush1.msra.mxu0 0.0
    %6719 = vmatprep.subr.mxu0 0.0
    %6720 = vmatpush1.msra.mxu0 0.0
    %6721 = vmatprep.subr.mxu0 0.0
    %6722 = vmatpush1.msra.mxu0 0.0
    %6723 = vmatprep.subr.mxu0 0.0
    %6724 = vmatpush1.msra.mxu0 0.0
    %6725 = vmatprep.subr.mxu0 0.0
    %6726 = vmatpush1.msra.mxu0 0.0
    %6727 = vmatprep.subr.mxu0 0.0
    %6728 = vmatpush1.msra.mxu0 0.0
    %6729 = vmatprep.subr.mxu0 0.0
    %6730 = vmatpush1.msra.mxu0 0.0
    %6731 = vmatprep.subr.mxu0 0.0
    %6732 = vmatpush1.msra.mxu0 0.0
    %6733 = vmatprep.subr.mxu0 0.0
    %6734 = vmatpush1.msra.mxu0 0.0
    %6735 = vmatprep.subr.mxu0 0.0
    %6736 = vmatpush1.msra.mxu0 0.0
    %6737 = vmatprep.subr.mxu0 0.0
    %6738 = vmatpush1.msra.mxu0 0.0
    %6739 = vmatprep.subr.mxu0 0.0
    %6740 = vmatpush1.msra.mxu0 0.0
    %6741 = vmatprep.subr.mxu0 0.0
    %6742 = vmatpush1.msra.mxu0 0.0
    %6743 = vmatprep.subr.mxu0 0.0
    %6744 = vmatpush1.msra.mxu0 0.0
    %6745 = vmatprep.subr.mxu0 0.0
    %6746 = vmatpush1.msra.mxu0 0.0
    %6747 = vmatprep.subr.mxu0 0.0
    %6748 = vmatpush1.msra.mxu0 0.0
    %6749 = vmatprep.subr.mxu0 0.0
    %6750 = vmatpush1.msra.mxu0 0.0
    %6751 = vmatprep.subr.mxu0 0.0
    %6752 = vmatpush1.msra.mxu0 0.0
    %6753 = vmatprep.subr.mxu0 0.0
    %6754 = vmatpush1.msra.mxu0 0.0
    %6755 = vmatprep.subr.mxu0 0.0
    %6756 = vmatpush1.msra.mxu0 0.0
    %6757 = vmatprep.subr.mxu0 0.0
    %6758 = vmatpush1.msra.mxu0 0.0
    %6759 = vmatprep.mubr.f32.mxu0 0.0
    %6760 = vmatmul.mubr.f32.gmra.mrb[0].mxu0 %v6690
    %v6761 = vpop.f32.mrb[0].mxu0
    %v6762 = vadd.f32 %v6688, %v6761
    %v6763 = vpop.f32.mrb[0].mxu0
    %6764 = vmatprep.mubr.f32.mxu0 0.0
    %6765 = vmatmul.mubr.f32.gmra.mrb[0].mxu0 %v6693
    %v6766 = vpop.f32.mrb[0].mxu0
    %v6767 = vadd.f32 %v6688, %v6766
    %v6768 = vpop.f32.mrb[0].mxu0
    %6769 = vdwg.mxu0
    %v6770 = vadd.f32 %v5171, %v6762
    %v6771 = vadd.f32 %v5172, %v6767
    %v6772 = vsel %vm158, %v6770, 0.0
    %6773 = vadd.xlane.f32.xlu0 %v6772
    %v6774 = vpop.xlane.xlu0 %6773
    %v6775 = vsel %vm158, %v6771, 0.0
    %6776 = vadd.xlane.f32.xlu0 %v6775
    %v6777 = vpop.xlane.xlu0 %6776
    %v6778 = vmul.f32 %v6774, %v1688
    %v6779 = vmul.f32 %v6777, %v1688
    %v6780 = vsub.f32 %v6770, %v6778
    %v6781 = vsub.f32 %v6771, %v6779
    %v6782 = vmul.f32 %v6780, %v6780
    %v6783 = vmul.f32 %v6781, %v6781
    %v6784 = vsel %vm158, %v6782, 0.0
    %6785 = vadd.xlane.f32.xlu0 %v6784
    %v6786 = vpop.xlane.xlu0 %6785
    %v6787 = vsel %vm158, %v6783, 0.0
    %6788 = vadd.xlane.f32.xlu0 %v6787
    %v6789 = vpop.xlane.xlu0 %6788
    %v6790 = vmul.f32 %v6786, %v1688
    %v6791 = vmul.f32 %v6789, %v1688
    %v6792 = vadd.f32 %v6790, 1e-05
    %v6793 = vadd.f32 %v6791, 1e-05
    %v6794 = vrsqrt.pop %v6792
    %v6795 = vrsqrt.pop %v6793
    %v6796 = vmul.f32 %v6780, %v6794
    %v6797 = vmul.f32 %v6781, %v6795
    %v6798 = vmul.f32 %v6796, %v5164
    %v6799 = vmul.f32 %v6797, %v5164
    %v6800 = vadd.f32 %v6798, %v5170
    %v6801 = vadd.f32 %v6799, %v5170
    %v6802 = vlaneseq
    %v6803 = vshrl.u32 %v6802, 7
    %v6804 = vsub.s32 2, %v6803
    %v6805 = vrot.slane %v3570, %v6804
    %v6807 = vsel %vm158, %v6800, 0
    %v6810 = vsel %vm158, %v6801, 0
    %6812 = vmatprep.subr.mxu0 0.0
    %6813 = vmatpush1.msra.mxu0 %v3598
    %6814 = vmatprep.subr.mxu0 0.0
    %6815 = vmatpush1.msra.mxu0 %v3599
    %6816 = vmatprep.subr.mxu0 0.0
    %6817 = vmatpush1.msra.mxu0 %v3600
    %6818 = vmatprep.subr.mxu0 0.0
    %6819 = vmatpush1.msra.mxu0 %v3601
    %6820 = vmatprep.subr.mxu0 0.0
    %6821 = vmatpush1.msra.mxu0 0.0
    %6822 = vmatprep.subr.mxu0 0.0
    %6823 = vmatpush1.msra.mxu0 0.0
    %6824 = vmatprep.subr.mxu0 0.0
    %6825 = vmatpush1.msra.mxu0 0.0
    %6826 = vmatprep.subr.mxu0 0.0
    %6827 = vmatpush1.msra.mxu0 0.0
    %6828 = vmatprep.subr.mxu0 0.0
    %6829 = vmatpush1.msra.mxu0 0.0
    %6830 = vmatprep.subr.mxu0 0.0
    %6831 = vmatpush1.msra.mxu0 0.0
    %6832 = vmatprep.subr.mxu0 0.0
    %6833 = vmatpush1.msra.mxu0 0.0
    %6834 = vmatprep.subr.mxu0 0.0
    %6835 = vmatpush1.msra.mxu0 0.0
    %6836 = vmatprep.subr.mxu0 0.0
    %6837 = vmatpush1.msra.mxu0 0.0
    %6838 = vmatprep.subr.mxu0 0.0
    %6839 = vmatpush1.msra.mxu0 0.0
    %6840 = vmatprep.subr.mxu0 0.0
    %6841 = vmatpush1.msra.mxu0 0.0
    %6842 = vmatprep.subr.mxu0 0.0
    %6843 = vmatpush1.msra.mxu0 0.0
    %6844 = vmatprep.subr.mxu0 0.0
    %6845 = vmatpush1.msra.mxu0 0.0
    %6846 = vmatprep.subr.mxu0 0.0
    %6847 = vmatpush1.msra.mxu0 0.0
    %6848 = vmatprep.subr.mxu0 0.0
    %6849 = vmatpush1.msra.mxu0 0.0
    %6850 = vmatprep.subr.mxu0 0.0
    %6851 = vmatpush1.msra.mxu0 0.0
    %6852 = vmatprep.subr.mxu0 0.0
    %6853 = vmatpush1.msra.mxu0 0.0
    %6854 = vmatprep.subr.mxu0 0.0
    %6855 = vmatpush1.msra.mxu0 0.0
    %6856 = vmatprep.subr.mxu0 0.0
    %6857 = vmatpush1.msra.mxu0 0.0
    %6858 = vmatprep.subr.mxu0 0.0
    %6859 = vmatpush1.msra.mxu0 0.0
    %6860 = vmatprep.subr.mxu0 0.0
    %6861 = vmatpush1.msra.mxu0 0.0
    %6862 = vmatprep.subr.mxu0 0.0
    %6863 = vmatpush1.msra.mxu0 0.0
    %6864 = vmatprep.subr.mxu0 0.0
    %6865 = vmatpush1.msra.mxu0 0.0
    %6866 = vmatprep.subr.mxu0 0.0
    %6867 = vmatpush1.msra.mxu0 0.0
    %6868 = vmatprep.subr.mxu0 0.0
    %6869 = vmatpush1.msra.mxu0 0.0
    %6870 = vmatprep.subr.mxu0 0.0
    %6871 = vmatpush1.msra.mxu0 0.0
    %6872 = vmatprep.subr.mxu0 0.0
    %6873 = vmatpush1.msra.mxu0 0.0
    %6874 = vmatprep.subr.mxu0 0.0
    %6875 = vmatpush1.msra.mxu0 0.0
    %6876 = vmatprep.mubr.f32.mxu0 0.0
    %6877 = vmatmul.mubr.f32.gmra.mrb[0].mxu0 %v6807
    %v6878 = vpop.f32.mrb[0].mxu0
    %v6879 = vadd.f32 %v6805, %v6878
    %v6880 = vpop.f32.mrb[0].mxu0
    %6881 = vmatprep.mubr.f32.mxu0 0.0
    %6882 = vmatmul.mubr.f32.gmra.mrb[0].mxu0 %v6810
    %v6883 = vpop.f32.mrb[0].mxu0
    %v6884 = vadd.f32 %v6805, %v6883
    %v6885 = vpop.f32.mrb[0].mxu0
    %6886 = vdwg.mxu0
    %v6887 = vmax.f32 %v6879, 0.0
    %v6888 = vmax.f32 %v6884, 0.0
    %v6889 = vlaneseq
    %v6890 = vshrl.u32 %v6889, 7
    %v6891 = vsub.s32 6, %v6890
    %v6892 = vrot.slane %v3570, %v6891
    %v6894 = vsel %vm3447, %v6887, 0
    %v6897 = vsel %vm3447, %v6888, 0
    %6899 = vmatprep.subr.mxu0 0.0
    %6900 = vmatpush1.msra.mxu0 %v3603
    %6901 = vmatprep.subr.mxu0 0.0
    %6902 = vmatpush1.msra.mxu0 %v3604
    %6903 = vmatprep.subr.mxu0 0.0
    %6904 = vmatpush1.msra.mxu0 %v3605
    %6905 = vmatprep.subr.mxu0 0.0
    %6906 = vmatpush1.msra.mxu0 %v3606
    %6907 = vmatprep.subr.mxu0 0.0
    %6908 = vmatpush1.msra.mxu0 %v3607
    %6909 = vmatprep.subr.mxu0 0.0
    %6910 = vmatpush1.msra.mxu0 %v3608
    %6911 = vmatprep.subr.mxu0 0.0
    %6912 = vmatpush1.msra.mxu0 %v3609
    %6913 = vmatprep.subr.mxu0 0.0
    %6914 = vmatpush1.msra.mxu0 %v3610
    %6915 = vmatprep.subr.mxu0 0.0
    %6916 = vmatpush1.msra.mxu0 0.0
    %6917 = vmatprep.subr.mxu0 0.0
    %6918 = vmatpush1.msra.mxu0 0.0
    %6919 = vmatprep.subr.mxu0 0.0
    %6920 = vmatpush1.msra.mxu0 0.0
    %6921 = vmatprep.subr.mxu0 0.0
    %6922 = vmatpush1.msra.mxu0 0.0
    %6923 = vmatprep.subr.mxu0 0.0
    %6924 = vmatpush1.msra.mxu0 0.0
    %6925 = vmatprep.subr.mxu0 0.0
    %6926 = vmatpush1.msra.mxu0 0.0
    %6927 = vmatprep.subr.mxu0 0.0
    %6928 = vmatpush1.msra.mxu0 0.0
    %6929 = vmatprep.subr.mxu0 0.0
    %6930 = vmatpush1.msra.mxu0 0.0
    %6931 = vmatprep.subr.mxu0 0.0
    %6932 = vmatpush1.msra.mxu0 0.0
    %6933 = vmatprep.subr.mxu0 0.0
    %6934 = vmatpush1.msra.mxu0 0.0
    %6935 = vmatprep.subr.mxu0 0.0
    %6936 = vmatpush1.msra.mxu0 0.0
    %6937 = vmatprep.subr.mxu0 0.0
    %6938 = vmatpush1.msra.mxu0 0.0
    %6939 = vmatprep.subr.mxu0 0.0
    %6940 = vmatpush1.msra.mxu0 0.0
    %6941 = vmatprep.subr.mxu0 0.0
    %6942 = vmatpush1.msra.mxu0 0.0
    %6943 = vmatprep.subr.mxu0 0.0
    %6944 = vmatpush1.msra.mxu0 0.0
    %6945 = vmatprep.subr.mxu0 0.0
    %6946 = vmatpush1.msra.mxu0 0.0
    %6947 = vmatprep.subr.mxu0 0.0
    %6948 = vmatpush1.msra.mxu0 0.0
    %6949 = vmatprep.subr.mxu0 0.0
    %6950 = vmatpush1.msra.mxu0 0.0
    %6951 = vmatprep.subr.mxu0 0.0
    %6952 = vmatpush1.msra.mxu0 0.0
    %6953 = vmatprep.subr.mxu0 0.0
    %6954 = vmatpush1.msra.mxu0 0.0
    %6955 = vmatprep.subr.mxu0 0.0
    %6956 = vmatpush1.msra.mxu0 0.0
    %6957 = vmatprep.subr.mxu0 0.0
    %6958 = vmatpush1.msra.mxu0 0.0
    %6959 = vmatprep.subr.mxu0 0.0
    %6960 = vmatpush1.msra.mxu0 0.0
    %6961 = vmatprep.subr.mxu0 0.0
    %6962 = vmatpush1.msra.mxu0 0.0
    %6963 = vmatprep.mubr.f32.mxu0 0.0
    %6964 = vmatmul.mubr.f32.gmra.mrb[0].mxu0 %v6894
    %v6965 = vpop.f32.mrb[0].mxu0
    %v6966 = vadd.f32 %v6892, %v6965
    %v6967 = vpop.f32.mrb[0].mxu0
    %6968 = vmatprep.mubr.f32.mxu0 0.0
    %6969 = vmatmul.mubr.f32.gmra.mrb[0].mxu0 %v6897
    %v6970 = vpop.f32.mrb[0].mxu0
    %v6971 = vadd.f32 %v6892, %v6970
    %v6972 = vpop.f32.mrb[0].mxu0
    %6973 = vdwg.mxu0
    %v6974 = vadd.f32 %v6800, %v6966
    %v6975 = vadd.f32 %v6801, %v6971
    %v6976 = vsel %vm158, %v6974, 0.0
    %6977 = vadd.xlane.f32.xlu0 %v6976
    %v6978 = vpop.xlane.xlu0 %6977
    %v6979 = vsel %vm158, %v6975, 0.0
    %6980 = vadd.xlane.f32.xlu0 %v6979
    %v6981 = vpop.xlane.xlu0 %6980
    %v6982 = vmul.f32 %v6978, %v1688
    %v6983 = vmul.f32 %v6981, %v1688
    %v6984 = vsub.f32 %v6974, %v6982
    %v6985 = vsub.f32 %v6975, %v6983
    %v6986 = vmul.f32 %v6984, %v6984
    %v6987 = vmul.f32 %v6985, %v6985
    %v6988 = vsel %vm158, %v6986, 0.0
    %6989 = vadd.xlane.f32.xlu0 %v6988
    %v6990 = vpop.xlane.xlu0 %6989
    %v6991 = vsel %vm158, %v6987, 0.0
    %6992 = vadd.xlane.f32.xlu0 %v6991
    %v6993 = vpop.xlane.xlu0 %6992
    %v6994 = vmul.f32 %v6990, %v1688
    %v6995 = vmul.f32 %v6993, %v1688
    %v6996 = vadd.f32 %v6994, 1e-05
    %v6997 = vadd.f32 %v6995, 1e-05
    %v6998 = vrsqrt.pop %v6996
    %v6999 = vrsqrt.pop %v6997
    %v7000 = vmul.f32 %v6984, %v6998
    %v7001 = vmul.f32 %v6985, %v6999
    %v7002 = vlaneseq
    %v7003 = vshrl.u32 %v7002, 7
    %v7004 = vsub.s32 1, %v7003
    %v7005 = vrot.slane %v3571, %v7004
    %v7006 = vmul.f32 %v7000, %v7005
    %v7007 = vmul.f32 %v7001, %v7005
    %v7008 = vlaneseq
    %v7009 = vshrl.u32 %v7008, 7
    %v7010 = vsub.s32 2, %v7009
    %v7011 = vrot.slane %v3571, %v7010
    %v7012 = vadd.f32 %v7006, %v7011
    %v7013 = vadd.f32 %v7007, %v7011
    %7014 = vst.msk [vmem:[#allocation13] sm:$0xff] %vm158, %v7012
    %7015 = vst.msk [vmem:[#allocation13 + $0x8] sm:$0xff] %vm158, %v7013
    // Predicated region
    $region62: #{tpu_custom_call.1} parent=1 // pred_check
      _
    $region63: #{tpu_custom_call.1} parent=1 // pred_check_branch
      %7017 = sbr.rel (0) target = $region65
    $region64: #{tpu_custom_call.1} parent=1 // pred_region
      %s7019 = ssub.s32 256, 256
      %7020 = vsyncadd [#allocation4], %s7019
      %s7021 = sshll.u32 [#allocation13], 4
      %s7022 = int_to_ptr.vmem [resolvable:$true] %s7021
      %7027 = dma.vmem_to_hbm [thread:$0]  %s7022, 256, %s9, [#allocation4], 128, 128, 8
    $region65: #{tpu_custom_call.1} parent=1 // pred_fallthru
      _
    // Predicated region
    $region66: #{tpu_custom_call.1} parent=1 // pred_check
      _
    $region67: #{tpu_custom_call.1} parent=1 // pred_check_branch
      %7029 = sbr.rel (0) target = $region69
    $region68: #{tpu_custom_call.1} parent=1 // pred_region
      %7030 = dma.done [#allocation4], 256
    $region69: #{tpu_custom_call.1} parent=1 // pred_fallthru
      _
    %7031 = vsyncpa [#allocation3], 1
    %7032 = vsyncpa [#allocation6], 1
    %7033 = vsyncpa [#allocation9], 1
    %7034 = vsyncpa [#allocation12], 1
    %7035 = vsyncpa [#allocation4], 1

</llo_original>
